<compile_context>
chip_gen: v6e
topology: v6e:2x2x1
jax: 0.10.0
libtpu: 0.0.40
codegen_flags: <defaults>
</compile_context>

<pallas_src>
import functools
import math

import jax
import jax.numpy as jnp
from jax.experimental import pallas as pl
from jax.experimental.pallas import tpu as pltpu

G_MAX = 16  # TODO(synk): static upper bound on distinct instance ids per image (PyTorch has no bound)


# --------------------------------------------------------------------------
# tile-size helpers (exact divisors -> no pad copies, no partial blocks)
# --------------------------------------------------------------------------

def _pick_tile(n, max_tile=256):
    for t in (1024, 512, 384, 256, 192, 128, 96, 64, 48, 32, 24, 16, 8):
        if t <= max_tile and t <= n and n % t == 0:
            return t
    return n


def _pick_k_tile(k):
    # K tile must be a multiple of 128 (lane dim of the A block) unless it equals K.
    for t in (512, 384, 256, 128):
        if t <= k and k % t == 0:
            return t
    return k


def _pick_n_tile(n):
    # 256 feeds the 256-wide MXU on v6e/v7x; on v5e 128 would also be fine.
    for t in (256, 128):
        if t <= n and n % t == 0:
            return t
    return n


# --------------------------------------------------------------------------
# Pallas kernels
# --------------------------------------------------------------------------

def _conv_matmul_kernel(a_ref, b_ref, bias_ref, *rest, act, with_stats):
    """Tiled matmul with K-axis accumulation, fused bias / activation / BN statistics."""
    if with_stats:
        o_ref, sum_ref, sq_ref, acc_ref = rest
    else:
        o_ref, acc_ref = rest

    k = pl.program_id(2)
    nk = pl.num_programs(2)

    @pl.when(k == 0)
    def _init_acc():
        # bias folded into the accumulator init (no epilogue VPU add)
        acc_ref[...] = jnp.broadcast_to(bias_ref[...], acc_ref.shape)

    acc_ref[...] += jnp.dot(a_ref[...], b_ref[...], preferred_element_type=jnp.float32)

    if with_stats:
        @pl.when((pl.program_id(1) == 0) & (k == nk - 1))
        def _init_stats():
            sum_ref[...] = jnp.zeros_like(sum_ref)
            sq_ref[...] = jnp.zeros_like(sq_ref)

    @pl.when(k == nk - 1)
    def _epilogue():
        out = acc_ref[...]
        if act == "tanh":
            out = jnp.tanh(out)
        o_ref[...] = out.astype(o_ref.dtype)
        if with_stats:
            # per-channel statistics for the following BatchNorm (from the f32 accumulator)
            sum_ref[...] += jnp.sum(out, axis=0, keepdims=True)
            sq_ref[...] += jnp.sum(out * out, axis=0, keepdims=True)


def pallas_conv_matmul(a, b, bias, act="none", out_dtype=jnp.bfloat16, with_stats=True):
    """(M,K) @ (K,N) + bias in bf16 on the MXU with f32 accumulation.

    Returns (out (M,N), col_sums (N,), col_sumsq (N,)) when with_stats, otherwise
    (out, None, None). The column reductions are the BatchNorm statistics of the conv
    output, fused into the matmul epilogue."""
    M, K = a.shape
    _, N = b.shape
    TM = _pick_tile(M, max_tile=256)
    TK = _pick_k_tile(K)
    TN = _pick_n_tile(N)

    a = a.astype(jnp.bfloat16)
    b = b.astype(jnp.bfloat16)
    bias2 = bias.reshape(1, N).astype(jnp.float32)

    out_shape = [jax.ShapeDtypeStruct((M, N), out_dtype)]
    out_specs = [pl.BlockSpec((TM, TN), lambda j, i, k: (i, j))]
    if with_stats:
        out_shape += [jax.ShapeDtypeStruct((1, N), jnp.float32),
                      jax.ShapeDtypeStruct((1, N), jnp.float32)]
        out_specs += [pl.BlockSpec((1, TN), lambda j, i, k: (0, j)),
                      pl.BlockSpec((1, TN), lambda j, i, k: (0, j))]

    res = pl.pallas_call(
        functools.partial(_conv_matmul_kernel, act=act, with_stats=with_stats),
        out_shape=out_shape,
        grid=(N // TN, M // TM, K // TK),               # (j, i, k): reduction axis innermost
        in_specs=[pl.BlockSpec((TM, TK), lambda j, i, k: (i, k)),
                  pl.BlockSpec((TK, TN), lambda j, i, k: (k, j)),
                  pl.BlockSpec((1, TN), lambda j, i, k: (0, j))],
        out_specs=out_specs,
        scratch_shapes=[pltpu.VMEM((TM, TN), jnp.float32)],
        compiler_params=pltpu.CompilerParams(
            # j is independent (megacore-splittable); stats accumulate over i and k.
            dimension_semantics=("parallel", "arbitrary", "arbitrary")),
    )(a, b, bias2)

    if with_stats:
        out, sums, sqs = res
        return out, sums.reshape(N), sqs.reshape(N)
    return res[0], None, None


def _affine_relu_kernel(x_ref, scale_ref, shift_ref, o_ref):
    x = x_ref[...].astype(jnp.float32)
    o_ref[...] = jnp.maximum(x * scale_ref[...] + shift_ref[...], 0.0).astype(o_ref.dtype)


def pallas_affine_relu(x2d, scale, shift):
    """y = relu(x * scale + shift), per-channel. x2d: (M, C) bf16.

    Rows are folded into lanes so the store is lane-dense even for small C."""
    M, C = x2d.shape
    r = 128 // math.gcd(C, 128)
    if M % r != 0:
        r = 1
    rows = M // r
    xw = x2d.reshape(rows, r * C)
    sc = jnp.tile(scale, r).reshape(1, r * C).astype(jnp.float32)
    sh = jnp.tile(shift, r).reshape(1, r * C).astype(jnp.float32)
    TR = _pick_tile(rows, max_tile=1024)

    out = pl.pallas_call(
        _affine_relu_kernel,
        out_shape=jax.ShapeDtypeStruct((rows, r * C), x2d.dtype),
        grid=(rows // TR,),
        in_specs=[pl.BlockSpec((TR, r * C), lambda i: (i, 0)),
                  pl.BlockSpec((1, r * C), lambda i: (0, 0)),
                  pl.BlockSpec((1, r * C), lambda i: (0, 0))],
        out_specs=pl.BlockSpec((TR, r * C), lambda i: (i, 0)),
        compiler_params=pltpu.CompilerParams(dimension_semantics=("parallel",)),
    )(xw, sc, sh)
    return out.reshape(M, C)


def _segment_sum_kernel(seg_ref, feat_ref, sums_ref, *, g_max):
    @pl.when(pl.program_id(1) == 0)
    def _():
        sums_ref[...] = jnp.zeros_like(sums_ref)
    seg = seg_ref[0]                                                 # (TP, 1) int32
    feats = feat_ref[0]                                              # (TP, C) f32
    gid = jax.lax.broadcasted_iota(jnp.int32, (1, g_max), 1)
    onehot = (seg == gid).astype(jnp.float32)                        # (TP, G)
    aug = jnp.concatenate([feats, jnp.ones_like(feats[:, :1])], axis=1)   # (TP, C+1)
    sums_ref[0] += jax.lax.dot_general(                              # onehot^T @ aug  -> (G, C+1)
        onehot, aug, (((0,), (0,)), ((), ())),
        preferred_element_type=jnp.float32)


def _broadcast_mean_kernel(seg_ref, mean_ref, out_ref, *, g_max):
    seg = seg_ref[0]                                                 # (TP, 1) int32
    gid = jax.lax.broadcasted_iota(jnp.int32, (1, g_max), 1)
    onehot = (seg == gid).astype(jnp.float32)                        # (TP, G)
    out_ref[0] = jnp.dot(onehot, mean_ref[0], preferred_element_type=jnp.float32)


def instance_mean_pool(feats, inst, g_max=G_MAX):
    """Per-batch, per-instance-id mean pooling (replaces every pixel by its instance mean)."""
    B, H, W, C = feats.shape
    P = H * W
    inst_flat = inst.reshape(B, P).astype(jnp.int32)

    # jit-safe dense id remap (no host np.unique round-trip, no device->host sync)
    segs = []
    for bi in range(B):
        ids_b = jnp.unique(inst_flat[bi], size=g_max, fill_value=jnp.iinfo(jnp.int32).max)
        segs.append(jnp.searchsorted(ids_b, inst_flat[bi]).astype(jnp.int32))
    seg = jnp.stack(segs).reshape(B, P, 1)                           # (B, P, 1)

    feats_flat = feats.reshape(B, P, C).astype(jnp.float32)
    TP = _pick_tile(P, max_tile=1024)

    sums = pl.pallas_call(
        functools.partial(_segment_sum_kernel, g_max=g_max),
        out_shape=jax.ShapeDtypeStruct((B, g_max, C + 1), jnp.float32),
        grid=(B, P // TP),
        in_specs=[pl.BlockSpec((1, TP, 1), lambda b, i: (b, i, 0)),
                  pl.BlockSpec((1, TP, C), lambda b, i: (b, i, 0))],
        out_specs=pl.BlockSpec((1, g_max, C + 1), lambda b, i: (b, 0, 0)),
        compiler_params=pltpu.CompilerParams(dimension_semantics=("parallel", "arbitrary")),
    )(seg, feats_flat)

    cnt = sums[..., C:]
    mean = jnp.where(cnt > 0, sums[..., :C] / jnp.maximum(cnt, 1.0), 0.0)    # (B, G, C)

    pooled = pl.pallas_call(
        functools.partial(_broadcast_mean_kernel, g_max=g_max),
        out_shape=jax.ShapeDtypeStruct((B, P, C), jnp.float32),
        grid=(B, P // TP),
        in_specs=[pl.BlockSpec((1, TP, 1), lambda b, i: (b, i, 0)),
                  pl.BlockSpec((1, g_max, C), lambda b, i: (b, 0, 0))],
        out_specs=pl.BlockSpec((1, TP, C), lambda b, i: (b, i, 0)),
        compiler_params=pltpu.CompilerParams(dimension_semantics=("parallel", "parallel")),
    )(seg, mean)
    return pooled.reshape(B, H, W, C)


# --------------------------------------------------------------------------
# Convolution wrappers (im2col glue in JAX, all FLOPs in the Pallas matmul)
# --------------------------------------------------------------------------

def _im2col(x, k, s):
    # TODO(synk): the patch materialization inflates HBM traffic by k*k; a halo-windowed
    # direct-conv kernel (manual DMA on a pl.ANY input) would remove it entirely.
    B, H, W, C = x.shape
    Ho = (H - k) // s + 1
    Wo = (W - k) // s + 1
    cols = []
    for kh in range(k):
        for kw in range(k):
            cols.append(x[:, kh:kh + (Ho - 1) * s + 1:s, kw:kw + (Wo - 1) * s + 1:s, :])
    patches = jnp.stack(cols, axis=3)                                # (B, Ho, Wo, k*k, C)
    return patches.reshape(B * Ho * Wo, k * k * C), (B, Ho, Wo)


def conv2d(x, w, b, stride, padding, pad_mode="constant", act="none",
           out_dtype=jnp.bfloat16, with_stats=True):
    """x: NHWC (bf16). w in PyTorch Conv2d layout (Cout, Cin, kH, kW)."""
    cout, cin, k, _ = w.shape
    if padding > 0:
        x = jnp.pad(x, ((0, 0), (padding, padding), (padding, padding), (0, 0)), mode=pad_mode)
    patches, (B, Ho, Wo) = _im2col(x, k, stride)
    w_mat = jnp.transpose(w, (2, 3, 1, 0)).reshape(k * k * cin, cout)
    out, sums, sqs = pallas_conv_matmul(patches, w_mat, b, act=act,
                                        out_dtype=out_dtype, with_stats=with_stats)
    return out.reshape(B, Ho, Wo, cout), sums, sqs


def conv_transpose2d(x, w, b, out_dtype=jnp.bfloat16):
    """Sub-pixel decomposition of ConvTranspose2d(k=3, stride=2, padding=1, output_padding=1).

    One matmul on the low-res grid produces all 4 output phases; no zero-stuffed upsample
    (75% of those MACs / DMA are structural zeros). w layout: (Cin, Cout, 3, 3)."""
    B, H, W, Cin = x.shape
    Cout = w.shape[1]
    xp = jnp.pad(x, ((0, 0), (0, 1), (0, 1), (0, 0)))                # one trailing zero row/col
    cols = [xp[:, dy:dy + H, dx:dx + W, :] for dy in (0, 1) for dx in (0, 1)]
    patches = jnp.concatenate(cols, axis=-1).reshape(B * H * W, 4 * Cin)

    # combined weight: rows blocked by window offset (dy,dx), cols blocked by phase (pi,pj)
    wb = jnp.zeros((4, Cin, 4, Cout), w.dtype)
    tap = lambda th, tw: w[:, :, th, tw]
    wb = wb.at[0, :, 0, :].set(tap(1, 1))                            # (even, even)
    wb = wb.at[0, :, 1, :].set(tap(1, 2))                            # (even, odd)
    wb = wb.at[1, :, 1, :].set(tap(1, 0))
    wb = wb.at[0, :, 2, :].set(tap(2, 1))                            # (odd, even)
    wb = wb.at[2, :, 2, :].set(tap(0, 1))
    wb = wb.at[0, :, 3, :].set(tap(2, 2))                            # (odd, odd)
    wb = wb.at[1, :, 3, :].set(tap(2, 0))
    wb = wb.at[2, :, 3, :].set(tap(0, 2))
    wb = wb.at[3, :, 3, :].set(tap(0, 0))
    w_mat = wb.reshape(4 * Cin, 4 * Cout)

    out, sums, sqs = pallas_conv_matmul(patches, w_mat, jnp.tile(b, 4),
                                        act="none", out_dtype=out_dtype, with_stats=True)
    y = (out.reshape(B, H, W, 2, 2, Cout)
            .transpose(0, 1, 3, 2, 4, 5)
            .reshape(B, 2 * H, 2 * W, Cout))
    # BN statistics per channel = sum of the four phase blocks
    return y, sums.reshape(4, Cout).sum(0), sqs.reshape(4, Cout).sum(0)


def batchnorm_relu(y, sums, sqs, gamma, beta, eps=1e-5):
    """Training-mode BatchNorm (batch statistics) + ReLU using the fused matmul statistics."""
    B, H, W, C = y.shape
    count = B * H * W
    mean = sums / count
    # NOTE: E[x^2]-E[x]^2 can cancel in f32; clamp at 0 (eps guards the rsqrt).
    var = jnp.maximum(sqs / count - mean * mean, 0.0)
    scale = gamma / jnp.sqrt(var + eps)
    shift = beta - mean * scale
    out = pallas_affine_relu(y.reshape(-1, C), scale, shift)
    return out.reshape(B, H, W, C)


# --------------------------------------------------------------------------
# Parameters (deterministic synthetic init)
# --------------------------------------------------------------------------

def init_params(key, input_nc, output_nc, ngf, n_down):
    params = {}

    def nxt():
        nonlocal key
        key, sub = jax.random.split(key)
        return sub

    def conv_p(cin, cout, k):
        fan = cin * k * k
        w = jax.random.normal(nxt(), (cout, cin, k, k), jnp.float32) / math.sqrt(fan)
        b = jax.random.normal(nxt(), (cout,), jnp.float32) * 0.01
        return w, b

    def convT_p(cin, cout, k):
        fan = cin * k * k
        w = jax.random.normal(nxt(), (cin, cout, k, k), jnp.float32) / math.sqrt(fan)
        b = jax.random.normal(nxt(), (cout,), jnp.float32) * 0.01
        return w, b

    def bn_p(c):
        return jnp.ones((c,), jnp.float32), jnp.zeros((c,), jnp.float32)

    params["c0"], params["bn0"] = conv_p(input_nc, ngf, 7), bn_p(ngf)
    for i in range(n_down):
        mult = 2 ** i
        params[f"down{i}"] = conv_p(ngf * mult, ngf * mult * 2, 3)
        params[f"bnd{i}"] = bn_p(ngf * mult * 2)
    for i in range(n_down):
        mult = 2 ** (n_down - i)
        params[f"up{i}"] = convT_p(ngf * mult, ngf * mult // 2, 3)
        params[f"bnu{i}"] = bn_p(ngf * mult // 2)
    params["cf"] = conv_p(ngf, output_nc, 7)
    return params


# --------------------------------------------------------------------------
# Full Encoder forward (jit-compatible end to end)
# --------------------------------------------------------------------------

def encoder_forward_impl(params, x_nchw, inst, output_nc, n_down):
    del output_nc  # channel count is implied by the parameter shapes
    x = jnp.transpose(x_nchw, (0, 2, 3, 1)).astype(jnp.bfloat16)     # NCHW -> NHWC

    # ReflectionPad2d(3) + Conv2d(input_nc, ngf, 7) + BN + ReLU
    w, b = params["c0"]
    y, s1, s2 = conv2d(x, w, b, stride=1, padding=3, pad_mode="reflect")
    x = batchnorm_relu(y, s1, s2, *params["bn0"])

    # downsampling
    for i in range(n_down):
        w, b = params[f"down{i}"]
        y, s1, s2 = conv2d(x, w, b, stride=2, padding=1)
        x = batchnorm_relu(y, s1, s2, *params[f"bnd{i}"])

    # upsampling (sub-pixel ConvTranspose)
    for i in range(n_down):
        w, b = params[f"up{i}"]
        y, s1, s2 = conv_transpose2d(x, w, b)
        x = batchnorm_relu(y, s1, s2, *params[f"bnu{i}"])

    # ReflectionPad2d(3) + Conv2d(ngf, output_nc, 7) + Tanh (fused in the matmul epilogue)
    w, b = params["cf"]
    y, _, _ = conv2d(x, w, b, stride=1, padding=3, pad_mode="reflect",
                     act="tanh", out_dtype=jnp.float32, with_stats=False)   # (B,H,W,out_nc) f32

    out_mean = instance_mean_pool(y, inst)
    return jnp.transpose(out_mean, (0, 3, 1, 2))                     # NHWC -> NCHW


encoder_forward = jax.jit(encoder_forward_impl, static_argnames=("output_nc", "n_down"))


# --------------------------------------------------------------------------

if __name__ == "__main__":
    key = jax.random.PRNGKey(0)
    B, input_nc, output_nc, ngf, n_down = 2, 4, 3, 8, 4
    H = W = 16                                   # must be divisible by 2**n_down

    k_in, k_inst, k_par = jax.random.split(key, 3)
    x = jax.random.normal(k_in, (B, input_nc, H, W), jnp.float32)
    inst = jax.random.randint(k_inst, (B, 1, H, W), 0, 3, dtype=jnp.int32)
    params = init_params(k_par, input_nc, output_nc, ngf, n_down)

    out = encoder_forward(params, x, inst, output_nc=output_nc, n_down=n_down)
    out = jax.block_until_ready(out)

    assert out.shape == (B, output_nc, H, W), out.shape
    assert bool(jnp.all(jnp.isfinite(out)))
    print("KERNEL_OK")
</pallas_src>

<mosaic_0001>
module attributes {stable_mosaic.version = 11 : i64} {
  func.func private @main(%arg0: i32) attributes {dimension_semantics = [#tpu.dimension_semantics<core_parallel>], iteration_bounds = array<i64: 2>, tpu.core_type = #tpu.core_type<sc_scalar_subcore>, window_params = []} {
    return
  }
}

module attributes {stable_mosaic.version = 11 : i64} {
  func.func private @main(%arg0: i32) attributes {dimension_semantics = [#tpu.dimension_semantics<core_parallel>], iteration_bounds = array<i64: 2>, tpu.core_type = #tpu.core_type<sc_scalar_subcore>, window_params = []} {
    return
  }
}

module attributes {stable_mosaic.version = 11 : i64} {
  func.func @_conv_matmul_kernel(%arg0: i32, %arg1: i32, %arg2: i32, %arg3: memref<256x196xbf16, #tpu.memory_space<vmem>>, %arg4: memref<196x8xbf16, #tpu.memory_space<vmem>>, %arg5: memref<1x8xf32, #tpu.memory_space<vmem>>, %arg6: memref<256x8xbf16, #tpu.memory_space<vmem>>, %arg7: memref<1x8xf32, #tpu.memory_space<vmem>>, %arg8: memref<1x8xf32, #tpu.memory_space<vmem>>, %arg9: memref<256x8xf32, #tpu.memory_space<vmem>>) attributes {dimension_semantics = [#tpu.dimension_semantics<parallel>, #tpu.dimension_semantics<arbitrary>, #tpu.dimension_semantics<arbitrary>], iteration_bounds = array<i64: 1, 2, 1>, scalar_prefetch = 0 : i64, scratch_operands = 1 : i64, tpu.core_type = #tpu.core_type<tc>, window_params = [{transform_indices = @transform_0, window_bounds = array<i64: 256, 196>}, {transform_indices = @transform_1, window_bounds = array<i64: 196, 8>}, {transform_indices = @transform_2, window_bounds = array<i64: 1, 8>}, {transform_indices = @transform_3, window_bounds = array<i64: 256, 8>}, {transform_indices = @transform_4, window_bounds = array<i64: 1, 8>}, {transform_indices = @transform_5, window_bounds = array<i64: 1, 8>}]} {
    %c0_i32 = arith.constant 0 : i32
    %0 = arith.cmpi eq, %arg2, %c0_i32 : i32
    %1 = arith.extui %0 : i1 to i32
    %c0_i32_0 = arith.constant 0 : i32
    %2 = arith.cmpi ne, %1, %c0_i32_0 : i32
    scf.if %2 {
      %c0_13 = arith.constant 0 : index
      %c0_14 = arith.constant 0 : index
      %17 = vector.load %arg5[%c0_13, %c0_14] : memref<1x8xf32, #tpu.memory_space<vmem>>, vector<1x8xf32>
      %18 = vector.shape_cast %17 : vector<1x8xf32> to vector<1x8xf32>
      %19 = vector.broadcast %18 : vector<1x8xf32> to vector<256x8xf32>
      %c0_15 = arith.constant 0 : index
      %c0_16 = arith.constant 0 : index
      %20 = vector.load %arg9[%c0_15, %c0_16] : memref<256x8xf32, #tpu.memory_space<vmem>>, vector<256x8xf32>
      tpu.vector_store %arg9[%c0_15, %c0_16], %19 {strides = array<i32>} : memref<256x8xf32, #tpu.memory_space<vmem>>, vector<256x8xf32>,
    } else {
    }
    %c0 = arith.constant 0 : index
    %c0_1 = arith.constant 0 : index
    %3 = vector.load %arg9[%c0, %c0_1] : memref<256x8xf32, #tpu.memory_space<vmem>>, vector<256x8xf32>
    %c0_2 = arith.constant 0 : index
    %c0_3 = arith.constant 0 : index
    %4 = vector.load %arg3[%c0_2, %c0_3] : memref<256x196xbf16, #tpu.memory_space<vmem>>, vector<256x196xbf16>
    %c0_4 = arith.constant 0 : index
    %c0_5 = arith.constant 0 : index
    %5 = vector.load %arg4[%c0_4, %c0_5] : memref<196x8xbf16, #tpu.memory_space<vmem>>, vector<196x8xbf16>
    %cst = arith.constant dense<0.000000e+00> : vector<256x8xf32>
    %6 = tpu.matmul %4, %5, %cst {dimension_numbers = #tpu.dot_dimension_numbers<[1], [0], [0], [1], [0, 0, 1, 1], [], []>} : vector<256x196xbf16>, vector<196x8xbf16>, vector<256x8xf32> -> vector<256x8xf32>
    %7 = arith.addf %3, %6 : vector<256x8xf32>
    %c0_6 = arith.constant 0 : index
    %c0_7 = arith.constant 0 : index
    %8 = vector.load %arg9[%c0_6, %c0_7] : memref<256x8xf32, #tpu.memory_space<vmem>>, vector<256x8xf32>
    tpu.vector_store %arg9[%c0_6, %c0_7], %7 {strides = array<i32>} : memref<256x8xf32, #tpu.memory_space<vmem>>, vector<256x8xf32>,
    %c0_i32_8 = arith.constant 0 : i32
    %9 = arith.cmpi eq, %arg1, %c0_i32_8 : i32
    %c0_i32_9 = arith.constant 0 : i32
    %10 = arith.cmpi eq, %arg2, %c0_i32_9 : i32
    %11 = arith.andi %9, %10 : i1
    %12 = arith.extui %11 : i1 to i32
    %c0_i32_10 = arith.constant 0 : i32
    %13 = arith.cmpi ne, %12, %c0_i32_10 : i32
    scf.if %13 {
      %cst_13 = arith.constant 0.000000e+00 : f32
      %17 = vector.broadcast %cst_13 : f32 to vector<1x8xf32>
      %c0_14 = arith.constant 0 : index
      %c0_15 = arith.constant 0 : index
      %18 = vector.load %arg7[%c0_14, %c0_15] : memref<1x8xf32, #tpu.memory_space<vmem>>, vector<1x8xf32>
      tpu.vector_store %arg7[%c0_14, %c0_15], %17 {strides = array<i32>} : memref<1x8xf32, #tpu.memory_space<vmem>>, vector<1x8xf32>,
      %cst_16 = arith.constant 0.000000e+00 : f32
      %19 = vector.broadcast %cst_16 : f32 to vector<1x8xf32>
      %c0_17 = arith.constant 0 : index
      %c0_18 = arith.constant 0 : index
      %20 = vector.load %arg8[%c0_17, %c0_18] : memref<1x8xf32, #tpu.memory_space<vmem>>, vector<1x8xf32>
      tpu.vector_store %arg8[%c0_17, %c0_18], %19 {strides = array<i32>} : memref<1x8xf32, #tpu.memory_space<vmem>>, vector<1x8xf32>,
    } else {
    }
    %c0_i32_11 = arith.constant 0 : i32
    %14 = arith.cmpi eq, %arg2, %c0_i32_11 : i32
    %15 = arith.extui %14 : i1 to i32
    %c0_i32_12 = arith.constant 0 : i32
    %16 = arith.cmpi ne, %15, %c0_i32_12 : i32
    scf.if %16 {
      %c0_13 = arith.constant 0 : index
      %c0_14 = arith.constant 0 : index
      %17 = vector.load %arg9[%c0_13, %c0_14] : memref<256x8xf32, #tpu.memory_space<vmem>>, vector<256x8xf32>
      %18 = arith.truncf %17 : vector<256x8xf32> to vector<256x8xbf16>
      %c0_15 = arith.constant 0 : index
      %c0_16 = arith.constant 0 : index
      %19 = vector.load %arg6[%c0_15, %c0_16] : memref<256x8xbf16, #tpu.memory_space<vmem>>, vector<256x8xbf16>
      tpu.vector_store %arg6[%c0_15, %c0_16], %18 {strides = array<i32>} : memref<256x8xbf16, #tpu.memory_space<vmem>>, vector<256x8xbf16>,
      %c0_17 = arith.constant 0 : index
      %c0_18 = arith.constant 0 : index
      %20 = vector.load %arg7[%c0_17, %c0_18] : memref<1x8xf32, #tpu.memory_space<vmem>>, vector<1x8xf32>
      %cst_19 = arith.constant dense<0.000000e+00> : vector<8xf32>
      %21 = vector.multi_reduction <add>, %17, %cst_19 [0] : vector<256x8xf32> to vector<8xf32>
      %22 = vector.shape_cast %21 : vector<8xf32> to vector<1x8xf32>
      %23 = arith.addf %20, %22 : vector<1x8xf32>
      %c0_20 = arith.constant 0 : index
      %c0_21 = arith.constant 0 : index
      %24 = vector.load %arg7[%c0_20, %c0_21] : memref<1x8xf32, #tpu.memory_space<vmem>>, vector<1x8xf32>
      tpu.vector_store %arg7[%c0_20, %c0_21], %23 {strides = array<i32>} : memref<1x8xf32, #tpu.memory_space<vmem>>, vector<1x8xf32>,
      %c0_22 = arith.constant 0 : index
      %c0_23 = arith.constant 0 : index
      %25 = vector.load %arg8[%c0_22, %c0_23] : memref<1x8xf32, #tpu.memory_space<vmem>>, vector<1x8xf32>
      %26 = arith.mulf %17, %17 : vector<256x8xf32>
      %cst_24 = arith.constant dense<0.000000e+00> : vector<8xf32>
      %27 = vector.multi_reduction <add>, %26, %cst_24 [0] : vector<256x8xf32> to vector<8xf32>
      %28 = vector.shape_cast %27 : vector<8xf32> to vector<1x8xf32>
      %29 = arith.addf %25, %28 : vector<1x8xf32>
      %c0_25 = arith.constant 0 : index
      %c0_26 = arith.constant 0 : index
      %30 = vector.load %arg8[%c0_25, %c0_26] : memref<1x8xf32, #tpu.memory_space<vmem>>, vector<1x8xf32>
      tpu.vector_store %arg8[%c0_25, %c0_26], %29 {strides = array<i32>} : memref<1x8xf32, #tpu.memory_space<vmem>>, vector<1x8xf32>,
    } else {
    }
    return
  }
  func.func @transform_0(%arg0: i32, %arg1: i32, %arg2: i32) -> (i32, i32) {
    %c0_i32 = arith.constant 0 : i32
    return %arg1, %arg2 : i32, i32
  }
  func.func @transform_1(%arg0: i32, %arg1: i32, %arg2: i32) -> (i32, i32) {
    %c0_i32 = arith.constant 0 : i32
    return %arg2, %arg0 : i32, i32
  }
  func.func @transform_2(%arg0: i32, %arg1: i32, %arg2: i32) -> (i32, i32) {
    %c0_i32 = arith.constant 0 : i32
    %c0_i32_0 = arith.constant 0 : i32
    return %c0_i32, %arg0 : i32, i32
  }
  func.func @transform_3(%arg0: i32, %arg1: i32, %arg2: i32) -> (i32, i32) {
    %c0_i32 = arith.constant 0 : i32
    return %arg1, %arg0 : i32, i32
  }
  func.func @transform_4(%arg0: i32, %arg1: i32, %arg2: i32) -> (i32, i32) {
    %c0_i32 = arith.constant 0 : i32
    %c0_i32_0 = arith.constant 0 : i32
    return %c0_i32, %arg0 : i32, i32
  }
  func.func @transform_5(%arg0: i32, %arg1: i32, %arg2: i32) -> (i32, i32) {
    %c0_i32 = arith.constant 0 : i32
    %c0_i32_0 = arith.constant 0 : i32
    return %c0_i32, %arg0 : i32, i32
  }
}

module attributes {stable_mosaic.version = 11 : i64} {
  func.func @_affine_relu_kernel(%arg0: i32, %arg1: memref<32x128xbf16, #tpu.memory_space<vmem>>, %arg2: memref<1x128xf32, #tpu.memory_space<vmem>>, %arg3: memref<1x128xf32, #tpu.memory_space<vmem>>, %arg4: memref<32x128xbf16, #tpu.memory_space<vmem>>) attributes {dimension_semantics = [#tpu.dimension_semantics<parallel>], iteration_bounds = array<i64: 1>, scalar_prefetch = 0 : i64, scratch_operands = 0 : i64, tpu.core_type = #tpu.core_type<tc>, window_params = [{transform_indices = @transform_0, window_bounds = array<i64: 32, 128>}, {pipeline_mode = #tpu.pipeline_mode<synchronous>, transform_indices = @transform_1, window_bounds = array<i64: 1, 128>}, {pipeline_mode = #tpu.pipeline_mode<synchronous>, transform_indices = @transform_2, window_bounds = array<i64: 1, 128>}, {transform_indices = @transform_3, window_bounds = array<i64: 32, 128>}]} {
    %c0 = arith.constant 0 : index
    %c0_0 = arith.constant 0 : index
    %0 = vector.load %arg1[%c0, %c0_0] : memref<32x128xbf16, #tpu.memory_space<vmem>>, vector<32x128xbf16>
    %1 = arith.extf %0 : vector<32x128xbf16> to vector<32x128xf32>
    %c0_1 = arith.constant 0 : index
    %c0_2 = arith.constant 0 : index
    %2 = vector.load %arg2[%c0_1, %c0_2] : memref<1x128xf32, #tpu.memory_space<vmem>>, vector<1x128xf32>
    %3 = vector.broadcast %2 : vector<1x128xf32> to vector<32x128xf32>
    %4 = arith.mulf %1, %3 : vector<32x128xf32>
    %c0_3 = arith.constant 0 : index
    %c0_4 = arith.constant 0 : index
    %5 = vector.load %arg3[%c0_3, %c0_4] : memref<1x128xf32, #tpu.memory_space<vmem>>, vector<1x128xf32>
    %6 = vector.broadcast %5 : vector<1x128xf32> to vector<32x128xf32>
    %7 = arith.addf %4, %6 : vector<32x128xf32>
    %cst = arith.constant 0.000000e+00 : f32
    %8 = vector.broadcast %cst : f32 to vector<32x128xf32>
    %9 = arith.maximumf %7, %8 : vector<32x128xf32>
    %10 = arith.truncf %9 : vector<32x128xf32> to vector<32x128xbf16>
    %c0_5 = arith.constant 0 : index
    %c0_6 = arith.constant 0 : index
    %11 = vector.load %arg4[%c0_5, %c0_6] : memref<32x128xbf16, #tpu.memory_space<vmem>>, vector<32x128xbf16>
    tpu.vector_store %arg4[%c0_5, %c0_6], %10 {strides = array<i32>} : memref<32x128xbf16, #tpu.memory_space<vmem>>, vector<32x128xbf16>,
    return
  }
  func.func @transform_0(%arg0: i32) -> (i32, i32) {
    %c0_i32 = arith.constant 0 : i32
    %c0_i32_0 = arith.constant 0 : i32
    return %arg0, %c0_i32 : i32, i32
  }
  func.func @transform_1(%arg0: i32) -> (i32, i32) {
    %c0_i32 = arith.constant 0 : i32
    %c0_i32_0 = arith.constant 0 : i32
    %c0_i32_1 = arith.constant 0 : i32
    return %c0_i32, %c0_i32_0 : i32, i32
  }
  func.func @transform_2(%arg0: i32) -> (i32, i32) {
    %c0_i32 = arith.constant 0 : i32
    %c0_i32_0 = arith.constant 0 : i32
    %c0_i32_1 = arith.constant 0 : i32
    return %c0_i32, %c0_i32_0 : i32, i32
  }
  func.func @transform_3(%arg0: i32) -> (i32, i32) {
    %c0_i32 = arith.constant 0 : i32
    %c0_i32_0 = arith.constant 0 : i32
    return %arg0, %c0_i32 : i32, i32
  }
}

module attributes {stable_mosaic.version = 11 : i64} {
  func.func @_conv_matmul_kernel(%arg0: i32, %arg1: i32, %arg2: i32, %arg3: memref<128x72xbf16, #tpu.memory_space<vmem>>, %arg4: memref<72x16xbf16, #tpu.memory_space<vmem>>, %arg5: memref<1x16xf32, #tpu.memory_space<vmem>>, %arg6: memref<128x16xbf16, #tpu.memory_space<vmem>>, %arg7: memref<1x16xf32, #tpu.memory_space<vmem>>, %arg8: memref<1x16xf32, #tpu.memory_space<vmem>>, %arg9: memref<128x16xf32, #tpu.memory_space<vmem>>) attributes {dimension_semantics = [#tpu.dimension_semantics<parallel>, #tpu.dimension_semantics<arbitrary>, #tpu.dimension_semantics<arbitrary>], iteration_bounds = array<i64: 1, 1, 1>, scalar_prefetch = 0 : i64, scratch_operands = 1 : i64, tpu.core_type = #tpu.core_type<tc>, window_params = [{transform_indices = @transform_0, window_bounds = array<i64: 128, 72>}, {transform_indices = @transform_1, window_bounds = array<i64: 72, 16>}, {transform_indices = @transform_2, window_bounds = array<i64: 1, 16>}, {transform_indices = @transform_3, window_bounds = array<i64: 128, 16>}, {transform_indices = @transform_4, window_bounds = array<i64: 1, 16>}, {transform_indices = @transform_5, window_bounds = array<i64: 1, 16>}]} {
    %c0_i32 = arith.constant 0 : i32
    %0 = arith.cmpi eq, %arg2, %c0_i32 : i32
    %1 = arith.extui %0 : i1 to i32
    %c0_i32_0 = arith.constant 0 : i32
    %2 = arith.cmpi ne, %1, %c0_i32_0 : i32
    scf.if %2 {
      %c0_13 = arith.constant 0 : index
      %c0_14 = arith.constant 0 : index
      %17 = vector.load %arg5[%c0_13, %c0_14] : memref<1x16xf32, #tpu.memory_space<vmem>>, vector<1x16xf32>
      %18 = vector.shape_cast %17 : vector<1x16xf32> to vector<1x16xf32>
      %19 = vector.broadcast %18 : vector<1x16xf32> to vector<128x16xf32>
      %c0_15 = arith.constant 0 : index
      %c0_16 = arith.constant 0 : index
      %20 = vector.load %arg9[%c0_15, %c0_16] : memref<128x16xf32, #tpu.memory_space<vmem>>, vector<128x16xf32>
      tpu.vector_store %arg9[%c0_15, %c0_16], %19 {strides = array<i32>} : memref<128x16xf32, #tpu.memory_space<vmem>>, vector<128x16xf32>,
    } else {
    }
    %c0 = arith.constant 0 : index
    %c0_1 = arith.constant 0 : index
    %3 = vector.load %arg9[%c0, %c0_1] : memref<128x16xf32, #tpu.memory_space<vmem>>, vector<128x16xf32>
    %c0_2 = arith.constant 0 : index
    %c0_3 = arith.constant 0 : index
    %4 = vector.load %arg3[%c0_2, %c0_3] : memref<128x72xbf16, #tpu.memory_space<vmem>>, vector<128x72xbf16>
    %c0_4 = arith.constant 0 : index
    %c0_5 = arith.constant 0 : index
    %5 = vector.load %arg4[%c0_4, %c0_5] : memref<72x16xbf16, #tpu.memory_space<vmem>>, vector<72x16xbf16>
    %cst = arith.constant dense<0.000000e+00> : vector<128x16xf32>
    %6 = tpu.matmul %4, %5, %cst {dimension_numbers = #tpu.dot_dimension_numbers<[1], [0], [0], [1], [0, 0, 1, 1], [], []>} : vector<128x72xbf16>, vector<72x16xbf16>, vector<128x16xf32> -> vector<128x16xf32>
    %7 = arith.addf %3, %6 : vector<128x16xf32>
    %c0_6 = arith.constant 0 : index
    %c0_7 = arith.constant 0 : index
    %8 = vector.load %arg9[%c0_6, %c0_7] : memref<128x16xf32, #tpu.memory_space<vmem>>, vector<128x16xf32>
    tpu.vector_store %arg9[%c0_6, %c0_7], %7 {strides = array<i32>} : memref<128x16xf32, #tpu.memory_space<vmem>>, vector<128x16xf32>,
    %c0_i32_8 = arith.constant 0 : i32
    %9 = arith.cmpi eq, %arg1, %c0_i32_8 : i32
    %c0_i32_9 = arith.constant 0 : i32
    %10 = arith.cmpi eq, %arg2, %c0_i32_9 : i32
    %11 = arith.andi %9, %10 : i1
    %12 = arith.extui %11 : i1 to i32
    %c0_i32_10 = arith.constant 0 : i32
    %13 = arith.cmpi ne, %12, %c0_i32_10 : i32
    scf.if %13 {
      %cst_13 = arith.constant 0.000000e+00 : f32
      %17 = vector.broadcast %cst_13 : f32 to vector<1x16xf32>
      %c0_14 = arith.constant 0 : index
      %c0_15 = arith.constant 0 : index
      %18 = vector.load %arg7[%c0_14, %c0_15] : memref<1x16xf32, #tpu.memory_space<vmem>>, vector<1x16xf32>
      tpu.vector_store %arg7[%c0_14, %c0_15], %17 {strides = array<i32>} : memref<1x16xf32, #tpu.memory_space<vmem>>, vector<1x16xf32>,
      %cst_16 = arith.constant 0.000000e+00 : f32
      %19 = vector.broadcast %cst_16 : f32 to vector<1x16xf32>
      %c0_17 = arith.constant 0 : index
      %c0_18 = arith.constant 0 : index
      %20 = vector.load %arg8[%c0_17, %c0_18] : memref<1x16xf32, #tpu.memory_space<vmem>>, vector<1x16xf32>
      tpu.vector_store %arg8[%c0_17, %c0_18], %19 {strides = array<i32>} : memref<1x16xf32, #tpu.memory_space<vmem>>, vector<1x16xf32>,
    } else {
    }
    %c0_i32_11 = arith.constant 0 : i32
    %14 = arith.cmpi eq, %arg2, %c0_i32_11 : i32
    %15 = arith.extui %14 : i1 to i32
    %c0_i32_12 = arith.constant 0 : i32
    %16 = arith.cmpi ne, %15, %c0_i32_12 : i32
    scf.if %16 {
      %c0_13 = arith.constant 0 : index
      %c0_14 = arith.constant 0 : index
      %17 = vector.load %arg9[%c0_13, %c0_14] : memref<128x16xf32, #tpu.memory_space<vmem>>, vector<128x16xf32>
      %18 = arith.truncf %17 : vector<128x16xf32> to vector<128x16xbf16>
      %c0_15 = arith.constant 0 : index
      %c0_16 = arith.constant 0 : index
      %19 = vector.load %arg6[%c0_15, %c0_16] : memref<128x16xbf16, #tpu.memory_space<vmem>>, vector<128x16xbf16>
      tpu.vector_store %arg6[%c0_15, %c0_16], %18 {strides = array<i32>} : memref<128x16xbf16, #tpu.memory_space<vmem>>, vector<128x16xbf16>,
      %c0_17 = arith.constant 0 : index
      %c0_18 = arith.constant 0 : index
      %20 = vector.load %arg7[%c0_17, %c0_18] : memref<1x16xf32, #tpu.memory_space<vmem>>, vector<1x16xf32>
      %cst_19 = arith.constant dense<0.000000e+00> : vector<16xf32>
      %21 = vector.multi_reduction <add>, %17, %cst_19 [0] : vector<128x16xf32> to vector<16xf32>
      %22 = vector.shape_cast %21 : vector<16xf32> to vector<1x16xf32>
      %23 = arith.addf %20, %22 : vector<1x16xf32>
      %c0_20 = arith.constant 0 : index
      %c0_21 = arith.constant 0 : index
      %24 = vector.load %arg7[%c0_20, %c0_21] : memref<1x16xf32, #tpu.memory_space<vmem>>, vector<1x16xf32>
      tpu.vector_store %arg7[%c0_20, %c0_21], %23 {strides = array<i32>} : memref<1x16xf32, #tpu.memory_space<vmem>>, vector<1x16xf32>,
      %c0_22 = arith.constant 0 : index
      %c0_23 = arith.constant 0 : index
      %25 = vector.load %arg8[%c0_22, %c0_23] : memref<1x16xf32, #tpu.memory_space<vmem>>, vector<1x16xf32>
      %26 = arith.mulf %17, %17 : vector<128x16xf32>
      %cst_24 = arith.constant dense<0.000000e+00> : vector<16xf32>
      %27 = vector.multi_reduction <add>, %26, %cst_24 [0] : vector<128x16xf32> to vector<16xf32>
      %28 = vector.shape_cast %27 : vector<16xf32> to vector<1x16xf32>
      %29 = arith.addf %25, %28 : vector<1x16xf32>
      %c0_25 = arith.constant 0 : index
      %c0_26 = arith.constant 0 : index
      %30 = vector.load %arg8[%c0_25, %c0_26] : memref<1x16xf32, #tpu.memory_space<vmem>>, vector<1x16xf32>
      tpu.vector_store %arg8[%c0_25, %c0_26], %29 {strides = array<i32>} : memref<1x16xf32, #tpu.memory_space<vmem>>, vector<1x16xf32>,
    } else {
    }
    return
  }
  func.func @transform_0(%arg0: i32, %arg1: i32, %arg2: i32) -> (i32, i32) {
    %c0_i32 = arith.constant 0 : i32
    return %arg1, %arg2 : i32, i32
  }
  func.func @transform_1(%arg0: i32, %arg1: i32, %arg2: i32) -> (i32, i32) {
    %c0_i32 = arith.constant 0 : i32
    return %arg2, %arg0 : i32, i32
  }
  func.func @transform_2(%arg0: i32, %arg1: i32, %arg2: i32) -> (i32, i32) {
    %c0_i32 = arith.constant 0 : i32
    %c0_i32_0 = arith.constant 0 : i32
    return %c0_i32, %arg0 : i32, i32
  }
  func.func @transform_3(%arg0: i32, %arg1: i32, %arg2: i32) -> (i32, i32) {
    %c0_i32 = arith.constant 0 : i32
    return %arg1, %arg0 : i32, i32
  }
  func.func @transform_4(%arg0: i32, %arg1: i32, %arg2: i32) -> (i32, i32) {
    %c0_i32 = arith.constant 0 : i32
    %c0_i32_0 = arith.constant 0 : i32
    return %c0_i32, %arg0 : i32, i32
  }
  func.func @transform_5(%arg0: i32, %arg1: i32, %arg2: i32) -> (i32, i32) {
    %c0_i32 = arith.constant 0 : i32
    %c0_i32_0 = arith.constant 0 : i32
    return %c0_i32, %arg0 : i32, i32
  }
}

module attributes {stable_mosaic.version = 11 : i64} {
  func.func @_affine_relu_kernel(%arg0: i32, %arg1: memref<16x128xbf16, #tpu.memory_space<vmem>>, %arg2: memref<1x128xf32, #tpu.memory_space<vmem>>, %arg3: memref<1x128xf32, #tpu.memory_space<vmem>>, %arg4: memref<16x128xbf16, #tpu.memory_space<vmem>>) attributes {dimension_semantics = [#tpu.dimension_semantics<parallel>], iteration_bounds = array<i64: 1>, scalar_prefetch = 0 : i64, scratch_operands = 0 : i64, tpu.core_type = #tpu.core_type<tc>, window_params = [{transform_indices = @transform_0, window_bounds = array<i64: 16, 128>}, {pipeline_mode = #tpu.pipeline_mode<synchronous>, transform_indices = @transform_1, window_bounds = array<i64: 1, 128>}, {pipeline_mode = #tpu.pipeline_mode<synchronous>, transform_indices = @transform_2, window_bounds = array<i64: 1, 128>}, {transform_indices = @transform_3, window_bounds = array<i64: 16, 128>}]} {
    %c0 = arith.constant 0 : index
    %c0_0 = arith.constant 0 : index
    %0 = vector.load %arg1[%c0, %c0_0] : memref<16x128xbf16, #tpu.memory_space<vmem>>, vector<16x128xbf16>
    %1 = arith.extf %0 : vector<16x128xbf16> to vector<16x128xf32>
    %c0_1 = arith.constant 0 : index
    %c0_2 = arith.constant 0 : index
    %2 = vector.load %arg2[%c0_1, %c0_2] : memref<1x128xf32, #tpu.memory_space<vmem>>, vector<1x128xf32>
    %3 = vector.broadcast %2 : vector<1x128xf32> to vector<16x128xf32>
    %4 = arith.mulf %1, %3 : vector<16x128xf32>
    %c0_3 = arith.constant 0 : index
    %c0_4 = arith.constant 0 : index
    %5 = vector.load %arg3[%c0_3, %c0_4] : memref<1x128xf32, #tpu.memory_space<vmem>>, vector<1x128xf32>
    %6 = vector.broadcast %5 : vector<1x128xf32> to vector<16x128xf32>
    %7 = arith.addf %4, %6 : vector<16x128xf32>
    %cst = arith.constant 0.000000e+00 : f32
    %8 = vector.broadcast %cst : f32 to vector<16x128xf32>
    %9 = arith.maximumf %7, %8 : vector<16x128xf32>
    %10 = arith.truncf %9 : vector<16x128xf32> to vector<16x128xbf16>
    %c0_5 = arith.constant 0 : index
    %c0_6 = arith.constant 0 : index
    %11 = vector.load %arg4[%c0_5, %c0_6] : memref<16x128xbf16, #tpu.memory_space<vmem>>, vector<16x128xbf16>
    tpu.vector_store %arg4[%c0_5, %c0_6], %10 {strides = array<i32>} : memref<16x128xbf16, #tpu.memory_space<vmem>>, vector<16x128xbf16>,
    return
  }
  func.func @transform_0(%arg0: i32) -> (i32, i32) {
    %c0_i32 = arith.constant 0 : i32
    %c0_i32_0 = arith.constant 0 : i32
    return %arg0, %c0_i32 : i32, i32
  }
  func.func @transform_1(%arg0: i32) -> (i32, i32) {
    %c0_i32 = arith.constant 0 : i32
    %c0_i32_0 = arith.constant 0 : i32
    %c0_i32_1 = arith.constant 0 : i32
    return %c0_i32, %c0_i32_0 : i32, i32
  }
  func.func @transform_2(%arg0: i32) -> (i32, i32) {
    %c0_i32 = arith.constant 0 : i32
    %c0_i32_0 = arith.constant 0 : i32
    %c0_i32_1 = arith.constant 0 : i32
    return %c0_i32, %c0_i32_0 : i32, i32
  }
  func.func @transform_3(%arg0: i32) -> (i32, i32) {
    %c0_i32 = arith.constant 0 : i32
    %c0_i32_0 = arith.constant 0 : i32
    return %arg0, %c0_i32 : i32, i32
  }
}

module attributes {stable_mosaic.version = 11 : i64} {
  func.func @_conv_matmul_kernel(%arg0: i32, %arg1: i32, %arg2: i32, %arg3: memref<32x144xbf16, #tpu.memory_space<vmem>>, %arg4: memref<144x32xbf16, #tpu.memory_space<vmem>>, %arg5: memref<1x32xf32, #tpu.memory_space<vmem>>, %arg6: memref<32x32xbf16, #tpu.memory_space<vmem>>, %arg7: memref<1x32xf32, #tpu.memory_space<vmem>>, %arg8: memref<1x32xf32, #tpu.memory_space<vmem>>, %arg9: memref<32x32xf32, #tpu.memory_space<vmem>>) attributes {dimension_semantics = [#tpu.dimension_semantics<parallel>, #tpu.dimension_semantics<arbitrary>, #tpu.dimension_semantics<arbitrary>], iteration_bounds = array<i64: 1, 1, 1>, scalar_prefetch = 0 : i64, scratch_operands = 1 : i64, tpu.core_type = #tpu.core_type<tc>, window_params = [{transform_indices = @transform_0, window_bounds = array<i64: 32, 144>}, {transform_indices = @transform_1, window_bounds = array<i64: 144, 32>}, {transform_indices = @transform_2, window_bounds = array<i64: 1, 32>}, {transform_indices = @transform_3, window_bounds = array<i64: 32, 32>}, {transform_indices = @transform_4, window_bounds = array<i64: 1, 32>}, {transform_indices = @transform_5, window_bounds = array<i64: 1, 32>}]} {
    %c0_i32 = arith.constant 0 : i32
    %0 = arith.cmpi eq, %arg2, %c0_i32 : i32
    %1 = arith.extui %0 : i1 to i32
    %c0_i32_0 = arith.constant 0 : i32
    %2 = arith.cmpi ne, %1, %c0_i32_0 : i32
    scf.if %2 {
      %c0_13 = arith.constant 0 : index
      %c0_14 = arith.constant 0 : index
      %17 = vector.load %arg5[%c0_13, %c0_14] : memref<1x32xf32, #tpu.memory_space<vmem>>, vector<1x32xf32>
      %18 = vector.shape_cast %17 : vector<1x32xf32> to vector<1x32xf32>
      %19 = vector.broadcast %18 : vector<1x32xf32> to vector<32x32xf32>
      %c0_15 = arith.constant 0 : index
      %c0_16 = arith.constant 0 : index
      %20 = vector.load %arg9[%c0_15, %c0_16] : memref<32x32xf32, #tpu.memory_space<vmem>>, vector<32x32xf32>
      tpu.vector_store %arg9[%c0_15, %c0_16], %19 {strides = array<i32>} : memref<32x32xf32, #tpu.memory_space<vmem>>, vector<32x32xf32>,
    } else {
    }
    %c0 = arith.constant 0 : index
    %c0_1 = arith.constant 0 : index
    %3 = vector.load %arg9[%c0, %c0_1] : memref<32x32xf32, #tpu.memory_space<vmem>>, vector<32x32xf32>
    %c0_2 = arith.constant 0 : index
    %c0_3 = arith.constant 0 : index
    %4 = vector.load %arg3[%c0_2, %c0_3] : memref<32x144xbf16, #tpu.memory_space<vmem>>, vector<32x144xbf16>
    %c0_4 = arith.constant 0 : index
    %c0_5 = arith.constant 0 : index
    %5 = vector.load %arg4[%c0_4, %c0_5] : memref<144x32xbf16, #tpu.memory_space<vmem>>, vector<144x32xbf16>
    %cst = arith.constant dense<0.000000e+00> : vector<32x32xf32>
    %6 = tpu.matmul %4, %5, %cst {dimension_numbers = #tpu.dot_dimension_numbers<[1], [0], [0], [1], [0, 0, 1, 1], [], []>} : vector<32x144xbf16>, vector<144x32xbf16>, vector<32x32xf32> -> vector<32x32xf32>
    %7 = arith.addf %3, %6 : vector<32x32xf32>
    %c0_6 = arith.constant 0 : index
    %c0_7 = arith.constant 0 : index
    %8 = vector.load %arg9[%c0_6, %c0_7] : memref<32x32xf32, #tpu.memory_space<vmem>>, vector<32x32xf32>
    tpu.vector_store %arg9[%c0_6, %c0_7], %7 {strides = array<i32>} : memref<32x32xf32, #tpu.memory_space<vmem>>, vector<32x32xf32>,
    %c0_i32_8 = arith.constant 0 : i32
    %9 = arith.cmpi eq, %arg1, %c0_i32_8 : i32
    %c0_i32_9 = arith.constant 0 : i32
    %10 = arith.cmpi eq, %arg2, %c0_i32_9 : i32
    %11 = arith.andi %9, %10 : i1
    %12 = arith.extui %11 : i1 to i32
    %c0_i32_10 = arith.constant 0 : i32
    %13 = arith.cmpi ne, %12, %c0_i32_10 : i32
    scf.if %13 {
      %cst_13 = arith.constant 0.000000e+00 : f32
      %17 = vector.broadcast %cst_13 : f32 to vector<1x32xf32>
      %c0_14 = arith.constant 0 : index
      %c0_15 = arith.constant 0 : index
      %18 = vector.load %arg7[%c0_14, %c0_15] : memref<1x32xf32, #tpu.memory_space<vmem>>, vector<1x32xf32>
      tpu.vector_store %arg7[%c0_14, %c0_15], %17 {strides = array<i32>} : memref<1x32xf32, #tpu.memory_space<vmem>>, vector<1x32xf32>,
      %cst_16 = arith.constant 0.000000e+00 : f32
      %19 = vector.broadcast %cst_16 : f32 to vector<1x32xf32>
      %c0_17 = arith.constant 0 : index
      %c0_18 = arith.constant 0 : index
      %20 = vector.load %arg8[%c0_17, %c0_18] : memref<1x32xf32, #tpu.memory_space<vmem>>, vector<1x32xf32>
      tpu.vector_store %arg8[%c0_17, %c0_18], %19 {strides = array<i32>} : memref<1x32xf32, #tpu.memory_space<vmem>>, vector<1x32xf32>,
    } else {
    }
    %c0_i32_11 = arith.constant 0 : i32
    %14 = arith.cmpi eq, %arg2, %c0_i32_11 : i32
    %15 = arith.extui %14 : i1 to i32
    %c0_i32_12 = arith.constant 0 : i32
    %16 = arith.cmpi ne, %15, %c0_i32_12 : i32
    scf.if %16 {
      %c0_13 = arith.constant 0 : index
      %c0_14 = arith.constant 0 : index
      %17 = vector.load %arg9[%c0_13, %c0_14] : memref<32x32xf32, #tpu.memory_space<vmem>>, vector<32x32xf32>
      %18 = arith.truncf %17 : vector<32x32xf32> to vector<32x32xbf16>
      %c0_15 = arith.constant 0 : index
      %c0_16 = arith.constant 0 : index
      %19 = vector.load %arg6[%c0_15, %c0_16] : memref<32x32xbf16, #tpu.memory_space<vmem>>, vector<32x32xbf16>
      tpu.vector_store %arg6[%c0_15, %c0_16], %18 {strides = array<i32>} : memref<32x32xbf16, #tpu.memory_space<vmem>>, vector<32x32xbf16>,
      %c0_17 = arith.constant 0 : index
      %c0_18 = arith.constant 0 : index
      %20 = vector.load %arg7[%c0_17, %c0_18] : memref<1x32xf32, #tpu.memory_space<vmem>>, vector<1x32xf32>
      %cst_19 = arith.constant dense<0.000000e+00> : vector<32xf32>
      %21 = vector.multi_reduction <add>, %17, %cst_19 [0] : vector<32x32xf32> to vector<32xf32>
      %22 = vector.shape_cast %21 : vector<32xf32> to vector<1x32xf32>
      %23 = arith.addf %20, %22 : vector<1x32xf32>
      %c0_20 = arith.constant 0 : index
      %c0_21 = arith.constant 0 : index
      %24 = vector.load %arg7[%c0_20, %c0_21] : memref<1x32xf32, #tpu.memory_space<vmem>>, vector<1x32xf32>
      tpu.vector_store %arg7[%c0_20, %c0_21], %23 {strides = array<i32>} : memref<1x32xf32, #tpu.memory_space<vmem>>, vector<1x32xf32>,
      %c0_22 = arith.constant 0 : index
      %c0_23 = arith.constant 0 : index
      %25 = vector.load %arg8[%c0_22, %c0_23] : memref<1x32xf32, #tpu.memory_space<vmem>>, vector<1x32xf32>
      %26 = arith.mulf %17, %17 : vector<32x32xf32>
      %cst_24 = arith.constant dense<0.000000e+00> : vector<32xf32>
      %27 = vector.multi_reduction <add>, %26, %cst_24 [0] : vector<32x32xf32> to vector<32xf32>
      %28 = vector.shape_cast %27 : vector<32xf32> to vector<1x32xf32>
      %29 = arith.addf %25, %28 : vector<1x32xf32>
      %c0_25 = arith.constant 0 : index
      %c0_26 = arith.constant 0 : index
      %30 = vector.load %arg8[%c0_25, %c0_26] : memref<1x32xf32, #tpu.memory_space<vmem>>, vector<1x32xf32>
      tpu.vector_store %arg8[%c0_25, %c0_26], %29 {strides = array<i32>} : memref<1x32xf32, #tpu.memory_space<vmem>>, vector<1x32xf32>,
    } else {
    }
    return
  }
  func.func @transform_0(%arg0: i32, %arg1: i32, %arg2: i32) -> (i32, i32) {
    %c0_i32 = arith.constant 0 : i32
    return %arg1, %arg2 : i32, i32
  }
  func.func @transform_1(%arg0: i32, %arg1: i32, %arg2: i32) -> (i32, i32) {
    %c0_i32 = arith.constant 0 : i32
    return %arg2, %arg0 : i32, i32
  }
  func.func @transform_2(%arg0: i32, %arg1: i32, %arg2: i32) -> (i32, i32) {
    %c0_i32 = arith.constant 0 : i32
    %c0_i32_0 = arith.constant 0 : i32
    return %c0_i32, %arg0 : i32, i32
  }
  func.func @transform_3(%arg0: i32, %arg1: i32, %arg2: i32) -> (i32, i32) {
    %c0_i32 = arith.constant 0 : i32
    return %arg1, %arg0 : i32, i32
  }
  func.func @transform_4(%arg0: i32, %arg1: i32, %arg2: i32) -> (i32, i32) {
    %c0_i32 = arith.constant 0 : i32
    %c0_i32_0 = arith.constant 0 : i32
    return %c0_i32, %arg0 : i32, i32
  }
  func.func @transform_5(%arg0: i32, %arg1: i32, %arg2: i32) -> (i32, i32) {
    %c0_i32 = arith.constant 0 : i32
    %c0_i32_0 = arith.constant 0 : i32
    return %c0_i32, %arg0 : i32, i32
  }
}

module attributes {stable_mosaic.version = 11 : i64} {
  func.func @_affine_relu_kernel(%arg0: i32, %arg1: memref<8x128xbf16, #tpu.memory_space<vmem>>, %arg2: memref<1x128xf32, #tpu.memory_space<vmem>>, %arg3: memref<1x128xf32, #tpu.memory_space<vmem>>, %arg4: memref<8x128xbf16, #tpu.memory_space<vmem>>) attributes {dimension_semantics = [#tpu.dimension_semantics<parallel>], iteration_bounds = array<i64: 1>, scalar_prefetch = 0 : i64, scratch_operands = 0 : i64, tpu.core_type = #tpu.core_type<tc>, window_params = [{transform_indices = @transform_0, window_bounds = array<i64: 8, 128>}, {pipeline_mode = #tpu.pipeline_mode<synchronous>, transform_indices = @transform_1, window_bounds = array<i64: 1, 128>}, {pipeline_mode = #tpu.pipeline_mode<synchronous>, transform_indices = @transform_2, window_bounds = array<i64: 1, 128>}, {transform_indices = @transform_3, window_bounds = array<i64: 8, 128>}]} {
    %c0 = arith.constant 0 : index
    %c0_0 = arith.constant 0 : index
    %0 = vector.load %arg1[%c0, %c0_0] : memref<8x128xbf16, #tpu.memory_space<vmem>>, vector<8x128xbf16>
    %1 = arith.extf %0 : vector<8x128xbf16> to vector<8x128xf32>
    %c0_1 = arith.constant 0 : index
    %c0_2 = arith.constant 0 : index
    %2 = vector.load %arg2[%c0_1, %c0_2] : memref<1x128xf32, #tpu.memory_space<vmem>>, vector<1x128xf32>
    %3 = vector.broadcast %2 : vector<1x128xf32> to vector<8x128xf32>
    %4 = arith.mulf %1, %3 : vector<8x128xf32>
    %c0_3 = arith.constant 0 : index
    %c0_4 = arith.constant 0 : index
    %5 = vector.load %arg3[%c0_3, %c0_4] : memref<1x128xf32, #tpu.memory_space<vmem>>, vector<1x128xf32>
    %6 = vector.broadcast %5 : vector<1x128xf32> to vector<8x128xf32>
    %7 = arith.addf %4, %6 : vector<8x128xf32>
    %cst = arith.constant 0.000000e+00 : f32
    %8 = vector.broadcast %cst : f32 to vector<8x128xf32>
    %9 = arith.maximumf %7, %8 : vector<8x128xf32>
    %10 = arith.truncf %9 : vector<8x128xf32> to vector<8x128xbf16>
    %c0_5 = arith.constant 0 : index
    %c0_6 = arith.constant 0 : index
    %11 = vector.load %arg4[%c0_5, %c0_6] : memref<8x128xbf16, #tpu.memory_space<vmem>>, vector<8x128xbf16>
    tpu.vector_store %arg4[%c0_5, %c0_6], %10 {strides = array<i32>} : memref<8x128xbf16, #tpu.memory_space<vmem>>, vector<8x128xbf16>,
    return
  }
  func.func @transform_0(%arg0: i32) -> (i32, i32) {
    %c0_i32 = arith.constant 0 : i32
    %c0_i32_0 = arith.constant 0 : i32
    return %arg0, %c0_i32 : i32, i32
  }
  func.func @transform_1(%arg0: i32) -> (i32, i32) {
    %c0_i32 = arith.constant 0 : i32
    %c0_i32_0 = arith.constant 0 : i32
    %c0_i32_1 = arith.constant 0 : i32
    return %c0_i32, %c0_i32_0 : i32, i32
  }
  func.func @transform_2(%arg0: i32) -> (i32, i32) {
    %c0_i32 = arith.constant 0 : i32
    %c0_i32_0 = arith.constant 0 : i32
    %c0_i32_1 = arith.constant 0 : i32
    return %c0_i32, %c0_i32_0 : i32, i32
  }
  func.func @transform_3(%arg0: i32) -> (i32, i32) {
    %c0_i32 = arith.constant 0 : i32
    %c0_i32_0 = arith.constant 0 : i32
    return %arg0, %c0_i32 : i32, i32
  }
}

module attributes {stable_mosaic.version = 11 : i64} {
  func.func @_affine_relu_kernel(%arg0: i32, %arg1: memref<4x128xbf16, #tpu.memory_space<vmem>>, %arg2: memref<1x128xf32, #tpu.memory_space<vmem>>, %arg3: memref<1x128xf32, #tpu.memory_space<vmem>>, %arg4: memref<4x128xbf16, #tpu.memory_space<vmem>>) attributes {dimension_semantics = [#tpu.dimension_semantics<parallel>], iteration_bounds = array<i64: 1>, scalar_prefetch = 0 : i64, scratch_operands = 0 : i64, tpu.core_type = #tpu.core_type<tc>, window_params = [{transform_indices = @transform_0, window_bounds = array<i64: 4, 128>}, {pipeline_mode = #tpu.pipeline_mode<synchronous>, transform_indices = @transform_1, window_bounds = array<i64: 1, 128>}, {pipeline_mode = #tpu.pipeline_mode<synchronous>, transform_indices = @transform_2, window_bounds = array<i64: 1, 128>}, {transform_indices = @transform_3, window_bounds = array<i64: 4, 128>}]} {
    %c0 = arith.constant 0 : index
    %c0_0 = arith.constant 0 : index
    %0 = vector.load %arg1[%c0, %c0_0] : memref<4x128xbf16, #tpu.memory_space<vmem>>, vector<4x128xbf16>
    %1 = arith.extf %0 : vector<4x128xbf16> to vector<4x128xf32>
    %c0_1 = arith.constant 0 : index
    %c0_2 = arith.constant 0 : index
    %2 = vector.load %arg2[%c0_1, %c0_2] : memref<1x128xf32, #tpu.memory_space<vmem>>, vector<1x128xf32>
    %3 = vector.broadcast %2 : vector<1x128xf32> to vector<4x128xf32>
    %4 = arith.mulf %1, %3 : vector<4x128xf32>
    %c0_3 = arith.constant 0 : index
    %c0_4 = arith.constant 0 : index
    %5 = vector.load %arg3[%c0_3, %c0_4] : memref<1x128xf32, #tpu.memory_space<vmem>>, vector<1x128xf32>
    %6 = vector.broadcast %5 : vector<1x128xf32> to vector<4x128xf32>
    %7 = arith.addf %4, %6 : vector<4x128xf32>
    %cst = arith.constant 0.000000e+00 : f32
    %8 = vector.broadcast %cst : f32 to vector<4x128xf32>
    %9 = arith.maximumf %7, %8 : vector<4x128xf32>
    %10 = arith.truncf %9 : vector<4x128xf32> to vector<4x128xbf16>
    %c0_5 = arith.constant 0 : index
    %c0_6 = arith.constant 0 : index
    %11 = vector.load %arg4[%c0_5, %c0_6] : memref<4x128xbf16, #tpu.memory_space<vmem>>, vector<4x128xbf16>
    tpu.vector_store %arg4[%c0_5, %c0_6], %10 {strides = array<i32>} : memref<4x128xbf16, #tpu.memory_space<vmem>>, vector<4x128xbf16>,
    return
  }
  func.func @transform_0(%arg0: i32) -> (i32, i32) {
    %c0_i32 = arith.constant 0 : i32
    %c0_i32_0 = arith.constant 0 : i32
    return %arg0, %c0_i32 : i32, i32
  }
  func.func @transform_1(%arg0: i32) -> (i32, i32) {
    %c0_i32 = arith.constant 0 : i32
    %c0_i32_0 = arith.constant 0 : i32
    %c0_i32_1 = arith.constant 0 : i32
    return %c0_i32, %c0_i32_0 : i32, i32
  }
  func.func @transform_2(%arg0: i32) -> (i32, i32) {
    %c0_i32 = arith.constant 0 : i32
    %c0_i32_0 = arith.constant 0 : i32
    %c0_i32_1 = arith.constant 0 : i32
    return %c0_i32, %c0_i32_0 : i32, i32
  }
  func.func @transform_3(%arg0: i32) -> (i32, i32) {
    %c0_i32 = arith.constant 0 : i32
    %c0_i32_0 = arith.constant 0 : i32
    return %arg0, %c0_i32 : i32, i32
  }
}

module attributes {stable_mosaic.version = 11 : i64} {
  func.func @_conv_matmul_kernel(%arg0: i32, %arg1: i32, %arg2: i32, %arg3: memref<8x288xbf16, #tpu.memory_space<vmem>>, %arg4: memref<288x64xbf16, #tpu.memory_space<vmem>>, %arg5: memref<1x64xf32, #tpu.memory_space<vmem>>, %arg6: memref<8x64xbf16, #tpu.memory_space<vmem>>, %arg7: memref<1x64xf32, #tpu.memory_space<vmem>>, %arg8: memref<1x64xf32, #tpu.memory_space<vmem>>, %arg9: memref<8x64xf32, #tpu.memory_space<vmem>>) attributes {dimension_semantics = [#tpu.dimension_semantics<parallel>, #tpu.dimension_semantics<arbitrary>, #tpu.dimension_semantics<arbitrary>], iteration_bounds = array<i64: 1, 1, 1>, scalar_prefetch = 0 : i64, scratch_operands = 1 : i64, tpu.core_type = #tpu.core_type<tc>, window_params = [{transform_indices = @transform_0, window_bounds = array<i64: 8, 288>}, {transform_indices = @transform_1, window_bounds = array<i64: 288, 64>}, {transform_indices = @transform_2, window_bounds = array<i64: 1, 64>}, {transform_indices = @transform_3, window_bounds = array<i64: 8, 64>}, {transform_indices = @transform_4, window_bounds = array<i64: 1, 64>}, {transform_indices = @transform_5, window_bounds = array<i64: 1, 64>}]} {
    %c0_i32 = arith.constant 0 : i32
    %0 = arith.cmpi eq, %arg2, %c0_i32 : i32
    %1 = arith.extui %0 : i1 to i32
    %c0_i32_0 = arith.constant 0 : i32
    %2 = arith.cmpi ne, %1, %c0_i32_0 : i32
    scf.if %2 {
      %c0_13 = arith.constant 0 : index
      %c0_14 = arith.constant 0 : index
      %17 = vector.load %arg5[%c0_13, %c0_14] : memref<1x64xf32, #tpu.memory_space<vmem>>, vector<1x64xf32>
      %18 = vector.shape_cast %17 : vector<1x64xf32> to vector<1x64xf32>
      %19 = vector.broadcast %18 : vector<1x64xf32> to vector<8x64xf32>
      %c0_15 = arith.constant 0 : index
      %c0_16 = arith.constant 0 : index
      %20 = vector.load %arg9[%c0_15, %c0_16] : memref<8x64xf32, #tpu.memory_space<vmem>>, vector<8x64xf32>
      tpu.vector_store %arg9[%c0_15, %c0_16], %19 {strides = array<i32>} : memref<8x64xf32, #tpu.memory_space<vmem>>, vector<8x64xf32>,
    } else {
    }
    %c0 = arith.constant 0 : index
    %c0_1 = arith.constant 0 : index
    %3 = vector.load %arg9[%c0, %c0_1] : memref<8x64xf32, #tpu.memory_space<vmem>>, vector<8x64xf32>
    %c0_2 = arith.constant 0 : index
    %c0_3 = arith.constant 0 : index
    %4 = vector.load %arg3[%c0_2, %c0_3] : memref<8x288xbf16, #tpu.memory_space<vmem>>, vector<8x288xbf16>
    %c0_4 = arith.constant 0 : index
    %c0_5 = arith.constant 0 : index
    %5 = vector.load %arg4[%c0_4, %c0_5] : memref<288x64xbf16, #tpu.memory_space<vmem>>, vector<288x64xbf16>
    %cst = arith.constant dense<0.000000e+00> : vector<8x64xf32>
    %6 = tpu.matmul %4, %5, %cst {dimension_numbers = #tpu.dot_dimension_numbers<[1], [0], [0], [1], [0, 0, 1, 1], [], []>} : vector<8x288xbf16>, vector<288x64xbf16>, vector<8x64xf32> -> vector<8x64xf32>
    %7 = arith.addf %3, %6 : vector<8x64xf32>
    %c0_6 = arith.constant 0 : index
    %c0_7 = arith.constant 0 : index
    %8 = vector.load %arg9[%c0_6, %c0_7] : memref<8x64xf32, #tpu.memory_space<vmem>>, vector<8x64xf32>
    tpu.vector_store %arg9[%c0_6, %c0_7], %7 {strides = array<i32>} : memref<8x64xf32, #tpu.memory_space<vmem>>, vector<8x64xf32>,
    %c0_i32_8 = arith.constant 0 : i32
    %9 = arith.cmpi eq, %arg1, %c0_i32_8 : i32
    %c0_i32_9 = arith.constant 0 : i32
    %10 = arith.cmpi eq, %arg2, %c0_i32_9 : i32
    %11 = arith.andi %9, %10 : i1
    %12 = arith.extui %11 : i1 to i32
    %c0_i32_10 = arith.constant 0 : i32
    %13 = arith.cmpi ne, %12, %c0_i32_10 : i32
    scf.if %13 {
      %cst_13 = arith.constant 0.000000e+00 : f32
      %17 = vector.broadcast %cst_13 : f32 to vector<1x64xf32>
      %c0_14 = arith.constant 0 : index
      %c0_15 = arith.constant 0 : index
      %18 = vector.load %arg7[%c0_14, %c0_15] : memref<1x64xf32, #tpu.memory_space<vmem>>, vector<1x64xf32>
      tpu.vector_store %arg7[%c0_14, %c0_15], %17 {strides = array<i32>} : memref<1x64xf32, #tpu.memory_space<vmem>>, vector<1x64xf32>,
      %cst_16 = arith.constant 0.000000e+00 : f32
      %19 = vector.broadcast %cst_16 : f32 to vector<1x64xf32>
      %c0_17 = arith.constant 0 : index
      %c0_18 = arith.constant 0 : index
      %20 = vector.load %arg8[%c0_17, %c0_18] : memref<1x64xf32, #tpu.memory_space<vmem>>, vector<1x64xf32>
      tpu.vector_store %arg8[%c0_17, %c0_18], %19 {strides = array<i32>} : memref<1x64xf32, #tpu.memory_space<vmem>>, vector<1x64xf32>,
    } else {
    }
    %c0_i32_11 = arith.constant 0 : i32
    %14 = arith.cmpi eq, %arg2, %c0_i32_11 : i32
    %15 = arith.extui %14 : i1 to i32
    %c0_i32_12 = arith.constant 0 : i32
    %16 = arith.cmpi ne, %15, %c0_i32_12 : i32
    scf.if %16 {
      %c0_13 = arith.constant 0 : index
      %c0_14 = arith.constant 0 : index
      %17 = vector.load %arg9[%c0_13, %c0_14] : memref<8x64xf32, #tpu.memory_space<vmem>>, vector<8x64xf32>
      %18 = arith.truncf %17 : vector<8x64xf32> to vector<8x64xbf16>
      %c0_15 = arith.constant 0 : index
      %c0_16 = arith.constant 0 : index
      %19 = vector.load %arg6[%c0_15, %c0_16] : memref<8x64xbf16, #tpu.memory_space<vmem>>, vector<8x64xbf16>
      tpu.vector_store %arg6[%c0_15, %c0_16], %18 {strides = array<i32>} : memref<8x64xbf16, #tpu.memory_space<vmem>>, vector<8x64xbf16>,
      %c0_17 = arith.constant 0 : index
      %c0_18 = arith.constant 0 : index
      %20 = vector.load %arg7[%c0_17, %c0_18] : memref<1x64xf32, #tpu.memory_space<vmem>>, vector<1x64xf32>
      %cst_19 = arith.constant dense<0.000000e+00> : vector<64xf32>
      %21 = vector.multi_reduction <add>, %17, %cst_19 [0] : vector<8x64xf32> to vector<64xf32>
      %22 = vector.shape_cast %21 : vector<64xf32> to vector<1x64xf32>
      %23 = arith.addf %20, %22 : vector<1x64xf32>
      %c0_20 = arith.constant 0 : index
      %c0_21 = arith.constant 0 : index
      %24 = vector.load %arg7[%c0_20, %c0_21] : memref<1x64xf32, #tpu.memory_space<vmem>>, vector<1x64xf32>
      tpu.vector_store %arg7[%c0_20, %c0_21], %23 {strides = array<i32>} : memref<1x64xf32, #tpu.memory_space<vmem>>, vector<1x64xf32>,
      %c0_22 = arith.constant 0 : index
      %c0_23 = arith.constant 0 : index
      %25 = vector.load %arg8[%c0_22, %c0_23] : memref<1x64xf32, #tpu.memory_space<vmem>>, vector<1x64xf32>
      %26 = arith.mulf %17, %17 : vector<8x64xf32>
      %cst_24 = arith.constant dense<0.000000e+00> : vector<64xf32>
      %27 = vector.multi_reduction <add>, %26, %cst_24 [0] : vector<8x64xf32> to vector<64xf32>
      %28 = vector.shape_cast %27 : vector<64xf32> to vector<1x64xf32>
      %29 = arith.addf %25, %28 : vector<1x64xf32>
      %c0_25 = arith.constant 0 : index
      %c0_26 = arith.constant 0 : index
      %30 = vector.load %arg8[%c0_25, %c0_26] : memref<1x64xf32, #tpu.memory_space<vmem>>, vector<1x64xf32>
      tpu.vector_store %arg8[%c0_25, %c0_26], %29 {strides = array<i32>} : memref<1x64xf32, #tpu.memory_space<vmem>>, vector<1x64xf32>,
    } else {
    }
    return
  }
  func.func @transform_0(%arg0: i32, %arg1: i32, %arg2: i32) -> (i32, i32) {
    %c0_i32 = arith.constant 0 : i32
    return %arg1, %arg2 : i32, i32
  }
  func.func @transform_1(%arg0: i32, %arg1: i32, %arg2: i32) -> (i32, i32) {
    %c0_i32 = arith.constant 0 : i32
    return %arg2, %arg0 : i32, i32
  }
  func.func @transform_2(%arg0: i32, %arg1: i32, %arg2: i32) -> (i32, i32) {
    %c0_i32 = arith.constant 0 : i32
    %c0_i32_0 = arith.constant 0 : i32
    return %c0_i32, %arg0 : i32, i32
  }
  func.func @transform_3(%arg0: i32, %arg1: i32, %arg2: i32) -> (i32, i32) {
    %c0_i32 = arith.constant 0 : i32
    return %arg1, %arg0 : i32, i32
  }
  func.func @transform_4(%arg0: i32, %arg1: i32, %arg2: i32) -> (i32, i32) {
    %c0_i32 = arith.constant 0 : i32
    %c0_i32_0 = arith.constant 0 : i32
    return %c0_i32, %arg0 : i32, i32
  }
  func.func @transform_5(%arg0: i32, %arg1: i32, %arg2: i32) -> (i32, i32) {
    %c0_i32 = arith.constant 0 : i32
    %c0_i32_0 = arith.constant 0 : i32
    return %c0_i32, %arg0 : i32, i32
  }
}

module attributes {stable_mosaic.version = 11 : i64} {
  func.func @_conv_matmul_kernel(%arg0: i32, %arg1: i32, %arg2: i32, %arg3: memref<2x576xbf16, #tpu.memory_space<vmem>>, %arg4: memref<576x128xbf16, #tpu.memory_space<vmem>>, %arg5: memref<1x128xf32, #tpu.memory_space<vmem>>, %arg6: memref<2x128xbf16, #tpu.memory_space<vmem>>, %arg7: memref<1x128xf32, #tpu.memory_space<vmem>>, %arg8: memref<1x128xf32, #tpu.memory_space<vmem>>, %arg9: memref<2x128xf32, #tpu.memory_space<vmem>>) attributes {dimension_semantics = [#tpu.dimension_semantics<parallel>, #tpu.dimension_semantics<arbitrary>, #tpu.dimension_semantics<arbitrary>], iteration_bounds = array<i64: 1, 1, 1>, scalar_prefetch = 0 : i64, scratch_operands = 1 : i64, tpu.core_type = #tpu.core_type<tc>, window_params = [{transform_indices = @transform_0, window_bounds = array<i64: 2, 576>}, {transform_indices = @transform_1, window_bounds = array<i64: 576, 128>}, {transform_indices = @transform_2, window_bounds = array<i64: 1, 128>}, {transform_indices = @transform_3, window_bounds = array<i64: 2, 128>}, {transform_indices = @transform_4, window_bounds = array<i64: 1, 128>}, {transform_indices = @transform_5, window_bounds = array<i64: 1, 128>}]} {
    %c0_i32 = arith.constant 0 : i32
    %0 = arith.cmpi eq, %arg2, %c0_i32 : i32
    %1 = arith.extui %0 : i1 to i32
    %c0_i32_0 = arith.constant 0 : i32
    %2 = arith.cmpi ne, %1, %c0_i32_0 : i32
    scf.if %2 {
      %c0_13 = arith.constant 0 : index
      %c0_14 = arith.constant 0 : index
      %17 = vector.load %arg5[%c0_13, %c0_14] : memref<1x128xf32, #tpu.memory_space<vmem>>, vector<1x128xf32>
      %18 = vector.shape_cast %17 : vector<1x128xf32> to vector<1x128xf32>
      %19 = vector.broadcast %18 : vector<1x128xf32> to vector<2x128xf32>
      %c0_15 = arith.constant 0 : index
      %c0_16 = arith.constant 0 : index
      %20 = vector.load %arg9[%c0_15, %c0_16] : memref<2x128xf32, #tpu.memory_space<vmem>>, vector<2x128xf32>
      tpu.vector_store %arg9[%c0_15, %c0_16], %19 {strides = array<i32>} : memref<2x128xf32, #tpu.memory_space<vmem>>, vector<2x128xf32>,
    } else {
    }
    %c0 = arith.constant 0 : index
    %c0_1 = arith.constant 0 : index
    %3 = vector.load %arg9[%c0, %c0_1] : memref<2x128xf32, #tpu.memory_space<vmem>>, vector<2x128xf32>
    %c0_2 = arith.constant 0 : index
    %c0_3 = arith.constant 0 : index
    %4 = vector.load %arg3[%c0_2, %c0_3] : memref<2x576xbf16, #tpu.memory_space<vmem>>, vector<2x576xbf16>
    %c0_4 = arith.constant 0 : index
    %c0_5 = arith.constant 0 : index
    %5 = vector.load %arg4[%c0_4, %c0_5] : memref<576x128xbf16, #tpu.memory_space<vmem>>, vector<576x128xbf16>
    %cst = arith.constant dense<0.000000e+00> : vector<2x128xf32>
    %6 = tpu.matmul %4, %5, %cst {dimension_numbers = #tpu.dot_dimension_numbers<[1], [0], [0], [1], [0, 0, 1, 1], [], []>} : vector<2x576xbf16>, vector<576x128xbf16>, vector<2x128xf32> -> vector<2x128xf32>
    %7 = arith.addf %3, %6 : vector<2x128xf32>
    %c0_6 = arith.constant 0 : index
    %c0_7 = arith.constant 0 : index
    %8 = vector.load %arg9[%c0_6, %c0_7] : memref<2x128xf32, #tpu.memory_space<vmem>>, vector<2x128xf32>
    tpu.vector_store %arg9[%c0_6, %c0_7], %7 {strides = array<i32>} : memref<2x128xf32, #tpu.memory_space<vmem>>, vector<2x128xf32>,
    %c0_i32_8 = arith.constant 0 : i32
    %9 = arith.cmpi eq, %arg1, %c0_i32_8 : i32
    %c0_i32_9 = arith.constant 0 : i32
    %10 = arith.cmpi eq, %arg2, %c0_i32_9 : i32
    %11 = arith.andi %9, %10 : i1
    %12 = arith.extui %11 : i1 to i32
    %c0_i32_10 = arith.constant 0 : i32
    %13 = arith.cmpi ne, %12, %c0_i32_10 : i32
    scf.if %13 {
      %cst_13 = arith.constant 0.000000e+00 : f32
      %17 = vector.broadcast %cst_13 : f32 to vector<1x128xf32>
      %c0_14 = arith.constant 0 : index
      %c0_15 = arith.constant 0 : index
      %18 = vector.load %arg7[%c0_14, %c0_15] : memref<1x128xf32, #tpu.memory_space<vmem>>, vector<1x128xf32>
      tpu.vector_store %arg7[%c0_14, %c0_15], %17 {strides = array<i32>} : memref<1x128xf32, #tpu.memory_space<vmem>>, vector<1x128xf32>,
      %cst_16 = arith.constant 0.000000e+00 : f32
      %19 = vector.broadcast %cst_16 : f32 to vector<1x128xf32>
      %c0_17 = arith.constant 0 : index
      %c0_18 = arith.constant 0 : index
      %20 = vector.load %arg8[%c0_17, %c0_18] : memref<1x128xf32, #tpu.memory_space<vmem>>, vector<1x128xf32>
      tpu.vector_store %arg8[%c0_17, %c0_18], %19 {strides = array<i32>} : memref<1x128xf32, #tpu.memory_space<vmem>>, vector<1x128xf32>,
    } else {
    }
    %c0_i32_11 = arith.constant 0 : i32
    %14 = arith.cmpi eq, %arg2, %c0_i32_11 : i32
    %15 = arith.extui %14 : i1 to i32
    %c0_i32_12 = arith.constant 0 : i32
    %16 = arith.cmpi ne, %15, %c0_i32_12 : i32
    scf.if %16 {
      %c0_13 = arith.constant 0 : index
      %c0_14 = arith.constant 0 : index
      %17 = vector.load %arg9[%c0_13, %c0_14] : memref<2x128xf32, #tpu.memory_space<vmem>>, vector<2x128xf32>
      %18 = arith.truncf %17 : vector<2x128xf32> to vector<2x128xbf16>
      %c0_15 = arith.constant 0 : index
      %c0_16 = arith.constant 0 : index
      %19 = vector.load %arg6[%c0_15, %c0_16] : memref<2x128xbf16, #tpu.memory_space<vmem>>, vector<2x128xbf16>
      tpu.vector_store %arg6[%c0_15, %c0_16], %18 {strides = array<i32>} : memref<2x128xbf16, #tpu.memory_space<vmem>>, vector<2x128xbf16>,
      %c0_17 = arith.constant 0 : index
      %c0_18 = arith.constant 0 : index
      %20 = vector.load %arg7[%c0_17, %c0_18] : memref<1x128xf32, #tpu.memory_space<vmem>>, vector<1x128xf32>
      %cst_19 = arith.constant dense<0.000000e+00> : vector<128xf32>
      %21 = vector.multi_reduction <add>, %17, %cst_19 [0] : vector<2x128xf32> to vector<128xf32>
      %22 = vector.shape_cast %21 : vector<128xf32> to vector<1x128xf32>
      %23 = arith.addf %20, %22 : vector<1x128xf32>
      %c0_20 = arith.constant 0 : index
      %c0_21 = arith.constant 0 : index
      %24 = vector.load %arg7[%c0_20, %c0_21] : memref<1x128xf32, #tpu.memory_space<vmem>>, vector<1x128xf32>
      tpu.vector_store %arg7[%c0_20, %c0_21], %23 {strides = array<i32>} : memref<1x128xf32, #tpu.memory_space<vmem>>, vector<1x128xf32>,
      %c0_22 = arith.constant 0 : index
      %c0_23 = arith.constant 0 : index
      %25 = vector.load %arg8[%c0_22, %c0_23] : memref<1x128xf32, #tpu.memory_space<vmem>>, vector<1x128xf32>
      %26 = arith.mulf %17, %17 : vector<2x128xf32>
      %cst_24 = arith.constant dense<0.000000e+00> : vector<128xf32>
      %27 = vector.multi_reduction <add>, %26, %cst_24 [0] : vector<2x128xf32> to vector<128xf32>
      %28 = vector.shape_cast %27 : vector<128xf32> to vector<1x128xf32>
      %29 = arith.addf %25, %28 : vector<1x128xf32>
      %c0_25 = arith.constant 0 : index
      %c0_26 = arith.constant 0 : index
      %30 = vector.load %arg8[%c0_25, %c0_26] : memref<1x128xf32, #tpu.memory_space<vmem>>, vector<1x128xf32>
      tpu.vector_store %arg8[%c0_25, %c0_26], %29 {strides = array<i32>} : memref<1x128xf32, #tpu.memory_space<vmem>>, vector<1x128xf32>,
    } else {
    }
    return
  }
  func.func @transform_0(%arg0: i32, %arg1: i32, %arg2: i32) -> (i32, i32) {
    %c0_i32 = arith.constant 0 : i32
    return %arg1, %arg2 : i32, i32
  }
  func.func @transform_1(%arg0: i32, %arg1: i32, %arg2: i32) -> (i32, i32) {
    %c0_i32 = arith.constant 0 : i32
    return %arg2, %arg0 : i32, i32
  }
  func.func @transform_2(%arg0: i32, %arg1: i32, %arg2: i32) -> (i32, i32) {
    %c0_i32 = arith.constant 0 : i32
    %c0_i32_0 = arith.constant 0 : i32
    return %c0_i32, %arg0 : i32, i32
  }
  func.func @transform_3(%arg0: i32, %arg1: i32, %arg2: i32) -> (i32, i32) {
    %c0_i32 = arith.constant 0 : i32
    return %arg1, %arg0 : i32, i32
  }
  func.func @transform_4(%arg0: i32, %arg1: i32, %arg2: i32) -> (i32, i32) {
    %c0_i32 = arith.constant 0 : i32
    %c0_i32_0 = arith.constant 0 : i32
    return %c0_i32, %arg0 : i32, i32
  }
  func.func @transform_5(%arg0: i32, %arg1: i32, %arg2: i32) -> (i32, i32) {
    %c0_i32 = arith.constant 0 : i32
    %c0_i32_0 = arith.constant 0 : i32
    return %c0_i32, %arg0 : i32, i32
  }
}

module attributes {stable_mosaic.version = 11 : i64} {
  func.func @_affine_relu_kernel(%arg0: i32, %arg1: memref<2x128xbf16, #tpu.memory_space<vmem>>, %arg2: memref<1x128xf32, #tpu.memory_space<vmem>>, %arg3: memref<1x128xf32, #tpu.memory_space<vmem>>, %arg4: memref<2x128xbf16, #tpu.memory_space<vmem>>) attributes {dimension_semantics = [#tpu.dimension_semantics<parallel>], iteration_bounds = array<i64: 1>, scalar_prefetch = 0 : i64, scratch_operands = 0 : i64, tpu.core_type = #tpu.core_type<tc>, window_params = [{transform_indices = @transform_0, window_bounds = array<i64: 2, 128>}, {pipeline_mode = #tpu.pipeline_mode<synchronous>, transform_indices = @transform_1, window_bounds = array<i64: 1, 128>}, {pipeline_mode = #tpu.pipeline_mode<synchronous>, transform_indices = @transform_2, window_bounds = array<i64: 1, 128>}, {transform_indices = @transform_3, window_bounds = array<i64: 2, 128>}]} {
    %c0 = arith.constant 0 : index
    %c0_0 = arith.constant 0 : index
    %0 = vector.load %arg1[%c0, %c0_0] : memref<2x128xbf16, #tpu.memory_space<vmem>>, vector<2x128xbf16>
    %1 = arith.extf %0 : vector<2x128xbf16> to vector<2x128xf32>
    %c0_1 = arith.constant 0 : index
    %c0_2 = arith.constant 0 : index
    %2 = vector.load %arg2[%c0_1, %c0_2] : memref<1x128xf32, #tpu.memory_space<vmem>>, vector<1x128xf32>
    %3 = vector.broadcast %2 : vector<1x128xf32> to vector<2x128xf32>
    %4 = arith.mulf %1, %3 : vector<2x128xf32>
    %c0_3 = arith.constant 0 : index
    %c0_4 = arith.constant 0 : index
    %5 = vector.load %arg3[%c0_3, %c0_4] : memref<1x128xf32, #tpu.memory_space<vmem>>, vector<1x128xf32>
    %6 = vector.broadcast %5 : vector<1x128xf32> to vector<2x128xf32>
    %7 = arith.addf %4, %6 : vector<2x128xf32>
    %cst = arith.constant 0.000000e+00 : f32
    %8 = vector.broadcast %cst : f32 to vector<2x128xf32>
    %9 = arith.maximumf %7, %8 : vector<2x128xf32>
    %10 = arith.truncf %9 : vector<2x128xf32> to vector<2x128xbf16>
    %c0_5 = arith.constant 0 : index
    %c0_6 = arith.constant 0 : index
    %11 = vector.load %arg4[%c0_5, %c0_6] : memref<2x128xbf16, #tpu.memory_space<vmem>>, vector<2x128xbf16>
    tpu.vector_store %arg4[%c0_5, %c0_6], %10 {strides = array<i32>} : memref<2x128xbf16, #tpu.memory_space<vmem>>, vector<2x128xbf16>,
    return
  }
  func.func @transform_0(%arg0: i32) -> (i32, i32) {
    %c0_i32 = arith.constant 0 : i32
    %c0_i32_0 = arith.constant 0 : i32
    return %arg0, %c0_i32 : i32, i32
  }
  func.func @transform_1(%arg0: i32) -> (i32, i32) {
    %c0_i32 = arith.constant 0 : i32
    %c0_i32_0 = arith.constant 0 : i32
    %c0_i32_1 = arith.constant 0 : i32
    return %c0_i32, %c0_i32_0 : i32, i32
  }
  func.func @transform_2(%arg0: i32) -> (i32, i32) {
    %c0_i32 = arith.constant 0 : i32
    %c0_i32_0 = arith.constant 0 : i32
    %c0_i32_1 = arith.constant 0 : i32
    return %c0_i32, %c0_i32_0 : i32, i32
  }
  func.func @transform_3(%arg0: i32) -> (i32, i32) {
    %c0_i32 = arith.constant 0 : i32
    %c0_i32_0 = arith.constant 0 : i32
    return %arg0, %c0_i32 : i32, i32
  }
}

module attributes {stable_mosaic.version = 11 : i64} {
  func.func @_conv_matmul_kernel(%arg0: i32, %arg1: i32, %arg2: i32, %arg3: memref<2x512xbf16, #tpu.memory_space<vmem>>, %arg4: memref<512x256xbf16, #tpu.memory_space<vmem>>, %arg5: memref<1x256xf32, #tpu.memory_space<vmem>>, %arg6: memref<2x256xbf16, #tpu.memory_space<vmem>>, %arg7: memref<1x256xf32, #tpu.memory_space<vmem>>, %arg8: memref<1x256xf32, #tpu.memory_space<vmem>>, %arg9: memref<2x256xf32, #tpu.memory_space<vmem>>) attributes {dimension_semantics = [#tpu.dimension_semantics<parallel>, #tpu.dimension_semantics<arbitrary>, #tpu.dimension_semantics<arbitrary>], iteration_bounds = array<i64: 1, 1, 1>, scalar_prefetch = 0 : i64, scratch_operands = 1 : i64, tpu.core_type = #tpu.core_type<tc>, window_params = [{transform_indices = @transform_0, window_bounds = array<i64: 2, 512>}, {transform_indices = @transform_1, window_bounds = array<i64: 512, 256>}, {transform_indices = @transform_2, window_bounds = array<i64: 1, 256>}, {transform_indices = @transform_3, window_bounds = array<i64: 2, 256>}, {transform_indices = @transform_4, window_bounds = array<i64: 1, 256>}, {transform_indices = @transform_5, window_bounds = array<i64: 1, 256>}]} {
    %c0_i32 = arith.constant 0 : i32
    %0 = arith.cmpi eq, %arg2, %c0_i32 : i32
    %1 = arith.extui %0 : i1 to i32
    %c0_i32_0 = arith.constant 0 : i32
    %2 = arith.cmpi ne, %1, %c0_i32_0 : i32
    scf.if %2 {
      %c0_13 = arith.constant 0 : index
      %c0_14 = arith.constant 0 : index
      %17 = vector.load %arg5[%c0_13, %c0_14] : memref<1x256xf32, #tpu.memory_space<vmem>>, vector<1x256xf32>
      %18 = vector.shape_cast %17 : vector<1x256xf32> to vector<1x256xf32>
      %19 = vector.broadcast %18 : vector<1x256xf32> to vector<2x256xf32>
      %c0_15 = arith.constant 0 : index
      %c0_16 = arith.constant 0 : index
      %20 = vector.load %arg9[%c0_15, %c0_16] : memref<2x256xf32, #tpu.memory_space<vmem>>, vector<2x256xf32>
      tpu.vector_store %arg9[%c0_15, %c0_16], %19 {strides = array<i32>} : memref<2x256xf32, #tpu.memory_space<vmem>>, vector<2x256xf32>,
    } else {
    }
    %c0 = arith.constant 0 : index
    %c0_1 = arith.constant 0 : index
    %3 = vector.load %arg9[%c0, %c0_1] : memref<2x256xf32, #tpu.memory_space<vmem>>, vector<2x256xf32>
    %c0_2 = arith.constant 0 : index
    %c0_3 = arith.constant 0 : index
    %4 = vector.load %arg3[%c0_2, %c0_3] : memref<2x512xbf16, #tpu.memory_space<vmem>>, vector<2x512xbf16>
    %c0_4 = arith.constant 0 : index
    %c0_5 = arith.constant 0 : index
    %5 = vector.load %arg4[%c0_4, %c0_5] : memref<512x256xbf16, #tpu.memory_space<vmem>>, vector<512x256xbf16>
    %cst = arith.constant dense<0.000000e+00> : vector<2x256xf32>
    %6 = tpu.matmul %4, %5, %cst {dimension_numbers = #tpu.dot_dimension_numbers<[1], [0], [0], [1], [0, 0, 1, 1], [], []>} : vector<2x512xbf16>, vector<512x256xbf16>, vector<2x256xf32> -> vector<2x256xf32>
    %7 = arith.addf %3, %6 : vector<2x256xf32>
    %c0_6 = arith.constant 0 : index
    %c0_7 = arith.constant 0 : index
    %8 = vector.load %arg9[%c0_6, %c0_7] : memref<2x256xf32, #tpu.memory_space<vmem>>, vector<2x256xf32>
    tpu.vector_store %arg9[%c0_6, %c0_7], %7 {strides = array<i32>} : memref<2x256xf32, #tpu.memory_space<vmem>>, vector<2x256xf32>,
    %c0_i32_8 = arith.constant 0 : i32
    %9 = arith.cmpi eq, %arg1, %c0_i32_8 : i32
    %c0_i32_9 = arith.constant 0 : i32
    %10 = arith.cmpi eq, %arg2, %c0_i32_9 : i32
    %11 = arith.andi %9, %10 : i1
    %12 = arith.extui %11 : i1 to i32
    %c0_i32_10 = arith.constant 0 : i32
    %13 = arith.cmpi ne, %12, %c0_i32_10 : i32
    scf.if %13 {
      %cst_13 = arith.constant 0.000000e+00 : f32
      %17 = vector.broadcast %cst_13 : f32 to vector<1x256xf32>
      %c0_14 = arith.constant 0 : index
      %c0_15 = arith.constant 0 : index
      %18 = vector.load %arg7[%c0_14, %c0_15] : memref<1x256xf32, #tpu.memory_space<vmem>>, vector<1x256xf32>
      tpu.vector_store %arg7[%c0_14, %c0_15], %17 {strides = array<i32>} : memref<1x256xf32, #tpu.memory_space<vmem>>, vector<1x256xf32>,
      %cst_16 = arith.constant 0.000000e+00 : f32
      %19 = vector.broadcast %cst_16 : f32 to vector<1x256xf32>
      %c0_17 = arith.constant 0 : index
      %c0_18 = arith.constant 0 : index
      %20 = vector.load %arg8[%c0_17, %c0_18] : memref<1x256xf32, #tpu.memory_space<vmem>>, vector<1x256xf32>
      tpu.vector_store %arg8[%c0_17, %c0_18], %19 {strides = array<i32>} : memref<1x256xf32, #tpu.memory_space<vmem>>, vector<1x256xf32>,
    } else {
    }
    %c0_i32_11 = arith.constant 0 : i32
    %14 = arith.cmpi eq, %arg2, %c0_i32_11 : i32
    %15 = arith.extui %14 : i1 to i32
    %c0_i32_12 = arith.constant 0 : i32
    %16 = arith.cmpi ne, %15, %c0_i32_12 : i32
    scf.if %16 {
      %c0_13 = arith.constant 0 : index
      %c0_14 = arith.constant 0 : index
      %17 = vector.load %arg9[%c0_13, %c0_14] : memref<2x256xf32, #tpu.memory_space<vmem>>, vector<2x256xf32>
      %18 = arith.truncf %17 : vector<2x256xf32> to vector<2x256xbf16>
      %c0_15 = arith.constant 0 : index
      %c0_16 = arith.constant 0 : index
      %19 = vector.load %arg6[%c0_15, %c0_16] : memref<2x256xbf16, #tpu.memory_space<vmem>>, vector<2x256xbf16>
      tpu.vector_store %arg6[%c0_15, %c0_16], %18 {strides = array<i32>} : memref<2x256xbf16, #tpu.memory_space<vmem>>, vector<2x256xbf16>,
      %c0_17 = arith.constant 0 : index
      %c0_18 = arith.constant 0 : index
      %20 = vector.load %arg7[%c0_17, %c0_18] : memref<1x256xf32, #tpu.memory_space<vmem>>, vector<1x256xf32>
      %cst_19 = arith.constant dense<0.000000e+00> : vector<256xf32>
      %21 = vector.multi_reduction <add>, %17, %cst_19 [0] : vector<2x256xf32> to vector<256xf32>
      %22 = vector.shape_cast %21 : vector<256xf32> to vector<1x256xf32>
      %23 = arith.addf %20, %22 : vector<1x256xf32>
      %c0_20 = arith.constant 0 : index
      %c0_21 = arith.constant 0 : index
      %24 = vector.load %arg7[%c0_20, %c0_21] : memref<1x256xf32, #tpu.memory_space<vmem>>, vector<1x256xf32>
      tpu.vector_store %arg7[%c0_20, %c0_21], %23 {strides = array<i32>} : memref<1x256xf32, #tpu.memory_space<vmem>>, vector<1x256xf32>,
      %c0_22 = arith.constant 0 : index
      %c0_23 = arith.constant 0 : index
      %25 = vector.load %arg8[%c0_22, %c0_23] : memref<1x256xf32, #tpu.memory_space<vmem>>, vector<1x256xf32>
      %26 = arith.mulf %17, %17 : vector<2x256xf32>
      %cst_24 = arith.constant dense<0.000000e+00> : vector<256xf32>
      %27 = vector.multi_reduction <add>, %26, %cst_24 [0] : vector<2x256xf32> to vector<256xf32>
      %28 = vector.shape_cast %27 : vector<256xf32> to vector<1x256xf32>
      %29 = arith.addf %25, %28 : vector<1x256xf32>
      %c0_25 = arith.constant 0 : index
      %c0_26 = arith.constant 0 : index
      %30 = vector.load %arg8[%c0_25, %c0_26] : memref<1x256xf32, #tpu.memory_space<vmem>>, vector<1x256xf32>
      tpu.vector_store %arg8[%c0_25, %c0_26], %29 {strides = array<i32>} : memref<1x256xf32, #tpu.memory_space<vmem>>, vector<1x256xf32>,
    } else {
    }
    return
  }
  func.func @transform_0(%arg0: i32, %arg1: i32, %arg2: i32) -> (i32, i32) {
    %c0_i32 = arith.constant 0 : i32
    return %arg1, %arg2 : i32, i32
  }
  func.func @transform_1(%arg0: i32, %arg1: i32, %arg2: i32) -> (i32, i32) {
    %c0_i32 = arith.constant 0 : i32
    return %arg2, %arg0 : i32, i32
  }
  func.func @transform_2(%arg0: i32, %arg1: i32, %arg2: i32) -> (i32, i32) {
    %c0_i32 = arith.constant 0 : i32
    %c0_i32_0 = arith.constant 0 : i32
    return %c0_i32, %arg0 : i32, i32
  }
  func.func @transform_3(%arg0: i32, %arg1: i32, %arg2: i32) -> (i32, i32) {
    %c0_i32 = arith.constant 0 : i32
    return %arg1, %arg0 : i32, i32
  }
  func.func @transform_4(%arg0: i32, %arg1: i32, %arg2: i32) -> (i32, i32) {
    %c0_i32 = arith.constant 0 : i32
    %c0_i32_0 = arith.constant 0 : i32
    return %c0_i32, %arg0 : i32, i32
  }
  func.func @transform_5(%arg0: i32, %arg1: i32, %arg2: i32) -> (i32, i32) {
    %c0_i32 = arith.constant 0 : i32
    %c0_i32_0 = arith.constant 0 : i32
    return %c0_i32, %arg0 : i32, i32
  }
}

module attributes {stable_mosaic.version = 11 : i64} {
  func.func @_conv_matmul_kernel(%arg0: i32, %arg1: i32, %arg2: i32, %arg3: memref<8x256xbf16, #tpu.memory_space<vmem>>, %arg4: memref<256x128xbf16, #tpu.memory_space<vmem>>, %arg5: memref<1x128xf32, #tpu.memory_space<vmem>>, %arg6: memref<8x128xbf16, #tpu.memory_space<vmem>>, %arg7: memref<1x128xf32, #tpu.memory_space<vmem>>, %arg8: memref<1x128xf32, #tpu.memory_space<vmem>>, %arg9: memref<8x128xf32, #tpu.memory_space<vmem>>) attributes {dimension_semantics = [#tpu.dimension_semantics<parallel>, #tpu.dimension_semantics<arbitrary>, #tpu.dimension_semantics<arbitrary>], iteration_bounds = array<i64: 1, 1, 1>, scalar_prefetch = 0 : i64, scratch_operands = 1 : i64, tpu.core_type = #tpu.core_type<tc>, window_params = [{transform_indices = @transform_0, window_bounds = array<i64: 8, 256>}, {transform_indices = @transform_1, window_bounds = array<i64: 256, 128>}, {transform_indices = @transform_2, window_bounds = array<i64: 1, 128>}, {transform_indices = @transform_3, window_bounds = array<i64: 8, 128>}, {transform_indices = @transform_4, window_bounds = array<i64: 1, 128>}, {transform_indices = @transform_5, window_bounds = array<i64: 1, 128>}]} {
    %c0_i32 = arith.constant 0 : i32
    %0 = arith.cmpi eq, %arg2, %c0_i32 : i32
    %1 = arith.extui %0 : i1 to i32
    %c0_i32_0 = arith.constant 0 : i32
    %2 = arith.cmpi ne, %1, %c0_i32_0 : i32
    scf.if %2 {
      %c0_13 = arith.constant 0 : index
      %c0_14 = arith.constant 0 : index
      %17 = vector.load %arg5[%c0_13, %c0_14] : memref<1x128xf32, #tpu.memory_space<vmem>>, vector<1x128xf32>
      %18 = vector.shape_cast %17 : vector<1x128xf32> to vector<1x128xf32>
      %19 = vector.broadcast %18 : vector<1x128xf32> to vector<8x128xf32>
      %c0_15 = arith.constant 0 : index
      %c0_16 = arith.constant 0 : index
      %20 = vector.load %arg9[%c0_15, %c0_16] : memref<8x128xf32, #tpu.memory_space<vmem>>, vector<8x128xf32>
      tpu.vector_store %arg9[%c0_15, %c0_16], %19 {strides = array<i32>} : memref<8x128xf32, #tpu.memory_space<vmem>>, vector<8x128xf32>,
    } else {
    }
    %c0 = arith.constant 0 : index
    %c0_1 = arith.constant 0 : index
    %3 = vector.load %arg9[%c0, %c0_1] : memref<8x128xf32, #tpu.memory_space<vmem>>, vector<8x128xf32>
    %c0_2 = arith.constant 0 : index
    %c0_3 = arith.constant 0 : index
    %4 = vector.load %arg3[%c0_2, %c0_3] : memref<8x256xbf16, #tpu.memory_space<vmem>>, vector<8x256xbf16>
    %c0_4 = arith.constant 0 : index
    %c0_5 = arith.constant 0 : index
    %5 = vector.load %arg4[%c0_4, %c0_5] : memref<256x128xbf16, #tpu.memory_space<vmem>>, vector<256x128xbf16>
    %cst = arith.constant dense<0.000000e+00> : vector<8x128xf32>
    %6 = tpu.matmul %4, %5, %cst {dimension_numbers = #tpu.dot_dimension_numbers<[1], [0], [0], [1], [0, 0, 1, 1], [], []>} : vector<8x256xbf16>, vector<256x128xbf16>, vector<8x128xf32> -> vector<8x128xf32>
    %7 = arith.addf %3, %6 : vector<8x128xf32>
    %c0_6 = arith.constant 0 : index
    %c0_7 = arith.constant 0 : index
    %8 = vector.load %arg9[%c0_6, %c0_7] : memref<8x128xf32, #tpu.memory_space<vmem>>, vector<8x128xf32>
    tpu.vector_store %arg9[%c0_6, %c0_7], %7 {strides = array<i32>} : memref<8x128xf32, #tpu.memory_space<vmem>>, vector<8x128xf32>,
    %c0_i32_8 = arith.constant 0 : i32
    %9 = arith.cmpi eq, %arg1, %c0_i32_8 : i32
    %c0_i32_9 = arith.constant 0 : i32
    %10 = arith.cmpi eq, %arg2, %c0_i32_9 : i32
    %11 = arith.andi %9, %10 : i1
    %12 = arith.extui %11 : i1 to i32
    %c0_i32_10 = arith.constant 0 : i32
    %13 = arith.cmpi ne, %12, %c0_i32_10 : i32
    scf.if %13 {
      %cst_13 = arith.constant 0.000000e+00 : f32
      %17 = vector.broadcast %cst_13 : f32 to vector<1x128xf32>
      %c0_14 = arith.constant 0 : index
      %c0_15 = arith.constant 0 : index
      %18 = vector.load %arg7[%c0_14, %c0_15] : memref<1x128xf32, #tpu.memory_space<vmem>>, vector<1x128xf32>
      tpu.vector_store %arg7[%c0_14, %c0_15], %17 {strides = array<i32>} : memref<1x128xf32, #tpu.memory_space<vmem>>, vector<1x128xf32>,
      %cst_16 = arith.constant 0.000000e+00 : f32
      %19 = vector.broadcast %cst_16 : f32 to vector<1x128xf32>
      %c0_17 = arith.constant 0 : index
      %c0_18 = arith.constant 0 : index
      %20 = vector.load %arg8[%c0_17, %c0_18] : memref<1x128xf32, #tpu.memory_space<vmem>>, vector<1x128xf32>
      tpu.vector_store %arg8[%c0_17, %c0_18], %19 {strides = array<i32>} : memref<1x128xf32, #tpu.memory_space<vmem>>, vector<1x128xf32>,
    } else {
    }
    %c0_i32_11 = arith.constant 0 : i32
    %14 = arith.cmpi eq, %arg2, %c0_i32_11 : i32
    %15 = arith.extui %14 : i1 to i32
    %c0_i32_12 = arith.constant 0 : i32
    %16 = arith.cmpi ne, %15, %c0_i32_12 : i32
    scf.if %16 {
      %c0_13 = arith.constant 0 : index
      %c0_14 = arith.constant 0 : index
      %17 = vector.load %arg9[%c0_13, %c0_14] : memref<8x128xf32, #tpu.memory_space<vmem>>, vector<8x128xf32>
      %18 = arith.truncf %17 : vector<8x128xf32> to vector<8x128xbf16>
      %c0_15 = arith.constant 0 : index
      %c0_16 = arith.constant 0 : index
      %19 = vector.load %arg6[%c0_15, %c0_16] : memref<8x128xbf16, #tpu.memory_space<vmem>>, vector<8x128xbf16>
      tpu.vector_store %arg6[%c0_15, %c0_16], %18 {strides = array<i32>} : memref<8x128xbf16, #tpu.memory_space<vmem>>, vector<8x128xbf16>,
      %c0_17 = arith.constant 0 : index
      %c0_18 = arith.constant 0 : index
      %20 = vector.load %arg7[%c0_17, %c0_18] : memref<1x128xf32, #tpu.memory_space<vmem>>, vector<1x128xf32>
      %cst_19 = arith.constant dense<0.000000e+00> : vector<128xf32>
      %21 = vector.multi_reduction <add>, %17, %cst_19 [0] : vector<8x128xf32> to vector<128xf32>
      %22 = vector.shape_cast %21 : vector<128xf32> to vector<1x128xf32>
      %23 = arith.addf %20, %22 : vector<1x128xf32>
      %c0_20 = arith.constant 0 : index
      %c0_21 = arith.constant 0 : index
      %24 = vector.load %arg7[%c0_20, %c0_21] : memref<1x128xf32, #tpu.memory_space<vmem>>, vector<1x128xf32>
      tpu.vector_store %arg7[%c0_20, %c0_21], %23 {strides = array<i32>} : memref<1x128xf32, #tpu.memory_space<vmem>>, vector<1x128xf32>,
      %c0_22 = arith.constant 0 : index
      %c0_23 = arith.constant 0 : index
      %25 = vector.load %arg8[%c0_22, %c0_23] : memref<1x128xf32, #tpu.memory_space<vmem>>, vector<1x128xf32>
      %26 = arith.mulf %17, %17 : vector<8x128xf32>
      %cst_24 = arith.constant dense<0.000000e+00> : vector<128xf32>
      %27 = vector.multi_reduction <add>, %26, %cst_24 [0] : vector<8x128xf32> to vector<128xf32>
      %28 = vector.shape_cast %27 : vector<128xf32> to vector<1x128xf32>
      %29 = arith.addf %25, %28 : vector<1x128xf32>
      %c0_25 = arith.constant 0 : index
      %c0_26 = arith.constant 0 : index
      %30 = vector.load %arg8[%c0_25, %c0_26] : memref<1x128xf32, #tpu.memory_space<vmem>>, vector<1x128xf32>
      tpu.vector_store %arg8[%c0_25, %c0_26], %29 {strides = array<i32>} : memref<1x128xf32, #tpu.memory_space<vmem>>, vector<1x128xf32>,
    } else {
    }
    return
  }
  func.func @transform_0(%arg0: i32, %arg1: i32, %arg2: i32) -> (i32, i32) {
    %c0_i32 = arith.constant 0 : i32
    return %arg1, %arg2 : i32, i32
  }
  func.func @transform_1(%arg0: i32, %arg1: i32, %arg2: i32) -> (i32, i32) {
    %c0_i32 = arith.constant 0 : i32
    return %arg2, %arg0 : i32, i32
  }
  func.func @transform_2(%arg0: i32, %arg1: i32, %arg2: i32) -> (i32, i32) {
    %c0_i32 = arith.constant 0 : i32
    %c0_i32_0 = arith.constant 0 : i32
    return %c0_i32, %arg0 : i32, i32
  }
  func.func @transform_3(%arg0: i32, %arg1: i32, %arg2: i32) -> (i32, i32) {
    %c0_i32 = arith.constant 0 : i32
    return %arg1, %arg0 : i32, i32
  }
  func.func @transform_4(%arg0: i32, %arg1: i32, %arg2: i32) -> (i32, i32) {
    %c0_i32 = arith.constant 0 : i32
    %c0_i32_0 = arith.constant 0 : i32
    return %c0_i32, %arg0 : i32, i32
  }
  func.func @transform_5(%arg0: i32, %arg1: i32, %arg2: i32) -> (i32, i32) {
    %c0_i32 = arith.constant 0 : i32
    %c0_i32_0 = arith.constant 0 : i32
    return %c0_i32, %arg0 : i32, i32
  }
}

module attributes {stable_mosaic.version = 11 : i64} {
  func.func @_conv_matmul_kernel(%arg0: i32, %arg1: i32, %arg2: i32, %arg3: memref<32x128xbf16, #tpu.memory_space<vmem>>, %arg4: memref<128x64xbf16, #tpu.memory_space<vmem>>, %arg5: memref<1x64xf32, #tpu.memory_space<vmem>>, %arg6: memref<32x64xbf16, #tpu.memory_space<vmem>>, %arg7: memref<1x64xf32, #tpu.memory_space<vmem>>, %arg8: memref<1x64xf32, #tpu.memory_space<vmem>>, %arg9: memref<32x64xf32, #tpu.memory_space<vmem>>) attributes {dimension_semantics = [#tpu.dimension_semantics<parallel>, #tpu.dimension_semantics<arbitrary>, #tpu.dimension_semantics<arbitrary>], iteration_bounds = array<i64: 1, 1, 1>, scalar_prefetch = 0 : i64, scratch_operands = 1 : i64, tpu.core_type = #tpu.core_type<tc>, window_params = [{transform_indices = @transform_0, window_bounds = array<i64: 32, 128>}, {transform_indices = @transform_1, window_bounds = array<i64: 128, 64>}, {transform_indices = @transform_2, window_bounds = array<i64: 1, 64>}, {transform_indices = @transform_3, window_bounds = array<i64: 32, 64>}, {transform_indices = @transform_4, window_bounds = array<i64: 1, 64>}, {transform_indices = @transform_5, window_bounds = array<i64: 1, 64>}]} {
    %c0_i32 = arith.constant 0 : i32
    %0 = arith.cmpi eq, %arg2, %c0_i32 : i32
    %1 = arith.extui %0 : i1 to i32
    %c0_i32_0 = arith.constant 0 : i32
    %2 = arith.cmpi ne, %1, %c0_i32_0 : i32
    scf.if %2 {
      %c0_13 = arith.constant 0 : index
      %c0_14 = arith.constant 0 : index
      %17 = vector.load %arg5[%c0_13, %c0_14] : memref<1x64xf32, #tpu.memory_space<vmem>>, vector<1x64xf32>
      %18 = vector.shape_cast %17 : vector<1x64xf32> to vector<1x64xf32>
      %19 = vector.broadcast %18 : vector<1x64xf32> to vector<32x64xf32>
      %c0_15 = arith.constant 0 : index
      %c0_16 = arith.constant 0 : index
      %20 = vector.load %arg9[%c0_15, %c0_16] : memref<32x64xf32, #tpu.memory_space<vmem>>, vector<32x64xf32>
      tpu.vector_store %arg9[%c0_15, %c0_16], %19 {strides = array<i32>} : memref<32x64xf32, #tpu.memory_space<vmem>>, vector<32x64xf32>,
    } else {
    }
    %c0 = arith.constant 0 : index
    %c0_1 = arith.constant 0 : index
    %3 = vector.load %arg9[%c0, %c0_1] : memref<32x64xf32, #tpu.memory_space<vmem>>, vector<32x64xf32>
    %c0_2 = arith.constant 0 : index
    %c0_3 = arith.constant 0 : index
    %4 = vector.load %arg3[%c0_2, %c0_3] : memref<32x128xbf16, #tpu.memory_space<vmem>>, vector<32x128xbf16>
    %c0_4 = arith.constant 0 : index
    %c0_5 = arith.constant 0 : index
    %5 = vector.load %arg4[%c0_4, %c0_5] : memref<128x64xbf16, #tpu.memory_space<vmem>>, vector<128x64xbf16>
    %cst = arith.constant dense<0.000000e+00> : vector<32x64xf32>
    %6 = tpu.matmul %4, %5, %cst {dimension_numbers = #tpu.dot_dimension_numbers<[1], [0], [0], [1], [0, 0, 1, 1], [], []>} : vector<32x128xbf16>, vector<128x64xbf16>, vector<32x64xf32> -> vector<32x64xf32>
    %7 = arith.addf %3, %6 : vector<32x64xf32>
    %c0_6 = arith.constant 0 : index
    %c0_7 = arith.constant 0 : index
    %8 = vector.load %arg9[%c0_6, %c0_7] : memref<32x64xf32, #tpu.memory_space<vmem>>, vector<32x64xf32>
    tpu.vector_store %arg9[%c0_6, %c0_7], %7 {strides = array<i32>} : memref<32x64xf32, #tpu.memory_space<vmem>>, vector<32x64xf32>,
    %c0_i32_8 = arith.constant 0 : i32
    %9 = arith.cmpi eq, %arg1, %c0_i32_8 : i32
    %c0_i32_9 = arith.constant 0 : i32
    %10 = arith.cmpi eq, %arg2, %c0_i32_9 : i32
    %11 = arith.andi %9, %10 : i1
    %12 = arith.extui %11 : i1 to i32
    %c0_i32_10 = arith.constant 0 : i32
    %13 = arith.cmpi ne, %12, %c0_i32_10 : i32
    scf.if %13 {
      %cst_13 = arith.constant 0.000000e+00 : f32
      %17 = vector.broadcast %cst_13 : f32 to vector<1x64xf32>
      %c0_14 = arith.constant 0 : index
      %c0_15 = arith.constant 0 : index
      %18 = vector.load %arg7[%c0_14, %c0_15] : memref<1x64xf32, #tpu.memory_space<vmem>>, vector<1x64xf32>
      tpu.vector_store %arg7[%c0_14, %c0_15], %17 {strides = array<i32>} : memref<1x64xf32, #tpu.memory_space<vmem>>, vector<1x64xf32>,
      %cst_16 = arith.constant 0.000000e+00 : f32
      %19 = vector.broadcast %cst_16 : f32 to vector<1x64xf32>
      %c0_17 = arith.constant 0 : index
      %c0_18 = arith.constant 0 : index
      %20 = vector.load %arg8[%c0_17, %c0_18] : memref<1x64xf32, #tpu.memory_space<vmem>>, vector<1x64xf32>
      tpu.vector_store %arg8[%c0_17, %c0_18], %19 {strides = array<i32>} : memref<1x64xf32, #tpu.memory_space<vmem>>, vector<1x64xf32>,
    } else {
    }
    %c0_i32_11 = arith.constant 0 : i32
    %14 = arith.cmpi eq, %arg2, %c0_i32_11 : i32
    %15 = arith.extui %14 : i1 to i32
    %c0_i32_12 = arith.constant 0 : i32
    %16 = arith.cmpi ne, %15, %c0_i32_12 : i32
    scf.if %16 {
      %c0_13 = arith.constant 0 : index
      %c0_14 = arith.constant 0 : index
      %17 = vector.load %arg9[%c0_13, %c0_14] : memref<32x64xf32, #tpu.memory_space<vmem>>, vector<32x64xf32>
      %18 = arith.truncf %17 : vector<32x64xf32> to vector<32x64xbf16>
      %c0_15 = arith.constant 0 : index
      %c0_16 = arith.constant 0 : index
      %19 = vector.load %arg6[%c0_15, %c0_16] : memref<32x64xbf16, #tpu.memory_space<vmem>>, vector<32x64xbf16>
      tpu.vector_store %arg6[%c0_15, %c0_16], %18 {strides = array<i32>} : memref<32x64xbf16, #tpu.memory_space<vmem>>, vector<32x64xbf16>,
      %c0_17 = arith.constant 0 : index
      %c0_18 = arith.constant 0 : index
      %20 = vector.load %arg7[%c0_17, %c0_18] : memref<1x64xf32, #tpu.memory_space<vmem>>, vector<1x64xf32>
      %cst_19 = arith.constant dense<0.000000e+00> : vector<64xf32>
      %21 = vector.multi_reduction <add>, %17, %cst_19 [0] : vector<32x64xf32> to vector<64xf32>
      %22 = vector.shape_cast %21 : vector<64xf32> to vector<1x64xf32>
      %23 = arith.addf %20, %22 : vector<1x64xf32>
      %c0_20 = arith.constant 0 : index
      %c0_21 = arith.constant 0 : index
      %24 = vector.load %arg7[%c0_20, %c0_21] : memref<1x64xf32, #tpu.memory_space<vmem>>, vector<1x64xf32>
      tpu.vector_store %arg7[%c0_20, %c0_21], %23 {strides = array<i32>} : memref<1x64xf32, #tpu.memory_space<vmem>>, vector<1x64xf32>,
      %c0_22 = arith.constant 0 : index
      %c0_23 = arith.constant 0 : index
      %25 = vector.load %arg8[%c0_22, %c0_23] : memref<1x64xf32, #tpu.memory_space<vmem>>, vector<1x64xf32>
      %26 = arith.mulf %17, %17 : vector<32x64xf32>
      %cst_24 = arith.constant dense<0.000000e+00> : vector<64xf32>
      %27 = vector.multi_reduction <add>, %26, %cst_24 [0] : vector<32x64xf32> to vector<64xf32>
      %28 = vector.shape_cast %27 : vector<64xf32> to vector<1x64xf32>
      %29 = arith.addf %25, %28 : vector<1x64xf32>
      %c0_25 = arith.constant 0 : index
      %c0_26 = arith.constant 0 : index
      %30 = vector.load %arg8[%c0_25, %c0_26] : memref<1x64xf32, #tpu.memory_space<vmem>>, vector<1x64xf32>
      tpu.vector_store %arg8[%c0_25, %c0_26], %29 {strides = array<i32>} : memref<1x64xf32, #tpu.memory_space<vmem>>, vector<1x64xf32>,
    } else {
    }
    return
  }
  func.func @transform_0(%arg0: i32, %arg1: i32, %arg2: i32) -> (i32, i32) {
    %c0_i32 = arith.constant 0 : i32
    return %arg1, %arg2 : i32, i32
  }
  func.func @transform_1(%arg0: i32, %arg1: i32, %arg2: i32) -> (i32, i32) {
    %c0_i32 = arith.constant 0 : i32
    return %arg2, %arg0 : i32, i32
  }
  func.func @transform_2(%arg0: i32, %arg1: i32, %arg2: i32) -> (i32, i32) {
    %c0_i32 = arith.constant 0 : i32
    %c0_i32_0 = arith.constant 0 : i32
    return %c0_i32, %arg0 : i32, i32
  }
  func.func @transform_3(%arg0: i32, %arg1: i32, %arg2: i32) -> (i32, i32) {
    %c0_i32 = arith.constant 0 : i32
    return %arg1, %arg0 : i32, i32
  }
  func.func @transform_4(%arg0: i32, %arg1: i32, %arg2: i32) -> (i32, i32) {
    %c0_i32 = arith.constant 0 : i32
    %c0_i32_0 = arith.constant 0 : i32
    return %c0_i32, %arg0 : i32, i32
  }
  func.func @transform_5(%arg0: i32, %arg1: i32, %arg2: i32) -> (i32, i32) {
    %c0_i32 = arith.constant 0 : i32
    %c0_i32_0 = arith.constant 0 : i32
    return %c0_i32, %arg0 : i32, i32
  }
}

module attributes {stable_mosaic.version = 11 : i64} {
  func.func @_conv_matmul_kernel(%arg0: i32, %arg1: i32, %arg2: i32, %arg3: memref<128x64xbf16, #tpu.memory_space<vmem>>, %arg4: memref<64x32xbf16, #tpu.memory_space<vmem>>, %arg5: memref<1x32xf32, #tpu.memory_space<vmem>>, %arg6: memref<128x32xbf16, #tpu.memory_space<vmem>>, %arg7: memref<1x32xf32, #tpu.memory_space<vmem>>, %arg8: memref<1x32xf32, #tpu.memory_space<vmem>>, %arg9: memref<128x32xf32, #tpu.memory_space<vmem>>) attributes {dimension_semantics = [#tpu.dimension_semantics<parallel>, #tpu.dimension_semantics<arbitrary>, #tpu.dimension_semantics<arbitrary>], iteration_bounds = array<i64: 1, 1, 1>, scalar_prefetch = 0 : i64, scratch_operands = 1 : i64, tpu.core_type = #tpu.core_type<tc>, window_params = [{transform_indices = @transform_0, window_bounds = array<i64: 128, 64>}, {transform_indices = @transform_1, window_bounds = array<i64: 64, 32>}, {transform_indices = @transform_2, window_bounds = array<i64: 1, 32>}, {transform_indices = @transform_3, window_bounds = array<i64: 128, 32>}, {transform_indices = @transform_4, window_bounds = array<i64: 1, 32>}, {transform_indices = @transform_5, window_bounds = array<i64: 1, 32>}]} {
    %c0_i32 = arith.constant 0 : i32
    %0 = arith.cmpi eq, %arg2, %c0_i32 : i32
    %1 = arith.extui %0 : i1 to i32
    %c0_i32_0 = arith.constant 0 : i32
    %2 = arith.cmpi ne, %1, %c0_i32_0 : i32
    scf.if %2 {
      %c0_13 = arith.constant 0 : index
      %c0_14 = arith.constant 0 : index
      %17 = vector.load %arg5[%c0_13, %c0_14] : memref<1x32xf32, #tpu.memory_space<vmem>>, vector<1x32xf32>
      %18 = vector.shape_cast %17 : vector<1x32xf32> to vector<1x32xf32>
      %19 = vector.broadcast %18 : vector<1x32xf32> to vector<128x32xf32>
      %c0_15 = arith.constant 0 : index
      %c0_16 = arith.constant 0 : index
      %20 = vector.load %arg9[%c0_15, %c0_16] : memref<128x32xf32, #tpu.memory_space<vmem>>, vector<128x32xf32>
      tpu.vector_store %arg9[%c0_15, %c0_16], %19 {strides = array<i32>} : memref<128x32xf32, #tpu.memory_space<vmem>>, vector<128x32xf32>,
    } else {
    }
    %c0 = arith.constant 0 : index
    %c0_1 = arith.constant 0 : index
    %3 = vector.load %arg9[%c0, %c0_1] : memref<128x32xf32, #tpu.memory_space<vmem>>, vector<128x32xf32>
    %c0_2 = arith.constant 0 : index
    %c0_3 = arith.constant 0 : index
    %4 = vector.load %arg3[%c0_2, %c0_3] : memref<128x64xbf16, #tpu.memory_space<vmem>>, vector<128x64xbf16>
    %c0_4 = arith.constant 0 : index
    %c0_5 = arith.constant 0 : index
    %5 = vector.load %arg4[%c0_4, %c0_5] : memref<64x32xbf16, #tpu.memory_space<vmem>>, vector<64x32xbf16>
    %cst = arith.constant dense<0.000000e+00> : vector<128x32xf32>
    %6 = tpu.matmul %4, %5, %cst {dimension_numbers = #tpu.dot_dimension_numbers<[1], [0], [0], [1], [0, 0, 1, 1], [], []>} : vector<128x64xbf16>, vector<64x32xbf16>, vector<128x32xf32> -> vector<128x32xf32>
    %7 = arith.addf %3, %6 : vector<128x32xf32>
    %c0_6 = arith.constant 0 : index
    %c0_7 = arith.constant 0 : index
    %8 = vector.load %arg9[%c0_6, %c0_7] : memref<128x32xf32, #tpu.memory_space<vmem>>, vector<128x32xf32>
    tpu.vector_store %arg9[%c0_6, %c0_7], %7 {strides = array<i32>} : memref<128x32xf32, #tpu.memory_space<vmem>>, vector<128x32xf32>,
    %c0_i32_8 = arith.constant 0 : i32
    %9 = arith.cmpi eq, %arg1, %c0_i32_8 : i32
    %c0_i32_9 = arith.constant 0 : i32
    %10 = arith.cmpi eq, %arg2, %c0_i32_9 : i32
    %11 = arith.andi %9, %10 : i1
    %12 = arith.extui %11 : i1 to i32
    %c0_i32_10 = arith.constant 0 : i32
    %13 = arith.cmpi ne, %12, %c0_i32_10 : i32
    scf.if %13 {
      %cst_13 = arith.constant 0.000000e+00 : f32
      %17 = vector.broadcast %cst_13 : f32 to vector<1x32xf32>
      %c0_14 = arith.constant 0 : index
      %c0_15 = arith.constant 0 : index
      %18 = vector.load %arg7[%c0_14, %c0_15] : memref<1x32xf32, #tpu.memory_space<vmem>>, vector<1x32xf32>
      tpu.vector_store %arg7[%c0_14, %c0_15], %17 {strides = array<i32>} : memref<1x32xf32, #tpu.memory_space<vmem>>, vector<1x32xf32>,
      %cst_16 = arith.constant 0.000000e+00 : f32
      %19 = vector.broadcast %cst_16 : f32 to vector<1x32xf32>
      %c0_17 = arith.constant 0 : index
      %c0_18 = arith.constant 0 : index
      %20 = vector.load %arg8[%c0_17, %c0_18] : memref<1x32xf32, #tpu.memory_space<vmem>>, vector<1x32xf32>
      tpu.vector_store %arg8[%c0_17, %c0_18], %19 {strides = array<i32>} : memref<1x32xf32, #tpu.memory_space<vmem>>, vector<1x32xf32>,
    } else {
    }
    %c0_i32_11 = arith.constant 0 : i32
    %14 = arith.cmpi eq, %arg2, %c0_i32_11 : i32
    %15 = arith.extui %14 : i1 to i32
    %c0_i32_12 = arith.constant 0 : i32
    %16 = arith.cmpi ne, %15, %c0_i32_12 : i32
    scf.if %16 {
      %c0_13 = arith.constant 0 : index
      %c0_14 = arith.constant 0 : index
      %17 = vector.load %arg9[%c0_13, %c0_14] : memref<128x32xf32, #tpu.memory_space<vmem>>, vector<128x32xf32>
      %18 = arith.truncf %17 : vector<128x32xf32> to vector<128x32xbf16>
      %c0_15 = arith.constant 0 : index
      %c0_16 = arith.constant 0 : index
      %19 = vector.load %arg6[%c0_15, %c0_16] : memref<128x32xbf16, #tpu.memory_space<vmem>>, vector<128x32xbf16>
      tpu.vector_store %arg6[%c0_15, %c0_16], %18 {strides = array<i32>} : memref<128x32xbf16, #tpu.memory_space<vmem>>, vector<128x32xbf16>,
      %c0_17 = arith.constant 0 : index
      %c0_18 = arith.constant 0 : index
      %20 = vector.load %arg7[%c0_17, %c0_18] : memref<1x32xf32, #tpu.memory_space<vmem>>, vector<1x32xf32>
      %cst_19 = arith.constant dense<0.000000e+00> : vector<32xf32>
      %21 = vector.multi_reduction <add>, %17, %cst_19 [0] : vector<128x32xf32> to vector<32xf32>
      %22 = vector.shape_cast %21 : vector<32xf32> to vector<1x32xf32>
      %23 = arith.addf %20, %22 : vector<1x32xf32>
      %c0_20 = arith.constant 0 : index
      %c0_21 = arith.constant 0 : index
      %24 = vector.load %arg7[%c0_20, %c0_21] : memref<1x32xf32, #tpu.memory_space<vmem>>, vector<1x32xf32>
      tpu.vector_store %arg7[%c0_20, %c0_21], %23 {strides = array<i32>} : memref<1x32xf32, #tpu.memory_space<vmem>>, vector<1x32xf32>,
      %c0_22 = arith.constant 0 : index
      %c0_23 = arith.constant 0 : index
      %25 = vector.load %arg8[%c0_22, %c0_23] : memref<1x32xf32, #tpu.memory_space<vmem>>, vector<1x32xf32>
      %26 = arith.mulf %17, %17 : vector<128x32xf32>
      %cst_24 = arith.constant dense<0.000000e+00> : vector<32xf32>
      %27 = vector.multi_reduction <add>, %26, %cst_24 [0] : vector<128x32xf32> to vector<32xf32>
      %28 = vector.shape_cast %27 : vector<32xf32> to vector<1x32xf32>
      %29 = arith.addf %25, %28 : vector<1x32xf32>
      %c0_25 = arith.constant 0 : index
      %c0_26 = arith.constant 0 : index
      %30 = vector.load %arg8[%c0_25, %c0_26] : memref<1x32xf32, #tpu.memory_space<vmem>>, vector<1x32xf32>
      tpu.vector_store %arg8[%c0_25, %c0_26], %29 {strides = array<i32>} : memref<1x32xf32, #tpu.memory_space<vmem>>, vector<1x32xf32>,
    } else {
    }
    return
  }
  func.func @transform_0(%arg0: i32, %arg1: i32, %arg2: i32) -> (i32, i32) {
    %c0_i32 = arith.constant 0 : i32
    return %arg1, %arg2 : i32, i32
  }
  func.func @transform_1(%arg0: i32, %arg1: i32, %arg2: i32) -> (i32, i32) {
    %c0_i32 = arith.constant 0 : i32
    return %arg2, %arg0 : i32, i32
  }
  func.func @transform_2(%arg0: i32, %arg1: i32, %arg2: i32) -> (i32, i32) {
    %c0_i32 = arith.constant 0 : i32
    %c0_i32_0 = arith.constant 0 : i32
    return %c0_i32, %arg0 : i32, i32
  }
  func.func @transform_3(%arg0: i32, %arg1: i32, %arg2: i32) -> (i32, i32) {
    %c0_i32 = arith.constant 0 : i32
    return %arg1, %arg0 : i32, i32
  }
  func.func @transform_4(%arg0: i32, %arg1: i32, %arg2: i32) -> (i32, i32) {
    %c0_i32 = arith.constant 0 : i32
    %c0_i32_0 = arith.constant 0 : i32
    return %c0_i32, %arg0 : i32, i32
  }
  func.func @transform_5(%arg0: i32, %arg1: i32, %arg2: i32) -> (i32, i32) {
    %c0_i32 = arith.constant 0 : i32
    %c0_i32_0 = arith.constant 0 : i32
    return %c0_i32, %arg0 : i32, i32
  }
}

module attributes {stable_mosaic.version = 11 : i64} {
  func.func @_conv_matmul_kernel(%arg0: i32, %arg1: i32, %arg2: i32, %arg3: memref<256x392xbf16, #tpu.memory_space<vmem>>, %arg4: memref<392x3xbf16, #tpu.memory_space<vmem>>, %arg5: memref<1x3xf32, #tpu.memory_space<vmem>>, %arg6: memref<256x3xf32, #tpu.memory_space<vmem>>, %arg7: memref<256x3xf32, #tpu.memory_space<vmem>>) attributes {dimension_semantics = [#tpu.dimension_semantics<parallel>, #tpu.dimension_semantics<arbitrary>, #tpu.dimension_semantics<arbitrary>], iteration_bounds = array<i64: 1, 2, 1>, scalar_prefetch = 0 : i64, scratch_operands = 1 : i64, tpu.core_type = #tpu.core_type<tc>, window_params = [{transform_indices = @transform_0, window_bounds = array<i64: 256, 392>}, {transform_indices = @transform_1, window_bounds = array<i64: 392, 3>}, {transform_indices = @transform_2, window_bounds = array<i64: 1, 3>}, {transform_indices = @transform_3, window_bounds = array<i64: 256, 3>}]} {
    %c0_i32 = arith.constant 0 : i32
    %0 = arith.cmpi eq, %arg2, %c0_i32 : i32
    %1 = arith.extui %0 : i1 to i32
    %c0_i32_0 = arith.constant 0 : i32
    %2 = arith.cmpi ne, %1, %c0_i32_0 : i32
    scf.if %2 {
      %c0_10 = arith.constant 0 : index
      %c0_11 = arith.constant 0 : index
      %12 = vector.load %arg5[%c0_10, %c0_11] : memref<1x3xf32, #tpu.memory_space<vmem>>, vector<1x3xf32>
      %13 = vector.shape_cast %12 : vector<1x3xf32> to vector<1x3xf32>
      %14 = vector.broadcast %13 : vector<1x3xf32> to vector<256x3xf32>
      %c0_12 = arith.constant 0 : index
      %c0_13 = arith.constant 0 : index
      %15 = vector.load %arg7[%c0_12, %c0_13] : memref<256x3xf32, #tpu.memory_space<vmem>>, vector<256x3xf32>
      tpu.vector_store %arg7[%c0_12, %c0_13], %14 {strides = array<i32>} : memref<256x3xf32, #tpu.memory_space<vmem>>, vector<256x3xf32>,
    } else {
    }
    %c0 = arith.constant 0 : index
    %c0_1 = arith.constant 0 : index
    %3 = vector.load %arg7[%c0, %c0_1] : memref<256x3xf32, #tpu.memory_space<vmem>>, vector<256x3xf32>
    %c0_2 = arith.constant 0 : index
    %c0_3 = arith.constant 0 : index
    %4 = vector.load %arg3[%c0_2, %c0_3] : memref<256x392xbf16, #tpu.memory_space<vmem>>, vector<256x392xbf16>
    %c0_4 = arith.constant 0 : index
    %c0_5 = arith.constant 0 : index
    %5 = vector.load %arg4[%c0_4, %c0_5] : memref<392x3xbf16, #tpu.memory_space<vmem>>, vector<392x3xbf16>
    %cst = arith.constant dense<0.000000e+00> : vector<256x3xf32>
    %6 = tpu.matmul %4, %5, %cst {dimension_numbers = #tpu.dot_dimension_numbers<[1], [0], [0], [1], [0, 0, 1, 1], [], []>} : vector<256x392xbf16>, vector<392x3xbf16>, vector<256x3xf32> -> vector<256x3xf32>
    %7 = arith.addf %3, %6 : vector<256x3xf32>
    %c0_6 = arith.constant 0 : index
    %c0_7 = arith.constant 0 : index
    %8 = vector.load %arg7[%c0_6, %c0_7] : memref<256x3xf32, #tpu.memory_space<vmem>>, vector<256x3xf32>
    tpu.vector_store %arg7[%c0_6, %c0_7], %7 {strides = array<i32>} : memref<256x3xf32, #tpu.memory_space<vmem>>, vector<256x3xf32>,
    %c0_i32_8 = arith.constant 0 : i32
    %9 = arith.cmpi eq, %arg2, %c0_i32_8 : i32
    %10 = arith.extui %9 : i1 to i32
    %c0_i32_9 = arith.constant 0 : i32
    %11 = arith.cmpi ne, %10, %c0_i32_9 : i32
    scf.if %11 {
      %c0_10 = arith.constant 0 : index
      %c0_11 = arith.constant 0 : index
      %12 = vector.load %arg7[%c0_10, %c0_11] : memref<256x3xf32, #tpu.memory_space<vmem>>, vector<256x3xf32>
      %13 = math.tanh %12 : vector<256x3xf32>
      %c0_12 = arith.constant 0 : index
      %c0_13 = arith.constant 0 : index
      %14 = vector.load %arg6[%c0_12, %c0_13] : memref<256x3xf32, #tpu.memory_space<vmem>>, vector<256x3xf32>
      tpu.vector_store %arg6[%c0_12, %c0_13], %13 {strides = array<i32>} : memref<256x3xf32, #tpu.memory_space<vmem>>, vector<256x3xf32>,
    } else {
    }
    return
  }
  func.func @transform_0(%arg0: i32, %arg1: i32, %arg2: i32) -> (i32, i32) {
    %c0_i32 = arith.constant 0 : i32
    return %arg1, %arg2 : i32, i32
  }
  func.func @transform_1(%arg0: i32, %arg1: i32, %arg2: i32) -> (i32, i32) {
    %c0_i32 = arith.constant 0 : i32
    return %arg2, %arg0 : i32, i32
  }
  func.func @transform_2(%arg0: i32, %arg1: i32, %arg2: i32) -> (i32, i32) {
    %c0_i32 = arith.constant 0 : i32
    %c0_i32_0 = arith.constant 0 : i32
    return %c0_i32, %arg0 : i32, i32
  }
  func.func @transform_3(%arg0: i32, %arg1: i32, %arg2: i32) -> (i32, i32) {
    %c0_i32 = arith.constant 0 : i32
    return %arg1, %arg0 : i32, i32
  }
}

module attributes {stable_mosaic.version = 11 : i64} {
  func.func @_segment_sum_kernel(%arg0: i32, %arg1: i32, %arg2: memref<1x256x1xi32, #tpu.memory_space<vmem>>, %arg3: memref<1x256x3xf32, #tpu.memory_space<vmem>>, %arg4: memref<1x16x4xf32, #tpu.memory_space<vmem>>) attributes {dimension_semantics = [#tpu.dimension_semantics<parallel>, #tpu.dimension_semantics<arbitrary>], iteration_bounds = array<i64: 2, 1>, scalar_prefetch = 0 : i64, scratch_operands = 0 : i64, tpu.core_type = #tpu.core_type<tc>, window_params = [{transform_indices = @transform_0, window_bounds = array<i64: 1, 256, 1>}, {transform_indices = @transform_1, window_bounds = array<i64: 1, 256, 3>}, {transform_indices = @transform_2, window_bounds = array<i64: 1, 16, 4>}]} {
    %c0_i32 = arith.constant 0 : i32
    %0 = arith.cmpi eq, %arg1, %c0_i32 : i32
    %1 = arith.extui %0 : i1 to i32
    %c0_i32_0 = arith.constant 0 : i32
    %2 = arith.cmpi ne, %1, %c0_i32_0 : i32
    scf.if %2 {
      %cst_13 = arith.constant 0.000000e+00 : f32
      %22 = vector.broadcast %cst_13 : f32 to vector<1x16x4xf32>
      %c0_14 = arith.constant 0 : index
      %c0_15 = arith.constant 0 : index
      %c0_16 = arith.constant 0 : index
      %23 = vector.load %arg4[%c0_14, %c0_15, %c0_16] : memref<1x16x4xf32, #tpu.memory_space<vmem>>, vector<1x16x4xf32>
      tpu.vector_store %arg4[%c0_14, %c0_15, %c0_16], %22 {strides = array<i32>} : memref<1x16x4xf32, #tpu.memory_space<vmem>>, vector<1x16x4xf32>,
    } else {
    }
    %c0 = arith.constant 0 : index
    %c0_1 = arith.constant 0 : index
    %c0_2 = arith.constant 0 : index
    %3 = vector.load %arg2[%c0, %c0_1, %c0_2] : memref<1x256x1xi32, #tpu.memory_space<vmem>>, vector<1x256x1xi32>
    %4 = vector.shape_cast %3 : vector<1x256x1xi32> to vector<256x1xi32>
    %c0_3 = arith.constant 0 : index
    %c0_4 = arith.constant 0 : index
    %c0_5 = arith.constant 0 : index
    %5 = vector.load %arg3[%c0_3, %c0_4, %c0_5] : memref<1x256x3xf32, #tpu.memory_space<vmem>>, vector<1x256x3xf32>
    %6 = vector.shape_cast %5 : vector<1x256x3xf32> to vector<256x3xf32>
    %7 = tpu.iota {dimensions = array<i32: 1>} : vector<1x16xi32>
    %8 = vector.broadcast %4 : vector<256x1xi32> to vector<256x16xi32>
    %9 = vector.broadcast %7 : vector<1x16xi32> to vector<256x16xi32>
    %10 = arith.cmpi eq, %8, %9 : vector<256x16xi32>
    %11 = arith.extui %10 : vector<256x16xi1> to vector<256x16xi32>
    %12 = arith.sitofp %11 : vector<256x16xi32> to vector<256x16xf32>
    %cst = arith.constant 1.000000e+00 : f32
    %13 = vector.broadcast %cst : f32 to vector<256x1xf32>
    %14 = tpu.concatenate %6, %13 in 1 : vector<256x3xf32>, vector<256x1xf32> -> vector<256x4xf32>
    %c0_6 = arith.constant 0 : index
    %c0_7 = arith.constant 0 : index
    %c0_8 = arith.constant 0 : index
    %15 = vector.load %arg4[%c0_6, %c0_7, %c0_8] : memref<1x16x4xf32, #tpu.memory_space<vmem>>, vector<1x16x4xf32>
    %16 = vector.shape_cast %15 : vector<1x16x4xf32> to vector<16x4xf32>
    %cst_9 = arith.constant dense<0.000000e+00> : vector<16x4xf32>
    %17 = tpu.matmul %12, %14, %cst_9 {dimension_numbers = #tpu.dot_dimension_numbers<[0], [0], [1], [1], [0, 1, 1, 1], [], []>} : vector<256x16xf32>, vector<256x4xf32>, vector<16x4xf32> -> vector<16x4xf32>
    %18 = arith.addf %16, %17 : vector<16x4xf32>
    %c0_10 = arith.constant 0 : index
    %c0_11 = arith.constant 0 : index
    %c0_12 = arith.constant 0 : index
    %19 = vector.load %arg4[%c0_10, %c0_11, %c0_12] : memref<1x16x4xf32, #tpu.memory_space<vmem>>, vector<1x16x4xf32>
    %20 = vector.shape_cast %19 : vector<1x16x4xf32> to vector<16x4xf32>
    %21 = vector.shape_cast %18 : vector<16x4xf32> to vector<1x16x4xf32>
    tpu.vector_store %arg4[%c0_10, %c0_11, %c0_12], %21 {strides = array<i32>} : memref<1x16x4xf32, #tpu.memory_space<vmem>>, vector<1x16x4xf32>,
    return
  }
  func.func @transform_0(%arg0: i32, %arg1: i32) -> (i32, i32, i32) {
    %c0_i32 = arith.constant 0 : i32
    %c0_i32_0 = arith.constant 0 : i32
    return %arg0, %arg1, %c0_i32 : i32, i32, i32
  }
  func.func @transform_1(%arg0: i32, %arg1: i32) -> (i32, i32, i32) {
    %c0_i32 = arith.constant 0 : i32
    %c0_i32_0 = arith.constant 0 : i32
    return %arg0, %arg1, %c0_i32 : i32, i32, i32
  }
  func.func @transform_2(%arg0: i32, %arg1: i32) -> (i32, i32, i32) {
    %c0_i32 = arith.constant 0 : i32
    %c0_i32_0 = arith.constant 0 : i32
    %c0_i32_1 = arith.constant 0 : i32
    return %arg0, %c0_i32, %c0_i32_0 : i32, i32, i32
  }
}

module attributes {stable_mosaic.version = 11 : i64} {
  func.func @_broadcast_mean_kernel(%arg0: i32, %arg1: i32, %arg2: memref<1x256x1xi32, #tpu.memory_space<vmem>>, %arg3: memref<1x16x3xf32, #tpu.memory_space<vmem>>, %arg4: memref<1x256x3xf32, #tpu.memory_space<vmem>>) attributes {dimension_semantics = [#tpu.dimension_semantics<parallel>, #tpu.dimension_semantics<parallel>], iteration_bounds = array<i64: 2, 1>, scalar_prefetch = 0 : i64, scratch_operands = 0 : i64, tpu.core_type = #tpu.core_type<tc>, window_params = [{transform_indices = @transform_0, window_bounds = array<i64: 1, 256, 1>}, {transform_indices = @transform_1, window_bounds = array<i64: 1, 16, 3>}, {transform_indices = @transform_2, window_bounds = array<i64: 1, 256, 3>}]} {
    %c0 = arith.constant 0 : index
    %c0_0 = arith.constant 0 : index
    %c0_1 = arith.constant 0 : index
    %0 = vector.load %arg2[%c0, %c0_0, %c0_1] : memref<1x256x1xi32, #tpu.memory_space<vmem>>, vector<1x256x1xi32>
    %1 = vector.shape_cast %0 : vector<1x256x1xi32> to vector<256x1xi32>
    %2 = tpu.iota {dimensions = array<i32: 1>} : vector<1x16xi32>
    %3 = vector.broadcast %1 : vector<256x1xi32> to vector<256x16xi32>
    %4 = vector.broadcast %2 : vector<1x16xi32> to vector<256x16xi32>
    %5 = arith.cmpi eq, %3, %4 : vector<256x16xi32>
    %6 = arith.extui %5 : vector<256x16xi1> to vector<256x16xi32>
    %7 = arith.sitofp %6 : vector<256x16xi32> to vector<256x16xf32>
    %c0_2 = arith.constant 0 : index
    %c0_3 = arith.constant 0 : index
    %c0_4 = arith.constant 0 : index
    %8 = vector.load %arg3[%c0_2, %c0_3, %c0_4] : memref<1x16x3xf32, #tpu.memory_space<vmem>>, vector<1x16x3xf32>
    %9 = vector.shape_cast %8 : vector<1x16x3xf32> to vector<16x3xf32>
    %cst = arith.constant dense<0.000000e+00> : vector<256x3xf32>
    %10 = tpu.matmul %7, %9, %cst {dimension_numbers = #tpu.dot_dimension_numbers<[1], [0], [0], [1], [0, 0, 1, 1], [], []>} : vector<256x16xf32>, vector<16x3xf32>, vector<256x3xf32> -> vector<256x3xf32>
    %c0_5 = arith.constant 0 : index
    %c0_6 = arith.constant 0 : index
    %c0_7 = arith.constant 0 : index
    %11 = vector.load %arg4[%c0_5, %c0_6, %c0_7] : memref<1x256x3xf32, #tpu.memory_space<vmem>>, vector<1x256x3xf32>
    %12 = vector.shape_cast %11 : vector<1x256x3xf32> to vector<256x3xf32>
    %13 = vector.shape_cast %10 : vector<256x3xf32> to vector<1x256x3xf32>
    tpu.vector_store %arg4[%c0_5, %c0_6, %c0_7], %13 {strides = array<i32>} : memref<1x256x3xf32, #tpu.memory_space<vmem>>, vector<1x256x3xf32>,
    return
  }
  func.func @transform_0(%arg0: i32, %arg1: i32) -> (i32, i32, i32) {
    %c0_i32 = arith.constant 0 : i32
    %c0_i32_0 = arith.constant 0 : i32
    return %arg0, %arg1, %c0_i32 : i32, i32, i32
  }
  func.func @transform_1(%arg0: i32, %arg1: i32) -> (i32, i32, i32) {
    %c0_i32 = arith.constant 0 : i32
    %c0_i32_0 = arith.constant 0 : i32
    %c0_i32_1 = arith.constant 0 : i32
    return %arg0, %c0_i32, %c0_i32_0 : i32, i32, i32
  }
  func.func @transform_2(%arg0: i32, %arg1: i32) -> (i32, i32, i32) {
    %c0_i32 = arith.constant 0 : i32
    %c0_i32_0 = arith.constant 0 : i32
    return %arg0, %arg1, %c0_i32 : i32, i32, i32
  }
}

</mosaic_0001>

<llo_original>
// kernel: tile.105
$region0: #{tile.105}
  #allocation0 [shape = 's32[1]{0}', space=sflag, size = 0x4, scoped, tag = 'scoped memory for tile.105']
  %s0 = inlined_call_operand.vmem [shape: f32[8], index: 0, kind: input, shape index: {}]
  %s1 = inlined_call_operand.vmem [shape: f32[16,8], index: 1, kind: output, shape index: {}]
  // Predicated region
  $region2: #{tile.105} parent=0 // pred_check
    _
  $region3: #{tile.105} parent=0 // pred_check_branch
    %3 = sbr.rel (0) target = $region5
  $region4: #{tile.105} parent=0 // pred_region
    _
  $region5: #{tile.105} parent=0 // pred_fallthru
    _
  %v4 = vld [vmem:[%s0] ss:$0 sm:$0xff]
  %5 = vst [vmem:[%s1] sm:$0xff] %v4
  %s6 = scalar_lea.vmem %s1, 8
  %7 = vst [vmem:[%s6] sm:$0xff] %v4

// kernel: tile.106
$region0: #{tile.106}
  %s0 = inlined_call_operand.vmem [shape: f32[16,8], index: 0, kind: input, shape index: {}]
  %s1 = inlined_call_operand.vmem [shape: f32[1,128], index: 1, kind: output, shape index: {}]
  $region1: #{tile.106} parent=0
    #allocation0 [shape = 'u8[4096]{0}', space=vmem, size = 0x1000, scoped, tag = 'scoped mem for output reshape']
    %v2 = vld [vmem:[%s0] sm:$0x1]
    %vm3 = vcmask 64512
    %4 = vst.msk [vmem:[#allocation0] sm:$0x1] %vm3, %v2
    %s5 = scalar_lea.vmem %s0, 15
    %v6 = vld [vmem:[%s5] sm:$0x1]
    %7 = vrot.lane.b32.xlu0 %v6, 120
    %v8 = vpop.permute.xlu0 %7
    %vm9 = vcmask 1048512
    %10 = vst.msk [vmem:[#allocation0] sm:$0x1] %vm9, %v8
    %s11 = scalar_lea.vmem %s0, 14
    %v12 = vld [vmem:[%s11] sm:$0x1]
    %13 = vrot.lane.b32.xlu0 %v12, 112
    %v14 = vpop.permute.xlu0 %13
    %vm15 = vcmask 982912
    %16 = vst.msk [vmem:[#allocation0] sm:$0x1] %vm15, %v14
    %s17 = scalar_lea.vmem %s0, 13
    %v18 = vld [vmem:[%s17] sm:$0x1]
    %19 = vrot.lane.b32.xlu0 %v18, 104
    %v20 = vpop.permute.xlu0 %19
    %vm21 = vcmask 917312
    %22 = vst.msk [vmem:[#allocation0] sm:$0x1] %vm21, %v20
    %s23 = scalar_lea.vmem %s0, 12
    %v24 = vld [vmem:[%s23] sm:$0x1]
    %25 = vrot.lane.b32.xlu0 %v24, 96
    %v26 = vpop.permute.xlu0 %25
    %vm27 = vcmask 851712
    %28 = vst.msk [vmem:[#allocation0] sm:$0x1] %vm27, %v26
    %s29 = scalar_lea.vmem %s0, 11
    %v30 = vld [vmem:[%s29] sm:$0x1]
    %31 = vrot.lane.b32.xlu0 %v30, 88
    %v32 = vpop.permute.xlu0 %31
    %vm33 = vcmask 786112
    %34 = vst.msk [vmem:[#allocation0] sm:$0x1] %vm33, %v32
    %s35 = scalar_lea.vmem %s0, 10
    %v36 = vld [vmem:[%s35] sm:$0x1]
    %37 = vrot.lane.b32.xlu0 %v36, 80
    %v38 = vpop.permute.xlu0 %37
    %vm39 = vcmask 720512
    %40 = vst.msk [vmem:[#allocation0] sm:$0x1] %vm39, %v38
    %s41 = scalar_lea.vmem %s0, 9
    %v42 = vld [vmem:[%s41] sm:$0x1]
    %43 = vrot.lane.b32.xlu0 %v42, 72
    %v44 = vpop.permute.xlu0 %43
    %vm45 = vcmask 654912
    %46 = vst.msk [vmem:[#allocation0] sm:$0x1] %vm45, %v44
    %s47 = scalar_lea.vmem %s0, 8
    %v48 = vld [vmem:[%s47] sm:$0x1]
    %49 = vrot.lane.b32.xlu0 %v48, 64
    %v50 = vpop.permute.xlu0 %49
    %vm51 = vcmask 589312
    %52 = vst.msk [vmem:[#allocation0] sm:$0x1] %vm51, %v50
    %s53 = scalar_lea.vmem %s0, 7
    %v54 = vld [vmem:[%s53] sm:$0x1]
    %55 = vrot.lane.b32.xlu0 %v54, 56
    %v56 = vpop.permute.xlu0 %55
    %vm57 = vcmask 523712
    %58 = vst.msk [vmem:[#allocation0] sm:$0x1] %vm57, %v56
    %s59 = scalar_lea.vmem %s0, 6
    %v60 = vld [vmem:[%s59] sm:$0x1]
    %61 = vrot.lane.b32.xlu0 %v60, 48
    %v62 = vpop.permute.xlu0 %61
    %vm63 = vcmask 458112
    %64 = vst.msk [vmem:[#allocation0] sm:$0x1] %vm63, %v62
    %s65 = scalar_lea.vmem %s0, 5
    %v66 = vld [vmem:[%s65] sm:$0x1]
    %67 = vrot.lane.b32.xlu0 %v66, 40
    %v68 = vpop.permute.xlu0 %67
    %vm69 = vcmask 392512
    %70 = vst.msk [vmem:[#allocation0] sm:$0x1] %vm69, %v68
    %s71 = scalar_lea.vmem %s0, 4
    %v72 = vld [vmem:[%s71] sm:$0x1]
    %73 = vrot.lane.b32.xlu0 %v72, 32
    %v74 = vpop.permute.xlu0 %73
    %vm75 = vcmask 326912
    %76 = vst.msk [vmem:[#allocation0] sm:$0x1] %vm75, %v74
    %s77 = scalar_lea.vmem %s0, 3
    %v78 = vld [vmem:[%s77] sm:$0x1]
    %79 = vrot.lane.b32.xlu0 %v78, 24
    %v80 = vpop.permute.xlu0 %79
    %vm81 = vcmask 261312
    %82 = vst.msk [vmem:[#allocation0] sm:$0x1] %vm81, %v80
    %s83 = scalar_lea.vmem %s0, 2
    %v84 = vld [vmem:[%s83] sm:$0x1]
    %85 = vrot.lane.b32.xlu0 %v84, 16
    %v86 = vpop.permute.xlu0 %85
    %vm87 = vcmask 195712
    %88 = vst.msk [vmem:[#allocation0] sm:$0x1] %vm87, %v86
    %s89 = scalar_lea.vmem %s0, 1
    %v90 = vld [vmem:[%s89] sm:$0x1]
    %91 = vrot.lane.b32.xlu0 %v90, 8
    %v92 = vpop.permute.xlu0 %91
    %vm93 = vcmask 130112
    %94 = vst.msk [vmem:[#allocation0] sm:$0x1] %vm93, %v92
    %s96 = sshll.u32 1, 1
    %s97 = ssub.s32 %s96, 1
    %v99 = vld [vmem:[#allocation0] sm:%s97]
    %s100 = sshll.u32 1, 1
    %s101 = ssub.s32 %s100, 1
    %102 = vst [vmem:[%s1] sm:%s101] %v99

// kernel: encoder_forward_impl.21
$region0: #{encoder_forward_impl.21}
  #allocation0 [shape = 'u32[]', space=smem, size = 0x4, offset = 0x4, fixed_abs, tag = 'smem constant byte address 0x4 - core index']
  #allocation1 [shape = 'u32[144,128]{1,0:T(1,128)}', space=vmem, size = 0x12000, scoped, tag = 'internal scratch']
  #allocation2 [shape = 'f32[256,8]{1,0:T(8,128)}', space=vmem, size = 0x20000, scoped, tag = 'scratch operand']
  %s0 = inlined_call_operand.vmem [shape: bf16[512,196], index: 0, kind: input, shape index: {}]
  %s1 = inlined_call_operand.vmem [shape: bf16[196,8], index: 1, kind: input, shape index: {}]
  %s2 = inlined_call_operand.vmem [shape: f32[1,8], index: 2, kind: input, shape index: {}]
  %s3 = inlined_call_operand.vmem [shape: bf16[512,8], index: 3, kind: output, shape index: {0}]
  %s4 = inlined_call_operand.vmem [shape: f32[1,8], index: 4, kind: output, shape index: {1}]
  %s5 = inlined_call_operand.vmem [shape: f32[1,8], index: 5, kind: output, shape index: {2}]
  %6 = xla_tuple %s3, %s4, %s5
  %s7 = sld [smem:[#allocation0]]
  $region73: #{encoder_forward_impl.21} parent=0
    _
  %s9 = ssub.s32 1, %s7
  %s10 = scalar_select 0, %s9, %s7
  loop: start=0, step=1, limit=4
  $region2: #{encoder_forward_impl.21} parent=0 // loop_pre_header
    _
  $region3: #{encoder_forward_impl.21} parent=0 // loop_header
    %s12 = sphi 0, %s16
    %p13 = scmp.ge.s32.totalorder %s12, 4
    %s19 = sphi 0, %s38
    %s20 = sphi 0, %s34
    %s21 = sphi 0, %s30
    %s22 = sphi 0, %s19
    %s23 = sphi 0, %s20
    %s24 = sphi 0, %s21
    %s25 = sphi 0, %s22
    %s26 = sphi 0, %s23
    %s27 = sphi 0, %s24
    %s43 = sphi 0, %s45
    %s46 = sphi 0, %s43
    %s47 = sphi 0, %s46
    %s63 = sphi 0, %s47
    %s71 = sphi 0, %s73
    %s74 = sphi 0, %s71
    %s75 = sphi 0, %s74
    %s91 = sphi 0, %s75
    %s97 = sphi 0, %s99
    %s100 = sphi 0, %s97
    %s101 = sphi 0, %s100
    %s117 = sphi 0, %s101
    %s125 = sphi 0, %s127
    %s128 = sphi 0, %s125
    %s129 = sphi 0, %s128
    %s145 = sphi 0, %s129
    %s151 = sphi 0, %s153
    %s154 = sphi 0, %s151
    %s155 = sphi 0, %s154
    %s171 = sphi 0, %s155
    %s177 = sphi 0, %s179
    %s180 = sphi 0, %s177
    %s181 = sphi 0, %s180
    %s197 = sphi 0, %s181
  $region4: #{encoder_forward_impl.21} parent=0 // loop_header_branch
    %15 = sbr.rel (%p13) target = $region8
  $region5: #{encoder_forward_impl.21} parent=0 // loop_body
    %s17 = ssub.s32 %s12, 1
    %s18 = ssub.s32 %s12, 2
    %s28 = sadd.s32 1, %s21
    %p29 = scmp.ge.s32.totalorder %s28, 1
    %s30 = scalar_select %p29, 0, %s28
    %s31 = sadd.s32 1, %s20
    %s32 = scalar_select %p29, %s31, %s20
    %p33 = scmp.ge.s32.totalorder %s32, 2
    %s34 = scalar_select %p33, 0, %s32
    %s35 = sadd.s32 1, %s19
    %s36 = scalar_select %p33, %s35, %s19
    %p37 = scmp.ge.s32.totalorder %s36, 1
    %s38 = scalar_select %p37, 0, %s36
    %s39 = ssub.s32 %s20, %s34
    %s40 = ssub.s32 %s21, %s30
    %s41 = sor.u32 %s39, %s40
    %p42 = scmp.eq.s32.totalorder %s41, 0
    %s44 = sadd.s32 %s43, 1
    %s45 = scalar_select %p42, %s43, %s44
    %p48 = pneg %p42
    %p49 = scmp.eq.s32.totalorder %s12, 1
    %p50 = por %p48, %p49
    %p51 = scmp.ne.s32.totalorder %s43, %s46
    %p52 = scmp.eq.s32.totalorder %s12, 0
    %p53 = por %p51, %p52
    %p54 = scmp.ne.s32.totalorder %s43, %s46
    %p55 = scmp.eq.s32.totalorder %s17, 1
    %p56 = por %p54, %p55
    %p57 = scmp.ne.s32.totalorder %s46, %s47
    %p58 = scmp.eq.s32.totalorder %s17, 0
    %p59 = por %p57, %p58
    %p60 = scmp.ne.s32.totalorder %s46, %s47
    %p61 = scmp.eq.s32.totalorder %s18, 1
    %p62 = por %p60, %p61
    %p64 = scmp.ne.s32.totalorder %s47, %s63
    %p65 = scmp.eq.s32.totalorder %s18, 0
    %p66 = por %p64, %p65
    %s67 = ssub.s32 %s21, %s30
    %s68 = ssub.s32 %s19, %s38
    %s69 = sor.u32 %s67, %s68
    %p70 = scmp.eq.s32.totalorder %s69, 0
    %s72 = sadd.s32 %s71, 1
    %s73 = scalar_select %p70, %s71, %s72
    %p76 = pneg %p70
    %p77 = scmp.eq.s32.totalorder %s12, 1
    %p78 = por %p76, %p77
    %p79 = scmp.ne.s32.totalorder %s71, %s74
    %p80 = scmp.eq.s32.totalorder %s12, 0
    %p81 = por %p79, %p80
    %p82 = scmp.ne.s32.totalorder %s71, %s74
    %p83 = scmp.eq.s32.totalorder %s17, 1
    %p84 = por %p82, %p83
    %p85 = scmp.ne.s32.totalorder %s74, %s75
    %p86 = scmp.eq.s32.totalorder %s17, 0
    %p87 = por %p85, %p86
    %p88 = scmp.ne.s32.totalorder %s74, %s75
    %p89 = scmp.eq.s32.totalorder %s18, 1
    %p90 = por %p88, %p89
    %p92 = scmp.ne.s32.totalorder %s75, %s91
    %p93 = scmp.eq.s32.totalorder %s18, 0
    %p94 = por %p92, %p93
    %s95 = ssub.s32 %s19, %s38
    %p96 = scmp.eq.s32.totalorder %s95, 0
    %s98 = sadd.s32 %s97, 1
    %s99 = scalar_select %p96, %s97, %s98
    %p102 = pneg %p96
    %p103 = scmp.eq.s32.totalorder %s12, 1
    %p104 = por %p102, %p103
    %p105 = scmp.ne.s32.totalorder %s97, %s100
    %p106 = scmp.eq.s32.totalorder %s12, 0
    %p107 = por %p105, %p106
    %p108 = scmp.ne.s32.totalorder %s97, %s100
    %p109 = scmp.eq.s32.totalorder %s17, 1
    %p110 = por %p108, %p109
    %p111 = scmp.ne.s32.totalorder %s100, %s101
    %p112 = scmp.eq.s32.totalorder %s17, 0
    %p113 = por %p111, %p112
    %p114 = scmp.ne.s32.totalorder %s100, %s101
    %p115 = scmp.eq.s32.totalorder %s18, 1
    %p116 = por %p114, %p115
    %p118 = scmp.ne.s32.totalorder %s101, %s117
    %p119 = scmp.eq.s32.totalorder %s18, 0
    %p120 = por %p118, %p119
    %s121 = ssub.s32 %s20, %s34
    %s122 = ssub.s32 %s19, %s38
    %s123 = sor.u32 %s121, %s122
    %p124 = scmp.eq.s32.totalorder %s123, 0
    %s126 = sadd.s32 %s125, 1
    %s127 = scalar_select %p124, %s125, %s126
    %p130 = pneg %p124
    %p131 = scmp.eq.s32.totalorder %s12, 1
    %p132 = por %p130, %p131
    %p133 = scmp.ne.s32.totalorder %s125, %s128
    %p134 = scmp.eq.s32.totalorder %s12, 0
    %p135 = por %p133, %p134
    %p136 = scmp.ne.s32.totalorder %s125, %s128
    %p137 = scmp.eq.s32.totalorder %s17, 1
    %p138 = por %p136, %p137
    %p139 = scmp.ne.s32.totalorder %s128, %s129
    %p140 = scmp.eq.s32.totalorder %s17, 0
    %p141 = por %p139, %p140
    %p142 = scmp.ne.s32.totalorder %s128, %s129
    %p143 = scmp.eq.s32.totalorder %s18, 1
    %p144 = por %p142, %p143
    %p146 = scmp.ne.s32.totalorder %s129, %s145
    %p147 = scmp.eq.s32.totalorder %s18, 0
    %p148 = por %p146, %p147
    %s149 = ssub.s32 %s19, %s38
    %p150 = scmp.eq.s32.totalorder %s149, 0
    %s152 = sadd.s32 %s151, 1
    %s153 = scalar_select %p150, %s151, %s152
    %p156 = pneg %p150
    %p157 = scmp.eq.s32.totalorder %s12, 1
    %p158 = por %p156, %p157
    %p159 = scmp.ne.s32.totalorder %s151, %s154
    %p160 = scmp.eq.s32.totalorder %s12, 0
    %p161 = por %p159, %p160
    %p162 = scmp.ne.s32.totalorder %s151, %s154
    %p163 = scmp.eq.s32.totalorder %s17, 1
    %p164 = por %p162, %p163
    %p165 = scmp.ne.s32.totalorder %s154, %s155
    %p166 = scmp.eq.s32.totalorder %s17, 0
    %p167 = por %p165, %p166
    %p168 = scmp.ne.s32.totalorder %s154, %s155
    %p169 = scmp.eq.s32.totalorder %s18, 1
    %p170 = por %p168, %p169
    %p172 = scmp.ne.s32.totalorder %s155, %s171
    %p173 = scmp.eq.s32.totalorder %s18, 0
    %p174 = por %p172, %p173
    %s175 = ssub.s32 %s19, %s38
    %p176 = scmp.eq.s32.totalorder %s175, 0
    %s178 = sadd.s32 %s177, 1
    %s179 = scalar_select %p176, %s177, %s178
    %p182 = pneg %p176
    %p183 = scmp.eq.s32.totalorder %s12, 1
    %p184 = por %p182, %p183
    %p185 = scmp.ne.s32.totalorder %s177, %s180
    %p186 = scmp.eq.s32.totalorder %s12, 0
    %p187 = por %p185, %p186
    %p188 = scmp.ne.s32.totalorder %s177, %s180
    %p189 = scmp.eq.s32.totalorder %s17, 1
    %p190 = por %p188, %p189
    %p191 = scmp.ne.s32.totalorder %s180, %s181
    %p192 = scmp.eq.s32.totalorder %s17, 0
    %p193 = por %p191, %p192
    %p194 = scmp.ne.s32.totalorder %s180, %s181
    %p195 = scmp.eq.s32.totalorder %s18, 1
    %p196 = por %p194, %p195
    %p198 = scmp.ne.s32.totalorder %s181, %s197
    %p199 = scmp.eq.s32.totalorder %s18, 0
    %p200 = por %p198, %p199
    %p201 = scmp.le.s32.totalorder 1, %s12
    %p202 = scmp.lt.s32.totalorder %s12, 3
    %p203 = pnand %p201, %p202
    %p204 = pneg %p203
    // Predicated region
    $region9: #{encoder_forward_impl.21} parent=5 // pred_check
      _
    $region10: #{encoder_forward_impl.21} parent=5 // pred_check_branch
      %206 = sbr.rel (%p203) target = $region12
    $region11: #{encoder_forward_impl.21} parent=5 // pred_region
      %s207 = ssub.s32 %s12, 1
      // Predicated region
      $region13: #{encoder_forward_impl.21} parent=11 // pred_check
        %p208 = pneg %p87
      $region14: #{encoder_forward_impl.21} parent=11 // pred_check_branch
        %210 = sbr.rel (%p208) target = $region16
      $region15: #{encoder_forward_impl.21} parent=11 // pred_region
        %s211 = smul.u32 25, %s24
        %p212 = scmp.lt.s32.totalorder %s211, 24
        %s213 = scalar_select %p212, %s211, 24
        %p214 = scmp.lt.s32.totalorder %s22, 0
        %s215 = scalar_select %p214, %s22, 0
        %s216 = sadd.s32 %s215, %s213
        %s217 = smul.addr %s216, 4
        %s218 = scalar_lea.vmem %s1, %s217
        %s219 = smul.u32 25, %s24
      $region16: #{encoder_forward_impl.21} parent=11 // pred_fallthru
        _
      // Predicated region
      $region17: #{encoder_forward_impl.21} parent=11 // pred_check
        %p220 = pneg %p113
      $region18: #{encoder_forward_impl.21} parent=11 // pred_check_branch
        %222 = sbr.rel (%p220) target = $region20
      $region19: #{encoder_forward_impl.21} parent=11 // pred_region
        %p223 = scmp.lt.s32.totalorder %s22, 0
        %s224 = scalar_select %p223, %s22, 0
        %s225 = scalar_lea.vmem %s2, %s224
      $region20: #{encoder_forward_impl.21} parent=11 // pred_fallthru
        _
    $region12: #{encoder_forward_impl.21} parent=5 // pred_fallthru
      _
    %p226 = scmp.lt.s32.totalorder %s12, 2
    // Predicated region
    $region21: #{encoder_forward_impl.21} parent=5 // pred_check
      %p227 = pneg %p226
    $region22: #{encoder_forward_impl.21} parent=5 // pred_check_branch
      %229 = sbr.rel (%p227) target = $region24
    $region23: #{encoder_forward_impl.21} parent=5 // pred_region
      // Predicated region
      $region25: #{encoder_forward_impl.21} parent=23 // pred_check
        %p230 = pneg %p53
      $region26: #{encoder_forward_impl.21} parent=23 // pred_check_branch
        %232 = sbr.rel (%p230) target = $region28
      $region27: #{encoder_forward_impl.21} parent=23 // pred_region
        %s233 = smul.u32 32, %s20
        %s234 = smul.u32 2, %s21
        %p235 = scmp.lt.s32.totalorder %s233, 63
        %s236 = scalar_select %p235, %s233, 63
        %p237 = scmp.lt.s32.totalorder %s234, 1
        %s238 = scalar_select %p237, %s234, 1
        %s239 = smul.addr %s236, 2
        %s240 = sadd.s32 %s238, %s239
        %s241 = smul.addr %s240, 4
        %s242 = scalar_lea.vmem %s0, %s241
        %s243 = smul.u32 32, %s20
        %s244 = smul.u32 2, %s21
      $region28: #{encoder_forward_impl.21} parent=23 // pred_fallthru
        _
    $region24: #{encoder_forward_impl.21} parent=5 // pred_fallthru
      _
    %p245 = scmp.le.s32.totalorder 1, %s12
    %p246 = scmp.lt.s32.totalorder %s12, 3
    %p247 = pnand %p245, %p246
    %p248 = pneg %p247
    // Predicated region
    $region29: #{encoder_forward_impl.21} parent=5 // pred_check
      _
    $region30: #{encoder_forward_impl.21} parent=5 // pred_check_branch
      %250 = sbr.rel (%p247) target = $region32
    $region31: #{encoder_forward_impl.21} parent=5 // pred_region
      %s251 = ssub.s32 %s12, 1
      %s252 = smul.u32 32, %s23
      %s253 = smul.u32 2, %s24
      %p254 = scmp.lt.s32.totalorder %s252, 63
      %s255 = scalar_select %p254, %s252, 63
      %p256 = scmp.lt.s32.totalorder %s253, 1
      %s257 = scalar_select %p256, %s253, 1
      %s258 = smul.addr %s255, 2
      %s259 = sadd.s32 %s257, %s258
      %s260 = smul.addr %s259, 4
      %s261 = scalar_lea.vmem %s0, %s260
      %p262 = pneg %p59
      %p263 = pneg %p56
      %s264 = smul.u32 25, %s24
      %p265 = scmp.lt.s32.totalorder %s264, 24
      %s266 = scalar_select %p265, %s264, 24
      %p267 = scmp.lt.s32.totalorder %s22, 0
      %s268 = scalar_select %p267, %s22, 0
      %s269 = sadd.s32 %s268, %s266
      %s270 = smul.addr %s269, 4
      %s271 = scalar_lea.vmem %s1, %s270
      %p272 = pneg %p87
      %p273 = pneg %p84
      %p274 = scmp.lt.s32.totalorder %s22, 0
      %s275 = scalar_select %p274, %s22, 0
      %s276 = scalar_lea.vmem %s2, %s275
      %p277 = pneg %p113
      %p278 = pneg %p110
      %p279 = pneg %p141
      %p280 = pneg %p138
      %s281 = smul.u32 32, %s23
      %p282 = scmp.lt.s32.totalorder %s281, 63
      %s283 = scalar_select %p282, %s281, 63
      %p284 = scmp.lt.s32.totalorder %s22, 0
      %s285 = scalar_select %p284, %s22, 0
      %s286 = sadd.s32 %s285, %s283
      %s287 = smul.addr %s286, 4
      %s288 = scalar_lea.vmem %s3, %s287
      %p289 = pneg %p167
      %p290 = pneg %p164
      %p291 = scmp.lt.s32.totalorder %s22, 0
      %s292 = scalar_select %p291, %s22, 0
      %s293 = scalar_lea.vmem %s4, %s292
      %p294 = pneg %p193
      %p295 = pneg %p190
      %p296 = scmp.lt.s32.totalorder %s22, 0
      %s297 = scalar_select %p296, %s22, 0
      %s298 = scalar_lea.vmem %s5, %s297
      %s299 = smul.u32 32, %s23
      %s300 = smul.u32 2, %s24
      %p301 = scmp.lt.s32.totalorder %s299, 63
      %s302 = scalar_select %p301, %s299, 63
      %p303 = scmp.lt.s32.totalorder %s300, 1
      %s304 = scalar_select %p303, %s300, 1
      %s305 = smul.addr %s302, 2
      %s306 = sadd.s32 %s304, %s305
      %s307 = smul.addr %s306, 4
      %s308 = scalar_lea.vmem %s0, %s307
      %s309 = smul.u32 32, %s23
      %s310 = smul.u32 2, %s24
      %s311 = smul.u32 25, %s24
      %p312 = scmp.lt.s32.totalorder %s311, 24
      %s313 = scalar_select %p312, %s311, 24
      %p314 = scmp.lt.s32.totalorder %s22, 0
      %s315 = scalar_select %p314, %s22, 0
      %s316 = sadd.s32 %s315, %s313
      %s317 = smul.addr %s316, 4
      %s318 = scalar_lea.vmem %s1, %s317
      %s319 = smul.u32 25, %s24
      %p320 = scmp.lt.s32.totalorder %s22, 0
      %s321 = scalar_select %p320, %s22, 0
      %s322 = scalar_lea.vmem %s2, %s321
      %s323 = smul.u32 32, %s23
      %p324 = scmp.lt.s32.totalorder %s323, 63
      %s325 = scalar_select %p324, %s323, 63
      %p326 = scmp.lt.s32.totalorder %s22, 0
      %s327 = scalar_select %p326, %s22, 0
      %s328 = sadd.s32 %s327, %s325
      %s329 = smul.addr %s328, 4
      %s330 = scalar_lea.vmem %s3, %s329
      %s331 = smul.u32 32, %s23
      %p332 = scmp.lt.s32.totalorder %s22, 0
      %s333 = scalar_select %p332, %s22, 0
      %s334 = scalar_lea.vmem %s4, %s333
      %p335 = scmp.lt.s32.totalorder %s22, 0
      %s336 = scalar_select %p335, %s22, 0
      %s337 = scalar_lea.vmem %s5, %s336
      %p339 = scmp.eq.s32.totalorder %s24, 0
      // Predicated region
      $region33: #{encoder_forward_impl.21} parent=31 // pred_check
        %p340 = pneg %p339
      $region34: #{encoder_forward_impl.21} parent=31 // pred_check_branch
        %342 = sbr.rel (%p340) target = $region36
      $region35: #{encoder_forward_impl.21} parent=31 // pred_region
        %v343 = vld [vmem:[%s322] sm:$0x1]
        %v345 = vlaneseq
        %v346 = vshrl.u32 %v345, 7
        %v347 = vsub.s32 0, %v346
        %v348 = vrot.slane %v343, %v347
        %vm350 = vcmask 64512
        %351 = vst.msk [vmem:[#allocation2] sm:$0xff] %vm350, %v348
        %352 = vst.msk [vmem:[#allocation2 + $0x8] sm:$0xff] %vm350, %v348
        %353 = vst.msk [vmem:[#allocation2 + $0x10] sm:$0xff] %vm350, %v348
        %354 = vst.msk [vmem:[#allocation2 + $0x18] sm:$0xff] %vm350, %v348
        %355 = vst.msk [vmem:[#allocation2 + $0x20] sm:$0xff] %vm350, %v348
        %356 = vst.msk [vmem:[#allocation2 + $0x28] sm:$0xff] %vm350, %v348
        %357 = vst.msk [vmem:[#allocation2 + $0x30] sm:$0xff] %vm350, %v348
        %358 = vst.msk [vmem:[#allocation2 + $0x38] sm:$0xff] %vm350, %v348
        %359 = vst.msk [vmem:[#allocation2 + $0x40] sm:$0xff] %vm350, %v348
        %360 = vst.msk [vmem:[#allocation2 + $0x48] sm:$0xff] %vm350, %v348
        %361 = vst.msk [vmem:[#allocation2 + $0x50] sm:$0xff] %vm350, %v348
        %362 = vst.msk [vmem:[#allocation2 + $0x58] sm:$0xff] %vm350, %v348
        %363 = vst.msk [vmem:[#allocation2 + $0x60] sm:$0xff] %vm350, %v348
        %364 = vst.msk [vmem:[#allocation2 + $0x68] sm:$0xff] %vm350, %v348
        %365 = vst.msk [vmem:[#allocation2 + $0x70] sm:$0xff] %vm350, %v348
        %366 = vst.msk [vmem:[#allocation2 + $0x78] sm:$0xff] %vm350, %v348
        %367 = vst.msk [vmem:[#allocation2 + $0x80] sm:$0xff] %vm350, %v348
        %368 = vst.msk [vmem:[#allocation2 + $0x88] sm:$0xff] %vm350, %v348
        %369 = vst.msk [vmem:[#allocation2 + $0x90] sm:$0xff] %vm350, %v348
        %370 = vst.msk [vmem:[#allocation2 + $0x98] sm:$0xff] %vm350, %v348
        %371 = vst.msk [vmem:[#allocation2 + $0xa0] sm:$0xff] %vm350, %v348
        %372 = vst.msk [vmem:[#allocation2 + $0xa8] sm:$0xff] %vm350, %v348
        %373 = vst.msk [vmem:[#allocation2 + $0xb0] sm:$0xff] %vm350, %v348
        %374 = vst.msk [vmem:[#allocation2 + $0xb8] sm:$0xff] %vm350, %v348
        %375 = vst.msk [vmem:[#allocation2 + $0xc0] sm:$0xff] %vm350, %v348
        %376 = vst.msk [vmem:[#allocation2 + $0xc8] sm:$0xff] %vm350, %v348
        %377 = vst.msk [vmem:[#allocation2 + $0xd0] sm:$0xff] %vm350, %v348
        %378 = vst.msk [vmem:[#allocation2 + $0xd8] sm:$0xff] %vm350, %v348
        %379 = vst.msk [vmem:[#allocation2 + $0xe0] sm:$0xff] %vm350, %v348
        %380 = vst.msk [vmem:[#allocation2 + $0xe8] sm:$0xff] %vm350, %v348
        %381 = vst.msk [vmem:[#allocation2 + $0xf0] sm:$0xff] %vm350, %v348
        %382 = vst.msk [vmem:[#allocation2 + $0xf8] sm:$0xff] %vm350, %v348
      $region36: #{encoder_forward_impl.21} parent=31 // pred_fallthru
        _
      %v383 = vld [vmem:[#allocation2] sm:$0xff]
      %v384 = vld [vmem:[#allocation2 + $0x8] sm:$0xff]
      %v385 = vld [vmem:[#allocation2 + $0x10] sm:$0xff]
      %v386 = vld [vmem:[#allocation2 + $0x18] sm:$0xff]
      %v387 = vld [vmem:[#allocation2 + $0x20] sm:$0xff]
      %v388 = vld [vmem:[#allocation2 + $0x28] sm:$0xff]
      %v389 = vld [vmem:[#allocation2 + $0x30] sm:$0xff]
      %v390 = vld [vmem:[#allocation2 + $0x38] sm:$0xff]
      %v391 = vld [vmem:[#allocation2 + $0x40] sm:$0xff]
      %v392 = vld [vmem:[#allocation2 + $0x48] sm:$0xff]
      %v393 = vld [vmem:[#allocation2 + $0x50] sm:$0xff]
      %v394 = vld [vmem:[#allocation2 + $0x58] sm:$0xff]
      %v395 = vld [vmem:[#allocation2 + $0x60] sm:$0xff]
      %v396 = vld [vmem:[#allocation2 + $0x68] sm:$0xff]
      %v397 = vld [vmem:[#allocation2 + $0x70] sm:$0xff]
      %v398 = vld [vmem:[#allocation2 + $0x78] sm:$0xff]
      %v399 = vld [vmem:[#allocation2 + $0x80] sm:$0xff]
      %v400 = vld [vmem:[#allocation2 + $0x88] sm:$0xff]
      %v401 = vld [vmem:[#allocation2 + $0x90] sm:$0xff]
      %v402 = vld [vmem:[#allocation2 + $0x98] sm:$0xff]
      %v403 = vld [vmem:[#allocation2 + $0xa0] sm:$0xff]
      %v404 = vld [vmem:[#allocation2 + $0xa8] sm:$0xff]
      %v405 = vld [vmem:[#allocation2 + $0xb0] sm:$0xff]
      %v406 = vld [vmem:[#allocation2 + $0xb8] sm:$0xff]
      %v407 = vld [vmem:[#allocation2 + $0xc0] sm:$0xff]
      %v408 = vld [vmem:[#allocation2 + $0xc8] sm:$0xff]
      %v409 = vld [vmem:[#allocation2 + $0xd0] sm:$0xff]
      %v410 = vld [vmem:[#allocation2 + $0xd8] sm:$0xff]
      %v411 = vld [vmem:[#allocation2 + $0xe0] sm:$0xff]
      %v412 = vld [vmem:[#allocation2 + $0xe8] sm:$0xff]
      %v413 = vld [vmem:[#allocation2 + $0xf0] sm:$0xff]
      %v414 = vld [vmem:[#allocation2 + $0xf8] sm:$0xff]
      %v415 = vld [vmem:[%s308] sm:$0xff]
      %v416 = vld [vmem:[%s308 + $0x8] sm:$0xff]
      %v417 = vld [vmem:[%s308 + $0x10] sm:$0xff]
      %v418 = vld [vmem:[%s308 + $0x18] sm:$0xff]
      %v419 = vld [vmem:[%s308 + $0x20] sm:$0xff]
      %v420 = vld [vmem:[%s308 + $0x28] sm:$0xff]
      %v421 = vld [vmem:[%s308 + $0x30] sm:$0xff]
      %v422 = vld [vmem:[%s308 + $0x38] sm:$0xff]
      %v423 = vld [vmem:[%s308 + $0x40] sm:$0xff]
      %v424 = vld [vmem:[%s308 + $0x48] sm:$0xff]
      %v425 = vld [vmem:[%s308 + $0x50] sm:$0xff]
      %v426 = vld [vmem:[%s308 + $0x58] sm:$0xff]
      %v427 = vld [vmem:[%s308 + $0x60] sm:$0xff]
      %v428 = vld [vmem:[%s308 + $0x68] sm:$0xff]
      %v429 = vld [vmem:[%s308 + $0x70] sm:$0xff]
      %v430 = vld [vmem:[%s308 + $0x78] sm:$0xff]
      %v431 = vld [vmem:[%s308 + $0x80] sm:$0xff]
      %v432 = vld [vmem:[%s308 + $0x88] sm:$0xff]
      %v433 = vld [vmem:[%s308 + $0x90] sm:$0xff]
      %v434 = vld [vmem:[%s308 + $0x98] sm:$0xff]
      %v435 = vld [vmem:[%s308 + $0xa0] sm:$0xff]
      %v436 = vld [vmem:[%s308 + $0xa8] sm:$0xff]
      %v437 = vld [vmem:[%s308 + $0xb0] sm:$0xff]
      %v438 = vld [vmem:[%s308 + $0xb8] sm:$0xff]
      %v439 = vld [vmem:[%s308 + $0xc0] sm:$0xff]
      %v440 = vld [vmem:[%s308 + $0xc8] sm:$0xff]
      %v441 = vld [vmem:[%s308 + $0xd0] sm:$0xff]
      %v442 = vld [vmem:[%s308 + $0xd8] sm:$0xff]
      %v443 = vld [vmem:[%s308 + $0xe0] sm:$0xff]
      %v444 = vld [vmem:[%s308 + $0xe8] sm:$0xff]
      %v445 = vld [vmem:[%s308 + $0xf0] sm:$0xff]
      %v446 = vld [vmem:[%s308 + $0xf8] sm:$0xff]
      %v447 = vld [vmem:[%s318] sm:$0xf]
      %v448 = vld [vmem:[%s318 + $0x4] sm:$0xf]
      %v449 = vld [vmem:[%s318 + $0x8] sm:$0xf]
      %v450 = vld [vmem:[%s318 + $0xc] sm:$0xf]
      %v451 = vld [vmem:[%s318 + $0x10] sm:$0xf]
      %v452 = vld [vmem:[%s318 + $0x14] sm:$0xf]
      %v453 = vld [vmem:[%s318 + $0x18] sm:$0xf]
      %v454 = vld [vmem:[%s318 + $0x1c] sm:$0xf]
      %v455 = vld [vmem:[%s318 + $0x20] sm:$0xf]
      %v456 = vld [vmem:[%s318 + $0x24] sm:$0xf]
      %v457 = vld [vmem:[%s318 + $0x28] sm:$0xf]
      %v458 = vld [vmem:[%s318 + $0x2c] sm:$0xf]
      %v459 = vld [vmem:[%s318 + $0x30] sm:$0xf]
      %v460 = vld [vmem:[%s318 + $0x34] sm:$0xf]
      %v461 = vld [vmem:[%s318 + $0x38] sm:$0xf]
      %v462 = vld [vmem:[%s318 + $0x3c] sm:$0xf]
      %v463 = vld [vmem:[%s318 + $0x40] sm:$0xf]
      %v464 = vld [vmem:[%s318 + $0x44] sm:$0xf]
      %v465 = vld [vmem:[%s318 + $0x48] sm:$0xf]
      %v466 = vld [vmem:[%s318 + $0x4c] sm:$0xf]
      %v467 = vld [vmem:[%s318 + $0x50] sm:$0xf]
      %v468 = vld [vmem:[%s318 + $0x54] sm:$0xf]
      %v469 = vld [vmem:[%s318 + $0x58] sm:$0xf]
      %v470 = vld [vmem:[%s318 + $0x5c] sm:$0xf]
      %v471 = vld [vmem:[%s318 + $0x60] sm:$0x3]
      %v504 = vunpack.c.l.b16 %v415
      %v505 = vunpack.c.h.b16 %v415
      %v506 = vunpack.c.l.b16 %v416
      %v507 = vunpack.c.h.b16 %v416
      %v508 = vunpack.c.l.b16 %v417
      %v509 = vunpack.c.h.b16 %v417
      %v510 = vunpack.c.l.b16 %v418
      %v511 = vunpack.c.h.b16 %v418
      %v512 = vunpack.c.l.b16 %v419
      %v513 = vunpack.c.h.b16 %v419
      %v514 = vunpack.c.l.b16 %v420
      %v515 = vunpack.c.h.b16 %v420
      %v516 = vunpack.c.l.b16 %v421
      %v517 = vunpack.c.h.b16 %v421
      %v518 = vunpack.c.l.b16 %v422
      %v519 = vunpack.c.h.b16 %v422
      %v520 = vunpack.c.l.b16 %v423
      %v521 = vunpack.c.h.b16 %v423
      %v522 = vunpack.c.l.b16 %v424
      %v523 = vunpack.c.h.b16 %v424
      %v524 = vunpack.c.l.b16 %v425
      %v525 = vunpack.c.h.b16 %v425
      %v526 = vunpack.c.l.b16 %v426
      %v527 = vunpack.c.h.b16 %v426
      %v528 = vunpack.c.l.b16 %v427
      %v529 = vunpack.c.h.b16 %v427
      %v530 = vunpack.c.l.b16 %v428
      %v531 = vunpack.c.h.b16 %v428
      %v532 = vunpack.c.l.b16 %v429
      %v533 = vunpack.c.h.b16 %v429
      %v534 = vunpack.c.l.b16 %v430
      %v535 = vunpack.c.h.b16 %v430
      %v536 = vunpack.c.l.b16 %v431
      %v537 = vunpack.c.h.b16 %v431
      %v538 = vunpack.c.l.b16 %v432
      %v539 = vunpack.c.h.b16 %v432
      %v540 = vunpack.c.l.b16 %v433
      %v541 = vunpack.c.h.b16 %v433
      %v542 = vunpack.c.l.b16 %v434
      %v543 = vunpack.c.h.b16 %v434
      %v544 = vunpack.c.l.b16 %v435
      %v545 = vunpack.c.h.b16 %v435
      %v546 = vunpack.c.l.b16 %v436
      %v547 = vunpack.c.h.b16 %v436
      %v548 = vunpack.c.l.b16 %v437
      %v549 = vunpack.c.h.b16 %v437
      %v550 = vunpack.c.l.b16 %v438
      %v551 = vunpack.c.h.b16 %v438
      %v552 = vunpack.c.l.b16 %v439
      %v553 = vunpack.c.h.b16 %v439
      %v554 = vunpack.c.l.b16 %v440
      %v555 = vunpack.c.h.b16 %v440
      %v556 = vunpack.c.l.b16 %v441
      %v557 = vunpack.c.h.b16 %v441
      %v558 = vunpack.c.l.b16 %v442
      %v559 = vunpack.c.h.b16 %v442
      %v560 = vunpack.c.l.b16 %v443
      %v561 = vunpack.c.h.b16 %v443
      %v562 = vunpack.c.l.b16 %v444
      %v563 = vunpack.c.h.b16 %v444
      %v564 = vunpack.c.l.b16 %v445
      %v565 = vunpack.c.h.b16 %v445
      %v566 = vunpack.c.l.b16 %v446
      %v567 = vunpack.c.h.b16 %v446
      %v568 = vpack.c.b16 %v506, %v504
      %v569 = vpack.c.b16 %v507, %v505
      %v570 = vpack.c.b16 %v510, %v508
      %v571 = vpack.c.b16 %v511, %v509
      %v572 = vpack.c.b16 %v514, %v512
      %v573 = vpack.c.b16 %v515, %v513
      %v574 = vpack.c.b16 %v518, %v516
      %v575 = vpack.c.b16 %v519, %v517
      %v576 = vpack.c.b16 %v522, %v520
      %v577 = vpack.c.b16 %v523, %v521
      %v578 = vpack.c.b16 %v526, %v524
      %v579 = vpack.c.b16 %v527, %v525
      %v580 = vpack.c.b16 %v530, %v528
      %v581 = vpack.c.b16 %v531, %v529
      %v582 = vpack.c.b16 %v534, %v532
      %v583 = vpack.c.b16 %v535, %v533
      %v584 = vpack.c.b16 %v538, %v536
      %v585 = vpack.c.b16 %v539, %v537
      %v586 = vpack.c.b16 %v542, %v540
      %v587 = vpack.c.b16 %v543, %v541
      %v588 = vpack.c.b16 %v546, %v544
      %v589 = vpack.c.b16 %v547, %v545
      %v590 = vpack.c.b16 %v550, %v548
      %v591 = vpack.c.b16 %v551, %v549
      %v592 = vpack.c.b16 %v554, %v552
      %v593 = vpack.c.b16 %v555, %v553
      %v594 = vpack.c.b16 %v558, %v556
      %v595 = vpack.c.b16 %v559, %v557
      %v596 = vpack.c.b16 %v562, %v560
      %v597 = vpack.c.b16 %v563, %v561
      %v598 = vpack.c.b16 %v566, %v564
      %v599 = vpack.c.b16 %v567, %v565
      %v641 = vunpack.c.l.b16 %v447
      %v642 = vunpack.c.l.b16 %v448
      %v643 = vunpack.c.l.b16 %v449
      %v644 = vunpack.c.l.b16 %v450
      %v645 = vunpack.c.l.b16 %v451
      %v646 = vunpack.c.l.b16 %v452
      %v647 = vunpack.c.l.b16 %v453
      %v648 = vunpack.c.l.b16 %v454
      %v649 = vunpack.c.l.b16 %v455
      %v650 = vunpack.c.l.b16 %v456
      %v651 = vunpack.c.l.b16 %v457
      %v652 = vunpack.c.l.b16 %v458
      %v653 = vunpack.c.l.b16 %v459
      %v654 = vunpack.c.l.b16 %v460
      %v655 = vunpack.c.l.b16 %v461
      %v656 = vunpack.c.l.b16 %v462
      %v657 = vunpack.c.l.b16 %v463
      %v658 = vunpack.c.l.b16 %v464
      %v659 = vunpack.c.l.b16 %v465
      %v660 = vunpack.c.l.b16 %v466
      %v661 = vunpack.c.l.b16 %v467
      %v662 = vunpack.c.l.b16 %v468
      %v663 = vunpack.c.l.b16 %v469
      %v664 = vunpack.c.l.b16 %v470
      %v665 = vunpack.c.l.b16 %v471
      %v666 = vpack.c.b16 %v642, %v641
      %v667 = vpack.c.b16 %v644, %v643
      %v668 = vpack.c.b16 %v646, %v645
      %v669 = vpack.c.b16 %v648, %v647
      %v670 = vpack.c.b16 %v650, %v649
      %v671 = vpack.c.b16 %v652, %v651
      %v672 = vpack.c.b16 %v654, %v653
      %v673 = vpack.c.b16 %v656, %v655
      %v674 = vpack.c.b16 %v658, %v657
      %v675 = vpack.c.b16 %v660, %v659
      %v676 = vpack.c.b16 %v662, %v661
      %v677 = vpack.c.b16 %v664, %v663
      %v678 = vpack.c.b16 %v665, %v665
      %vm691 = vcmask 556032
      %v693 = vsel %vm691, %v569, 0
      %v696 = vsel %vm691, %v571, 0
      %v699 = vsel %vm691, %v573, 0
      %v702 = vsel %vm691, %v575, 0
      %v705 = vsel %vm691, %v577, 0
      %v708 = vsel %vm691, %v579, 0
      %v711 = vsel %vm691, %v581, 0
      %v714 = vsel %vm691, %v583, 0
      %v717 = vsel %vm691, %v585, 0
      %v720 = vsel %vm691, %v587, 0
      %v723 = vsel %vm691, %v589, 0
      %v726 = vsel %vm691, %v591, 0
      %v729 = vsel %vm691, %v593, 0
      %v732 = vsel %vm691, %v595, 0
      %v735 = vsel %vm691, %v597, 0
      %v738 = vsel %vm691, %v599, 0
      %vm740 = vcmask 1041408
      %v742 = vsel %vm740, %v678, 0
      %744 = vmatprep.subr.bf16.mxu0 0
      %745 = vmatpush1.bf16.msra.mxu0 %v673
      %746 = vmatprep.subr.bf16.mxu0 0
      %747 = vmatpush1.bf16.msra.mxu0 %v672
      %748 = vmatprep.subr.bf16.mxu0 0
      %749 = vmatpush1.bf16.msra.mxu0 %v671
      %750 = vmatprep.subr.bf16.mxu0 0
      %751 = vmatpush1.bf16.msra.mxu0 %v670
      %752 = vmatprep.subr.bf16.mxu0 0
      %753 = vmatpush1.bf16.msra.mxu0 %v669
      %754 = vmatprep.subr.bf16.mxu0 0
      %755 = vmatpush1.bf16.msra.mxu0 %v668
      %756 = vmatprep.subr.bf16.mxu0 0
      %757 = vmatpush1.bf16.msra.mxu0 %v667
      %758 = vmatprep.subr.bf16.mxu0 0
      %759 = vmatpush1.bf16.msra.mxu0 %v666
      %760 = vmatprep.subr.bf16.mxu0 0
      %761 = vmatpush2.bf16.msra.mxu0 0
      %762 = vmatprep.subr.bf16.mxu0 0
      %763 = vmatpush2.bf16.msra.mxu0 0
      %764 = vmatprep.subr.bf16.mxu0 0
      %765 = vmatpush2.bf16.msra.mxu0 0
      %766 = vmatprep.subr.bf16.mxu0 0
      %767 = vmatpush2.bf16.msra.mxu0 %v742
      %768 = vmatprep.subr.bf16.mxu0 0
      %769 = vmatpush2.bf16.msra.mxu0 %v677
      %770 = vmatprep.subr.bf16.mxu0 0
      %771 = vmatpush2.bf16.msra.mxu0 %v676
      %772 = vmatprep.subr.bf16.mxu0 0
      %773 = vmatpush2.bf16.msra.mxu0 %v675
      %774 = vmatprep.subr.bf16.mxu0 0
      %775 = vmatpush2.bf16.msra.mxu0 %v674
      %776 = vmatprep.mubr.bf16.mxu0 %v693
      %777 = vmatmul.mubr.bf16.gmra.mxu0 %v568
      %v778 = vpop.f32.mrf.mxu0
      %v779 = vadd.f32 0.0, %v778
      %v780 = vpop.f32.mrf.mxu0
      %v781 = vpop.f32.mrf.mxu0
      %v782 = vadd.f32 0.0, %v781
      %v783 = vpop.f32.mrf.mxu0
      %784 = vmatprep.mubr.bf16.mxu0 %v696
      %785 = vmatmul.mubr.bf16.gmra.mxu0 %v570
      %v786 = vpop.f32.mrf.mxu0
      %v787 = vadd.f32 0.0, %v786
      %v788 = vpop.f32.mrf.mxu0
      %v789 = vpop.f32.mrf.mxu0
      %v790 = vadd.f32 0.0, %v789
      %v791 = vpop.f32.mrf.mxu0
      %792 = vmatprep.mubr.bf16.mxu0 %v699
      %793 = vmatmul.mubr.bf16.gmra.mxu0 %v572
      %v794 = vpop.f32.mrf.mxu0
      %v795 = vadd.f32 0.0, %v794
      %v796 = vpop.f32.mrf.mxu0
      %v797 = vpop.f32.mrf.mxu0
      %v798 = vadd.f32 0.0, %v797
      %v799 = vpop.f32.mrf.mxu0
      %800 = vmatprep.mubr.bf16.mxu0 %v702
      %801 = vmatmul.mubr.bf16.gmra.mxu0 %v574
      %v802 = vpop.f32.mrf.mxu0
      %v803 = vadd.f32 0.0, %v802
      %v804 = vpop.f32.mrf.mxu0
      %v805 = vpop.f32.mrf.mxu0
      %v806 = vadd.f32 0.0, %v805
      %v807 = vpop.f32.mrf.mxu0
      %808 = vmatprep.mubr.bf16.mxu0 %v705
      %809 = vmatmul.mubr.bf16.gmra.mxu0 %v576
      %v810 = vpop.f32.mrf.mxu0
      %v811 = vadd.f32 0.0, %v810
      %v812 = vpop.f32.mrf.mxu0
      %v813 = vpop.f32.mrf.mxu0
      %v814 = vadd.f32 0.0, %v813
      %v815 = vpop.f32.mrf.mxu0
      %816 = vmatprep.mubr.bf16.mxu0 %v708
      %817 = vmatmul.mubr.bf16.gmra.mxu0 %v578
      %v818 = vpop.f32.mrf.mxu0
      %v819 = vadd.f32 0.0, %v818
      %v820 = vpop.f32.mrf.mxu0
      %v821 = vpop.f32.mrf.mxu0
      %v822 = vadd.f32 0.0, %v821
      %v823 = vpop.f32.mrf.mxu0
      %824 = vmatprep.mubr.bf16.mxu0 %v711
      %825 = vmatmul.mubr.bf16.gmra.mxu0 %v580
      %v826 = vpop.f32.mrf.mxu0
      %v827 = vadd.f32 0.0, %v826
      %v828 = vpop.f32.mrf.mxu0
      %v829 = vpop.f32.mrf.mxu0
      %v830 = vadd.f32 0.0, %v829
      %v831 = vpop.f32.mrf.mxu0
      %832 = vmatprep.mubr.bf16.mxu0 %v714
      %833 = vmatmul.mubr.bf16.gmra.mxu0 %v582
      %v834 = vpop.f32.mrf.mxu0
      %v835 = vadd.f32 0.0, %v834
      %v836 = vpop.f32.mrf.mxu0
      %v837 = vpop.f32.mrf.mxu0
      %v838 = vadd.f32 0.0, %v837
      %v839 = vpop.f32.mrf.mxu0
      %840 = vmatprep.mubr.bf16.mxu0 %v717
      %841 = vmatmul.mubr.bf16.gmra.mxu0 %v584
      %v842 = vpop.f32.mrf.mxu0
      %v843 = vadd.f32 0.0, %v842
      %v844 = vpop.f32.mrf.mxu0
      %v845 = vpop.f32.mrf.mxu0
      %v846 = vadd.f32 0.0, %v845
      %v847 = vpop.f32.mrf.mxu0
      %848 = vmatprep.mubr.bf16.mxu0 %v720
      %849 = vmatmul.mubr.bf16.gmra.mxu0 %v586
      %v850 = vpop.f32.mrf.mxu0
      %v851 = vadd.f32 0.0, %v850
      %v852 = vpop.f32.mrf.mxu0
      %v853 = vpop.f32.mrf.mxu0
      %v854 = vadd.f32 0.0, %v853
      %v855 = vpop.f32.mrf.mxu0
      %856 = vmatprep.mubr.bf16.mxu0 %v723
      %857 = vmatmul.mubr.bf16.gmra.mxu0 %v588
      %v858 = vpop.f32.mrf.mxu0
      %v859 = vadd.f32 0.0, %v858
      %v860 = vpop.f32.mrf.mxu0
      %v861 = vpop.f32.mrf.mxu0
      %v862 = vadd.f32 0.0, %v861
      %v863 = vpop.f32.mrf.mxu0
      %864 = vmatprep.mubr.bf16.mxu0 %v726
      %865 = vmatmul.mubr.bf16.gmra.mxu0 %v590
      %v866 = vpop.f32.mrf.mxu0
      %v867 = vadd.f32 0.0, %v866
      %v868 = vpop.f32.mrf.mxu0
      %v869 = vpop.f32.mrf.mxu0
      %v870 = vadd.f32 0.0, %v869
      %v871 = vpop.f32.mrf.mxu0
      %872 = vmatprep.mubr.bf16.mxu0 %v729
      %873 = vmatmul.mubr.bf16.gmra.mxu0 %v592
      %v874 = vpop.f32.mrf.mxu0
      %v875 = vadd.f32 0.0, %v874
      %v876 = vpop.f32.mrf.mxu0
      %v877 = vpop.f32.mrf.mxu0
      %v878 = vadd.f32 0.0, %v877
      %v879 = vpop.f32.mrf.mxu0
      %880 = vmatprep.mubr.bf16.mxu0 %v732
      %881 = vmatmul.mubr.bf16.gmra.mxu0 %v594
      %v882 = vpop.f32.mrf.mxu0
      %v883 = vadd.f32 0.0, %v882
      %v884 = vpop.f32.mrf.mxu0
      %v885 = vpop.f32.mrf.mxu0
      %v886 = vadd.f32 0.0, %v885
      %v887 = vpop.f32.mrf.mxu0
      %888 = vmatprep.mubr.bf16.mxu0 %v735
      %889 = vmatmul.mubr.bf16.gmra.mxu0 %v596
      %v890 = vpop.f32.mrf.mxu0
      %v891 = vadd.f32 0.0, %v890
      %v892 = vpop.f32.mrf.mxu0
      %v893 = vpop.f32.mrf.mxu0
      %v894 = vadd.f32 0.0, %v893
      %v895 = vpop.f32.mrf.mxu0
      %896 = vmatprep.mubr.bf16.mxu0 %v738
      %897 = vmatmul.mubr.bf16.gmra.mxu0 %v598
      %v898 = vpop.f32.mrf.mxu0
      %v899 = vadd.f32 0.0, %v898
      %v900 = vpop.f32.mrf.mxu0
      %v901 = vpop.f32.mrf.mxu0
      %v902 = vadd.f32 0.0, %v901
      %v903 = vpop.f32.mrf.mxu0
      %904 = vdwg.mxu0
      %v905 = vadd.f32 %v383, %v779
      %v906 = vadd.f32 %v384, %v782
      %v907 = vadd.f32 %v385, %v787
      %v908 = vadd.f32 %v386, %v790
      %v909 = vadd.f32 %v387, %v795
      %v910 = vadd.f32 %v388, %v798
      %v911 = vadd.f32 %v389, %v803
      %v912 = vadd.f32 %v390, %v806
      %v913 = vadd.f32 %v391, %v811
      %v914 = vadd.f32 %v392, %v814
      %v915 = vadd.f32 %v393, %v819
      %v916 = vadd.f32 %v394, %v822
      %v917 = vadd.f32 %v395, %v827
      %v918 = vadd.f32 %v396, %v830
      %v919 = vadd.f32 %v397, %v835
      %v920 = vadd.f32 %v398, %v838
      %v921 = vadd.f32 %v399, %v843
      %v922 = vadd.f32 %v400, %v846
      %v923 = vadd.f32 %v401, %v851
      %v924 = vadd.f32 %v402, %v854
      %v925 = vadd.f32 %v403, %v859
      %v926 = vadd.f32 %v404, %v862
      %v927 = vadd.f32 %v405, %v867
      %v928 = vadd.f32 %v406, %v870
      %v929 = vadd.f32 %v407, %v875
      %v930 = vadd.f32 %v408, %v878
      %v931 = vadd.f32 %v409, %v883
      %v932 = vadd.f32 %v410, %v886
      %v933 = vadd.f32 %v411, %v891
      %v934 = vadd.f32 %v412, %v894
      %v935 = vadd.f32 %v413, %v899
      %v936 = vadd.f32 %v414, %v902
      %vm937 = vcmask 64512
      %938 = vst.msk [vmem:[#allocation2] sm:$0xff] %vm937, %v905
      %939 = vst.msk [vmem:[#allocation2 + $0x8] sm:$0xff] %vm937, %v906
      %940 = vst.msk [vmem:[#allocation2 + $0x10] sm:$0xff] %vm937, %v907
      %941 = vst.msk [vmem:[#allocation2 + $0x18] sm:$0xff] %vm937, %v908
      %942 = vst.msk [vmem:[#allocation2 + $0x20] sm:$0xff] %vm937, %v909
      %943 = vst.msk [vmem:[#allocation2 + $0x28] sm:$0xff] %vm937, %v910
      %944 = vst.msk [vmem:[#allocation2 + $0x30] sm:$0xff] %vm937, %v911
      %945 = vst.msk [vmem:[#allocation2 + $0x38] sm:$0xff] %vm937, %v912
      %946 = vst.msk [vmem:[#allocation2 + $0x40] sm:$0xff] %vm937, %v913
      %947 = vst.msk [vmem:[#allocation2 + $0x48] sm:$0xff] %vm937, %v914
      %948 = vst.msk [vmem:[#allocation2 + $0x50] sm:$0xff] %vm937, %v915
      %949 = vst.msk [vmem:[#allocation2 + $0x58] sm:$0xff] %vm937, %v916
      %950 = vst.msk [vmem:[#allocation2 + $0x60] sm:$0xff] %vm937, %v917
      %951 = vst.msk [vmem:[#allocation2 + $0x68] sm:$0xff] %vm937, %v918
      %952 = vst.msk [vmem:[#allocation2 + $0x70] sm:$0xff] %vm937, %v919
      %953 = vst.msk [vmem:[#allocation2 + $0x78] sm:$0xff] %vm937, %v920
      %954 = vst.msk [vmem:[#allocation2 + $0x80] sm:$0xff] %vm937, %v921
      %955 = vst.msk [vmem:[#allocation2 + $0x88] sm:$0xff] %vm937, %v922
      %956 = vst.msk [vmem:[#allocation2 + $0x90] sm:$0xff] %vm937, %v923
      %957 = vst.msk [vmem:[#allocation2 + $0x98] sm:$0xff] %vm937, %v924
      %958 = vst.msk [vmem:[#allocation2 + $0xa0] sm:$0xff] %vm937, %v925
      %959 = vst.msk [vmem:[#allocation2 + $0xa8] sm:$0xff] %vm937, %v926
      %960 = vst.msk [vmem:[#allocation2 + $0xb0] sm:$0xff] %vm937, %v927
      %961 = vst.msk [vmem:[#allocation2 + $0xb8] sm:$0xff] %vm937, %v928
      %962 = vst.msk [vmem:[#allocation2 + $0xc0] sm:$0xff] %vm937, %v929
      %963 = vst.msk [vmem:[#allocation2 + $0xc8] sm:$0xff] %vm937, %v930
      %964 = vst.msk [vmem:[#allocation2 + $0xd0] sm:$0xff] %vm937, %v931
      %965 = vst.msk [vmem:[#allocation2 + $0xd8] sm:$0xff] %vm937, %v932
      %966 = vst.msk [vmem:[#allocation2 + $0xe0] sm:$0xff] %vm937, %v933
      %967 = vst.msk [vmem:[#allocation2 + $0xe8] sm:$0xff] %vm937, %v934
      %968 = vst.msk [vmem:[#allocation2 + $0xf0] sm:$0xff] %vm937, %v935
      %969 = vst.msk [vmem:[#allocation2 + $0xf8] sm:$0xff] %vm937, %v936
      %p970 = scmp.eq.s32.totalorder %s23, 0
      %p971 = pnand %p970, %p339
      %p972 = pneg %p971
      // Predicated region
      $region37: #{encoder_forward_impl.21} parent=31 // pred_check
        _
      $region38: #{encoder_forward_impl.21} parent=31 // pred_check_branch
        %974 = sbr.rel (%p971) target = $region40
      $region39: #{encoder_forward_impl.21} parent=31 // pred_region
        %vm975 = vcmask 57344
        %976 = vst.msk [vmem:[%s334] sm:$0x1] %vm975, 0.0
        %977 = vst.msk [vmem:[%s337] sm:$0x1] %vm975, 0.0
      $region40: #{encoder_forward_impl.21} parent=31 // pred_fallthru
        _
      // Predicated region
      $region41: #{encoder_forward_impl.21} parent=31 // pred_check
        %p978 = pneg %p339
      $region42: #{encoder_forward_impl.21} parent=31 // pred_check_branch
        %980 = sbr.rel (%p978) target = $region44
      $region43: #{encoder_forward_impl.21} parent=31 // pred_region
        %v981 = vld [vmem:[#allocation2] sm:$0xff]
        %v982 = vld [vmem:[#allocation2 + $0x8] sm:$0xff]
        %v983 = vld [vmem:[#allocation2 + $0x10] sm:$0xff]
        %v984 = vld [vmem:[#allocation2 + $0x18] sm:$0xff]
        %v985 = vld [vmem:[#allocation2 + $0x20] sm:$0xff]
        %v986 = vld [vmem:[#allocation2 + $0x28] sm:$0xff]
        %v987 = vld [vmem:[#allocation2 + $0x30] sm:$0xff]
        %v988 = vld [vmem:[#allocation2 + $0x38] sm:$0xff]
        %v989 = vld [vmem:[#allocation2 + $0x40] sm:$0xff]
        %v990 = vld [vmem:[#allocation2 + $0x48] sm:$0xff]
        %v991 = vld [vmem:[#allocation2 + $0x50] sm:$0xff]
        %v992 = vld [vmem:[#allocation2 + $0x58] sm:$0xff]
        %v993 = vld [vmem:[#allocation2 + $0x60] sm:$0xff]
        %v994 = vld [vmem:[#allocation2 + $0x68] sm:$0xff]
        %v995 = vld [vmem:[#allocation2 + $0x70] sm:$0xff]
        %v996 = vld [vmem:[#allocation2 + $0x78] sm:$0xff]
        %v997 = vld [vmem:[#allocation2 + $0x80] sm:$0xff]
        %v998 = vld [vmem:[#allocation2 + $0x88] sm:$0xff]
        %v999 = vld [vmem:[#allocation2 + $0x90] sm:$0xff]
        %v1000 = vld [vmem:[#allocation2 + $0x98] sm:$0xff]
        %v1001 = vld [vmem:[#allocation2 + $0xa0] sm:$0xff]
        %v1002 = vld [vmem:[#allocation2 + $0xa8] sm:$0xff]
        %v1003 = vld [vmem:[#allocation2 + $0xb0] sm:$0xff]
        %v1004 = vld [vmem:[#allocation2 + $0xb8] sm:$0xff]
        %v1005 = vld [vmem:[#allocation2 + $0xc0] sm:$0xff]
        %v1006 = vld [vmem:[#allocation2 + $0xc8] sm:$0xff]
        %v1007 = vld [vmem:[#allocation2 + $0xd0] sm:$0xff]
        %v1008 = vld [vmem:[#allocation2 + $0xd8] sm:$0xff]
        %v1009 = vld [vmem:[#allocation2 + $0xe0] sm:$0xff]
        %v1010 = vld [vmem:[#allocation2 + $0xe8] sm:$0xff]
        %v1011 = vld [vmem:[#allocation2 + $0xf0] sm:$0xff]
        %v1012 = vld [vmem:[#allocation2 + $0xf8] sm:$0xff]
        %v1013 = vpack.c.bf16 %v982, %v981
        %v1014 = vpack.c.bf16 %v984, %v983
        %v1015 = vpack.c.bf16 %v986, %v985
        %v1016 = vpack.c.bf16 %v988, %v987
        %v1017 = vpack.c.bf16 %v990, %v989
        %v1018 = vpack.c.bf16 %v992, %v991
        %v1019 = vpack.c.bf16 %v994, %v993
        %v1020 = vpack.c.bf16 %v996, %v995
        %v1021 = vpack.c.bf16 %v998, %v997
        %v1022 = vpack.c.bf16 %v1000, %v999
        %v1023 = vpack.c.bf16 %v1002, %v1001
        %v1024 = vpack.c.bf16 %v1004, %v1003
        %v1025 = vpack.c.bf16 %v1006, %v1005
        %v1026 = vpack.c.bf16 %v1008, %v1007
        %v1027 = vpack.c.bf16 %v1010, %v1009
        %v1028 = vpack.c.bf16 %v1012, %v1011
        %v1045 = vunpack.c.l.b16 %v1013
        %v1046 = vunpack.c.h.b16 %v1013
        %v1047 = vunpack.c.l.b16 %v1014
        %v1048 = vunpack.c.h.b16 %v1014
        %v1049 = vunpack.c.l.b16 %v1015
        %v1050 = vunpack.c.h.b16 %v1015
        %v1051 = vunpack.c.l.b16 %v1016
        %v1052 = vunpack.c.h.b16 %v1016
        %v1053 = vunpack.c.l.b16 %v1017
        %v1054 = vunpack.c.h.b16 %v1017
        %v1055 = vunpack.c.l.b16 %v1018
        %v1056 = vunpack.c.h.b16 %v1018
        %v1057 = vunpack.c.l.b16 %v1019
        %v1058 = vunpack.c.h.b16 %v1019
        %v1059 = vunpack.c.l.b16 %v1020
        %v1060 = vunpack.c.h.b16 %v1020
        %v1061 = vunpack.c.l.b16 %v1021
        %v1062 = vunpack.c.h.b16 %v1021
        %v1063 = vunpack.c.l.b16 %v1022
        %v1064 = vunpack.c.h.b16 %v1022
        %v1065 = vunpack.c.l.b16 %v1023
        %v1066 = vunpack.c.h.b16 %v1023
        %v1067 = vunpack.c.l.b16 %v1024
        %v1068 = vunpack.c.h.b16 %v1024
        %v1069 = vunpack.c.l.b16 %v1025
        %v1070 = vunpack.c.h.b16 %v1025
        %v1071 = vunpack.c.l.b16 %v1026
        %v1072 = vunpack.c.h.b16 %v1026
        %v1073 = vunpack.c.l.b16 %v1027
        %v1074 = vunpack.c.h.b16 %v1027
        %v1075 = vunpack.c.l.b16 %v1028
        %v1076 = vunpack.c.h.b16 %v1028
        %v1077 = vpack.c.b16 %v1045, %v1045
        %v1078 = vpack.c.b16 %v1046, %v1046
        %v1079 = vpack.c.b16 %v1047, %v1047
        %v1080 = vpack.c.b16 %v1048, %v1048
        %v1081 = vpack.c.b16 %v1049, %v1049
        %v1082 = vpack.c.b16 %v1050, %v1050
        %v1083 = vpack.c.b16 %v1051, %v1051
        %v1084 = vpack.c.b16 %v1052, %v1052
        %v1085 = vpack.c.b16 %v1053, %v1053
        %v1086 = vpack.c.b16 %v1054, %v1054
        %v1087 = vpack.c.b16 %v1055, %v1055
        %v1088 = vpack.c.b16 %v1056, %v1056
        %v1089 = vpack.c.b16 %v1057, %v1057
        %v1090 = vpack.c.b16 %v1058, %v1058
        %v1091 = vpack.c.b16 %v1059, %v1059
        %v1092 = vpack.c.b16 %v1060, %v1060
        %v1093 = vpack.c.b16 %v1061, %v1061
        %v1094 = vpack.c.b16 %v1062, %v1062
        %v1095 = vpack.c.b16 %v1063, %v1063
        %v1096 = vpack.c.b16 %v1064, %v1064
        %v1097 = vpack.c.b16 %v1065, %v1065
        %v1098 = vpack.c.b16 %v1066, %v1066
        %v1099 = vpack.c.b16 %v1067, %v1067
        %v1100 = vpack.c.b16 %v1068, %v1068
        %v1101 = vpack.c.b16 %v1069, %v1069
        %v1102 = vpack.c.b16 %v1070, %v1070
        %v1103 = vpack.c.b16 %v1071, %v1071
        %v1104 = vpack.c.b16 %v1072, %v1072
        %v1105 = vpack.c.b16 %v1073, %v1073
        %v1106 = vpack.c.b16 %v1074, %v1074
        %v1107 = vpack.c.b16 %v1075, %v1075
        %v1108 = vpack.c.b16 %v1076, %v1076
        %vm1141 = vcmask 60416
        %1142 = vst.msk [vmem:[%s330] sm:$0xf] %vm1141, %v1077
        %1143 = vst.msk [vmem:[%s330 + $0x4] sm:$0xf] %vm1141, %v1078
        %1144 = vst.msk [vmem:[%s330 + $0x8] sm:$0xf] %vm1141, %v1079
        %1145 = vst.msk [vmem:[%s330 + $0xc] sm:$0xf] %vm1141, %v1080
        %1146 = vst.msk [vmem:[%s330 + $0x10] sm:$0xf] %vm1141, %v1081
        %1147 = vst.msk [vmem:[%s330 + $0x14] sm:$0xf] %vm1141, %v1082
        %1148 = vst.msk [vmem:[%s330 + $0x18] sm:$0xf] %vm1141, %v1083
        %1149 = vst.msk [vmem:[%s330 + $0x1c] sm:$0xf] %vm1141, %v1084
        %1150 = vst.msk [vmem:[%s330 + $0x20] sm:$0xf] %vm1141, %v1085
        %1151 = vst.msk [vmem:[%s330 + $0x24] sm:$0xf] %vm1141, %v1086
        %1152 = vst.msk [vmem:[%s330 + $0x28] sm:$0xf] %vm1141, %v1087
        %1153 = vst.msk [vmem:[%s330 + $0x2c] sm:$0xf] %vm1141, %v1088
        %1154 = vst.msk [vmem:[%s330 + $0x30] sm:$0xf] %vm1141, %v1089
        %1155 = vst.msk [vmem:[%s330 + $0x34] sm:$0xf] %vm1141, %v1090
        %1156 = vst.msk [vmem:[%s330 + $0x38] sm:$0xf] %vm1141, %v1091
        %1157 = vst.msk [vmem:[%s330 + $0x3c] sm:$0xf] %vm1141, %v1092
        %1158 = vst.msk [vmem:[%s330 + $0x40] sm:$0xf] %vm1141, %v1093
        %1159 = vst.msk [vmem:[%s330 + $0x44] sm:$0xf] %vm1141, %v1094
        %1160 = vst.msk [vmem:[%s330 + $0x48] sm:$0xf] %vm1141, %v1095
        %1161 = vst.msk [vmem:[%s330 + $0x4c] sm:$0xf] %vm1141, %v1096
        %1162 = vst.msk [vmem:[%s330 + $0x50] sm:$0xf] %vm1141, %v1097
        %1163 = vst.msk [vmem:[%s330 + $0x54] sm:$0xf] %vm1141, %v1098
        %1164 = vst.msk [vmem:[%s330 + $0x58] sm:$0xf] %vm1141, %v1099
        %1165 = vst.msk [vmem:[%s330 + $0x5c] sm:$0xf] %vm1141, %v1100
        %1166 = vst.msk [vmem:[%s330 + $0x60] sm:$0xf] %vm1141, %v1101
        %1167 = vst.msk [vmem:[%s330 + $0x64] sm:$0xf] %vm1141, %v1102
        %1168 = vst.msk [vmem:[%s330 + $0x68] sm:$0xf] %vm1141, %v1103
        %1169 = vst.msk [vmem:[%s330 + $0x6c] sm:$0xf] %vm1141, %v1104
        %1170 = vst.msk [vmem:[%s330 + $0x70] sm:$0xf] %vm1141, %v1105
        %1171 = vst.msk [vmem:[%s330 + $0x74] sm:$0xf] %vm1141, %v1106
        %1172 = vst.msk [vmem:[%s330 + $0x78] sm:$0xf] %vm1141, %v1107
        %1173 = vst.msk [vmem:[%s330 + $0x7c] sm:$0xf] %vm1141, %v1108
        %v1174 = vld [vmem:[%s334] sm:$0x1]
        %v1175 = vsel %vm937, %v981, 0.0
        %v1176 = vsel %vm937, %v982, 0.0
        %v1177 = vadd.f32 %v1175, %v1176
        %v1178 = vsel %vm937, %v983, 0.0
        %v1179 = vadd.f32 %v1177, %v1178
        %v1180 = vsel %vm937, %v984, 0.0
        %v1181 = vadd.f32 %v1179, %v1180
        %v1182 = vsel %vm937, %v985, 0.0
        %v1183 = vadd.f32 %v1181, %v1182
        %v1184 = vsel %vm937, %v986, 0.0
        %v1185 = vadd.f32 %v1183, %v1184
        %v1186 = vsel %vm937, %v987, 0.0
        %v1187 = vadd.f32 %v1185, %v1186
        %v1188 = vsel %vm937, %v988, 0.0
        %v1189 = vadd.f32 %v1187, %v1188
        %v1190 = vsel %vm937, %v989, 0.0
        %v1191 = vadd.f32 %v1189, %v1190
        %v1192 = vsel %vm937, %v990, 0.0
        %v1193 = vadd.f32 %v1191, %v1192
        %v1194 = vsel %vm937, %v991, 0.0
        %v1195 = vadd.f32 %v1193, %v1194
        %v1196 = vsel %vm937, %v992, 0.0
        %v1197 = vadd.f32 %v1195, %v1196
        %v1198 = vsel %vm937, %v993, 0.0
        %v1199 = vadd.f32 %v1197, %v1198
        %v1200 = vsel %vm937, %v994, 0.0
        %v1201 = vadd.f32 %v1199, %v1200
        %v1202 = vsel %vm937, %v995, 0.0
        %v1203 = vadd.f32 %v1201, %v1202
        %v1204 = vsel %vm937, %v996, 0.0
        %v1205 = vadd.f32 %v1203, %v1204
        %v1206 = vsel %vm937, %v997, 0.0
        %v1207 = vadd.f32 %v1205, %v1206
        %v1208 = vsel %vm937, %v998, 0.0
        %v1209 = vadd.f32 %v1207, %v1208
        %v1210 = vsel %vm937, %v999, 0.0
        %v1211 = vadd.f32 %v1209, %v1210
        %v1212 = vsel %vm937, %v1000, 0.0
        %v1213 = vadd.f32 %v1211, %v1212
        %v1214 = vsel %vm937, %v1001, 0.0
        %v1215 = vadd.f32 %v1213, %v1214
        %v1216 = vsel %vm937, %v1002, 0.0
        %v1217 = vadd.f32 %v1215, %v1216
        %v1218 = vsel %vm937, %v1003, 0.0
        %v1219 = vadd.f32 %v1217, %v1218
        %v1220 = vsel %vm937, %v1004, 0.0
        %v1221 = vadd.f32 %v1219, %v1220
        %v1222 = vsel %vm937, %v1005, 0.0
        %v1223 = vadd.f32 %v1221, %v1222
        %v1224 = vsel %vm937, %v1006, 0.0
        %v1225 = vadd.f32 %v1223, %v1224
        %v1226 = vsel %vm937, %v1007, 0.0
        %v1227 = vadd.f32 %v1225, %v1226
        %v1228 = vsel %vm937, %v1008, 0.0
        %v1229 = vadd.f32 %v1227, %v1228
        %v1230 = vsel %vm937, %v1009, 0.0
        %v1231 = vadd.f32 %v1229, %v1230
        %v1232 = vsel %vm937, %v1010, 0.0
        %v1233 = vadd.f32 %v1231, %v1232
        %v1234 = vsel %vm937, %v1011, 0.0
        %v1235 = vadd.f32 %v1233, %v1234
        %v1236 = vsel %vm937, %v1012, 0.0
        %v1237 = vadd.f32 %v1235, %v1236
        %v1238 = vrot.slane %v1237, 4
        %v1239 = vadd.f32 %v1237, %v1238
        %v1240 = vrot.slane %v1239, 2
        %v1241 = vadd.f32 %v1239, %v1240
        %v1242 = vrot.slane %v1241, 1
        %v1243 = vadd.f32 %v1241, %v1242
        %v1244 = vadd.f32 %v1174, %v1243
        %vm1245 = vcmask 57344
        %1246 = vst.msk [vmem:[%s334] sm:$0x1] %vm1245, %v1244
        %v1247 = vld [vmem:[%s337] sm:$0x1]
        %v1248 = vmul.f32 %v981, %v981
        %v1249 = vmul.f32 %v982, %v982
        %v1250 = vmul.f32 %v983, %v983
        %v1251 = vmul.f32 %v984, %v984
        %v1252 = vmul.f32 %v985, %v985
        %v1253 = vmul.f32 %v986, %v986
        %v1254 = vmul.f32 %v987, %v987
        %v1255 = vmul.f32 %v988, %v988
        %v1256 = vmul.f32 %v989, %v989
        %v1257 = vmul.f32 %v990, %v990
        %v1258 = vmul.f32 %v991, %v991
        %v1259 = vmul.f32 %v992, %v992
        %v1260 = vmul.f32 %v993, %v993
        %v1261 = vmul.f32 %v994, %v994
        %v1262 = vmul.f32 %v995, %v995
        %v1263 = vmul.f32 %v996, %v996
        %v1264 = vmul.f32 %v997, %v997
        %v1265 = vmul.f32 %v998, %v998
        %v1266 = vmul.f32 %v999, %v999
        %v1267 = vmul.f32 %v1000, %v1000
        %v1268 = vmul.f32 %v1001, %v1001
        %v1269 = vmul.f32 %v1002, %v1002
        %v1270 = vmul.f32 %v1003, %v1003
        %v1271 = vmul.f32 %v1004, %v1004
        %v1272 = vmul.f32 %v1005, %v1005
        %v1273 = vmul.f32 %v1006, %v1006
        %v1274 = vmul.f32 %v1007, %v1007
        %v1275 = vmul.f32 %v1008, %v1008
        %v1276 = vmul.f32 %v1009, %v1009
        %v1277 = vmul.f32 %v1010, %v1010
        %v1278 = vmul.f32 %v1011, %v1011
        %v1279 = vmul.f32 %v1012, %v1012
        %v1280 = vsel %vm937, %v1248, 0.0
        %v1281 = vsel %vm937, %v1249, 0.0
        %v1282 = vadd.f32 %v1280, %v1281
        %v1283 = vsel %vm937, %v1250, 0.0
        %v1284 = vadd.f32 %v1282, %v1283
        %v1285 = vsel %vm937, %v1251, 0.0
        %v1286 = vadd.f32 %v1284, %v1285
        %v1287 = vsel %vm937, %v1252, 0.0
        %v1288 = vadd.f32 %v1286, %v1287
        %v1289 = vsel %vm937, %v1253, 0.0
        %v1290 = vadd.f32 %v1288, %v1289
        %v1291 = vsel %vm937, %v1254, 0.0
        %v1292 = vadd.f32 %v1290, %v1291
        %v1293 = vsel %vm937, %v1255, 0.0
        %v1294 = vadd.f32 %v1292, %v1293
        %v1295 = vsel %vm937, %v1256, 0.0
        %v1296 = vadd.f32 %v1294, %v1295
        %v1297 = vsel %vm937, %v1257, 0.0
        %v1298 = vadd.f32 %v1296, %v1297
        %v1299 = vsel %vm937, %v1258, 0.0
        %v1300 = vadd.f32 %v1298, %v1299
        %v1301 = vsel %vm937, %v1259, 0.0
        %v1302 = vadd.f32 %v1300, %v1301
        %v1303 = vsel %vm937, %v1260, 0.0
        %v1304 = vadd.f32 %v1302, %v1303
        %v1305 = vsel %vm937, %v1261, 0.0
        %v1306 = vadd.f32 %v1304, %v1305
        %v1307 = vsel %vm937, %v1262, 0.0
        %v1308 = vadd.f32 %v1306, %v1307
        %v1309 = vsel %vm937, %v1263, 0.0
        %v1310 = vadd.f32 %v1308, %v1309
        %v1311 = vsel %vm937, %v1264, 0.0
        %v1312 = vadd.f32 %v1310, %v1311
        %v1313 = vsel %vm937, %v1265, 0.0
        %v1314 = vadd.f32 %v1312, %v1313
        %v1315 = vsel %vm937, %v1266, 0.0
        %v1316 = vadd.f32 %v1314, %v1315
        %v1317 = vsel %vm937, %v1267, 0.0
        %v1318 = vadd.f32 %v1316, %v1317
        %v1319 = vsel %vm937, %v1268, 0.0
        %v1320 = vadd.f32 %v1318, %v1319
        %v1321 = vsel %vm937, %v1269, 0.0
        %v1322 = vadd.f32 %v1320, %v1321
        %v1323 = vsel %vm937, %v1270, 0.0
        %v1324 = vadd.f32 %v1322, %v1323
        %v1325 = vsel %vm937, %v1271, 0.0
        %v1326 = vadd.f32 %v1324, %v1325
        %v1327 = vsel %vm937, %v1272, 0.0
        %v1328 = vadd.f32 %v1326, %v1327
        %v1329 = vsel %vm937, %v1273, 0.0
        %v1330 = vadd.f32 %v1328, %v1329
        %v1331 = vsel %vm937, %v1274, 0.0
        %v1332 = vadd.f32 %v1330, %v1331
        %v1333 = vsel %vm937, %v1275, 0.0
        %v1334 = vadd.f32 %v1332, %v1333
        %v1335 = vsel %vm937, %v1276, 0.0
        %v1336 = vadd.f32 %v1334, %v1335
        %v1337 = vsel %vm937, %v1277, 0.0
        %v1338 = vadd.f32 %v1336, %v1337
        %v1339 = vsel %vm937, %v1278, 0.0
        %v1340 = vadd.f32 %v1338, %v1339
        %v1341 = vsel %vm937, %v1279, 0.0
        %v1342 = vadd.f32 %v1340, %v1341
        %v1343 = vrot.slane %v1342, 4
        %v1344 = vadd.f32 %v1342, %v1343
        %v1345 = vrot.slane %v1344, 2
        %v1346 = vadd.f32 %v1344, %v1345
        %v1347 = vrot.slane %v1346, 1
        %v1348 = vadd.f32 %v1346, %v1347
        %v1349 = vadd.f32 %v1247, %v1348
        %1350 = vst.msk [vmem:[%s337] sm:$0x1] %vm1245, %v1349
      $region44: #{encoder_forward_impl.21} parent=31 // pred_fallthru
        _
      %s1351 = smul.u32 32, %s23
      %p1352 = scmp.lt.s32.totalorder %s1351, 63
      %s1353 = scalar_select %p1352, %s1351, 63
      %p1354 = scmp.lt.s32.totalorder %s22, 0
      %s1355 = scalar_select %p1354, %s22, 0
      %s1356 = sadd.s32 %s1355, %s1353
      %s1357 = smul.addr %s1356, 4
      %s1358 = scalar_lea.vmem %s3, %s1357
      %p1359 = scmp.lt.s32.totalorder %s22, 0
      %s1360 = scalar_select %p1359, %s22, 0
      %s1361 = scalar_lea.vmem %s4, %s1360
      %p1362 = scmp.lt.s32.totalorder %s22, 0
      %s1363 = scalar_select %p1362, %s22, 0
      %s1364 = scalar_lea.vmem %s5, %s1363
      // Predicated region
      $region45: #{encoder_forward_impl.21} parent=31 // pred_check
        %p1365 = pneg %p138
      $region46: #{encoder_forward_impl.21} parent=31 // pred_check_branch
        %1367 = sbr.rel (%p1365) target = $region48
      $region47: #{encoder_forward_impl.21} parent=31 // pred_region
        %s1368 = smul.u32 32, %s23
      $region48: #{encoder_forward_impl.21} parent=31 // pred_fallthru
        _
      // Predicated region
      $region49: #{encoder_forward_impl.21} parent=31 // pred_check
        %p1369 = pneg %p164
      $region50: #{encoder_forward_impl.21} parent=31 // pred_check_branch
        %1371 = sbr.rel (%p1369) target = $region52
      $region51: #{encoder_forward_impl.21} parent=31 // pred_region
        _
      $region52: #{encoder_forward_impl.21} parent=31 // pred_fallthru
        _
      // Predicated region
      $region53: #{encoder_forward_impl.21} parent=31 // pred_check
        %p1372 = pneg %p190
      $region54: #{encoder_forward_impl.21} parent=31 // pred_check_branch
        %1374 = sbr.rel (%p1372) target = $region56
      $region55: #{encoder_forward_impl.21} parent=31 // pred_region
        _
      $region56: #{encoder_forward_impl.21} parent=31 // pred_fallthru
        _
      // Predicated region
      $region57: #{encoder_forward_impl.21} parent=31 // pred_check
        %p1375 = pneg %p164
      $region58: #{encoder_forward_impl.21} parent=31 // pred_check_branch
        %1377 = sbr.rel (%p1375) target = $region60
      $region59: #{encoder_forward_impl.21} parent=31 // pred_region
        %p1378 = scmp.lt.s32.totalorder %s22, 0
        %s1379 = scalar_select %p1378, %s22, 0
        %s1380 = scalar_lea.vmem %s4, %s1379
      $region60: #{encoder_forward_impl.21} parent=31 // pred_fallthru
        _
      // Predicated region
      $region61: #{encoder_forward_impl.21} parent=31 // pred_check
        %p1381 = pneg %p190
      $region62: #{encoder_forward_impl.21} parent=31 // pred_check_branch
        %1383 = sbr.rel (%p1381) target = $region64
      $region63: #{encoder_forward_impl.21} parent=31 // pred_region
        %p1384 = scmp.lt.s32.totalorder %s22, 0
        %s1385 = scalar_select %p1384, %s22, 0
        %s1386 = scalar_lea.vmem %s5, %s1385
      $region64: #{encoder_forward_impl.21} parent=31 // pred_fallthru
        _
    $region32: #{encoder_forward_impl.21} parent=5 // pred_fallthru
      _
    %p1387 = scmp.le.s32.totalorder 2, %s12
    // Predicated region
    $region65: #{encoder_forward_impl.21} parent=5 // pred_check
      %p1388 = pneg %p1387
    $region66: #{encoder_forward_impl.21} parent=5 // pred_check_branch
      %1390 = sbr.rel (%p1388) target = $region68
    $region67: #{encoder_forward_impl.21} parent=5 // pred_region
      %s1391 = ssub.s32 %s12, 2
      // Predicated region
      $region69: #{encoder_forward_impl.21} parent=67 // pred_check
        %p1392 = pneg %p144
      $region70: #{encoder_forward_impl.21} parent=67 // pred_check_branch
        %1394 = sbr.rel (%p1392) target = $region72
      $region71: #{encoder_forward_impl.21} parent=67 // pred_region
        %s1395 = smul.u32 32, %s26
        %p1396 = scmp.lt.s32.totalorder %s1395, 63
        %s1397 = scalar_select %p1396, %s1395, 63
        %p1398 = scmp.lt.s32.totalorder %s25, 0
        %s1399 = scalar_select %p1398, %s25, 0
        %s1400 = sadd.s32 %s1399, %s1397
        %s1401 = smul.addr %s1400, 4
        %s1402 = scalar_lea.vmem %s3, %s1401
      $region72: #{encoder_forward_impl.21} parent=67 // pred_fallthru
        _
    $region68: #{encoder_forward_impl.21} parent=5 // pred_fallthru
      _
  $region6: #{encoder_forward_impl.21} parent=0 // loop_footer
    %s16 = sadd.s32 1, %s12
  $region7: #{encoder_forward_impl.21} parent=0 // loop_footer_branch
    %11 = sbr.rel target = $region3
  $region8: #{encoder_forward_impl.21} parent=0 // loop_exit
    _

// kernel: encoder_forward_impl.22
$region0: #{encoder_forward_impl.22}
  #allocation0 [shape = 'u32[]', space=smem, size = 0x4, offset = 0x4, fixed_abs, tag = 'smem constant byte address 0x4 - core index']
  #allocation1 [shape = 'u32[144,128]{1,0:T(1,128)}', space=vmem, size = 0x12000, scoped, tag = 'internal scratch']
  %s0 = inlined_call_operand.vmem [shape: bf16[32,128], index: 0, kind: input, shape index: {}]
  %s1 = inlined_call_operand.vmem [shape: f32[1,128], index: 1, kind: input, shape index: {}]
  %s2 = inlined_call_operand.vmem [shape: f32[1,128], index: 2, kind: input, shape index: {}]
  %s3 = inlined_call_operand.vmem [shape: bf16[32,128], index: 3, kind: output, shape index: {}]
  %s4 = sld [smem:[#allocation0]]
  $region22: #{encoder_forward_impl.22} parent=0
    _
  %s6 = ssub.s32 1, %s4
  %s7 = scalar_select 0, %s6, %s4
  // Predicated region
  $region2: #{encoder_forward_impl.22} parent=0 // pred_check
    _
  $region3: #{encoder_forward_impl.22} parent=0 // pred_check_branch
    %9 = sbr.rel (0) target = $region5
  $region4: #{encoder_forward_impl.22} parent=0 // pred_region
    _
  $region5: #{encoder_forward_impl.22} parent=0 // pred_fallthru
    _
  // Predicated region
  $region6: #{encoder_forward_impl.22} parent=0 // pred_check
    _
  $region7: #{encoder_forward_impl.22} parent=0 // pred_check_branch
    %11 = sbr.rel (0) target = $region9
  $region8: #{encoder_forward_impl.22} parent=0 // pred_region
    _
  $region9: #{encoder_forward_impl.22} parent=0 // pred_fallthru
    _
  // Predicated region
  $region10: #{encoder_forward_impl.22} parent=0 // pred_check
    _
  $region11: #{encoder_forward_impl.22} parent=0 // pred_check_branch
    %13 = sbr.rel (0) target = $region13
  $region12: #{encoder_forward_impl.22} parent=0 // pred_region
    _
  $region13: #{encoder_forward_impl.22} parent=0 // pred_fallthru
    _
  %v14 = vld [vmem:[%s0] sm:$0xf]
  %v15 = vld [vmem:[%s0 + $0x4] sm:$0xf]
  %v16 = vld [vmem:[%s0 + $0x8] sm:$0xf]
  %v17 = vld [vmem:[%s0 + $0xc] sm:$0xf]
  %v18 = vunpack.c.l.bf16 %v14
  %v19 = vunpack.c.l.bf16 %v15
  %v20 = vunpack.c.l.bf16 %v16
  %v21 = vunpack.c.l.bf16 %v17
  %v22 = vld [vmem:[%s1] sm:$0x1]
  %v24 = vlaneseq
  %v25 = vshrl.u32 %v24, 7
  %v26 = vsub.s32 0, %v25
  %v27 = vrot.slane %v22, %v26
  %v29 = vmul.f32 %v18, %v27
  %v30 = vmul.f32 %v19, %v27
  %v31 = vmul.f32 %v20, %v27
  %v32 = vmul.f32 %v21, %v27
  %v33 = vld [vmem:[%s2] sm:$0x1]
  %v35 = vlaneseq
  %v36 = vshrl.u32 %v35, 7
  %v37 = vsub.s32 0, %v36
  %v38 = vrot.slane %v33, %v37
  %v40 = vadd.f32 %v29, %v38
  %v41 = vadd.f32 %v30, %v38
  %v42 = vadd.f32 %v31, %v38
  %v43 = vadd.f32 %v32, %v38
  %v44 = vmax.f32 %v40, 0.0
  %v45 = vmax.f32 %v41, 0.0
  %v46 = vmax.f32 %v42, 0.0
  %v47 = vmax.f32 %v43, 0.0
  %v48 = vpack.c.bf16 %v45, %v44
  %v49 = vpack.c.bf16 %v47, %v46
  %v52 = vunpack.c.l.b16 %v48
  %v53 = vunpack.c.h.b16 %v48
  %v54 = vunpack.c.l.b16 %v49
  %v55 = vunpack.c.h.b16 %v49
  %v56 = vpack.c.b16 %v52, %v52
  %v57 = vpack.c.b16 %v53, %v53
  %v58 = vpack.c.b16 %v54, %v54
  %v59 = vpack.c.b16 %v55, %v55
  %64 = vst [vmem:[%s3] sm:$0xf] %v56
  %65 = vst [vmem:[%s3 + $0x4] sm:$0xf] %v57
  %66 = vst [vmem:[%s3 + $0x8] sm:$0xf] %v58
  %67 = vst [vmem:[%s3 + $0xc] sm:$0xf] %v59
  // Predicated region
  $region14: #{encoder_forward_impl.22} parent=0 // pred_check
    _
  $region15: #{encoder_forward_impl.22} parent=0 // pred_check_branch
    %69 = sbr.rel (0) target = $region17
  $region16: #{encoder_forward_impl.22} parent=0 // pred_region
    _
  $region17: #{encoder_forward_impl.22} parent=0 // pred_fallthru
    _
  // Predicated region
  $region18: #{encoder_forward_impl.22} parent=0 // pred_check
    _
  $region19: #{encoder_forward_impl.22} parent=0 // pred_check_branch
    %71 = sbr.rel (0) target = $region21
  $region20: #{encoder_forward_impl.22} parent=0 // pred_region
    _
  $region21: #{encoder_forward_impl.22} parent=0 // pred_fallthru
    _

// kernel: encoder_forward_impl.23
$region0: #{encoder_forward_impl.23}
  #allocation0 [shape = 'u32[]', space=smem, size = 0x4, offset = 0x4, fixed_abs, tag = 'smem constant byte address 0x4 - core index']
  #allocation1 [shape = 'u32[144,128]{1,0:T(1,128)}', space=vmem, size = 0x12000, scoped, tag = 'internal scratch']
  #allocation2 [shape = 'f32[128,16]{1,0:T(8,128)}', space=vmem, size = 0x10000, scoped, tag = 'scratch operand']
  %s0 = inlined_call_operand.vmem [shape: bf16[128,72], index: 0, kind: input, shape index: {}]
  %s1 = inlined_call_operand.vmem [shape: bf16[72,16], index: 1, kind: input, shape index: {}]
  %s2 = inlined_call_operand.vmem [shape: f32[1,16], index: 2, kind: input, shape index: {}]
  %s3 = inlined_call_operand.vmem [shape: bf16[128,16], index: 3, kind: output, shape index: {0}]
  %s4 = inlined_call_operand.vmem [shape: f32[1,16], index: 4, kind: output, shape index: {1}]
  %s5 = inlined_call_operand.vmem [shape: f32[1,16], index: 5, kind: output, shape index: {2}]
  %6 = xla_tuple %s3, %s4, %s5
  %s7 = sld [smem:[#allocation0]]
  $region50: #{encoder_forward_impl.23} parent=0
    _
  %s9 = ssub.s32 1, %s7
  %s10 = scalar_select 0, %s9, %s7
  // Predicated region
  $region2: #{encoder_forward_impl.23} parent=0 // pred_check
    _
  $region3: #{encoder_forward_impl.23} parent=0 // pred_check_branch
    %12 = sbr.rel (0) target = $region5
  $region4: #{encoder_forward_impl.23} parent=0 // pred_region
    _
  $region5: #{encoder_forward_impl.23} parent=0 // pred_fallthru
    _
  // Predicated region
  $region6: #{encoder_forward_impl.23} parent=0 // pred_check
    _
  $region7: #{encoder_forward_impl.23} parent=0 // pred_check_branch
    %14 = sbr.rel (0) target = $region9
  $region8: #{encoder_forward_impl.23} parent=0 // pred_region
    _
  $region9: #{encoder_forward_impl.23} parent=0 // pred_fallthru
    _
  // Predicated region
  $region10: #{encoder_forward_impl.23} parent=0 // pred_check
    _
  $region11: #{encoder_forward_impl.23} parent=0 // pred_check_branch
    %16 = sbr.rel (0) target = $region13
  $region12: #{encoder_forward_impl.23} parent=0 // pred_region
    _
  $region13: #{encoder_forward_impl.23} parent=0 // pred_fallthru
    _
  %p18 = scmp.eq.s32.totalorder 0, 0
  // Predicated region
  $region14: #{encoder_forward_impl.23} parent=0 // pred_check
    %p19 = pneg %p18
  $region15: #{encoder_forward_impl.23} parent=0 // pred_check_branch
    %21 = sbr.rel (%p19) target = $region17
  $region16: #{encoder_forward_impl.23} parent=0 // pred_region
    %v22 = vld [vmem:[%s2] sm:$0x1]
    %v24 = vlaneseq
    %v25 = vshrl.u32 %v24, 7
    %v26 = vsub.s32 0, %v25
    %v27 = vrot.slane %v22, %v26
    %vm29 = vcmask 130048
    %30 = vst.msk [vmem:[#allocation2] sm:$0xff] %vm29, %v27
    %31 = vst.msk [vmem:[#allocation2 + $0x8] sm:$0xff] %vm29, %v27
    %32 = vst.msk [vmem:[#allocation2 + $0x10] sm:$0xff] %vm29, %v27
    %33 = vst.msk [vmem:[#allocation2 + $0x18] sm:$0xff] %vm29, %v27
    %34 = vst.msk [vmem:[#allocation2 + $0x20] sm:$0xff] %vm29, %v27
    %35 = vst.msk [vmem:[#allocation2 + $0x28] sm:$0xff] %vm29, %v27
    %36 = vst.msk [vmem:[#allocation2 + $0x30] sm:$0xff] %vm29, %v27
    %37 = vst.msk [vmem:[#allocation2 + $0x38] sm:$0xff] %vm29, %v27
    %38 = vst.msk [vmem:[#allocation2 + $0x40] sm:$0xff] %vm29, %v27
    %39 = vst.msk [vmem:[#allocation2 + $0x48] sm:$0xff] %vm29, %v27
    %40 = vst.msk [vmem:[#allocation2 + $0x50] sm:$0xff] %vm29, %v27
    %41 = vst.msk [vmem:[#allocation2 + $0x58] sm:$0xff] %vm29, %v27
    %42 = vst.msk [vmem:[#allocation2 + $0x60] sm:$0xff] %vm29, %v27
    %43 = vst.msk [vmem:[#allocation2 + $0x68] sm:$0xff] %vm29, %v27
    %44 = vst.msk [vmem:[#allocation2 + $0x70] sm:$0xff] %vm29, %v27
    %45 = vst.msk [vmem:[#allocation2 + $0x78] sm:$0xff] %vm29, %v27
  $region17: #{encoder_forward_impl.23} parent=0 // pred_fallthru
    _
  %v46 = vld [vmem:[#allocation2] sm:$0xff]
  %v47 = vld [vmem:[#allocation2 + $0x8] sm:$0xff]
  %v48 = vld [vmem:[#allocation2 + $0x10] sm:$0xff]
  %v49 = vld [vmem:[#allocation2 + $0x18] sm:$0xff]
  %v50 = vld [vmem:[#allocation2 + $0x20] sm:$0xff]
  %v51 = vld [vmem:[#allocation2 + $0x28] sm:$0xff]
  %v52 = vld [vmem:[#allocation2 + $0x30] sm:$0xff]
  %v53 = vld [vmem:[#allocation2 + $0x38] sm:$0xff]
  %v54 = vld [vmem:[#allocation2 + $0x40] sm:$0xff]
  %v55 = vld [vmem:[#allocation2 + $0x48] sm:$0xff]
  %v56 = vld [vmem:[#allocation2 + $0x50] sm:$0xff]
  %v57 = vld [vmem:[#allocation2 + $0x58] sm:$0xff]
  %v58 = vld [vmem:[#allocation2 + $0x60] sm:$0xff]
  %v59 = vld [vmem:[#allocation2 + $0x68] sm:$0xff]
  %v60 = vld [vmem:[#allocation2 + $0x70] sm:$0xff]
  %v61 = vld [vmem:[#allocation2 + $0x78] sm:$0xff]
  %v62 = vld [vmem:[%s0] sm:$0xf]
  %v63 = vld [vmem:[%s0 + $0x4] sm:$0xf]
  %v64 = vld [vmem:[%s0 + $0x8] sm:$0xf]
  %v65 = vld [vmem:[%s0 + $0xc] sm:$0xf]
  %v66 = vld [vmem:[%s0 + $0x10] sm:$0xf]
  %v67 = vld [vmem:[%s0 + $0x14] sm:$0xf]
  %v68 = vld [vmem:[%s0 + $0x18] sm:$0xf]
  %v69 = vld [vmem:[%s0 + $0x1c] sm:$0xf]
  %v70 = vld [vmem:[%s0 + $0x20] sm:$0xf]
  %v71 = vld [vmem:[%s0 + $0x24] sm:$0xf]
  %v72 = vld [vmem:[%s0 + $0x28] sm:$0xf]
  %v73 = vld [vmem:[%s0 + $0x2c] sm:$0xf]
  %v74 = vld [vmem:[%s0 + $0x30] sm:$0xf]
  %v75 = vld [vmem:[%s0 + $0x34] sm:$0xf]
  %v76 = vld [vmem:[%s0 + $0x38] sm:$0xf]
  %v77 = vld [vmem:[%s0 + $0x3c] sm:$0xf]
  %v78 = vld [vmem:[%s1] sm:$0xf]
  %v79 = vld [vmem:[%s1 + $0x4] sm:$0xf]
  %v80 = vld [vmem:[%s1 + $0x8] sm:$0xf]
  %v81 = vld [vmem:[%s1 + $0xc] sm:$0xf]
  %v82 = vld [vmem:[%s1 + $0x10] sm:$0xf]
  %v83 = vld [vmem:[%s1 + $0x14] sm:$0xf]
  %v84 = vld [vmem:[%s1 + $0x18] sm:$0xf]
  %v85 = vld [vmem:[%s1 + $0x1c] sm:$0xf]
  %v86 = vld [vmem:[%s1 + $0x20] sm:$0xf]
  %v103 = vunpack.c.l.b16 %v62
  %v104 = vunpack.c.l.b16 %v63
  %v105 = vunpack.c.l.b16 %v64
  %v106 = vunpack.c.l.b16 %v65
  %v107 = vunpack.c.l.b16 %v66
  %v108 = vunpack.c.l.b16 %v67
  %v109 = vunpack.c.l.b16 %v68
  %v110 = vunpack.c.l.b16 %v69
  %v111 = vunpack.c.l.b16 %v70
  %v112 = vunpack.c.l.b16 %v71
  %v113 = vunpack.c.l.b16 %v72
  %v114 = vunpack.c.l.b16 %v73
  %v115 = vunpack.c.l.b16 %v74
  %v116 = vunpack.c.l.b16 %v75
  %v117 = vunpack.c.l.b16 %v76
  %v118 = vunpack.c.l.b16 %v77
  %v119 = vpack.c.b16 %v104, %v103
  %v120 = vpack.c.b16 %v106, %v105
  %v121 = vpack.c.b16 %v108, %v107
  %v122 = vpack.c.b16 %v110, %v109
  %v123 = vpack.c.b16 %v112, %v111
  %v124 = vpack.c.b16 %v114, %v113
  %v125 = vpack.c.b16 %v116, %v115
  %v126 = vpack.c.b16 %v118, %v117
  %v136 = vunpack.c.l.b16 %v78
  %v137 = vunpack.c.l.b16 %v79
  %v138 = vunpack.c.l.b16 %v80
  %v139 = vunpack.c.l.b16 %v81
  %v140 = vunpack.c.l.b16 %v82
  %v141 = vunpack.c.l.b16 %v83
  %v142 = vunpack.c.l.b16 %v84
  %v143 = vunpack.c.l.b16 %v85
  %v144 = vunpack.c.l.b16 %v86
  %v145 = vpack.c.b16 %v137, %v136
  %v146 = vpack.c.b16 %v139, %v138
  %v147 = vpack.c.b16 %v141, %v140
  %v148 = vpack.c.b16 %v143, %v142
  %v149 = vpack.c.b16 %v144, %v144
  %vm154 = vcmask 588800
  %v156 = vsel %vm154, %v119, 0
  %v159 = vsel %vm154, %v120, 0
  %v162 = vsel %vm154, %v121, 0
  %v165 = vsel %vm154, %v122, 0
  %v168 = vsel %vm154, %v123, 0
  %v171 = vsel %vm154, %v124, 0
  %v174 = vsel %vm154, %v125, 0
  %v177 = vsel %vm154, %v126, 0
  %vm179 = vcmask 1043456
  %v181 = vsel %vm179, %v149, 0
  %183 = vmatprep.subr.bf16.mxu0 0
  %184 = vmatpush1.bf16.msra.mxu0 0
  %185 = vmatprep.subr.bf16.mxu0 0
  %186 = vmatpush1.bf16.msra.mxu0 0
  %187 = vmatprep.subr.bf16.mxu0 0
  %188 = vmatpush1.bf16.msra.mxu0 0
  %189 = vmatprep.subr.bf16.mxu0 0
  %190 = vmatpush1.bf16.msra.mxu0 %v181
  %191 = vmatprep.subr.bf16.mxu0 0
  %192 = vmatpush1.bf16.msra.mxu0 %v148
  %193 = vmatprep.subr.bf16.mxu0 0
  %194 = vmatpush1.bf16.msra.mxu0 %v147
  %195 = vmatprep.subr.bf16.mxu0 0
  %196 = vmatpush1.bf16.msra.mxu0 %v146
  %197 = vmatprep.subr.bf16.mxu0 0
  %198 = vmatpush1.bf16.msra.mxu0 %v145
  %199 = vmatprep.subr.bf16.mxu0 0
  %200 = vmatpush2.bf16.msra.mxu0 0
  %201 = vmatprep.subr.bf16.mxu0 0
  %202 = vmatpush2.bf16.msra.mxu0 0
  %203 = vmatprep.subr.bf16.mxu0 0
  %204 = vmatpush2.bf16.msra.mxu0 0
  %205 = vmatprep.subr.bf16.mxu0 0
  %206 = vmatpush2.bf16.msra.mxu0 0
  %207 = vmatprep.subr.bf16.mxu0 0
  %208 = vmatpush2.bf16.msra.mxu0 0
  %209 = vmatprep.subr.bf16.mxu0 0
  %210 = vmatpush2.bf16.msra.mxu0 0
  %211 = vmatprep.subr.bf16.mxu0 0
  %212 = vmatpush2.bf16.msra.mxu0 0
  %213 = vmatprep.subr.bf16.mxu0 0
  %214 = vmatpush2.bf16.msra.mxu0 0
  %215 = vmatprep.mubr.bf16.mxu0 0
  %216 = vmatmul.mubr.bf16.gmra.mxu0 %v156
  %v217 = vpop.f32.mrf.mxu0
  %v218 = vadd.f32 0.0, %v217
  %v219 = vpop.f32.mrf.mxu0
  %v220 = vpop.f32.mrf.mxu0
  %v221 = vadd.f32 0.0, %v220
  %v222 = vpop.f32.mrf.mxu0
  %223 = vmatprep.mubr.bf16.mxu0 0
  %224 = vmatmul.mubr.bf16.gmra.mxu0 %v159
  %v225 = vpop.f32.mrf.mxu0
  %v226 = vadd.f32 0.0, %v225
  %v227 = vpop.f32.mrf.mxu0
  %v228 = vpop.f32.mrf.mxu0
  %v229 = vadd.f32 0.0, %v228
  %v230 = vpop.f32.mrf.mxu0
  %231 = vmatprep.mubr.bf16.mxu0 0
  %232 = vmatmul.mubr.bf16.gmra.mxu0 %v162
  %v233 = vpop.f32.mrf.mxu0
  %v234 = vadd.f32 0.0, %v233
  %v235 = vpop.f32.mrf.mxu0
  %v236 = vpop.f32.mrf.mxu0
  %v237 = vadd.f32 0.0, %v236
  %v238 = vpop.f32.mrf.mxu0
  %239 = vmatprep.mubr.bf16.mxu0 0
  %240 = vmatmul.mubr.bf16.gmra.mxu0 %v165
  %v241 = vpop.f32.mrf.mxu0
  %v242 = vadd.f32 0.0, %v241
  %v243 = vpop.f32.mrf.mxu0
  %v244 = vpop.f32.mrf.mxu0
  %v245 = vadd.f32 0.0, %v244
  %v246 = vpop.f32.mrf.mxu0
  %247 = vmatprep.mubr.bf16.mxu0 0
  %248 = vmatmul.mubr.bf16.gmra.mxu0 %v168
  %v249 = vpop.f32.mrf.mxu0
  %v250 = vadd.f32 0.0, %v249
  %v251 = vpop.f32.mrf.mxu0
  %v252 = vpop.f32.mrf.mxu0
  %v253 = vadd.f32 0.0, %v252
  %v254 = vpop.f32.mrf.mxu0
  %255 = vmatprep.mubr.bf16.mxu0 0
  %256 = vmatmul.mubr.bf16.gmra.mxu0 %v171
  %v257 = vpop.f32.mrf.mxu0
  %v258 = vadd.f32 0.0, %v257
  %v259 = vpop.f32.mrf.mxu0
  %v260 = vpop.f32.mrf.mxu0
  %v261 = vadd.f32 0.0, %v260
  %v262 = vpop.f32.mrf.mxu0
  %263 = vmatprep.mubr.bf16.mxu0 0
  %264 = vmatmul.mubr.bf16.gmra.mxu0 %v174
  %v265 = vpop.f32.mrf.mxu0
  %v266 = vadd.f32 0.0, %v265
  %v267 = vpop.f32.mrf.mxu0
  %v268 = vpop.f32.mrf.mxu0
  %v269 = vadd.f32 0.0, %v268
  %v270 = vpop.f32.mrf.mxu0
  %271 = vmatprep.mubr.bf16.mxu0 0
  %272 = vmatmul.mubr.bf16.gmra.mxu0 %v177
  %v273 = vpop.f32.mrf.mxu0
  %v274 = vadd.f32 0.0, %v273
  %v275 = vpop.f32.mrf.mxu0
  %v276 = vpop.f32.mrf.mxu0
  %v277 = vadd.f32 0.0, %v276
  %v278 = vpop.f32.mrf.mxu0
  %279 = vdwg.mxu0
  %v280 = vadd.f32 %v46, %v218
  %v281 = vadd.f32 %v47, %v221
  %v282 = vadd.f32 %v48, %v226
  %v283 = vadd.f32 %v49, %v229
  %v284 = vadd.f32 %v50, %v234
  %v285 = vadd.f32 %v51, %v237
  %v286 = vadd.f32 %v52, %v242
  %v287 = vadd.f32 %v53, %v245
  %v288 = vadd.f32 %v54, %v250
  %v289 = vadd.f32 %v55, %v253
  %v290 = vadd.f32 %v56, %v258
  %v291 = vadd.f32 %v57, %v261
  %v292 = vadd.f32 %v58, %v266
  %v293 = vadd.f32 %v59, %v269
  %v294 = vadd.f32 %v60, %v274
  %v295 = vadd.f32 %v61, %v277
  %vm296 = vcmask 130048
  %297 = vst.msk [vmem:[#allocation2] sm:$0xff] %vm296, %v280
  %298 = vst.msk [vmem:[#allocation2 + $0x8] sm:$0xff] %vm296, %v281
  %299 = vst.msk [vmem:[#allocation2 + $0x10] sm:$0xff] %vm296, %v282
  %300 = vst.msk [vmem:[#allocation2 + $0x18] sm:$0xff] %vm296, %v283
  %301 = vst.msk [vmem:[#allocation2 + $0x20] sm:$0xff] %vm296, %v284
  %302 = vst.msk [vmem:[#allocation2 + $0x28] sm:$0xff] %vm296, %v285
  %303 = vst.msk [vmem:[#allocation2 + $0x30] sm:$0xff] %vm296, %v286
  %304 = vst.msk [vmem:[#allocation2 + $0x38] sm:$0xff] %vm296, %v287
  %305 = vst.msk [vmem:[#allocation2 + $0x40] sm:$0xff] %vm296, %v288
  %306 = vst.msk [vmem:[#allocation2 + $0x48] sm:$0xff] %vm296, %v289
  %307 = vst.msk [vmem:[#allocation2 + $0x50] sm:$0xff] %vm296, %v290
  %308 = vst.msk [vmem:[#allocation2 + $0x58] sm:$0xff] %vm296, %v291
  %309 = vst.msk [vmem:[#allocation2 + $0x60] sm:$0xff] %vm296, %v292
  %310 = vst.msk [vmem:[#allocation2 + $0x68] sm:$0xff] %vm296, %v293
  %311 = vst.msk [vmem:[#allocation2 + $0x70] sm:$0xff] %vm296, %v294
  %312 = vst.msk [vmem:[#allocation2 + $0x78] sm:$0xff] %vm296, %v295
  %p313 = scmp.eq.s32.totalorder 0, 0
  %p314 = pnand %p313, %p18
  %p315 = pneg %p314
  // Predicated region
  $region18: #{encoder_forward_impl.23} parent=0 // pred_check
    _
  $region19: #{encoder_forward_impl.23} parent=0 // pred_check_branch
    %317 = sbr.rel (%p314) target = $region21
  $region20: #{encoder_forward_impl.23} parent=0 // pred_region
    %vm318 = vcmask 122880
    %319 = vst.msk [vmem:[%s4] sm:$0x1] %vm318, 0.0
    %320 = vst.msk [vmem:[%s5] sm:$0x1] %vm318, 0.0
  $region21: #{encoder_forward_impl.23} parent=0 // pred_fallthru
    _
  // Predicated region
  $region22: #{encoder_forward_impl.23} parent=0 // pred_check
    %p321 = pneg %p18
  $region23: #{encoder_forward_impl.23} parent=0 // pred_check_branch
    %323 = sbr.rel (%p321) target = $region25
  $region24: #{encoder_forward_impl.23} parent=0 // pred_region
    %v324 = vld [vmem:[#allocation2] sm:$0xff]
    %v325 = vld [vmem:[#allocation2 + $0x8] sm:$0xff]
    %v326 = vld [vmem:[#allocation2 + $0x10] sm:$0xff]
    %v327 = vld [vmem:[#allocation2 + $0x18] sm:$0xff]
    %v328 = vld [vmem:[#allocation2 + $0x20] sm:$0xff]
    %v329 = vld [vmem:[#allocation2 + $0x28] sm:$0xff]
    %v330 = vld [vmem:[#allocation2 + $0x30] sm:$0xff]
    %v331 = vld [vmem:[#allocation2 + $0x38] sm:$0xff]
    %v332 = vld [vmem:[#allocation2 + $0x40] sm:$0xff]
    %v333 = vld [vmem:[#allocation2 + $0x48] sm:$0xff]
    %v334 = vld [vmem:[#allocation2 + $0x50] sm:$0xff]
    %v335 = vld [vmem:[#allocation2 + $0x58] sm:$0xff]
    %v336 = vld [vmem:[#allocation2 + $0x60] sm:$0xff]
    %v337 = vld [vmem:[#allocation2 + $0x68] sm:$0xff]
    %v338 = vld [vmem:[#allocation2 + $0x70] sm:$0xff]
    %v339 = vld [vmem:[#allocation2 + $0x78] sm:$0xff]
    %v340 = vpack.c.bf16 %v325, %v324
    %v341 = vpack.c.bf16 %v327, %v326
    %v342 = vpack.c.bf16 %v329, %v328
    %v343 = vpack.c.bf16 %v331, %v330
    %v344 = vpack.c.bf16 %v333, %v332
    %v345 = vpack.c.bf16 %v335, %v334
    %v346 = vpack.c.bf16 %v337, %v336
    %v347 = vpack.c.bf16 %v339, %v338
    %v356 = vunpack.c.l.b16 %v340
    %v357 = vunpack.c.h.b16 %v340
    %v358 = vunpack.c.l.b16 %v341
    %v359 = vunpack.c.h.b16 %v341
    %v360 = vunpack.c.l.b16 %v342
    %v361 = vunpack.c.h.b16 %v342
    %v362 = vunpack.c.l.b16 %v343
    %v363 = vunpack.c.h.b16 %v343
    %v364 = vunpack.c.l.b16 %v344
    %v365 = vunpack.c.h.b16 %v344
    %v366 = vunpack.c.l.b16 %v345
    %v367 = vunpack.c.h.b16 %v345
    %v368 = vunpack.c.l.b16 %v346
    %v369 = vunpack.c.h.b16 %v346
    %v370 = vunpack.c.l.b16 %v347
    %v371 = vunpack.c.h.b16 %v347
    %v372 = vpack.c.b16 %v356, %v356
    %v373 = vpack.c.b16 %v357, %v357
    %v374 = vpack.c.b16 %v358, %v358
    %v375 = vpack.c.b16 %v359, %v359
    %v376 = vpack.c.b16 %v360, %v360
    %v377 = vpack.c.b16 %v361, %v361
    %v378 = vpack.c.b16 %v362, %v362
    %v379 = vpack.c.b16 %v363, %v363
    %v380 = vpack.c.b16 %v364, %v364
    %v381 = vpack.c.b16 %v365, %v365
    %v382 = vpack.c.b16 %v366, %v366
    %v383 = vpack.c.b16 %v367, %v367
    %v384 = vpack.c.b16 %v368, %v368
    %v385 = vpack.c.b16 %v369, %v369
    %v386 = vpack.c.b16 %v370, %v370
    %v387 = vpack.c.b16 %v371, %v371
    %vm404 = vcmask 125952
    %405 = vst.msk [vmem:[%s3] sm:$0xf] %vm404, %v372
    %406 = vst.msk [vmem:[%s3 + $0x4] sm:$0xf] %vm404, %v373
    %407 = vst.msk [vmem:[%s3 + $0x8] sm:$0xf] %vm404, %v374
    %408 = vst.msk [vmem:[%s3 + $0xc] sm:$0xf] %vm404, %v375
    %409 = vst.msk [vmem:[%s3 + $0x10] sm:$0xf] %vm404, %v376
    %410 = vst.msk [vmem:[%s3 + $0x14] sm:$0xf] %vm404, %v377
    %411 = vst.msk [vmem:[%s3 + $0x18] sm:$0xf] %vm404, %v378
    %412 = vst.msk [vmem:[%s3 + $0x1c] sm:$0xf] %vm404, %v379
    %413 = vst.msk [vmem:[%s3 + $0x20] sm:$0xf] %vm404, %v380
    %414 = vst.msk [vmem:[%s3 + $0x24] sm:$0xf] %vm404, %v381
    %415 = vst.msk [vmem:[%s3 + $0x28] sm:$0xf] %vm404, %v382
    %416 = vst.msk [vmem:[%s3 + $0x2c] sm:$0xf] %vm404, %v383
    %417 = vst.msk [vmem:[%s3 + $0x30] sm:$0xf] %vm404, %v384
    %418 = vst.msk [vmem:[%s3 + $0x34] sm:$0xf] %vm404, %v385
    %419 = vst.msk [vmem:[%s3 + $0x38] sm:$0xf] %vm404, %v386
    %420 = vst.msk [vmem:[%s3 + $0x3c] sm:$0xf] %vm404, %v387
    %v421 = vld [vmem:[%s4] sm:$0x1]
    %v422 = vsel %vm296, %v324, 0.0
    %v423 = vsel %vm296, %v325, 0.0
    %v424 = vadd.f32 %v422, %v423
    %v425 = vsel %vm296, %v326, 0.0
    %v426 = vadd.f32 %v424, %v425
    %v427 = vsel %vm296, %v327, 0.0
    %v428 = vadd.f32 %v426, %v427
    %v429 = vsel %vm296, %v328, 0.0
    %v430 = vadd.f32 %v428, %v429
    %v431 = vsel %vm296, %v329, 0.0
    %v432 = vadd.f32 %v430, %v431
    %v433 = vsel %vm296, %v330, 0.0
    %v434 = vadd.f32 %v432, %v433
    %v435 = vsel %vm296, %v331, 0.0
    %v436 = vadd.f32 %v434, %v435
    %v437 = vsel %vm296, %v332, 0.0
    %v438 = vadd.f32 %v436, %v437
    %v439 = vsel %vm296, %v333, 0.0
    %v440 = vadd.f32 %v438, %v439
    %v441 = vsel %vm296, %v334, 0.0
    %v442 = vadd.f32 %v440, %v441
    %v443 = vsel %vm296, %v335, 0.0
    %v444 = vadd.f32 %v442, %v443
    %v445 = vsel %vm296, %v336, 0.0
    %v446 = vadd.f32 %v444, %v445
    %v447 = vsel %vm296, %v337, 0.0
    %v448 = vadd.f32 %v446, %v447
    %v449 = vsel %vm296, %v338, 0.0
    %v450 = vadd.f32 %v448, %v449
    %v451 = vsel %vm296, %v339, 0.0
    %v452 = vadd.f32 %v450, %v451
    %v453 = vrot.slane %v452, 4
    %v454 = vadd.f32 %v452, %v453
    %v455 = vrot.slane %v454, 2
    %v456 = vadd.f32 %v454, %v455
    %v457 = vrot.slane %v456, 1
    %v458 = vadd.f32 %v456, %v457
    %v459 = vadd.f32 %v421, %v458
    %vm460 = vcmask 122880
    %461 = vst.msk [vmem:[%s4] sm:$0x1] %vm460, %v459
    %v462 = vld [vmem:[%s5] sm:$0x1]
    %v463 = vmul.f32 %v324, %v324
    %v464 = vmul.f32 %v325, %v325
    %v465 = vmul.f32 %v326, %v326
    %v466 = vmul.f32 %v327, %v327
    %v467 = vmul.f32 %v328, %v328
    %v468 = vmul.f32 %v329, %v329
    %v469 = vmul.f32 %v330, %v330
    %v470 = vmul.f32 %v331, %v331
    %v471 = vmul.f32 %v332, %v332
    %v472 = vmul.f32 %v333, %v333
    %v473 = vmul.f32 %v334, %v334
    %v474 = vmul.f32 %v335, %v335
    %v475 = vmul.f32 %v336, %v336
    %v476 = vmul.f32 %v337, %v337
    %v477 = vmul.f32 %v338, %v338
    %v478 = vmul.f32 %v339, %v339
    %v479 = vsel %vm296, %v463, 0.0
    %v480 = vsel %vm296, %v464, 0.0
    %v481 = vadd.f32 %v479, %v480
    %v482 = vsel %vm296, %v465, 0.0
    %v483 = vadd.f32 %v481, %v482
    %v484 = vsel %vm296, %v466, 0.0
    %v485 = vadd.f32 %v483, %v484
    %v486 = vsel %vm296, %v467, 0.0
    %v487 = vadd.f32 %v485, %v486
    %v488 = vsel %vm296, %v468, 0.0
    %v489 = vadd.f32 %v487, %v488
    %v490 = vsel %vm296, %v469, 0.0
    %v491 = vadd.f32 %v489, %v490
    %v492 = vsel %vm296, %v470, 0.0
    %v493 = vadd.f32 %v491, %v492
    %v494 = vsel %vm296, %v471, 0.0
    %v495 = vadd.f32 %v493, %v494
    %v496 = vsel %vm296, %v472, 0.0
    %v497 = vadd.f32 %v495, %v496
    %v498 = vsel %vm296, %v473, 0.0
    %v499 = vadd.f32 %v497, %v498
    %v500 = vsel %vm296, %v474, 0.0
    %v501 = vadd.f32 %v499, %v500
    %v502 = vsel %vm296, %v475, 0.0
    %v503 = vadd.f32 %v501, %v502
    %v504 = vsel %vm296, %v476, 0.0
    %v505 = vadd.f32 %v503, %v504
    %v506 = vsel %vm296, %v477, 0.0
    %v507 = vadd.f32 %v505, %v506
    %v508 = vsel %vm296, %v478, 0.0
    %v509 = vadd.f32 %v507, %v508
    %v510 = vrot.slane %v509, 4
    %v511 = vadd.f32 %v509, %v510
    %v512 = vrot.slane %v511, 2
    %v513 = vadd.f32 %v511, %v512
    %v514 = vrot.slane %v513, 1
    %v515 = vadd.f32 %v513, %v514
    %v516 = vadd.f32 %v462, %v515
    %517 = vst.msk [vmem:[%s5] sm:$0x1] %vm460, %v516
  $region25: #{encoder_forward_impl.23} parent=0 // pred_fallthru
    _
  // Predicated region
  $region26: #{encoder_forward_impl.23} parent=0 // pred_check
    _
  $region27: #{encoder_forward_impl.23} parent=0 // pred_check_branch
    %519 = sbr.rel (0) target = $region29
  $region28: #{encoder_forward_impl.23} parent=0 // pred_region
    _
  $region29: #{encoder_forward_impl.23} parent=0 // pred_fallthru
    _
  // Predicated region
  $region30: #{encoder_forward_impl.23} parent=0 // pred_check
    _
  $region31: #{encoder_forward_impl.23} parent=0 // pred_check_branch
    %521 = sbr.rel (0) target = $region33
  $region32: #{encoder_forward_impl.23} parent=0 // pred_region
    _
  $region33: #{encoder_forward_impl.23} parent=0 // pred_fallthru
    _
  // Predicated region
  $region34: #{encoder_forward_impl.23} parent=0 // pred_check
    _
  $region35: #{encoder_forward_impl.23} parent=0 // pred_check_branch
    %523 = sbr.rel (0) target = $region37
  $region36: #{encoder_forward_impl.23} parent=0 // pred_region
    _
  $region37: #{encoder_forward_impl.23} parent=0 // pred_fallthru
    _
  // Predicated region
  $region38: #{encoder_forward_impl.23} parent=0 // pred_check
    _
  $region39: #{encoder_forward_impl.23} parent=0 // pred_check_branch
    %525 = sbr.rel (0) target = $region41
  $region40: #{encoder_forward_impl.23} parent=0 // pred_region
    _
  $region41: #{encoder_forward_impl.23} parent=0 // pred_fallthru
    _
  // Predicated region
  $region42: #{encoder_forward_impl.23} parent=0 // pred_check
    _
  $region43: #{encoder_forward_impl.23} parent=0 // pred_check_branch
    %527 = sbr.rel (0) target = $region45
  $region44: #{encoder_forward_impl.23} parent=0 // pred_region
    _
  $region45: #{encoder_forward_impl.23} parent=0 // pred_fallthru
    _
  // Predicated region
  $region46: #{encoder_forward_impl.23} parent=0 // pred_check
    _
  $region47: #{encoder_forward_impl.23} parent=0 // pred_check_branch
    %529 = sbr.rel (0) target = $region49
  $region48: #{encoder_forward_impl.23} parent=0 // pred_region
    _
  $region49: #{encoder_forward_impl.23} parent=0 // pred_fallthru
    _

// kernel: tile.115
$region0: #{tile.115}
  #allocation0 [shape = 's32[1]{0}', space=sflag, size = 0x4, scoped, tag = 'scoped memory for tile.115']
  %s0 = inlined_call_operand.vmem [shape: f32[16], index: 0, kind: input, shape index: {}]
  %s1 = inlined_call_operand.vmem [shape: f32[8,16], index: 1, kind: output, shape index: {}]
  // Predicated region
  $region2: #{tile.115} parent=0 // pred_check
    _
  $region3: #{tile.115} parent=0 // pred_check_branch
    %3 = sbr.rel (0) target = $region5
  $region4: #{tile.115} parent=0 // pred_region
    _
  $region5: #{tile.115} parent=0 // pred_fallthru
    _
  %v4 = vld [vmem:[%s0] ss:$0 sm:$0xff]
  %5 = vst [vmem:[%s1] sm:$0xff] %v4

// kernel: tile.116
$region0: #{tile.116}
  %s0 = inlined_call_operand.vmem [shape: f32[8,16], index: 0, kind: input, shape index: {}]
  %s1 = inlined_call_operand.vmem [shape: f32[1,128], index: 1, kind: output, shape index: {}]
  $region1: #{tile.116} parent=0
    #allocation0 [shape = 'u8[4096]{0}', space=vmem, size = 0x1000, scoped, tag = 'scoped mem for output reshape']
    %v2 = vld [vmem:[%s0] sm:$0x1]
    %vm3 = vcmask 130048
    %4 = vst.msk [vmem:[#allocation0] sm:$0x1] %vm3, %v2
    %s5 = scalar_lea.vmem %s0, 7
    %v6 = vld [vmem:[%s5] sm:$0x1]
    %7 = vrot.lane.b32.xlu0 %v6, 112
    %v8 = vpop.permute.xlu0 %7
    %vm9 = vcmask 1048448
    %10 = vst.msk [vmem:[#allocation0] sm:$0x1] %vm9, %v8
    %s11 = scalar_lea.vmem %s0, 6
    %v12 = vld [vmem:[%s11] sm:$0x1]
    %13 = vrot.lane.b32.xlu0 %v12, 96
    %v14 = vpop.permute.xlu0 %13
    %vm15 = vcmask 917248
    %16 = vst.msk [vmem:[#allocation0] sm:$0x1] %vm15, %v14
    %s17 = scalar_lea.vmem %s0, 5
    %v18 = vld [vmem:[%s17] sm:$0x1]
    %19 = vrot.lane.b32.xlu0 %v18, 80
    %v20 = vpop.permute.xlu0 %19
    %vm21 = vcmask 786048
    %22 = vst.msk [vmem:[#allocation0] sm:$0x1] %vm21, %v20
    %s23 = scalar_lea.vmem %s0, 4
    %v24 = vld [vmem:[%s23] sm:$0x1]
    %25 = vrot.lane.b32.xlu0 %v24, 64
    %v26 = vpop.permute.xlu0 %25
    %vm27 = vcmask 654848
    %28 = vst.msk [vmem:[#allocation0] sm:$0x1] %vm27, %v26
    %s29 = scalar_lea.vmem %s0, 3
    %v30 = vld [vmem:[%s29] sm:$0x1]
    %31 = vrot.lane.b32.xlu0 %v30, 48
    %v32 = vpop.permute.xlu0 %31
    %vm33 = vcmask 523648
    %34 = vst.msk [vmem:[#allocation0] sm:$0x1] %vm33, %v32
    %s35 = scalar_lea.vmem %s0, 2
    %v36 = vld [vmem:[%s35] sm:$0x1]
    %37 = vrot.lane.b32.xlu0 %v36, 32
    %v38 = vpop.permute.xlu0 %37
    %vm39 = vcmask 392448
    %40 = vst.msk [vmem:[#allocation0] sm:$0x1] %vm39, %v38
    %s41 = scalar_lea.vmem %s0, 1
    %v42 = vld [vmem:[%s41] sm:$0x1]
    %43 = vrot.lane.b32.xlu0 %v42, 16
    %v44 = vpop.permute.xlu0 %43
    %vm45 = vcmask 261248
    %46 = vst.msk [vmem:[#allocation0] sm:$0x1] %vm45, %v44
    %s48 = sshll.u32 1, 1
    %s49 = ssub.s32 %s48, 1
    %v51 = vld [vmem:[#allocation0] sm:%s49]
    %s52 = sshll.u32 1, 1
    %s53 = ssub.s32 %s52, 1
    %54 = vst [vmem:[%s1] sm:%s53] %v51

// kernel: encoder_forward_impl.24
$region0: #{encoder_forward_impl.24}
  #allocation0 [shape = 'u32[]', space=smem, size = 0x4, offset = 0x4, fixed_abs, tag = 'smem constant byte address 0x4 - core index']
  #allocation1 [shape = 'u32[144,128]{1,0:T(1,128)}', space=vmem, size = 0x12000, scoped, tag = 'internal scratch']
  %s0 = inlined_call_operand.vmem [shape: bf16[16,128], index: 0, kind: input, shape index: {}]
  %s1 = inlined_call_operand.vmem [shape: f32[1,128], index: 1, kind: input, shape index: {}]
  %s2 = inlined_call_operand.vmem [shape: f32[1,128], index: 2, kind: input, shape index: {}]
  %s3 = inlined_call_operand.vmem [shape: bf16[16,128], index: 3, kind: output, shape index: {}]
  %s4 = sld [smem:[#allocation0]]
  $region22: #{encoder_forward_impl.24} parent=0
    _
  %s6 = ssub.s32 1, %s4
  %s7 = scalar_select 0, %s6, %s4
  // Predicated region
  $region2: #{encoder_forward_impl.24} parent=0 // pred_check
    _
  $region3: #{encoder_forward_impl.24} parent=0 // pred_check_branch
    %9 = sbr.rel (0) target = $region5
  $region4: #{encoder_forward_impl.24} parent=0 // pred_region
    _
  $region5: #{encoder_forward_impl.24} parent=0 // pred_fallthru
    _
  // Predicated region
  $region6: #{encoder_forward_impl.24} parent=0 // pred_check
    _
  $region7: #{encoder_forward_impl.24} parent=0 // pred_check_branch
    %11 = sbr.rel (0) target = $region9
  $region8: #{encoder_forward_impl.24} parent=0 // pred_region
    _
  $region9: #{encoder_forward_impl.24} parent=0 // pred_fallthru
    _
  // Predicated region
  $region10: #{encoder_forward_impl.24} parent=0 // pred_check
    _
  $region11: #{encoder_forward_impl.24} parent=0 // pred_check_branch
    %13 = sbr.rel (0) target = $region13
  $region12: #{encoder_forward_impl.24} parent=0 // pred_region
    _
  $region13: #{encoder_forward_impl.24} parent=0 // pred_fallthru
    _
  %v14 = vld [vmem:[%s0] sm:$0xf]
  %v15 = vld [vmem:[%s0 + $0x4] sm:$0xf]
  %v16 = vunpack.c.l.bf16 %v14
  %v17 = vunpack.c.l.bf16 %v15
  %v18 = vld [vmem:[%s1] sm:$0x1]
  %v20 = vlaneseq
  %v21 = vshrl.u32 %v20, 7
  %v22 = vsub.s32 0, %v21
  %v23 = vrot.slane %v18, %v22
  %v25 = vmul.f32 %v16, %v23
  %v26 = vmul.f32 %v17, %v23
  %v27 = vld [vmem:[%s2] sm:$0x1]
  %v29 = vlaneseq
  %v30 = vshrl.u32 %v29, 7
  %v31 = vsub.s32 0, %v30
  %v32 = vrot.slane %v27, %v31
  %v34 = vadd.f32 %v25, %v32
  %v35 = vadd.f32 %v26, %v32
  %v36 = vmax.f32 %v34, 0.0
  %v37 = vmax.f32 %v35, 0.0
  %v38 = vpack.c.bf16 %v37, %v36
  %v40 = vunpack.c.l.b16 %v38
  %v41 = vunpack.c.h.b16 %v38
  %v42 = vpack.c.b16 %v40, %v40
  %v43 = vpack.c.b16 %v41, %v41
  %46 = vst [vmem:[%s3] sm:$0xf] %v42
  %47 = vst [vmem:[%s3 + $0x4] sm:$0xf] %v43
  // Predicated region
  $region14: #{encoder_forward_impl.24} parent=0 // pred_check
    _
  $region15: #{encoder_forward_impl.24} parent=0 // pred_check_branch
    %49 = sbr.rel (0) target = $region17
  $region16: #{encoder_forward_impl.24} parent=0 // pred_region
    _
  $region17: #{encoder_forward_impl.24} parent=0 // pred_fallthru
    _
  // Predicated region
  $region18: #{encoder_forward_impl.24} parent=0 // pred_check
    _
  $region19: #{encoder_forward_impl.24} parent=0 // pred_check_branch
    %51 = sbr.rel (0) target = $region21
  $region20: #{encoder_forward_impl.24} parent=0 // pred_region
    _
  $region21: #{encoder_forward_impl.24} parent=0 // pred_fallthru
    _

// kernel: tile.125
$region0: #{tile.125}
  #allocation0 [shape = 's32[1]{0}', space=sflag, size = 0x4, scoped, tag = 'scoped memory for tile.125']
  %s0 = inlined_call_operand.vmem [shape: f32[32], index: 0, kind: input, shape index: {}]
  %s1 = inlined_call_operand.vmem [shape: f32[4,32], index: 1, kind: output, shape index: {}]
  // Predicated region
  $region2: #{tile.125} parent=0 // pred_check
    _
  $region3: #{tile.125} parent=0 // pred_check_branch
    %3 = sbr.rel (0) target = $region5
  $region4: #{tile.125} parent=0 // pred_region
    _
  $region5: #{tile.125} parent=0 // pred_fallthru
    _
  %v4 = vld [vmem:[%s0] ss:$0 sm:$0xff]
  %5 = vst [vmem:[%s1] sm:$0xf] %v4

// kernel: tile.126
$region0: #{tile.126}
  %s0 = inlined_call_operand.vmem [shape: f32[4,32], index: 0, kind: input, shape index: {}]
  %s1 = inlined_call_operand.vmem [shape: f32[1,128], index: 1, kind: output, shape index: {}]
  $region1: #{tile.126} parent=0
    #allocation0 [shape = 'u8[4096]{0}', space=vmem, size = 0x1000, scoped, tag = 'scoped mem for output reshape']
    #allocation1 [shape = 'u8[4096]{0}', space=vmem, size = 0x1000, scoped, tag = 'scoped mem for input reshape']
    %s3 = sshll.u32 1, 4
    %s4 = ssub.s32 %s3, 1
    %v5 = vld [vmem:[%s0] sm:%s4]
    %6 = vst [vmem:[#allocation1] sm:%s4] %v5
    %v7 = vld [vmem:[#allocation1] sm:$0x1]
    %vm8 = vcmask 261120
    %9 = vst.msk [vmem:[#allocation0] sm:$0x1] %vm8, %v7
    %s10 = scalar_lea.vmem [#allocation1], 3
    %v11 = vld [vmem:[%s10] sm:$0x1]
    %12 = vrot.lane.b32.xlu0 %v11, 96
    %v13 = vpop.permute.xlu0 %12
    %vm14 = vcmask 1048320
    %15 = vst.msk [vmem:[#allocation0] sm:$0x1] %vm14, %v13
    %s16 = scalar_lea.vmem [#allocation1], 2
    %v17 = vld [vmem:[%s16] sm:$0x1]
    %18 = vrot.lane.b32.xlu0 %v17, 64
    %v19 = vpop.permute.xlu0 %18
    %vm20 = vcmask 785920
    %21 = vst.msk [vmem:[#allocation0] sm:$0x1] %vm20, %v19
    %s22 = scalar_lea.vmem [#allocation1], 1
    %v23 = vld [vmem:[%s22] sm:$0x1]
    %24 = vrot.lane.b32.xlu0 %v23, 32
    %v25 = vpop.permute.xlu0 %24
    %vm26 = vcmask 523520
    %27 = vst.msk [vmem:[#allocation0] sm:$0x1] %vm26, %v25
    %s29 = sshll.u32 1, 1
    %s30 = ssub.s32 %s29, 1
    %v32 = vld [vmem:[#allocation0] sm:%s30]
    %s33 = sshll.u32 1, 1
    %s34 = ssub.s32 %s33, 1
    %35 = vst [vmem:[%s1] sm:%s34] %v32

// kernel: encoder_forward_impl.25
$region0: #{encoder_forward_impl.25}
  #allocation0 [shape = 'u32[]', space=smem, size = 0x4, offset = 0x4, fixed_abs, tag = 'smem constant byte address 0x4 - core index']
  #allocation1 [shape = 'u32[144,128]{1,0:T(1,128)}', space=vmem, size = 0x12000, scoped, tag = 'internal scratch']
  #allocation2 [shape = 'f32[32,32]{1,0:T(8,128)}', space=vmem, size = 0x4000, scoped, tag = 'scratch operand']
  %s0 = inlined_call_operand.vmem [shape: bf16[32,144], index: 0, kind: input, shape index: {}]
  %s1 = inlined_call_operand.vmem [shape: bf16[144,32], index: 1, kind: input, shape index: {}]
  %s2 = inlined_call_operand.vmem [shape: f32[1,32], index: 2, kind: input, shape index: {}]
  %s3 = inlined_call_operand.vmem [shape: bf16[32,32], index: 3, kind: output, shape index: {0}]
  %s4 = inlined_call_operand.vmem [shape: f32[1,32], index: 4, kind: output, shape index: {1}]
  %s5 = inlined_call_operand.vmem [shape: f32[1,32], index: 5, kind: output, shape index: {2}]
  %6 = xla_tuple %s3, %s4, %s5
  %s7 = sld [smem:[#allocation0]]
  $region50: #{encoder_forward_impl.25} parent=0
    _
  %s9 = ssub.s32 1, %s7
  %s10 = scalar_select 0, %s9, %s7
  // Predicated region
  $region2: #{encoder_forward_impl.25} parent=0 // pred_check
    _
  $region3: #{encoder_forward_impl.25} parent=0 // pred_check_branch
    %12 = sbr.rel (0) target = $region5
  $region4: #{encoder_forward_impl.25} parent=0 // pred_region
    _
  $region5: #{encoder_forward_impl.25} parent=0 // pred_fallthru
    _
  // Predicated region
  $region6: #{encoder_forward_impl.25} parent=0 // pred_check
    _
  $region7: #{encoder_forward_impl.25} parent=0 // pred_check_branch
    %14 = sbr.rel (0) target = $region9
  $region8: #{encoder_forward_impl.25} parent=0 // pred_region
    _
  $region9: #{encoder_forward_impl.25} parent=0 // pred_fallthru
    _
  // Predicated region
  $region10: #{encoder_forward_impl.25} parent=0 // pred_check
    _
  $region11: #{encoder_forward_impl.25} parent=0 // pred_check_branch
    %16 = sbr.rel (0) target = $region13
  $region12: #{encoder_forward_impl.25} parent=0 // pred_region
    _
  $region13: #{encoder_forward_impl.25} parent=0 // pred_fallthru
    _
  %p18 = scmp.eq.s32.totalorder 0, 0
  // Predicated region
  $region14: #{encoder_forward_impl.25} parent=0 // pred_check
    %p19 = pneg %p18
  $region15: #{encoder_forward_impl.25} parent=0 // pred_check_branch
    %21 = sbr.rel (%p19) target = $region17
  $region16: #{encoder_forward_impl.25} parent=0 // pred_region
    %v22 = vld [vmem:[%s2] sm:$0x1]
    %v24 = vlaneseq
    %v25 = vshrl.u32 %v24, 7
    %v26 = vsub.s32 0, %v25
    %v27 = vrot.slane %v22, %v26
    %vm29 = vcmask 261120
    %30 = vst.msk [vmem:[#allocation2] sm:$0xff] %vm29, %v27
    %31 = vst.msk [vmem:[#allocation2 + $0x8] sm:$0xff] %vm29, %v27
    %32 = vst.msk [vmem:[#allocation2 + $0x10] sm:$0xff] %vm29, %v27
    %33 = vst.msk [vmem:[#allocation2 + $0x18] sm:$0xff] %vm29, %v27
  $region17: #{encoder_forward_impl.25} parent=0 // pred_fallthru
    _
  %v34 = vld [vmem:[#allocation2] sm:$0xff]
  %v35 = vld [vmem:[#allocation2 + $0x8] sm:$0xff]
  %v36 = vld [vmem:[#allocation2 + $0x10] sm:$0xff]
  %v37 = vld [vmem:[#allocation2 + $0x18] sm:$0xff]
  %v38 = vld [vmem:[%s0] sm:$0xff]
  %v39 = vld [vmem:[%s0 + $0x8] sm:$0xff]
  %v40 = vld [vmem:[%s0 + $0x10] sm:$0xff]
  %v41 = vld [vmem:[%s0 + $0x18] sm:$0xff]
  %v42 = vld [vmem:[%s1] sm:$0xf]
  %v43 = vld [vmem:[%s1 + $0x4] sm:$0xf]
  %v44 = vld [vmem:[%s1 + $0x8] sm:$0xf]
  %v45 = vld [vmem:[%s1 + $0xc] sm:$0xf]
  %v46 = vld [vmem:[%s1 + $0x10] sm:$0xf]
  %v47 = vld [vmem:[%s1 + $0x14] sm:$0xf]
  %v48 = vld [vmem:[%s1 + $0x18] sm:$0xf]
  %v49 = vld [vmem:[%s1 + $0x1c] sm:$0xf]
  %v50 = vld [vmem:[%s1 + $0x20] sm:$0xf]
  %v51 = vld [vmem:[%s1 + $0x24] sm:$0xf]
  %v52 = vld [vmem:[%s1 + $0x28] sm:$0xf]
  %v53 = vld [vmem:[%s1 + $0x2c] sm:$0xf]
  %v54 = vld [vmem:[%s1 + $0x30] sm:$0xf]
  %v55 = vld [vmem:[%s1 + $0x34] sm:$0xf]
  %v56 = vld [vmem:[%s1 + $0x38] sm:$0xf]
  %v57 = vld [vmem:[%s1 + $0x3c] sm:$0xf]
  %v58 = vld [vmem:[%s1 + $0x40] sm:$0xf]
  %v59 = vld [vmem:[%s1 + $0x44] sm:$0xf]
  %v64 = vunpack.c.l.b16 %v38
  %v65 = vunpack.c.h.b16 %v38
  %v66 = vunpack.c.l.b16 %v39
  %v67 = vunpack.c.h.b16 %v39
  %v68 = vunpack.c.l.b16 %v40
  %v69 = vunpack.c.h.b16 %v40
  %v70 = vunpack.c.l.b16 %v41
  %v71 = vunpack.c.h.b16 %v41
  %v72 = vpack.c.b16 %v66, %v64
  %v73 = vpack.c.b16 %v67, %v65
  %v74 = vpack.c.b16 %v70, %v68
  %v75 = vpack.c.b16 %v71, %v69
  %v96 = vunpack.c.l.b16 %v42
  %v97 = vunpack.c.l.b16 %v43
  %v98 = vunpack.c.l.b16 %v44
  %v99 = vunpack.c.l.b16 %v45
  %v100 = vunpack.c.l.b16 %v46
  %v101 = vunpack.c.l.b16 %v47
  %v102 = vunpack.c.l.b16 %v48
  %v103 = vunpack.c.l.b16 %v49
  %v104 = vunpack.c.l.b16 %v50
  %v105 = vunpack.c.l.b16 %v51
  %v106 = vunpack.c.l.b16 %v52
  %v107 = vunpack.c.l.b16 %v53
  %v108 = vunpack.c.l.b16 %v54
  %v109 = vunpack.c.l.b16 %v55
  %v110 = vunpack.c.l.b16 %v56
  %v111 = vunpack.c.l.b16 %v57
  %v112 = vunpack.c.l.b16 %v58
  %v113 = vunpack.c.l.b16 %v59
  %v114 = vpack.c.b16 %v97, %v96
  %v115 = vpack.c.b16 %v99, %v98
  %v116 = vpack.c.b16 %v101, %v100
  %v117 = vpack.c.b16 %v103, %v102
  %v118 = vpack.c.b16 %v105, %v104
  %v119 = vpack.c.b16 %v107, %v106
  %v120 = vpack.c.b16 %v109, %v108
  %v121 = vpack.c.b16 %v111, %v110
  %v122 = vpack.c.b16 %v113, %v112
  %vm132 = vcmask 130048
  %v134 = vsel %vm132, %v73, 0
  %v137 = vsel %vm132, %v75, 0
  %139 = vmatprep.subr.bf16.mxu0 0
  %140 = vmatpush1.bf16.msra.mxu0 %v121
  %141 = vmatprep.subr.bf16.mxu0 0
  %142 = vmatpush1.bf16.msra.mxu0 %v120
  %143 = vmatprep.subr.bf16.mxu0 0
  %144 = vmatpush1.bf16.msra.mxu0 %v119
  %145 = vmatprep.subr.bf16.mxu0 0
  %146 = vmatpush1.bf16.msra.mxu0 %v118
  %147 = vmatprep.subr.bf16.mxu0 0
  %148 = vmatpush1.bf16.msra.mxu0 %v117
  %149 = vmatprep.subr.bf16.mxu0 0
  %150 = vmatpush1.bf16.msra.mxu0 %v116
  %151 = vmatprep.subr.bf16.mxu0 0
  %152 = vmatpush1.bf16.msra.mxu0 %v115
  %153 = vmatprep.subr.bf16.mxu0 0
  %154 = vmatpush1.bf16.msra.mxu0 %v114
  %155 = vmatprep.subr.bf16.mxu0 0
  %156 = vmatpush2.bf16.msra.mxu0 0
  %157 = vmatprep.subr.bf16.mxu0 0
  %158 = vmatpush2.bf16.msra.mxu0 0
  %159 = vmatprep.subr.bf16.mxu0 0
  %160 = vmatpush2.bf16.msra.mxu0 0
  %161 = vmatprep.subr.bf16.mxu0 0
  %162 = vmatpush2.bf16.msra.mxu0 0
  %163 = vmatprep.subr.bf16.mxu0 0
  %164 = vmatpush2.bf16.msra.mxu0 0
  %165 = vmatprep.subr.bf16.mxu0 0
  %166 = vmatpush2.bf16.msra.mxu0 0
  %167 = vmatprep.subr.bf16.mxu0 0
  %168 = vmatpush2.bf16.msra.mxu0 0
  %169 = vmatprep.subr.bf16.mxu0 0
  %170 = vmatpush2.bf16.msra.mxu0 %v122
  %171 = vmatprep.mubr.bf16.mxu0 %v134
  %172 = vmatmul.mubr.bf16.gmra.mxu0 %v72
  %v173 = vpop.f32.mrf.mxu0
  %v174 = vadd.f32 0.0, %v173
  %v175 = vpop.f32.mrf.mxu0
  %v176 = vpop.f32.mrf.mxu0
  %v177 = vadd.f32 0.0, %v176
  %v178 = vpop.f32.mrf.mxu0
  %179 = vmatprep.mubr.bf16.mxu0 %v137
  %180 = vmatmul.mubr.bf16.gmra.mxu0 %v74
  %v181 = vpop.f32.mrf.mxu0
  %v182 = vadd.f32 0.0, %v181
  %v183 = vpop.f32.mrf.mxu0
  %v184 = vpop.f32.mrf.mxu0
  %v185 = vadd.f32 0.0, %v184
  %v186 = vpop.f32.mrf.mxu0
  %187 = vdwg.mxu0
  %v188 = vadd.f32 %v34, %v174
  %v189 = vadd.f32 %v35, %v177
  %v190 = vadd.f32 %v36, %v182
  %v191 = vadd.f32 %v37, %v185
  %vm192 = vcmask 261120
  %193 = vst.msk [vmem:[#allocation2] sm:$0xff] %vm192, %v188
  %194 = vst.msk [vmem:[#allocation2 + $0x8] sm:$0xff] %vm192, %v189
  %195 = vst.msk [vmem:[#allocation2 + $0x10] sm:$0xff] %vm192, %v190
  %196 = vst.msk [vmem:[#allocation2 + $0x18] sm:$0xff] %vm192, %v191
  %p197 = scmp.eq.s32.totalorder 0, 0
  %p198 = pnand %p197, %p18
  %p199 = pneg %p198
  // Predicated region
  $region18: #{encoder_forward_impl.25} parent=0 // pred_check
    _
  $region19: #{encoder_forward_impl.25} parent=0 // pred_check_branch
    %201 = sbr.rel (%p198) target = $region21
  $region20: #{encoder_forward_impl.25} parent=0 // pred_region
    %vm202 = vcmask 253952
    %203 = vst.msk [vmem:[%s4] sm:$0x1] %vm202, 0.0
    %204 = vst.msk [vmem:[%s5] sm:$0x1] %vm202, 0.0
  $region21: #{encoder_forward_impl.25} parent=0 // pred_fallthru
    _
  // Predicated region
  $region22: #{encoder_forward_impl.25} parent=0 // pred_check
    %p205 = pneg %p18
  $region23: #{encoder_forward_impl.25} parent=0 // pred_check_branch
    %207 = sbr.rel (%p205) target = $region25
  $region24: #{encoder_forward_impl.25} parent=0 // pred_region
    %v208 = vld [vmem:[#allocation2] sm:$0xff]
    %v209 = vld [vmem:[#allocation2 + $0x8] sm:$0xff]
    %v210 = vld [vmem:[#allocation2 + $0x10] sm:$0xff]
    %v211 = vld [vmem:[#allocation2 + $0x18] sm:$0xff]
    %v212 = vpack.c.bf16 %v209, %v208
    %v213 = vpack.c.bf16 %v211, %v210
    %v216 = vunpack.c.l.b16 %v212
    %v217 = vunpack.c.h.b16 %v212
    %v218 = vunpack.c.l.b16 %v213
    %v219 = vunpack.c.h.b16 %v213
    %v220 = vpack.c.b16 %v216, %v216
    %v221 = vpack.c.b16 %v217, %v217
    %v222 = vpack.c.b16 %v218, %v218
    %v223 = vpack.c.b16 %v219, %v219
    %vm228 = vcmask 257024
    %229 = vst.msk [vmem:[%s3] sm:$0xf] %vm228, %v220
    %230 = vst.msk [vmem:[%s3 + $0x4] sm:$0xf] %vm228, %v221
    %231 = vst.msk [vmem:[%s3 + $0x8] sm:$0xf] %vm228, %v222
    %232 = vst.msk [vmem:[%s3 + $0xc] sm:$0xf] %vm228, %v223
    %v233 = vld [vmem:[%s4] sm:$0x1]
    %v234 = vsel %vm192, %v208, 0.0
    %v235 = vsel %vm192, %v209, 0.0
    %v236 = vadd.f32 %v234, %v235
    %v237 = vsel %vm192, %v210, 0.0
    %v238 = vadd.f32 %v236, %v237
    %v239 = vsel %vm192, %v211, 0.0
    %v240 = vadd.f32 %v238, %v239
    %v241 = vrot.slane %v240, 4
    %v242 = vadd.f32 %v240, %v241
    %v243 = vrot.slane %v242, 2
    %v244 = vadd.f32 %v242, %v243
    %v245 = vrot.slane %v244, 1
    %v246 = vadd.f32 %v244, %v245
    %v247 = vadd.f32 %v233, %v246
    %vm248 = vcmask 253952
    %249 = vst.msk [vmem:[%s4] sm:$0x1] %vm248, %v247
    %v250 = vld [vmem:[%s5] sm:$0x1]
    %v251 = vmul.f32 %v208, %v208
    %v252 = vmul.f32 %v209, %v209
    %v253 = vmul.f32 %v210, %v210
    %v254 = vmul.f32 %v211, %v211
    %v255 = vsel %vm192, %v251, 0.0
    %v256 = vsel %vm192, %v252, 0.0
    %v257 = vadd.f32 %v255, %v256
    %v258 = vsel %vm192, %v253, 0.0
    %v259 = vadd.f32 %v257, %v258
    %v260 = vsel %vm192, %v254, 0.0
    %v261 = vadd.f32 %v259, %v260
    %v262 = vrot.slane %v261, 4
    %v263 = vadd.f32 %v261, %v262
    %v264 = vrot.slane %v263, 2
    %v265 = vadd.f32 %v263, %v264
    %v266 = vrot.slane %v265, 1
    %v267 = vadd.f32 %v265, %v266
    %v268 = vadd.f32 %v250, %v267
    %269 = vst.msk [vmem:[%s5] sm:$0x1] %vm248, %v268
  $region25: #{encoder_forward_impl.25} parent=0 // pred_fallthru
    _
  // Predicated region
  $region26: #{encoder_forward_impl.25} parent=0 // pred_check
    _
  $region27: #{encoder_forward_impl.25} parent=0 // pred_check_branch
    %271 = sbr.rel (0) target = $region29
  $region28: #{encoder_forward_impl.25} parent=0 // pred_region
    _
  $region29: #{encoder_forward_impl.25} parent=0 // pred_fallthru
    _
  // Predicated region
  $region30: #{encoder_forward_impl.25} parent=0 // pred_check
    _
  $region31: #{encoder_forward_impl.25} parent=0 // pred_check_branch
    %273 = sbr.rel (0) target = $region33
  $region32: #{encoder_forward_impl.25} parent=0 // pred_region
    _
  $region33: #{encoder_forward_impl.25} parent=0 // pred_fallthru
    _
  // Predicated region
  $region34: #{encoder_forward_impl.25} parent=0 // pred_check
    _
  $region35: #{encoder_forward_impl.25} parent=0 // pred_check_branch
    %275 = sbr.rel (0) target = $region37
  $region36: #{encoder_forward_impl.25} parent=0 // pred_region
    _
  $region37: #{encoder_forward_impl.25} parent=0 // pred_fallthru
    _
  // Predicated region
  $region38: #{encoder_forward_impl.25} parent=0 // pred_check
    _
  $region39: #{encoder_forward_impl.25} parent=0 // pred_check_branch
    %277 = sbr.rel (0) target = $region41
  $region40: #{encoder_forward_impl.25} parent=0 // pred_region
    _
  $region41: #{encoder_forward_impl.25} parent=0 // pred_fallthru
    _
  // Predicated region
  $region42: #{encoder_forward_impl.25} parent=0 // pred_check
    _
  $region43: #{encoder_forward_impl.25} parent=0 // pred_check_branch
    %279 = sbr.rel (0) target = $region45
  $region44: #{encoder_forward_impl.25} parent=0 // pred_region
    _
  $region45: #{encoder_forward_impl.25} parent=0 // pred_fallthru
    _
  // Predicated region
  $region46: #{encoder_forward_impl.25} parent=0 // pred_check
    _
  $region47: #{encoder_forward_impl.25} parent=0 // pred_check_branch
    %281 = sbr.rel (0) target = $region49
  $region48: #{encoder_forward_impl.25} parent=0 // pred_region
    _
  $region49: #{encoder_forward_impl.25} parent=0 // pred_fallthru
    _

// kernel: encoder_forward_impl.26
$region0: #{encoder_forward_impl.26}
  #allocation0 [shape = 'u32[]', space=smem, size = 0x4, offset = 0x4, fixed_abs, tag = 'smem constant byte address 0x4 - core index']
  #allocation1 [shape = 'u32[144,128]{1,0:T(1,128)}', space=vmem, size = 0x12000, scoped, tag = 'internal scratch']
  %s0 = inlined_call_operand.vmem [shape: bf16[8,128], index: 0, kind: input, shape index: {}]
  %s1 = inlined_call_operand.vmem [shape: f32[1,128], index: 1, kind: input, shape index: {}]
  %s2 = inlined_call_operand.vmem [shape: f32[1,128], index: 2, kind: input, shape index: {}]
  %s3 = inlined_call_operand.vmem [shape: bf16[8,128], index: 3, kind: output, shape index: {}]
  %s4 = sld [smem:[#allocation0]]
  $region22: #{encoder_forward_impl.26} parent=0
    _
  %s6 = ssub.s32 1, %s4
  %s7 = scalar_select 0, %s6, %s4
  // Predicated region
  $region2: #{encoder_forward_impl.26} parent=0 // pred_check
    _
  $region3: #{encoder_forward_impl.26} parent=0 // pred_check_branch
    %9 = sbr.rel (0) target = $region5
  $region4: #{encoder_forward_impl.26} parent=0 // pred_region
    _
  $region5: #{encoder_forward_impl.26} parent=0 // pred_fallthru
    _
  // Predicated region
  $region6: #{encoder_forward_impl.26} parent=0 // pred_check
    _
  $region7: #{encoder_forward_impl.26} parent=0 // pred_check_branch
    %11 = sbr.rel (0) target = $region9
  $region8: #{encoder_forward_impl.26} parent=0 // pred_region
    _
  $region9: #{encoder_forward_impl.26} parent=0 // pred_fallthru
    _
  // Predicated region
  $region10: #{encoder_forward_impl.26} parent=0 // pred_check
    _
  $region11: #{encoder_forward_impl.26} parent=0 // pred_check_branch
    %13 = sbr.rel (0) target = $region13
  $region12: #{encoder_forward_impl.26} parent=0 // pred_region
    _
  $region13: #{encoder_forward_impl.26} parent=0 // pred_fallthru
    _
  %v14 = vld [vmem:[%s0] sm:$0xf]
  %v15 = vunpack.c.l.bf16 %v14
  %v16 = vld [vmem:[%s1] sm:$0x1]
  %v18 = vlaneseq
  %v19 = vshrl.u32 %v18, 7
  %v20 = vsub.s32 0, %v19
  %v21 = vrot.slane %v16, %v20
  %v23 = vmul.f32 %v15, %v21
  %v24 = vld [vmem:[%s2] sm:$0x1]
  %v26 = vlaneseq
  %v27 = vshrl.u32 %v26, 7
  %v28 = vsub.s32 0, %v27
  %v29 = vrot.slane %v24, %v28
  %v31 = vadd.f32 %v23, %v29
  %v32 = vmax.f32 %v31, 0.0
  %v33 = vpack.c.bf16 %v32, %v32
  %34 = vst [vmem:[%s3] sm:$0xf] %v33
  // Predicated region
  $region14: #{encoder_forward_impl.26} parent=0 // pred_check
    _
  $region15: #{encoder_forward_impl.26} parent=0 // pred_check_branch
    %36 = sbr.rel (0) target = $region17
  $region16: #{encoder_forward_impl.26} parent=0 // pred_region
    _
  $region17: #{encoder_forward_impl.26} parent=0 // pred_fallthru
    _
  // Predicated region
  $region18: #{encoder_forward_impl.26} parent=0 // pred_check
    _
  $region19: #{encoder_forward_impl.26} parent=0 // pred_check_branch
    %38 = sbr.rel (0) target = $region21
  $region20: #{encoder_forward_impl.26} parent=0 // pred_region
    _
  $region21: #{encoder_forward_impl.26} parent=0 // pred_fallthru
    _

// kernel: tile.135
$region0: #{tile.135}
  #allocation0 [shape = 's32[1]{0}', space=sflag, size = 0x4, scoped, tag = 'scoped memory for tile.135']
  %s0 = inlined_call_operand.vmem [shape: f32[64], index: 0, kind: input, shape index: {}]
  %s1 = inlined_call_operand.vmem [shape: f32[2,64], index: 1, kind: output, shape index: {}]
  // Predicated region
  $region2: #{tile.135} parent=0 // pred_check
    _
  $region3: #{tile.135} parent=0 // pred_check_branch
    %3 = sbr.rel (0) target = $region5
  $region4: #{tile.135} parent=0 // pred_region
    _
  $region5: #{tile.135} parent=0 // pred_fallthru
    _
  %v4 = vld [vmem:[%s0] ss:$0 sm:$0xff]
  %5 = vst [vmem:[%s1] sm:$0x3] %v4

// kernel: tile.136
$region0: #{tile.136}
  %s0 = inlined_call_operand.vmem [shape: f32[2,64], index: 0, kind: input, shape index: {}]
  %s1 = inlined_call_operand.vmem [shape: f32[1,128], index: 1, kind: output, shape index: {}]
  $region1: #{tile.136} parent=0
    #allocation0 [shape = 'u8[4096]{0}', space=vmem, size = 0x1000, scoped, tag = 'scoped mem for output reshape']
    #allocation1 [shape = 'u8[4096]{0}', space=vmem, size = 0x1000, scoped, tag = 'scoped mem for input reshape']
    %s3 = sshll.u32 1, 2
    %s4 = ssub.s32 %s3, 1
    %v5 = vld [vmem:[%s0] sm:%s4]
    %6 = vst [vmem:[#allocation1] sm:%s4] %v5
    %v7 = vld [vmem:[#allocation1] sm:$0x1]
    %vm8 = vcmask 523264
    %9 = vst.msk [vmem:[#allocation0] sm:$0x1] %vm8, %v7
    %s10 = scalar_lea.vmem [#allocation1], 1
    %v11 = vld [vmem:[%s10] sm:$0x1]
    %12 = vrot.lane.b32.xlu0 %v11, 64
    %v13 = vpop.permute.xlu0 %12
    %vm14 = vcmask 1048064
    %15 = vst.msk [vmem:[#allocation0] sm:$0x1] %vm14, %v13
    %s17 = sshll.u32 1, 1
    %s18 = ssub.s32 %s17, 1
    %v20 = vld [vmem:[#allocation0] sm:%s18]
    %s21 = sshll.u32 1, 1
    %s22 = ssub.s32 %s21, 1
    %23 = vst [vmem:[%s1] sm:%s22] %v20

// kernel: encoder_forward_impl.28
$region0: #{encoder_forward_impl.28}
  #allocation0 [shape = 'u32[]', space=smem, size = 0x4, offset = 0x4, fixed_abs, tag = 'smem constant byte address 0x4 - core index']
  #allocation1 [shape = 'u32[144,128]{1,0:T(1,128)}', space=vmem, size = 0x12000, scoped, tag = 'internal scratch']
  %s0 = inlined_call_operand.vmem [shape: bf16[4,128], index: 0, kind: input, shape index: {}]
  %s1 = inlined_call_operand.vmem [shape: f32[1,128], index: 1, kind: input, shape index: {}]
  %s2 = inlined_call_operand.vmem [shape: f32[1,128], index: 2, kind: input, shape index: {}]
  %s3 = inlined_call_operand.vmem [shape: bf16[4,128], index: 3, kind: output, shape index: {}]
  %s4 = sld [smem:[#allocation0]]
  $region22: #{encoder_forward_impl.28} parent=0
    _
  %s6 = ssub.s32 1, %s4
  %s7 = scalar_select 0, %s6, %s4
  // Predicated region
  $region2: #{encoder_forward_impl.28} parent=0 // pred_check
    _
  $region3: #{encoder_forward_impl.28} parent=0 // pred_check_branch
    %9 = sbr.rel (0) target = $region5
  $region4: #{encoder_forward_impl.28} parent=0 // pred_region
    _
  $region5: #{encoder_forward_impl.28} parent=0 // pred_fallthru
    _
  // Predicated region
  $region6: #{encoder_forward_impl.28} parent=0 // pred_check
    _
  $region7: #{encoder_forward_impl.28} parent=0 // pred_check_branch
    %11 = sbr.rel (0) target = $region9
  $region8: #{encoder_forward_impl.28} parent=0 // pred_region
    _
  $region9: #{encoder_forward_impl.28} parent=0 // pred_fallthru
    _
  // Predicated region
  $region10: #{encoder_forward_impl.28} parent=0 // pred_check
    _
  $region11: #{encoder_forward_impl.28} parent=0 // pred_check_branch
    %13 = sbr.rel (0) target = $region13
  $region12: #{encoder_forward_impl.28} parent=0 // pred_region
    _
  $region13: #{encoder_forward_impl.28} parent=0 // pred_fallthru
    _
  %v14 = vld [vmem:[%s0] sm:$0x3]
  %v15 = vunpack.c.l.bf16 %v14
  %v16 = vld [vmem:[%s1] sm:$0x1]
  %v18 = vlaneseq
  %v19 = vshrl.u32 %v18, 7
  %v20 = vsub.s32 0, %v19
  %v21 = vrot.slane %v16, %v20
  %v23 = vmul.f32 %v15, %v21
  %v24 = vld [vmem:[%s2] sm:$0x1]
  %v26 = vlaneseq
  %v27 = vshrl.u32 %v26, 7
  %v28 = vsub.s32 0, %v27
  %v29 = vrot.slane %v24, %v28
  %v31 = vadd.f32 %v23, %v29
  %v32 = vmax.f32 %v31, 0.0
  %v33 = vpack.c.bf16 %v32, %v32
  %34 = vst [vmem:[%s3] sm:$0x3] %v33
  // Predicated region
  $region14: #{encoder_forward_impl.28} parent=0 // pred_check
    _
  $region15: #{encoder_forward_impl.28} parent=0 // pred_check_branch
    %36 = sbr.rel (0) target = $region17
  $region16: #{encoder_forward_impl.28} parent=0 // pred_region
    _
  $region17: #{encoder_forward_impl.28} parent=0 // pred_fallthru
    _
  // Predicated region
  $region18: #{encoder_forward_impl.28} parent=0 // pred_check
    _
  $region19: #{encoder_forward_impl.28} parent=0 // pred_check_branch
    %38 = sbr.rel (0) target = $region21
  $region20: #{encoder_forward_impl.28} parent=0 // pred_region
    _
  $region21: #{encoder_forward_impl.28} parent=0 // pred_fallthru
    _

// kernel: encoder_forward_impl.27
$region0: #{encoder_forward_impl.27}
  #allocation0 [shape = 'u32[]', space=smem, size = 0x4, offset = 0x4, fixed_abs, tag = 'smem constant byte address 0x4 - core index']
  #allocation1 [shape = 'u32[144,128]{1,0:T(1,128)}', space=vmem, size = 0x12000, scoped, tag = 'internal scratch']
  #allocation2 [shape = 'f32[8,64]{1,0:T(8,128)}', space=vmem, size = 0x1000, scoped, tag = 'scratch operand']
  %s0 = inlined_call_operand.vmem [shape: bf16[8,288], index: 0, kind: input, shape index: {}]
  %s1 = inlined_call_operand.vmem [shape: bf16[288,64], index: 1, kind: input, shape index: {}]
  %s2 = inlined_call_operand.vmem [shape: f32[1,64], index: 2, kind: input, shape index: {}]
  %s3 = inlined_call_operand.vmem [shape: bf16[8,64], index: 3, kind: output, shape index: {0}]
  %s4 = inlined_call_operand.vmem [shape: f32[1,64], index: 4, kind: output, shape index: {1}]
  %s5 = inlined_call_operand.vmem [shape: f32[1,64], index: 5, kind: output, shape index: {2}]
  %6 = xla_tuple %s3, %s4, %s5
  %s7 = sld [smem:[#allocation0]]
  $region50: #{encoder_forward_impl.27} parent=0
    _
  %s9 = ssub.s32 1, %s7
  %s10 = scalar_select 0, %s9, %s7
  // Predicated region
  $region2: #{encoder_forward_impl.27} parent=0 // pred_check
    _
  $region3: #{encoder_forward_impl.27} parent=0 // pred_check_branch
    %12 = sbr.rel (0) target = $region5
  $region4: #{encoder_forward_impl.27} parent=0 // pred_region
    _
  $region5: #{encoder_forward_impl.27} parent=0 // pred_fallthru
    _
  // Predicated region
  $region6: #{encoder_forward_impl.27} parent=0 // pred_check
    _
  $region7: #{encoder_forward_impl.27} parent=0 // pred_check_branch
    %14 = sbr.rel (0) target = $region9
  $region8: #{encoder_forward_impl.27} parent=0 // pred_region
    _
  $region9: #{encoder_forward_impl.27} parent=0 // pred_fallthru
    _
  // Predicated region
  $region10: #{encoder_forward_impl.27} parent=0 // pred_check
    _
  $region11: #{encoder_forward_impl.27} parent=0 // pred_check_branch
    %16 = sbr.rel (0) target = $region13
  $region12: #{encoder_forward_impl.27} parent=0 // pred_region
    _
  $region13: #{encoder_forward_impl.27} parent=0 // pred_fallthru
    _
  %p18 = scmp.eq.s32.totalorder 0, 0
  // Predicated region
  $region14: #{encoder_forward_impl.27} parent=0 // pred_check
    %p19 = pneg %p18
  $region15: #{encoder_forward_impl.27} parent=0 // pred_check_branch
    %21 = sbr.rel (%p19) target = $region17
  $region16: #{encoder_forward_impl.27} parent=0 // pred_region
    %v22 = vld [vmem:[%s2] sm:$0x1]
    %v24 = vlaneseq
    %v25 = vshrl.u32 %v24, 7
    %v26 = vsub.s32 0, %v25
    %v27 = vrot.slane %v22, %v26
    %vm29 = vcmask 523264
    %30 = vst.msk [vmem:[#allocation2] sm:$0xff] %vm29, %v27
  $region17: #{encoder_forward_impl.27} parent=0 // pred_fallthru
    _
  %v31 = vld [vmem:[#allocation2] sm:$0xff]
  %v32 = vld [vmem:[%s0] sm:$0xff]
  %v33 = vld [vmem:[%s0 + $0x8] sm:$0xf]
  %v34 = vld [vmem:[%s1] sm:$0xf]
  %v35 = vld [vmem:[%s1 + $0x4] sm:$0xf]
  %v36 = vld [vmem:[%s1 + $0x8] sm:$0xf]
  %v37 = vld [vmem:[%s1 + $0xc] sm:$0xf]
  %v38 = vld [vmem:[%s1 + $0x10] sm:$0xf]
  %v39 = vld [vmem:[%s1 + $0x14] sm:$0xf]
  %v40 = vld [vmem:[%s1 + $0x18] sm:$0xf]
  %v41 = vld [vmem:[%s1 + $0x1c] sm:$0xf]
  %v42 = vld [vmem:[%s1 + $0x20] sm:$0xf]
  %v43 = vld [vmem:[%s1 + $0x24] sm:$0xf]
  %v44 = vld [vmem:[%s1 + $0x28] sm:$0xf]
  %v45 = vld [vmem:[%s1 + $0x2c] sm:$0xf]
  %v46 = vld [vmem:[%s1 + $0x30] sm:$0xf]
  %v47 = vld [vmem:[%s1 + $0x34] sm:$0xf]
  %v48 = vld [vmem:[%s1 + $0x38] sm:$0xf]
  %v49 = vld [vmem:[%s1 + $0x3c] sm:$0xf]
  %v50 = vld [vmem:[%s1 + $0x40] sm:$0xf]
  %v51 = vld [vmem:[%s1 + $0x44] sm:$0xf]
  %v52 = vld [vmem:[%s1 + $0x48] sm:$0xf]
  %v53 = vld [vmem:[%s1 + $0x4c] sm:$0xf]
  %v54 = vld [vmem:[%s1 + $0x50] sm:$0xf]
  %v55 = vld [vmem:[%s1 + $0x54] sm:$0xf]
  %v56 = vld [vmem:[%s1 + $0x58] sm:$0xf]
  %v57 = vld [vmem:[%s1 + $0x5c] sm:$0xf]
  %v58 = vld [vmem:[%s1 + $0x60] sm:$0xf]
  %v59 = vld [vmem:[%s1 + $0x64] sm:$0xf]
  %v60 = vld [vmem:[%s1 + $0x68] sm:$0xf]
  %v61 = vld [vmem:[%s1 + $0x6c] sm:$0xf]
  %v62 = vld [vmem:[%s1 + $0x70] sm:$0xf]
  %v63 = vld [vmem:[%s1 + $0x74] sm:$0xf]
  %v64 = vld [vmem:[%s1 + $0x78] sm:$0xf]
  %v65 = vld [vmem:[%s1 + $0x7c] sm:$0xf]
  %v66 = vld [vmem:[%s1 + $0x80] sm:$0xf]
  %v67 = vld [vmem:[%s1 + $0x84] sm:$0xf]
  %v68 = vld [vmem:[%s1 + $0x88] sm:$0xf]
  %v69 = vld [vmem:[%s1 + $0x8c] sm:$0xf]
  %v72 = vunpack.c.l.b16 %v32
  %v73 = vunpack.c.h.b16 %v32
  %v74 = vunpack.c.l.b16 %v33
  %v75 = vpack.c.b16 %v72, %v72
  %v76 = vpack.c.b16 %v73, %v73
  %v77 = vpack.c.b16 %v74, %v74
  %v116 = vunpack.c.l.b16 %v34
  %v117 = vunpack.c.l.b16 %v35
  %v118 = vunpack.c.l.b16 %v36
  %v119 = vunpack.c.l.b16 %v37
  %v120 = vunpack.c.l.b16 %v38
  %v121 = vunpack.c.l.b16 %v39
  %v122 = vunpack.c.l.b16 %v40
  %v123 = vunpack.c.l.b16 %v41
  %v124 = vunpack.c.l.b16 %v42
  %v125 = vunpack.c.l.b16 %v43
  %v126 = vunpack.c.l.b16 %v44
  %v127 = vunpack.c.l.b16 %v45
  %v128 = vunpack.c.l.b16 %v46
  %v129 = vunpack.c.l.b16 %v47
  %v130 = vunpack.c.l.b16 %v48
  %v131 = vunpack.c.l.b16 %v49
  %v132 = vunpack.c.l.b16 %v50
  %v133 = vunpack.c.l.b16 %v51
  %v134 = vunpack.c.l.b16 %v52
  %v135 = vunpack.c.l.b16 %v53
  %v136 = vunpack.c.l.b16 %v54
  %v137 = vunpack.c.l.b16 %v55
  %v138 = vunpack.c.l.b16 %v56
  %v139 = vunpack.c.l.b16 %v57
  %v140 = vunpack.c.l.b16 %v58
  %v141 = vunpack.c.l.b16 %v59
  %v142 = vunpack.c.l.b16 %v60
  %v143 = vunpack.c.l.b16 %v61
  %v144 = vunpack.c.l.b16 %v62
  %v145 = vunpack.c.l.b16 %v63
  %v146 = vunpack.c.l.b16 %v64
  %v147 = vunpack.c.l.b16 %v65
  %v148 = vunpack.c.l.b16 %v66
  %v149 = vunpack.c.l.b16 %v67
  %v150 = vunpack.c.l.b16 %v68
  %v151 = vunpack.c.l.b16 %v69
  %v152 = vpack.c.b16 %v117, %v116
  %v153 = vpack.c.b16 %v119, %v118
  %v154 = vpack.c.b16 %v121, %v120
  %v155 = vpack.c.b16 %v123, %v122
  %v156 = vpack.c.b16 %v125, %v124
  %v157 = vpack.c.b16 %v127, %v126
  %v158 = vpack.c.b16 %v129, %v128
  %v159 = vpack.c.b16 %v131, %v130
  %v160 = vpack.c.b16 %v133, %v132
  %v161 = vpack.c.b16 %v135, %v134
  %v162 = vpack.c.b16 %v137, %v136
  %v163 = vpack.c.b16 %v139, %v138
  %v164 = vpack.c.b16 %v141, %v140
  %v165 = vpack.c.b16 %v143, %v142
  %v166 = vpack.c.b16 %v145, %v144
  %v167 = vpack.c.b16 %v147, %v146
  %v168 = vpack.c.b16 %v149, %v148
  %v169 = vpack.c.b16 %v151, %v150
  %vm188 = vcmask 261120
  %v190 = vsel %vm188, %v77, 0
  %192 = vmatprep.subr.bf16.mxu0 0
  %193 = vmatpush1.bf16.msra.mxu0 %v159
  %194 = vmatprep.subr.bf16.mxu0 0
  %195 = vmatpush1.bf16.msra.mxu0 %v158
  %196 = vmatprep.subr.bf16.mxu0 0
  %197 = vmatpush1.bf16.msra.mxu0 %v157
  %198 = vmatprep.subr.bf16.mxu0 0
  %199 = vmatpush1.bf16.msra.mxu0 %v156
  %200 = vmatprep.subr.bf16.mxu0 0
  %201 = vmatpush1.bf16.msra.mxu0 %v155
  %202 = vmatprep.subr.bf16.mxu0 0
  %203 = vmatpush1.bf16.msra.mxu0 %v154
  %204 = vmatprep.subr.bf16.mxu0 0
  %205 = vmatpush1.bf16.msra.mxu0 %v153
  %206 = vmatprep.subr.bf16.mxu0 0
  %207 = vmatpush1.bf16.msra.mxu0 %v152
  %208 = vmatprep.subr.bf16.mxu0 0
  %209 = vmatpush2.bf16.msra.mxu0 %v167
  %210 = vmatprep.subr.bf16.mxu0 0
  %211 = vmatpush2.bf16.msra.mxu0 %v166
  %212 = vmatprep.subr.bf16.mxu0 0
  %213 = vmatpush2.bf16.msra.mxu0 %v165
  %214 = vmatprep.subr.bf16.mxu0 0
  %215 = vmatpush2.bf16.msra.mxu0 %v164
  %216 = vmatprep.subr.bf16.mxu0 0
  %217 = vmatpush2.bf16.msra.mxu0 %v163
  %218 = vmatprep.subr.bf16.mxu0 0
  %219 = vmatpush2.bf16.msra.mxu0 %v162
  %220 = vmatprep.subr.bf16.mxu0 0
  %221 = vmatpush2.bf16.msra.mxu0 %v161
  %222 = vmatprep.subr.bf16.mxu0 0
  %223 = vmatpush2.bf16.msra.mxu0 %v160
  %224 = vmatprep.mubr.bf16.mxu0 %v76
  %225 = vmatmul.mubr.bf16.gmra.mxu0 %v75
  %v226 = vpop.f32.mrf.mxu0
  %v227 = vadd.f32 0.0, %v226
  %v228 = vpop.f32.mrf.mxu0
  %v229 = vpop.f32.mrf.mxu0
  %v230 = vpop.f32.mrf.mxu0
  %231 = vdwg.mxu0
  %232 = vmatprep.subr.bf16.mxu0 0
  %233 = vmatpush1.bf16.msra.mxu0 0
  %234 = vmatprep.subr.bf16.mxu0 0
  %235 = vmatpush1.bf16.msra.mxu0 0
  %236 = vmatprep.subr.bf16.mxu0 0
  %237 = vmatpush1.bf16.msra.mxu0 0
  %238 = vmatprep.subr.bf16.mxu0 0
  %239 = vmatpush1.bf16.msra.mxu0 0
  %240 = vmatprep.subr.bf16.mxu0 0
  %241 = vmatpush1.bf16.msra.mxu0 0
  %242 = vmatprep.subr.bf16.mxu0 0
  %243 = vmatpush1.bf16.msra.mxu0 0
  %244 = vmatprep.subr.bf16.mxu0 0
  %245 = vmatpush1.bf16.msra.mxu0 %v169
  %246 = vmatprep.subr.bf16.mxu0 0
  %247 = vmatpush1.bf16.msra.mxu0 %v168
  %248 = vmatprep.subr.bf16.mxu0 0
  %249 = vmatpush2.bf16.msra.mxu0 0
  %250 = vmatprep.subr.bf16.mxu0 0
  %251 = vmatpush2.bf16.msra.mxu0 0
  %252 = vmatprep.subr.bf16.mxu0 0
  %253 = vmatpush2.bf16.msra.mxu0 0
  %254 = vmatprep.subr.bf16.mxu0 0
  %255 = vmatpush2.bf16.msra.mxu0 0
  %256 = vmatprep.subr.bf16.mxu0 0
  %257 = vmatpush2.bf16.msra.mxu0 0
  %258 = vmatprep.subr.bf16.mxu0 0
  %259 = vmatpush2.bf16.msra.mxu0 0
  %260 = vmatprep.subr.bf16.mxu0 0
  %261 = vmatpush2.bf16.msra.mxu0 0
  %262 = vmatprep.subr.bf16.mxu0 0
  %263 = vmatpush2.bf16.msra.mxu0 0
  %264 = vmatprep.mubr.bf16.mxu0 0
  %265 = vmatmul.mubr.bf16.gmra.mxu0 %v190
  %v266 = vpop.f32.mrf.mxu0
  %v267 = vadd.f32 %v227, %v266
  %v268 = vpop.f32.mrf.mxu0
  %v269 = vpop.f32.mrf.mxu0
  %v270 = vpop.f32.mrf.mxu0
  %271 = vdwg.mxu0
  %v272 = vadd.f32 %v31, %v267
  %vm273 = vcmask 523264
  %274 = vst.msk [vmem:[#allocation2] sm:$0xff] %vm273, %v272
  %p275 = scmp.eq.s32.totalorder 0, 0
  %p276 = pnand %p275, %p18
  %p277 = pneg %p276
  // Predicated region
  $region18: #{encoder_forward_impl.27} parent=0 // pred_check
    _
  $region19: #{encoder_forward_impl.27} parent=0 // pred_check_branch
    %279 = sbr.rel (%p276) target = $region21
  $region20: #{encoder_forward_impl.27} parent=0 // pred_region
    %vm280 = vcmask 516096
    %281 = vst.msk [vmem:[%s4] sm:$0x1] %vm280, 0.0
    %282 = vst.msk [vmem:[%s5] sm:$0x1] %vm280, 0.0
  $region21: #{encoder_forward_impl.27} parent=0 // pred_fallthru
    _
  // Predicated region
  $region22: #{encoder_forward_impl.27} parent=0 // pred_check
    %p283 = pneg %p18
  $region23: #{encoder_forward_impl.27} parent=0 // pred_check_branch
    %285 = sbr.rel (%p283) target = $region25
  $region24: #{encoder_forward_impl.27} parent=0 // pred_region
    %v286 = vld [vmem:[#allocation2] sm:$0xff]
    %v287 = vpack.c.bf16 %v286, %v286
    %vm288 = vcmask 519168
    %289 = vst.msk [vmem:[%s3] sm:$0xf] %vm288, %v287
    %v290 = vld [vmem:[%s4] sm:$0x1]
    %v291 = vsel %vm273, %v286, 0.0
    %v292 = vrot.slane %v291, 4
    %v293 = vadd.f32 %v291, %v292
    %v294 = vrot.slane %v293, 2
    %v295 = vadd.f32 %v293, %v294
    %v296 = vrot.slane %v295, 1
    %v297 = vadd.f32 %v295, %v296
    %v298 = vadd.f32 %v290, %v297
    %vm299 = vcmask 516096
    %300 = vst.msk [vmem:[%s4] sm:$0x1] %vm299, %v298
    %v301 = vld [vmem:[%s5] sm:$0x1]
    %v302 = vmul.f32 %v286, %v286
    %v303 = vsel %vm273, %v302, 0.0
    %v304 = vrot.slane %v303, 4
    %v305 = vadd.f32 %v303, %v304
    %v306 = vrot.slane %v305, 2
    %v307 = vadd.f32 %v305, %v306
    %v308 = vrot.slane %v307, 1
    %v309 = vadd.f32 %v307, %v308
    %v310 = vadd.f32 %v301, %v309
    %311 = vst.msk [vmem:[%s5] sm:$0x1] %vm299, %v310
  $region25: #{encoder_forward_impl.27} parent=0 // pred_fallthru
    _
  // Predicated region
  $region26: #{encoder_forward_impl.27} parent=0 // pred_check
    _
  $region27: #{encoder_forward_impl.27} parent=0 // pred_check_branch
    %313 = sbr.rel (0) target = $region29
  $region28: #{encoder_forward_impl.27} parent=0 // pred_region
    _
  $region29: #{encoder_forward_impl.27} parent=0 // pred_fallthru
    _
  // Predicated region
  $region30: #{encoder_forward_impl.27} parent=0 // pred_check
    _
  $region31: #{encoder_forward_impl.27} parent=0 // pred_check_branch
    %315 = sbr.rel (0) target = $region33
  $region32: #{encoder_forward_impl.27} parent=0 // pred_region
    _
  $region33: #{encoder_forward_impl.27} parent=0 // pred_fallthru
    _
  // Predicated region
  $region34: #{encoder_forward_impl.27} parent=0 // pred_check
    _
  $region35: #{encoder_forward_impl.27} parent=0 // pred_check_branch
    %317 = sbr.rel (0) target = $region37
  $region36: #{encoder_forward_impl.27} parent=0 // pred_region
    _
  $region37: #{encoder_forward_impl.27} parent=0 // pred_fallthru
    _
  // Predicated region
  $region38: #{encoder_forward_impl.27} parent=0 // pred_check
    _
  $region39: #{encoder_forward_impl.27} parent=0 // pred_check_branch
    %319 = sbr.rel (0) target = $region41
  $region40: #{encoder_forward_impl.27} parent=0 // pred_region
    _
  $region41: #{encoder_forward_impl.27} parent=0 // pred_fallthru
    _
  // Predicated region
  $region42: #{encoder_forward_impl.27} parent=0 // pred_check
    _
  $region43: #{encoder_forward_impl.27} parent=0 // pred_check_branch
    %321 = sbr.rel (0) target = $region45
  $region44: #{encoder_forward_impl.27} parent=0 // pred_region
    _
  $region45: #{encoder_forward_impl.27} parent=0 // pred_fallthru
    _
  // Predicated region
  $region46: #{encoder_forward_impl.27} parent=0 // pred_check
    _
  $region47: #{encoder_forward_impl.27} parent=0 // pred_check_branch
    %323 = sbr.rel (0) target = $region49
  $region48: #{encoder_forward_impl.27} parent=0 // pred_region
    _
  $region49: #{encoder_forward_impl.27} parent=0 // pred_fallthru
    _

// kernel: tile.147
$region0: #{tile.147}
  #allocation0 [shape = 's32[1]{0}', space=sflag, size = 0x4, scoped, tag = 'scoped memory for tile.147']
  %s0 = inlined_call_operand.vmem [shape: f32[64], index: 0, kind: input, shape index: {}]
  %s1 = inlined_call_operand.vmem [shape: f32[4,64], index: 1, kind: output, shape index: {}]
  // Predicated region
  $region2: #{tile.147} parent=0 // pred_check
    _
  $region3: #{tile.147} parent=0 // pred_check_branch
    %3 = sbr.rel (0) target = $region5
  $region4: #{tile.147} parent=0 // pred_region
    _
  $region5: #{tile.147} parent=0 // pred_fallthru
    _
  %v4 = vld [vmem:[%s0] ss:$0 sm:$0xff]
  %5 = vst [vmem:[%s1] sm:$0xf] %v4

// kernel: tile.148
$region0: #{tile.148}
  %s0 = inlined_call_operand.vmem [shape: f32[4,64], index: 0, kind: input, shape index: {}]
  %s1 = inlined_call_operand.vmem [shape: f32[1,256], index: 1, kind: output, shape index: {}]
  $region1: #{tile.148} parent=0
    #allocation0 [shape = 'u8[8192]{0}', space=vmem, size = 0x2000, scoped, tag = 'scoped mem for output reshape']
    #allocation1 [shape = 'u8[4096]{0}', space=vmem, size = 0x1000, scoped, tag = 'scoped mem for input reshape']
    %s3 = sshll.u32 1, 4
    %s4 = ssub.s32 %s3, 1
    %v5 = vld [vmem:[%s0] sm:%s4]
    %6 = vst [vmem:[#allocation1] sm:%s4] %v5
    %s7 = smov 3
    %v8 = vld [vmem:[#allocation1] ss:$2 sm:%s7]
    %vm9 = vcmask 523264
    %10 = vst.msk [vmem:[#allocation0] ss:$8 sm:$0x3] %vm9, %v8
    %s11 = scalar_lea.vmem [#allocation1], 1
    %s12 = smov 3
    %v13 = vld [vmem:[%s11] ss:$2 sm:%s12]
    %14 = vrot.lane.b32.xlu0 %v13, 64
    %v15 = vpop.permute.xlu0 %14
    %vm16 = vcmask 1048064
    %17 = vst.msk [vmem:[#allocation0] ss:$8 sm:$0x3] %vm16, %v15
    %s19 = sshll.u32 1, 1
    %s20 = ssub.s32 %s19, 1
    %v22 = vld [vmem:[#allocation0] sm:%s20]
    %s23 = sshll.u32 1, 1
    %s24 = ssub.s32 %s23, 1
    %25 = vst [vmem:[%s1] sm:%s24] %v22
    %s26 = scalar_lea.vmem [#allocation0], 8
    %v27 = vld [vmem:[%s26] sm:%s20]
    %s28 = sshll.u32 1, 1
    %s29 = ssub.s32 %s28, 1
    %s30 = scalar_lea.vmem %s1, 1
    %31 = vst [vmem:[%s30] sm:%s29] %v27

// kernel: encoder_forward_impl.29
$region0: #{encoder_forward_impl.29}
  #allocation0 [shape = 'u32[]', space=smem, size = 0x4, offset = 0x4, fixed_abs, tag = 'smem constant byte address 0x4 - core index']
  #allocation1 [shape = 'u32[144,128]{1,0:T(1,128)}', space=vmem, size = 0x12000, scoped, tag = 'internal scratch']
  #allocation2 [shape = 'f32[2,128]{1,0:T(2,128)}', space=vmem, size = 0x400, scoped, tag = 'scratch operand']
  %s0 = inlined_call_operand.vmem [shape: bf16[2,576], index: 0, kind: input, shape index: {}]
  %s1 = inlined_call_operand.vmem [shape: bf16[576,128], index: 1, kind: input, shape index: {}]
  %s2 = inlined_call_operand.vmem [shape: f32[1,128], index: 2, kind: input, shape index: {}]
  %s3 = inlined_call_operand.vmem [shape: bf16[2,128], index: 3, kind: output, shape index: {0}]
  %s4 = inlined_call_operand.vmem [shape: f32[1,128], index: 4, kind: output, shape index: {1}]
  %s5 = inlined_call_operand.vmem [shape: f32[1,128], index: 5, kind: output, shape index: {2}]
  %6 = xla_tuple %s3, %s4, %s5
  %s7 = sld [smem:[#allocation0]]
  $region50: #{encoder_forward_impl.29} parent=0
    _
  %s9 = ssub.s32 1, %s7
  %s10 = scalar_select 0, %s9, %s7
  // Predicated region
  $region2: #{encoder_forward_impl.29} parent=0 // pred_check
    _
  $region3: #{encoder_forward_impl.29} parent=0 // pred_check_branch
    %12 = sbr.rel (0) target = $region5
  $region4: #{encoder_forward_impl.29} parent=0 // pred_region
    _
  $region5: #{encoder_forward_impl.29} parent=0 // pred_fallthru
    _
  // Predicated region
  $region6: #{encoder_forward_impl.29} parent=0 // pred_check
    _
  $region7: #{encoder_forward_impl.29} parent=0 // pred_check_branch
    %14 = sbr.rel (0) target = $region9
  $region8: #{encoder_forward_impl.29} parent=0 // pred_region
    _
  $region9: #{encoder_forward_impl.29} parent=0 // pred_fallthru
    _
  // Predicated region
  $region10: #{encoder_forward_impl.29} parent=0 // pred_check
    _
  $region11: #{encoder_forward_impl.29} parent=0 // pred_check_branch
    %16 = sbr.rel (0) target = $region13
  $region12: #{encoder_forward_impl.29} parent=0 // pred_region
    _
  $region13: #{encoder_forward_impl.29} parent=0 // pred_fallthru
    _
  %p18 = scmp.eq.s32.totalorder 0, 0
  // Predicated region
  $region14: #{encoder_forward_impl.29} parent=0 // pred_check
    %p19 = pneg %p18
  $region15: #{encoder_forward_impl.29} parent=0 // pred_check_branch
    %21 = sbr.rel (%p19) target = $region17
  $region16: #{encoder_forward_impl.29} parent=0 // pred_region
    %v22 = vld [vmem:[%s2] sm:$0x1]
    %v24 = vlaneseq
    %v25 = vshrl.u32 %v24, 7
    %v26 = vsub.s32 0, %v25
    %v27 = vrot.slane %v22, %v26
    %29 = vst [vmem:[#allocation2] sm:$0x3] %v27
  $region17: #{encoder_forward_impl.29} parent=0 // pred_fallthru
    _
  %v30 = vld [vmem:[#allocation2] sm:$0x3]
  %v31 = vld [vmem:[%s0] sm:$0x1f]
  %v32 = vld [vmem:[%s1] sm:$0xf]
  %v33 = vld [vmem:[%s1 + $0x4] sm:$0xf]
  %v34 = vld [vmem:[%s1 + $0x8] sm:$0xf]
  %v35 = vld [vmem:[%s1 + $0xc] sm:$0xf]
  %v36 = vld [vmem:[%s1 + $0x10] sm:$0xf]
  %v37 = vld [vmem:[%s1 + $0x14] sm:$0xf]
  %v38 = vld [vmem:[%s1 + $0x18] sm:$0xf]
  %v39 = vld [vmem:[%s1 + $0x1c] sm:$0xf]
  %v40 = vld [vmem:[%s1 + $0x20] sm:$0xf]
  %v41 = vld [vmem:[%s1 + $0x24] sm:$0xf]
  %v42 = vld [vmem:[%s1 + $0x28] sm:$0xf]
  %v43 = vld [vmem:[%s1 + $0x2c] sm:$0xf]
  %v44 = vld [vmem:[%s1 + $0x30] sm:$0xf]
  %v45 = vld [vmem:[%s1 + $0x34] sm:$0xf]
  %v46 = vld [vmem:[%s1 + $0x38] sm:$0xf]
  %v47 = vld [vmem:[%s1 + $0x3c] sm:$0xf]
  %v48 = vld [vmem:[%s1 + $0x40] sm:$0xf]
  %v49 = vld [vmem:[%s1 + $0x44] sm:$0xf]
  %v50 = vld [vmem:[%s1 + $0x48] sm:$0xf]
  %v51 = vld [vmem:[%s1 + $0x4c] sm:$0xf]
  %v52 = vld [vmem:[%s1 + $0x50] sm:$0xf]
  %v53 = vld [vmem:[%s1 + $0x54] sm:$0xf]
  %v54 = vld [vmem:[%s1 + $0x58] sm:$0xf]
  %v55 = vld [vmem:[%s1 + $0x5c] sm:$0xf]
  %v56 = vld [vmem:[%s1 + $0x60] sm:$0xf]
  %v57 = vld [vmem:[%s1 + $0x64] sm:$0xf]
  %v58 = vld [vmem:[%s1 + $0x68] sm:$0xf]
  %v59 = vld [vmem:[%s1 + $0x6c] sm:$0xf]
  %v60 = vld [vmem:[%s1 + $0x70] sm:$0xf]
  %v61 = vld [vmem:[%s1 + $0x74] sm:$0xf]
  %v62 = vld [vmem:[%s1 + $0x78] sm:$0xf]
  %v63 = vld [vmem:[%s1 + $0x7c] sm:$0xf]
  %v64 = vld [vmem:[%s1 + $0x80] sm:$0xf]
  %v65 = vld [vmem:[%s1 + $0x84] sm:$0xf]
  %v66 = vld [vmem:[%s1 + $0x88] sm:$0xf]
  %v67 = vld [vmem:[%s1 + $0x8c] sm:$0xf]
  %v68 = vld [vmem:[%s1 + $0x90] sm:$0xf]
  %v69 = vld [vmem:[%s1 + $0x94] sm:$0xf]
  %v70 = vld [vmem:[%s1 + $0x98] sm:$0xf]
  %v71 = vld [vmem:[%s1 + $0x9c] sm:$0xf]
  %v72 = vld [vmem:[%s1 + $0xa0] sm:$0xf]
  %v73 = vld [vmem:[%s1 + $0xa4] sm:$0xf]
  %v74 = vld [vmem:[%s1 + $0xa8] sm:$0xf]
  %v75 = vld [vmem:[%s1 + $0xac] sm:$0xf]
  %v76 = vld [vmem:[%s1 + $0xb0] sm:$0xf]
  %v77 = vld [vmem:[%s1 + $0xb4] sm:$0xf]
  %v78 = vld [vmem:[%s1 + $0xb8] sm:$0xf]
  %v79 = vld [vmem:[%s1 + $0xbc] sm:$0xf]
  %v80 = vld [vmem:[%s1 + $0xc0] sm:$0xf]
  %v81 = vld [vmem:[%s1 + $0xc4] sm:$0xf]
  %v82 = vld [vmem:[%s1 + $0xc8] sm:$0xf]
  %v83 = vld [vmem:[%s1 + $0xcc] sm:$0xf]
  %v84 = vld [vmem:[%s1 + $0xd0] sm:$0xf]
  %v85 = vld [vmem:[%s1 + $0xd4] sm:$0xf]
  %v86 = vld [vmem:[%s1 + $0xd8] sm:$0xf]
  %v87 = vld [vmem:[%s1 + $0xdc] sm:$0xf]
  %v88 = vld [vmem:[%s1 + $0xe0] sm:$0xf]
  %v89 = vld [vmem:[%s1 + $0xe4] sm:$0xf]
  %v90 = vld [vmem:[%s1 + $0xe8] sm:$0xf]
  %v91 = vld [vmem:[%s1 + $0xec] sm:$0xf]
  %v92 = vld [vmem:[%s1 + $0xf0] sm:$0xf]
  %v93 = vld [vmem:[%s1 + $0xf4] sm:$0xf]
  %v94 = vld [vmem:[%s1 + $0xf8] sm:$0xf]
  %v95 = vld [vmem:[%s1 + $0xfc] sm:$0xf]
  %v96 = vld [vmem:[%s1 + $0x100] sm:$0xf]
  %v97 = vld [vmem:[%s1 + $0x104] sm:$0xf]
  %v98 = vld [vmem:[%s1 + $0x108] sm:$0xf]
  %v99 = vld [vmem:[%s1 + $0x10c] sm:$0xf]
  %v100 = vld [vmem:[%s1 + $0x110] sm:$0xf]
  %v101 = vld [vmem:[%s1 + $0x114] sm:$0xf]
  %v102 = vld [vmem:[%s1 + $0x118] sm:$0xf]
  %v103 = vld [vmem:[%s1 + $0x11c] sm:$0xf]
  %v105 = vcombine.high %v31, %v31
  %v107 = vunpack.c.l.s4 1966171168
  %v108 = vunpack.c.0.s8 %v107
  %v109 = vlaneseq
  %v110 = vshrl.u32 %v109, 7
  %v111 = vsub.s32 %v108, %v110
  %v112 = vrot.slane %v31, %v111
  %v114 = vunpack.c.l.s4 1966171168
  %v115 = vunpack.c.0.s8 %v114
  %v116 = vlaneseq
  %v117 = vshrl.u32 %v116, 7
  %v118 = vsub.s32 %v115, %v117
  %v119 = vrot.slane %v105, %v118
  %v120 = vcombine.high %v112, %v112
  %v122 = vunpack.c.l.s4 1966171168
  %v123 = vunpack.c.0.s8 %v122
  %v124 = vlaneseq
  %v125 = vshrl.u32 %v124, 7
  %v126 = vsub.s32 %v123, %v125
  %v127 = vrot.slane %v112, %v126
  %v129 = vunpack.c.l.s4 1966171168
  %v130 = vunpack.c.0.s8 %v129
  %v131 = vlaneseq
  %v132 = vshrl.u32 %v131, 7
  %v133 = vsub.s32 %v130, %v132
  %v134 = vrot.slane %v119, %v133
  %v136 = vunpack.c.l.s4 1966171168
  %v137 = vunpack.c.0.s8 %v136
  %v138 = vlaneseq
  %v139 = vshrl.u32 %v138, 7
  %v140 = vsub.s32 %v137, %v139
  %v141 = vrot.slane %v120, %v140
  %v142 = vcombine.high %v127, %v127
  %v143 = vcombine.high %v141, %v141
  %v220 = vunpack.c.l.b16 %v32
  %v221 = vunpack.c.l.b16 %v33
  %v222 = vunpack.c.l.b16 %v34
  %v223 = vunpack.c.l.b16 %v35
  %v224 = vunpack.c.l.b16 %v36
  %v225 = vunpack.c.l.b16 %v37
  %v226 = vunpack.c.l.b16 %v38
  %v227 = vunpack.c.l.b16 %v39
  %v228 = vunpack.c.l.b16 %v40
  %v229 = vunpack.c.l.b16 %v41
  %v230 = vunpack.c.l.b16 %v42
  %v231 = vunpack.c.l.b16 %v43
  %v232 = vunpack.c.l.b16 %v44
  %v233 = vunpack.c.l.b16 %v45
  %v234 = vunpack.c.l.b16 %v46
  %v235 = vunpack.c.l.b16 %v47
  %v236 = vunpack.c.l.b16 %v48
  %v237 = vunpack.c.l.b16 %v49
  %v238 = vunpack.c.l.b16 %v50
  %v239 = vunpack.c.l.b16 %v51
  %v240 = vunpack.c.l.b16 %v52
  %v241 = vunpack.c.l.b16 %v53
  %v242 = vunpack.c.l.b16 %v54
  %v243 = vunpack.c.l.b16 %v55
  %v244 = vunpack.c.l.b16 %v56
  %v245 = vunpack.c.l.b16 %v57
  %v246 = vunpack.c.l.b16 %v58
  %v247 = vunpack.c.l.b16 %v59
  %v248 = vunpack.c.l.b16 %v60
  %v249 = vunpack.c.l.b16 %v61
  %v250 = vunpack.c.l.b16 %v62
  %v251 = vunpack.c.l.b16 %v63
  %v252 = vunpack.c.l.b16 %v64
  %v253 = vunpack.c.l.b16 %v65
  %v254 = vunpack.c.l.b16 %v66
  %v255 = vunpack.c.l.b16 %v67
  %v256 = vunpack.c.l.b16 %v68
  %v257 = vunpack.c.l.b16 %v69
  %v258 = vunpack.c.l.b16 %v70
  %v259 = vunpack.c.l.b16 %v71
  %v260 = vunpack.c.l.b16 %v72
  %v261 = vunpack.c.l.b16 %v73
  %v262 = vunpack.c.l.b16 %v74
  %v263 = vunpack.c.l.b16 %v75
  %v264 = vunpack.c.l.b16 %v76
  %v265 = vunpack.c.l.b16 %v77
  %v266 = vunpack.c.l.b16 %v78
  %v267 = vunpack.c.l.b16 %v79
  %v268 = vunpack.c.l.b16 %v80
  %v269 = vunpack.c.l.b16 %v81
  %v270 = vunpack.c.l.b16 %v82
  %v271 = vunpack.c.l.b16 %v83
  %v272 = vunpack.c.l.b16 %v84
  %v273 = vunpack.c.l.b16 %v85
  %v274 = vunpack.c.l.b16 %v86
  %v275 = vunpack.c.l.b16 %v87
  %v276 = vunpack.c.l.b16 %v88
  %v277 = vunpack.c.l.b16 %v89
  %v278 = vunpack.c.l.b16 %v90
  %v279 = vunpack.c.l.b16 %v91
  %v280 = vunpack.c.l.b16 %v92
  %v281 = vunpack.c.l.b16 %v93
  %v282 = vunpack.c.l.b16 %v94
  %v283 = vunpack.c.l.b16 %v95
  %v284 = vunpack.c.l.b16 %v96
  %v285 = vunpack.c.l.b16 %v97
  %v286 = vunpack.c.l.b16 %v98
  %v287 = vunpack.c.l.b16 %v99
  %v288 = vunpack.c.l.b16 %v100
  %v289 = vunpack.c.l.b16 %v101
  %v290 = vunpack.c.l.b16 %v102
  %v291 = vunpack.c.l.b16 %v103
  %v292 = vpack.c.b16 %v221, %v220
  %v293 = vpack.c.b16 %v223, %v222
  %v294 = vpack.c.b16 %v225, %v224
  %v295 = vpack.c.b16 %v227, %v226
  %v296 = vpack.c.b16 %v229, %v228
  %v297 = vpack.c.b16 %v231, %v230
  %v298 = vpack.c.b16 %v233, %v232
  %v299 = vpack.c.b16 %v235, %v234
  %v300 = vpack.c.b16 %v237, %v236
  %v301 = vpack.c.b16 %v239, %v238
  %v302 = vpack.c.b16 %v241, %v240
  %v303 = vpack.c.b16 %v243, %v242
  %v304 = vpack.c.b16 %v245, %v244
  %v305 = vpack.c.b16 %v247, %v246
  %v306 = vpack.c.b16 %v249, %v248
  %v307 = vpack.c.b16 %v251, %v250
  %v308 = vpack.c.b16 %v253, %v252
  %v309 = vpack.c.b16 %v255, %v254
  %v310 = vpack.c.b16 %v257, %v256
  %v311 = vpack.c.b16 %v259, %v258
  %v312 = vpack.c.b16 %v261, %v260
  %v313 = vpack.c.b16 %v263, %v262
  %v314 = vpack.c.b16 %v265, %v264
  %v315 = vpack.c.b16 %v267, %v266
  %v316 = vpack.c.b16 %v269, %v268
  %v317 = vpack.c.b16 %v271, %v270
  %v318 = vpack.c.b16 %v273, %v272
  %v319 = vpack.c.b16 %v275, %v274
  %v320 = vpack.c.b16 %v277, %v276
  %v321 = vpack.c.b16 %v279, %v278
  %v322 = vpack.c.b16 %v281, %v280
  %v323 = vpack.c.b16 %v283, %v282
  %v324 = vpack.c.b16 %v285, %v284
  %v325 = vpack.c.b16 %v287, %v286
  %v326 = vpack.c.b16 %v289, %v288
  %v327 = vpack.c.b16 %v291, %v290
  %vm364 = vcmask 523264
  %v366 = vsel %vm364, %v134, 0
  %368 = vmatprep.subr.bf16.mxu0 0
  %369 = vmatpush1.bf16.msra.mxu0 %v299
  %370 = vmatprep.subr.bf16.mxu0 0
  %371 = vmatpush1.bf16.msra.mxu0 %v298
  %372 = vmatprep.subr.bf16.mxu0 0
  %373 = vmatpush1.bf16.msra.mxu0 %v297
  %374 = vmatprep.subr.bf16.mxu0 0
  %375 = vmatpush1.bf16.msra.mxu0 %v296
  %376 = vmatprep.subr.bf16.mxu0 0
  %377 = vmatpush1.bf16.msra.mxu0 %v295
  %378 = vmatprep.subr.bf16.mxu0 0
  %379 = vmatpush1.bf16.msra.mxu0 %v294
  %380 = vmatprep.subr.bf16.mxu0 0
  %381 = vmatpush1.bf16.msra.mxu0 %v293
  %382 = vmatprep.subr.bf16.mxu0 0
  %383 = vmatpush1.bf16.msra.mxu0 %v292
  %384 = vmatprep.subr.bf16.mxu0 0
  %385 = vmatpush2.bf16.msra.mxu0 %v307
  %386 = vmatprep.subr.bf16.mxu0 0
  %387 = vmatpush2.bf16.msra.mxu0 %v306
  %388 = vmatprep.subr.bf16.mxu0 0
  %389 = vmatpush2.bf16.msra.mxu0 %v305
  %390 = vmatprep.subr.bf16.mxu0 0
  %391 = vmatpush2.bf16.msra.mxu0 %v304
  %392 = vmatprep.subr.bf16.mxu0 0
  %393 = vmatpush2.bf16.msra.mxu0 %v303
  %394 = vmatprep.subr.bf16.mxu0 0
  %395 = vmatpush2.bf16.msra.mxu0 %v302
  %396 = vmatprep.subr.bf16.mxu0 0
  %397 = vmatpush2.bf16.msra.mxu0 %v301
  %398 = vmatprep.subr.bf16.mxu0 0
  %399 = vmatpush2.bf16.msra.mxu0 %v300
  %400 = vmatprep.mubr.bf16.mxu0 %v141
  %401 = vmatmul.mubr.bf16.gmra.mxu0 %v127
  %v402 = vpop.f32.mrf.mxu0
  %v403 = vadd.f32 0.0, %v402
  %v404 = vpop.f32.mrf.mxu0
  %v405 = vpop.f32.mrf.mxu0
  %v406 = vpop.f32.mrf.mxu0
  %407 = vdwg.mxu0
  %408 = vmatprep.subr.bf16.mxu0 0
  %409 = vmatpush1.bf16.msra.mxu0 %v315
  %410 = vmatprep.subr.bf16.mxu0 0
  %411 = vmatpush1.bf16.msra.mxu0 %v314
  %412 = vmatprep.subr.bf16.mxu0 0
  %413 = vmatpush1.bf16.msra.mxu0 %v313
  %414 = vmatprep.subr.bf16.mxu0 0
  %415 = vmatpush1.bf16.msra.mxu0 %v312
  %416 = vmatprep.subr.bf16.mxu0 0
  %417 = vmatpush1.bf16.msra.mxu0 %v311
  %418 = vmatprep.subr.bf16.mxu0 0
  %419 = vmatpush1.bf16.msra.mxu0 %v310
  %420 = vmatprep.subr.bf16.mxu0 0
  %421 = vmatpush1.bf16.msra.mxu0 %v309
  %422 = vmatprep.subr.bf16.mxu0 0
  %423 = vmatpush1.bf16.msra.mxu0 %v308
  %424 = vmatprep.subr.bf16.mxu0 0
  %425 = vmatpush2.bf16.msra.mxu0 %v323
  %426 = vmatprep.subr.bf16.mxu0 0
  %427 = vmatpush2.bf16.msra.mxu0 %v322
  %428 = vmatprep.subr.bf16.mxu0 0
  %429 = vmatpush2.bf16.msra.mxu0 %v321
  %430 = vmatprep.subr.bf16.mxu0 0
  %431 = vmatpush2.bf16.msra.mxu0 %v320
  %432 = vmatprep.subr.bf16.mxu0 0
  %433 = vmatpush2.bf16.msra.mxu0 %v319
  %434 = vmatprep.subr.bf16.mxu0 0
  %435 = vmatpush2.bf16.msra.mxu0 %v318
  %436 = vmatprep.subr.bf16.mxu0 0
  %437 = vmatpush2.bf16.msra.mxu0 %v317
  %438 = vmatprep.subr.bf16.mxu0 0
  %439 = vmatpush2.bf16.msra.mxu0 %v316
  %440 = vmatprep.mubr.bf16.mxu0 %v143
  %441 = vmatmul.mubr.bf16.gmra.mxu0 %v142
  %v442 = vpop.f32.mrf.mxu0
  %v443 = vadd.f32 %v403, %v442
  %v444 = vpop.f32.mrf.mxu0
  %v445 = vpop.f32.mrf.mxu0
  %v446 = vpop.f32.mrf.mxu0
  %447 = vdwg.mxu0
  %448 = vmatprep.subr.bf16.mxu0 0
  %449 = vmatpush1.bf16.msra.mxu0 0
  %450 = vmatprep.subr.bf16.mxu0 0
  %451 = vmatpush1.bf16.msra.mxu0 0
  %452 = vmatprep.subr.bf16.mxu0 0
  %453 = vmatpush1.bf16.msra.mxu0 0
  %454 = vmatprep.subr.bf16.mxu0 0
  %455 = vmatpush1.bf16.msra.mxu0 0
  %456 = vmatprep.subr.bf16.mxu0 0
  %457 = vmatpush1.bf16.msra.mxu0 %v327
  %458 = vmatprep.subr.bf16.mxu0 0
  %459 = vmatpush1.bf16.msra.mxu0 %v326
  %460 = vmatprep.subr.bf16.mxu0 0
  %461 = vmatpush1.bf16.msra.mxu0 %v325
  %462 = vmatprep.subr.bf16.mxu0 0
  %463 = vmatpush1.bf16.msra.mxu0 %v324
  %464 = vmatprep.subr.bf16.mxu0 0
  %465 = vmatpush2.bf16.msra.mxu0 0
  %466 = vmatprep.subr.bf16.mxu0 0
  %467 = vmatpush2.bf16.msra.mxu0 0
  %468 = vmatprep.subr.bf16.mxu0 0
  %469 = vmatpush2.bf16.msra.mxu0 0
  %470 = vmatprep.subr.bf16.mxu0 0
  %471 = vmatpush2.bf16.msra.mxu0 0
  %472 = vmatprep.subr.bf16.mxu0 0
  %473 = vmatpush2.bf16.msra.mxu0 0
  %474 = vmatprep.subr.bf16.mxu0 0
  %475 = vmatpush2.bf16.msra.mxu0 0
  %476 = vmatprep.subr.bf16.mxu0 0
  %477 = vmatpush2.bf16.msra.mxu0 0
  %478 = vmatprep.subr.bf16.mxu0 0
  %479 = vmatpush2.bf16.msra.mxu0 0
  %480 = vmatprep.mubr.bf16.mxu0 0
  %481 = vmatmul.mubr.bf16.gmra.mxu0 %v366
  %v482 = vpop.f32.mrf.mxu0
  %v483 = vadd.f32 %v443, %v482
  %v484 = vpop.f32.mrf.mxu0
  %v485 = vpop.f32.mrf.mxu0
  %v486 = vpop.f32.mrf.mxu0
  %487 = vdwg.mxu0
  %v488 = vadd.f32 %v30, %v483
  %489 = vst [vmem:[#allocation2] sm:$0x3] %v488
  %p490 = scmp.eq.s32.totalorder 0, 0
  %p491 = pnand %p490, %p18
  %p492 = pneg %p491
  // Predicated region
  $region18: #{encoder_forward_impl.29} parent=0 // pred_check
    _
  $region19: #{encoder_forward_impl.29} parent=0 // pred_check_branch
    %494 = sbr.rel (%p491) target = $region21
  $region20: #{encoder_forward_impl.29} parent=0 // pred_region
    %495 = vst [vmem:[%s4] sm:$0x1] 0.0
    %496 = vst [vmem:[%s5] sm:$0x1] 0.0
  $region21: #{encoder_forward_impl.29} parent=0 // pred_fallthru
    _
  // Predicated region
  $region22: #{encoder_forward_impl.29} parent=0 // pred_check
    %p497 = pneg %p18
  $region23: #{encoder_forward_impl.29} parent=0 // pred_check_branch
    %499 = sbr.rel (%p497) target = $region25
  $region24: #{encoder_forward_impl.29} parent=0 // pred_region
    %v500 = vld [vmem:[#allocation2] sm:$0x3]
    %v501 = vpack.c.bf16 %v500, %v500
    %502 = vst [vmem:[%s3] sm:$0x1] %v501
    %v503 = vld [vmem:[%s4] sm:$0x1]
    %vm504 = vcmask 1041408
    %v505 = vsel %vm504, %v500, 0.0
    %v506 = vrot.slane %v505, 4
    %v507 = vadd.f32 %v505, %v506
    %v508 = vrot.slane %v507, 2
    %v509 = vadd.f32 %v507, %v508
    %v510 = vrot.slane %v509, 1
    %v511 = vadd.f32 %v509, %v510
    %v512 = vadd.f32 %v503, %v511
    %513 = vst [vmem:[%s4] sm:$0x1] %v512
    %v514 = vld [vmem:[%s5] sm:$0x1]
    %v515 = vmul.f32 %v500, %v500
    %v516 = vsel %vm504, %v515, 0.0
    %v517 = vrot.slane %v516, 4
    %v518 = vadd.f32 %v516, %v517
    %v519 = vrot.slane %v518, 2
    %v520 = vadd.f32 %v518, %v519
    %v521 = vrot.slane %v520, 1
    %v522 = vadd.f32 %v520, %v521
    %v523 = vadd.f32 %v514, %v522
    %524 = vst [vmem:[%s5] sm:$0x1] %v523
  $region25: #{encoder_forward_impl.29} parent=0 // pred_fallthru
    _
  // Predicated region
  $region26: #{encoder_forward_impl.29} parent=0 // pred_check
    _
  $region27: #{encoder_forward_impl.29} parent=0 // pred_check_branch
    %526 = sbr.rel (0) target = $region29
  $region28: #{encoder_forward_impl.29} parent=0 // pred_region
    _
  $region29: #{encoder_forward_impl.29} parent=0 // pred_fallthru
    _
  // Predicated region
  $region30: #{encoder_forward_impl.29} parent=0 // pred_check
    _
  $region31: #{encoder_forward_impl.29} parent=0 // pred_check_branch
    %528 = sbr.rel (0) target = $region33
  $region32: #{encoder_forward_impl.29} parent=0 // pred_region
    _
  $region33: #{encoder_forward_impl.29} parent=0 // pred_fallthru
    _
  // Predicated region
  $region34: #{encoder_forward_impl.29} parent=0 // pred_check
    _
  $region35: #{encoder_forward_impl.29} parent=0 // pred_check_branch
    %530 = sbr.rel (0) target = $region37
  $region36: #{encoder_forward_impl.29} parent=0 // pred_region
    _
  $region37: #{encoder_forward_impl.29} parent=0 // pred_fallthru
    _
  // Predicated region
  $region38: #{encoder_forward_impl.29} parent=0 // pred_check
    _
  $region39: #{encoder_forward_impl.29} parent=0 // pred_check_branch
    %532 = sbr.rel (0) target = $region41
  $region40: #{encoder_forward_impl.29} parent=0 // pred_region
    _
  $region41: #{encoder_forward_impl.29} parent=0 // pred_fallthru
    _
  // Predicated region
  $region42: #{encoder_forward_impl.29} parent=0 // pred_check
    _
  $region43: #{encoder_forward_impl.29} parent=0 // pred_check_branch
    %534 = sbr.rel (0) target = $region45
  $region44: #{encoder_forward_impl.29} parent=0 // pred_region
    _
  $region45: #{encoder_forward_impl.29} parent=0 // pred_fallthru
    _
  // Predicated region
  $region46: #{encoder_forward_impl.29} parent=0 // pred_check
    _
  $region47: #{encoder_forward_impl.29} parent=0 // pred_check_branch
    %536 = sbr.rel (0) target = $region49
  $region48: #{encoder_forward_impl.29} parent=0 // pred_region
    _
  $region49: #{encoder_forward_impl.29} parent=0 // pred_fallthru
    _

// kernel: encoder_forward_impl.30
$region0: #{encoder_forward_impl.30}
  #allocation0 [shape = 'u32[]', space=smem, size = 0x4, offset = 0x4, fixed_abs, tag = 'smem constant byte address 0x4 - core index']
  #allocation1 [shape = 'u32[144,128]{1,0:T(1,128)}', space=vmem, size = 0x12000, scoped, tag = 'internal scratch']
  %s0 = inlined_call_operand.vmem [shape: bf16[2,128], index: 0, kind: input, shape index: {}]
  %s1 = inlined_call_operand.vmem [shape: f32[1,128], index: 1, kind: input, shape index: {}]
  %s2 = inlined_call_operand.vmem [shape: f32[1,128], index: 2, kind: input, shape index: {}]
  %s3 = inlined_call_operand.vmem [shape: bf16[2,128], index: 3, kind: output, shape index: {}]
  %s4 = sld [smem:[#allocation0]]
  $region22: #{encoder_forward_impl.30} parent=0
    _
  %s6 = ssub.s32 1, %s4
  %s7 = scalar_select 0, %s6, %s4
  // Predicated region
  $region2: #{encoder_forward_impl.30} parent=0 // pred_check
    _
  $region3: #{encoder_forward_impl.30} parent=0 // pred_check_branch
    %9 = sbr.rel (0) target = $region5
  $region4: #{encoder_forward_impl.30} parent=0 // pred_region
    _
  $region5: #{encoder_forward_impl.30} parent=0 // pred_fallthru
    _
  // Predicated region
  $region6: #{encoder_forward_impl.30} parent=0 // pred_check
    _
  $region7: #{encoder_forward_impl.30} parent=0 // pred_check_branch
    %11 = sbr.rel (0) target = $region9
  $region8: #{encoder_forward_impl.30} parent=0 // pred_region
    _
  $region9: #{encoder_forward_impl.30} parent=0 // pred_fallthru
    _
  // Predicated region
  $region10: #{encoder_forward_impl.30} parent=0 // pred_check
    _
  $region11: #{encoder_forward_impl.30} parent=0 // pred_check_branch
    %13 = sbr.rel (0) target = $region13
  $region12: #{encoder_forward_impl.30} parent=0 // pred_region
    _
  $region13: #{encoder_forward_impl.30} parent=0 // pred_fallthru
    _
  %v14 = vld [vmem:[%s0] sm:$0x1]
  %v15 = vunpack.c.l.bf16 %v14
  %v16 = vld [vmem:[%s1] sm:$0x1]
  %v18 = vlaneseq
  %v19 = vshrl.u32 %v18, 7
  %v20 = vsub.s32 0, %v19
  %v21 = vrot.slane %v16, %v20
  %v23 = vmul.f32 %v15, %v21
  %v24 = vld [vmem:[%s2] sm:$0x1]
  %v26 = vlaneseq
  %v27 = vshrl.u32 %v26, 7
  %v28 = vsub.s32 0, %v27
  %v29 = vrot.slane %v24, %v28
  %v31 = vadd.f32 %v23, %v29
  %v32 = vmax.f32 %v31, 0.0
  %v33 = vpack.c.bf16 %v32, %v32
  %34 = vst [vmem:[%s3] sm:$0x1] %v33
  // Predicated region
  $region14: #{encoder_forward_impl.30} parent=0 // pred_check
    _
  $region15: #{encoder_forward_impl.30} parent=0 // pred_check_branch
    %36 = sbr.rel (0) target = $region17
  $region16: #{encoder_forward_impl.30} parent=0 // pred_region
    _
  $region17: #{encoder_forward_impl.30} parent=0 // pred_fallthru
    _
  // Predicated region
  $region18: #{encoder_forward_impl.30} parent=0 // pred_check
    _
  $region19: #{encoder_forward_impl.30} parent=0 // pred_check_branch
    %38 = sbr.rel (0) target = $region21
  $region20: #{encoder_forward_impl.30} parent=0 // pred_region
    _
  $region21: #{encoder_forward_impl.30} parent=0 // pred_fallthru
    _

// kernel: encoder_forward_impl.31
$region0: #{encoder_forward_impl.31}
  #allocation0 [shape = 'u32[]', space=smem, size = 0x4, offset = 0x4, fixed_abs, tag = 'smem constant byte address 0x4 - core index']
  #allocation1 [shape = 'u32[144,128]{1,0:T(1,128)}', space=vmem, size = 0x12000, scoped, tag = 'internal scratch']
  #allocation2 [shape = 'f32[2,256]{1,0:T(2,128)}', space=vmem, size = 0x800, scoped, tag = 'scratch operand']
  %s0 = inlined_call_operand.vmem [shape: bf16[2,512], index: 0, kind: input, shape index: {}]
  %s1 = inlined_call_operand.vmem [shape: bf16[512,256], index: 1, kind: input, shape index: {}]
  %s2 = inlined_call_operand.vmem [shape: f32[1,256], index: 2, kind: input, shape index: {}]
  %s3 = inlined_call_operand.vmem [shape: bf16[2,256], index: 3, kind: output, shape index: {0}]
  %s4 = inlined_call_operand.vmem [shape: f32[1,256], index: 4, kind: output, shape index: {1}]
  %s5 = inlined_call_operand.vmem [shape: f32[1,256], index: 5, kind: output, shape index: {2}]
  %6 = xla_tuple %s3, %s4, %s5
  %s7 = sld [smem:[#allocation0]]
  $region50: #{encoder_forward_impl.31} parent=0
    _
  %s9 = ssub.s32 1, %s7
  %s10 = scalar_select 0, %s9, %s7
  // Predicated region
  $region2: #{encoder_forward_impl.31} parent=0 // pred_check
    _
  $region3: #{encoder_forward_impl.31} parent=0 // pred_check_branch
    %12 = sbr.rel (0) target = $region5
  $region4: #{encoder_forward_impl.31} parent=0 // pred_region
    _
  $region5: #{encoder_forward_impl.31} parent=0 // pred_fallthru
    _
  // Predicated region
  $region6: #{encoder_forward_impl.31} parent=0 // pred_check
    _
  $region7: #{encoder_forward_impl.31} parent=0 // pred_check_branch
    %14 = sbr.rel (0) target = $region9
  $region8: #{encoder_forward_impl.31} parent=0 // pred_region
    _
  $region9: #{encoder_forward_impl.31} parent=0 // pred_fallthru
    _
  // Predicated region
  $region10: #{encoder_forward_impl.31} parent=0 // pred_check
    _
  $region11: #{encoder_forward_impl.31} parent=0 // pred_check_branch
    %16 = sbr.rel (0) target = $region13
  $region12: #{encoder_forward_impl.31} parent=0 // pred_region
    _
  $region13: #{encoder_forward_impl.31} parent=0 // pred_fallthru
    _
  %p17 = scmp.eq.s32.totalorder 0, 0
  // Predicated region
  $region14: #{encoder_forward_impl.31} parent=0 // pred_check
    %p18 = pneg %p17
  $region15: #{encoder_forward_impl.31} parent=0 // pred_check_branch
    %20 = sbr.rel (%p18) target = $region17
  $region16: #{encoder_forward_impl.31} parent=0 // pred_region
    %v21 = vld [vmem:[%s2] sm:$0x3]
    %v23 = vlaneseq
    %v24 = vshrl.u32 %v23, 7
    %v25 = vsub.s32 0, %v24
    %v26 = vrot.slane %v21, %v25
    %v27 = vlaneseq
    %v28 = vshrl.u32 %v27, 7
    %v29 = vsub.s32 1, %v28
    %v30 = vrot.slane %v21, %v29
    %v31 = vcombine.low %v26, %v30
    %v33 = vunpack.c.l.s4 1983009808
    %v34 = vunpack.c.0.s8 %v33
    %v35 = vlaneseq
    %v36 = vshrl.u32 %v35, 7
    %v37 = vsub.s32 %v34, %v36
    %v38 = vrot.slane %v31, %v37
    %40 = vst [vmem:[#allocation2] sm:$0xf] %v38
  $region17: #{encoder_forward_impl.31} parent=0 // pred_fallthru
    _
  %v41 = vld [vmem:[#allocation2] sm:$0xf]
  %v42 = vld [vmem:[%s0] sm:$0xf]
  %v43 = vld [vmem:[%s1] sm:$0xff]
  %v44 = vld [vmem:[%s1 + $0x8] sm:$0xff]
  %v45 = vld [vmem:[%s1 + $0x10] sm:$0xff]
  %v46 = vld [vmem:[%s1 + $0x18] sm:$0xff]
  %v47 = vld [vmem:[%s1 + $0x20] sm:$0xff]
  %v48 = vld [vmem:[%s1 + $0x28] sm:$0xff]
  %v49 = vld [vmem:[%s1 + $0x30] sm:$0xff]
  %v50 = vld [vmem:[%s1 + $0x38] sm:$0xff]
  %v51 = vld [vmem:[%s1 + $0x40] sm:$0xff]
  %v52 = vld [vmem:[%s1 + $0x48] sm:$0xff]
  %v53 = vld [vmem:[%s1 + $0x50] sm:$0xff]
  %v54 = vld [vmem:[%s1 + $0x58] sm:$0xff]
  %v55 = vld [vmem:[%s1 + $0x60] sm:$0xff]
  %v56 = vld [vmem:[%s1 + $0x68] sm:$0xff]
  %v57 = vld [vmem:[%s1 + $0x70] sm:$0xff]
  %v58 = vld [vmem:[%s1 + $0x78] sm:$0xff]
  %v59 = vld [vmem:[%s1 + $0x80] sm:$0xff]
  %v60 = vld [vmem:[%s1 + $0x88] sm:$0xff]
  %v61 = vld [vmem:[%s1 + $0x90] sm:$0xff]
  %v62 = vld [vmem:[%s1 + $0x98] sm:$0xff]
  %v63 = vld [vmem:[%s1 + $0xa0] sm:$0xff]
  %v64 = vld [vmem:[%s1 + $0xa8] sm:$0xff]
  %v65 = vld [vmem:[%s1 + $0xb0] sm:$0xff]
  %v66 = vld [vmem:[%s1 + $0xb8] sm:$0xff]
  %v67 = vld [vmem:[%s1 + $0xc0] sm:$0xff]
  %v68 = vld [vmem:[%s1 + $0xc8] sm:$0xff]
  %v69 = vld [vmem:[%s1 + $0xd0] sm:$0xff]
  %v70 = vld [vmem:[%s1 + $0xd8] sm:$0xff]
  %v71 = vld [vmem:[%s1 + $0xe0] sm:$0xff]
  %v72 = vld [vmem:[%s1 + $0xe8] sm:$0xff]
  %v73 = vld [vmem:[%s1 + $0xf0] sm:$0xff]
  %v74 = vld [vmem:[%s1 + $0xf8] sm:$0xff]
  %v75 = vld [vmem:[%s1 + $0x100] sm:$0xff]
  %v76 = vld [vmem:[%s1 + $0x108] sm:$0xff]
  %v77 = vld [vmem:[%s1 + $0x110] sm:$0xff]
  %v78 = vld [vmem:[%s1 + $0x118] sm:$0xff]
  %v79 = vld [vmem:[%s1 + $0x120] sm:$0xff]
  %v80 = vld [vmem:[%s1 + $0x128] sm:$0xff]
  %v81 = vld [vmem:[%s1 + $0x130] sm:$0xff]
  %v82 = vld [vmem:[%s1 + $0x138] sm:$0xff]
  %v83 = vld [vmem:[%s1 + $0x140] sm:$0xff]
  %v84 = vld [vmem:[%s1 + $0x148] sm:$0xff]
  %v85 = vld [vmem:[%s1 + $0x150] sm:$0xff]
  %v86 = vld [vmem:[%s1 + $0x158] sm:$0xff]
  %v87 = vld [vmem:[%s1 + $0x160] sm:$0xff]
  %v88 = vld [vmem:[%s1 + $0x168] sm:$0xff]
  %v89 = vld [vmem:[%s1 + $0x170] sm:$0xff]
  %v90 = vld [vmem:[%s1 + $0x178] sm:$0xff]
  %v91 = vld [vmem:[%s1 + $0x180] sm:$0xff]
  %v92 = vld [vmem:[%s1 + $0x188] sm:$0xff]
  %v93 = vld [vmem:[%s1 + $0x190] sm:$0xff]
  %v94 = vld [vmem:[%s1 + $0x198] sm:$0xff]
  %v95 = vld [vmem:[%s1 + $0x1a0] sm:$0xff]
  %v96 = vld [vmem:[%s1 + $0x1a8] sm:$0xff]
  %v97 = vld [vmem:[%s1 + $0x1b0] sm:$0xff]
  %v98 = vld [vmem:[%s1 + $0x1b8] sm:$0xff]
  %v99 = vld [vmem:[%s1 + $0x1c0] sm:$0xff]
  %v100 = vld [vmem:[%s1 + $0x1c8] sm:$0xff]
  %v101 = vld [vmem:[%s1 + $0x1d0] sm:$0xff]
  %v102 = vld [vmem:[%s1 + $0x1d8] sm:$0xff]
  %v103 = vld [vmem:[%s1 + $0x1e0] sm:$0xff]
  %v104 = vld [vmem:[%s1 + $0x1e8] sm:$0xff]
  %v105 = vld [vmem:[%s1 + $0x1f0] sm:$0xff]
  %v106 = vld [vmem:[%s1 + $0x1f8] sm:$0xff]
  %v109 = vunpack.c.l.s4 1966171168
  %v110 = vunpack.c.0.s8 %v109
  %v111 = vlaneseq
  %v112 = vshrl.u32 %v111, 7
  %v113 = vsub.s32 %v110, %v112
  %v114 = vrot.slane %v42, %v113
  %v115 = vcombine.high %v114, %v114
  %v117 = vunpack.c.l.s4 1966171168
  %v118 = vunpack.c.0.s8 %v117
  %v119 = vlaneseq
  %v120 = vshrl.u32 %v119, 7
  %v121 = vsub.s32 %v118, %v120
  %v122 = vrot.slane %v114, %v121
  %v124 = vunpack.c.l.s4 1966171168
  %v125 = vunpack.c.0.s8 %v124
  %v126 = vlaneseq
  %v127 = vshrl.u32 %v126, 7
  %v128 = vsub.s32 %v125, %v127
  %v129 = vrot.slane %v115, %v128
  %v130 = vcombine.high %v122, %v122
  %v131 = vcombine.high %v129, %v129
  %v200 = vunpack.c.l.b16 %v43
  %v201 = vunpack.c.h.b16 %v43
  %v202 = vunpack.c.l.b16 %v44
  %v203 = vunpack.c.h.b16 %v44
  %v204 = vunpack.c.l.b16 %v45
  %v205 = vunpack.c.h.b16 %v45
  %v206 = vunpack.c.l.b16 %v46
  %v207 = vunpack.c.h.b16 %v46
  %v208 = vunpack.c.l.b16 %v47
  %v209 = vunpack.c.h.b16 %v47
  %v210 = vunpack.c.l.b16 %v48
  %v211 = vunpack.c.h.b16 %v48
  %v212 = vunpack.c.l.b16 %v49
  %v213 = vunpack.c.h.b16 %v49
  %v214 = vunpack.c.l.b16 %v50
  %v215 = vunpack.c.h.b16 %v50
  %v216 = vunpack.c.l.b16 %v51
  %v217 = vunpack.c.h.b16 %v51
  %v218 = vunpack.c.l.b16 %v52
  %v219 = vunpack.c.h.b16 %v52
  %v220 = vunpack.c.l.b16 %v53
  %v221 = vunpack.c.h.b16 %v53
  %v222 = vunpack.c.l.b16 %v54
  %v223 = vunpack.c.h.b16 %v54
  %v224 = vunpack.c.l.b16 %v55
  %v225 = vunpack.c.h.b16 %v55
  %v226 = vunpack.c.l.b16 %v56
  %v227 = vunpack.c.h.b16 %v56
  %v228 = vunpack.c.l.b16 %v57
  %v229 = vunpack.c.h.b16 %v57
  %v230 = vunpack.c.l.b16 %v58
  %v231 = vunpack.c.h.b16 %v58
  %v232 = vunpack.c.l.b16 %v59
  %v233 = vunpack.c.h.b16 %v59
  %v234 = vunpack.c.l.b16 %v60
  %v235 = vunpack.c.h.b16 %v60
  %v236 = vunpack.c.l.b16 %v61
  %v237 = vunpack.c.h.b16 %v61
  %v238 = vunpack.c.l.b16 %v62
  %v239 = vunpack.c.h.b16 %v62
  %v240 = vunpack.c.l.b16 %v63
  %v241 = vunpack.c.h.b16 %v63
  %v242 = vunpack.c.l.b16 %v64
  %v243 = vunpack.c.h.b16 %v64
  %v244 = vunpack.c.l.b16 %v65
  %v245 = vunpack.c.h.b16 %v65
  %v246 = vunpack.c.l.b16 %v66
  %v247 = vunpack.c.h.b16 %v66
  %v248 = vunpack.c.l.b16 %v67
  %v249 = vunpack.c.h.b16 %v67
  %v250 = vunpack.c.l.b16 %v68
  %v251 = vunpack.c.h.b16 %v68
  %v252 = vunpack.c.l.b16 %v69
  %v253 = vunpack.c.h.b16 %v69
  %v254 = vunpack.c.l.b16 %v70
  %v255 = vunpack.c.h.b16 %v70
  %v256 = vunpack.c.l.b16 %v71
  %v257 = vunpack.c.h.b16 %v71
  %v258 = vunpack.c.l.b16 %v72
  %v259 = vunpack.c.h.b16 %v72
  %v260 = vunpack.c.l.b16 %v73
  %v261 = vunpack.c.h.b16 %v73
  %v262 = vunpack.c.l.b16 %v74
  %v263 = vunpack.c.h.b16 %v74
  %v264 = vunpack.c.l.b16 %v75
  %v265 = vunpack.c.h.b16 %v75
  %v266 = vunpack.c.l.b16 %v76
  %v267 = vunpack.c.h.b16 %v76
  %v268 = vunpack.c.l.b16 %v77
  %v269 = vunpack.c.h.b16 %v77
  %v270 = vunpack.c.l.b16 %v78
  %v271 = vunpack.c.h.b16 %v78
  %v272 = vunpack.c.l.b16 %v79
  %v273 = vunpack.c.h.b16 %v79
  %v274 = vunpack.c.l.b16 %v80
  %v275 = vunpack.c.h.b16 %v80
  %v276 = vunpack.c.l.b16 %v81
  %v277 = vunpack.c.h.b16 %v81
  %v278 = vunpack.c.l.b16 %v82
  %v279 = vunpack.c.h.b16 %v82
  %v280 = vunpack.c.l.b16 %v83
  %v281 = vunpack.c.h.b16 %v83
  %v282 = vunpack.c.l.b16 %v84
  %v283 = vunpack.c.h.b16 %v84
  %v284 = vunpack.c.l.b16 %v85
  %v285 = vunpack.c.h.b16 %v85
  %v286 = vunpack.c.l.b16 %v86
  %v287 = vunpack.c.h.b16 %v86
  %v288 = vunpack.c.l.b16 %v87
  %v289 = vunpack.c.h.b16 %v87
  %v290 = vunpack.c.l.b16 %v88
  %v291 = vunpack.c.h.b16 %v88
  %v292 = vunpack.c.l.b16 %v89
  %v293 = vunpack.c.h.b16 %v89
  %v294 = vunpack.c.l.b16 %v90
  %v295 = vunpack.c.h.b16 %v90
  %v296 = vunpack.c.l.b16 %v91
  %v297 = vunpack.c.h.b16 %v91
  %v298 = vunpack.c.l.b16 %v92
  %v299 = vunpack.c.h.b16 %v92
  %v300 = vunpack.c.l.b16 %v93
  %v301 = vunpack.c.h.b16 %v93
  %v302 = vunpack.c.l.b16 %v94
  %v303 = vunpack.c.h.b16 %v94
  %v304 = vunpack.c.l.b16 %v95
  %v305 = vunpack.c.h.b16 %v95
  %v306 = vunpack.c.l.b16 %v96
  %v307 = vunpack.c.h.b16 %v96
  %v308 = vunpack.c.l.b16 %v97
  %v309 = vunpack.c.h.b16 %v97
  %v310 = vunpack.c.l.b16 %v98
  %v311 = vunpack.c.h.b16 %v98
  %v312 = vunpack.c.l.b16 %v99
  %v313 = vunpack.c.h.b16 %v99
  %v314 = vunpack.c.l.b16 %v100
  %v315 = vunpack.c.h.b16 %v100
  %v316 = vunpack.c.l.b16 %v101
  %v317 = vunpack.c.h.b16 %v101
  %v318 = vunpack.c.l.b16 %v102
  %v319 = vunpack.c.h.b16 %v102
  %v320 = vunpack.c.l.b16 %v103
  %v321 = vunpack.c.h.b16 %v103
  %v322 = vunpack.c.l.b16 %v104
  %v323 = vunpack.c.h.b16 %v104
  %v324 = vunpack.c.l.b16 %v105
  %v325 = vunpack.c.h.b16 %v105
  %v326 = vunpack.c.l.b16 %v106
  %v327 = vunpack.c.h.b16 %v106
  %v328 = vpack.c.b16 %v202, %v200
  %v329 = vpack.c.b16 %v203, %v201
  %v330 = vpack.c.b16 %v206, %v204
  %v331 = vpack.c.b16 %v207, %v205
  %v332 = vpack.c.b16 %v210, %v208
  %v333 = vpack.c.b16 %v211, %v209
  %v334 = vpack.c.b16 %v214, %v212
  %v335 = vpack.c.b16 %v215, %v213
  %v336 = vpack.c.b16 %v218, %v216
  %v337 = vpack.c.b16 %v219, %v217
  %v338 = vpack.c.b16 %v222, %v220
  %v339 = vpack.c.b16 %v223, %v221
  %v340 = vpack.c.b16 %v226, %v224
  %v341 = vpack.c.b16 %v227, %v225
  %v342 = vpack.c.b16 %v230, %v228
  %v343 = vpack.c.b16 %v231, %v229
  %v344 = vpack.c.b16 %v234, %v232
  %v345 = vpack.c.b16 %v235, %v233
  %v346 = vpack.c.b16 %v238, %v236
  %v347 = vpack.c.b16 %v239, %v237
  %v348 = vpack.c.b16 %v242, %v240
  %v349 = vpack.c.b16 %v243, %v241
  %v350 = vpack.c.b16 %v246, %v244
  %v351 = vpack.c.b16 %v247, %v245
  %v352 = vpack.c.b16 %v250, %v248
  %v353 = vpack.c.b16 %v251, %v249
  %v354 = vpack.c.b16 %v254, %v252
  %v355 = vpack.c.b16 %v255, %v253
  %v356 = vpack.c.b16 %v258, %v256
  %v357 = vpack.c.b16 %v259, %v257
  %v358 = vpack.c.b16 %v262, %v260
  %v359 = vpack.c.b16 %v263, %v261
  %v360 = vpack.c.b16 %v266, %v264
  %v361 = vpack.c.b16 %v267, %v265
  %v362 = vpack.c.b16 %v270, %v268
  %v363 = vpack.c.b16 %v271, %v269
  %v364 = vpack.c.b16 %v274, %v272
  %v365 = vpack.c.b16 %v275, %v273
  %v366 = vpack.c.b16 %v278, %v276
  %v367 = vpack.c.b16 %v279, %v277
  %v368 = vpack.c.b16 %v282, %v280
  %v369 = vpack.c.b16 %v283, %v281
  %v370 = vpack.c.b16 %v286, %v284
  %v371 = vpack.c.b16 %v287, %v285
  %v372 = vpack.c.b16 %v290, %v288
  %v373 = vpack.c.b16 %v291, %v289
  %v374 = vpack.c.b16 %v294, %v292
  %v375 = vpack.c.b16 %v295, %v293
  %v376 = vpack.c.b16 %v298, %v296
  %v377 = vpack.c.b16 %v299, %v297
  %v378 = vpack.c.b16 %v302, %v300
  %v379 = vpack.c.b16 %v303, %v301
  %v380 = vpack.c.b16 %v306, %v304
  %v381 = vpack.c.b16 %v307, %v305
  %v382 = vpack.c.b16 %v310, %v308
  %v383 = vpack.c.b16 %v311, %v309
  %v384 = vpack.c.b16 %v314, %v312
  %v385 = vpack.c.b16 %v315, %v313
  %v386 = vpack.c.b16 %v318, %v316
  %v387 = vpack.c.b16 %v319, %v317
  %v388 = vpack.c.b16 %v322, %v320
  %v389 = vpack.c.b16 %v323, %v321
  %v390 = vpack.c.b16 %v326, %v324
  %v391 = vpack.c.b16 %v327, %v325
  %456 = vmatprep.subr.bf16.mxu0 %v343
  %457 = vmatpush1.bf16.msra.mxu0 %v342
  %458 = vmatprep.subr.bf16.mxu0 %v341
  %459 = vmatpush1.bf16.msra.mxu0 %v340
  %460 = vmatprep.subr.bf16.mxu0 %v339
  %461 = vmatpush1.bf16.msra.mxu0 %v338
  %462 = vmatprep.subr.bf16.mxu0 %v337
  %463 = vmatpush1.bf16.msra.mxu0 %v336
  %464 = vmatprep.subr.bf16.mxu0 %v335
  %465 = vmatpush1.bf16.msra.mxu0 %v334
  %466 = vmatprep.subr.bf16.mxu0 %v333
  %467 = vmatpush1.bf16.msra.mxu0 %v332
  %468 = vmatprep.subr.bf16.mxu0 %v331
  %469 = vmatpush1.bf16.msra.mxu0 %v330
  %470 = vmatprep.subr.bf16.mxu0 %v329
  %471 = vmatpush1.bf16.msra.mxu0 %v328
  %472 = vmatprep.subr.bf16.mxu0 %v359
  %473 = vmatpush2.bf16.msra.mxu0 %v358
  %474 = vmatprep.subr.bf16.mxu0 %v357
  %475 = vmatpush2.bf16.msra.mxu0 %v356
  %476 = vmatprep.subr.bf16.mxu0 %v355
  %477 = vmatpush2.bf16.msra.mxu0 %v354
  %478 = vmatprep.subr.bf16.mxu0 %v353
  %479 = vmatpush2.bf16.msra.mxu0 %v352
  %480 = vmatprep.subr.bf16.mxu0 %v351
  %481 = vmatpush2.bf16.msra.mxu0 %v350
  %482 = vmatprep.subr.bf16.mxu0 %v349
  %483 = vmatpush2.bf16.msra.mxu0 %v348
  %484 = vmatprep.subr.bf16.mxu0 %v347
  %485 = vmatpush2.bf16.msra.mxu0 %v346
  %486 = vmatprep.subr.bf16.mxu0 %v345
  %487 = vmatpush2.bf16.msra.mxu0 %v344
  %488 = vmatprep.mubr.bf16.mxu0 %v129
  %489 = vmatmul.mubr.bf16.gmra.mxu0 %v122
  %v490 = vpop.f32.mrf.mxu0
  %v491 = vadd.f32 0.0, %v490
  %v492 = vpop.f32.mrf.mxu0
  %v493 = vadd.f32 0.0, %v492
  %v494 = vpop.f32.mrf.mxu0
  %v495 = vpop.f32.mrf.mxu0
  %496 = vdwg.mxu0
  %497 = vmatprep.subr.bf16.mxu0 %v375
  %498 = vmatpush1.bf16.msra.mxu0 %v374
  %499 = vmatprep.subr.bf16.mxu0 %v373
  %500 = vmatpush1.bf16.msra.mxu0 %v372
  %501 = vmatprep.subr.bf16.mxu0 %v371
  %502 = vmatpush1.bf16.msra.mxu0 %v370
  %503 = vmatprep.subr.bf16.mxu0 %v369
  %504 = vmatpush1.bf16.msra.mxu0 %v368
  %505 = vmatprep.subr.bf16.mxu0 %v367
  %506 = vmatpush1.bf16.msra.mxu0 %v366
  %507 = vmatprep.subr.bf16.mxu0 %v365
  %508 = vmatpush1.bf16.msra.mxu0 %v364
  %509 = vmatprep.subr.bf16.mxu0 %v363
  %510 = vmatpush1.bf16.msra.mxu0 %v362
  %511 = vmatprep.subr.bf16.mxu0 %v361
  %512 = vmatpush1.bf16.msra.mxu0 %v360
  %513 = vmatprep.subr.bf16.mxu0 %v391
  %514 = vmatpush2.bf16.msra.mxu0 %v390
  %515 = vmatprep.subr.bf16.mxu0 %v389
  %516 = vmatpush2.bf16.msra.mxu0 %v388
  %517 = vmatprep.subr.bf16.mxu0 %v387
  %518 = vmatpush2.bf16.msra.mxu0 %v386
  %519 = vmatprep.subr.bf16.mxu0 %v385
  %520 = vmatpush2.bf16.msra.mxu0 %v384
  %521 = vmatprep.subr.bf16.mxu0 %v383
  %522 = vmatpush2.bf16.msra.mxu0 %v382
  %523 = vmatprep.subr.bf16.mxu0 %v381
  %524 = vmatpush2.bf16.msra.mxu0 %v380
  %525 = vmatprep.subr.bf16.mxu0 %v379
  %526 = vmatpush2.bf16.msra.mxu0 %v378
  %527 = vmatprep.subr.bf16.mxu0 %v377
  %528 = vmatpush2.bf16.msra.mxu0 %v376
  %529 = vmatprep.mubr.bf16.mxu0 %v131
  %530 = vmatmul.mubr.bf16.gmra.mxu0 %v130
  %v531 = vpop.f32.mrf.mxu0
  %v532 = vadd.f32 %v491, %v531
  %v533 = vpop.f32.mrf.mxu0
  %v534 = vadd.f32 %v493, %v533
  %v535 = vpop.f32.mrf.mxu0
  %v536 = vpop.f32.mrf.mxu0
  %537 = vdwg.mxu0
  %v540 = vcombine.low %v532, %v534
  %v542 = vunpack.c.l.s4 1983009808
  %v543 = vunpack.c.0.s8 %v542
  %v544 = vlaneseq
  %v545 = vshrl.u32 %v544, 7
  %v546 = vsub.s32 %v543, %v545
  %v547 = vrot.slane %v540, %v546
  %v549 = vadd.f32 %v41, %v547
  %550 = vst [vmem:[#allocation2] sm:$0xf] %v549
  %p551 = scmp.eq.s32.totalorder 0, 0
  %p552 = pnand %p551, %p17
  %p553 = pneg %p552
  // Predicated region
  $region18: #{encoder_forward_impl.31} parent=0 // pred_check
    _
  $region19: #{encoder_forward_impl.31} parent=0 // pred_check_branch
    %555 = sbr.rel (%p552) target = $region21
  $region20: #{encoder_forward_impl.31} parent=0 // pred_region
    %v556 = vlaneseq
    %vm557 = vcmp.ge.s32.totalorder %v556, 0
    %vm558 = vcmp.lt.s32.totalorder %v556, 256
    %vm559 = vmand %vm557, %vm558
    %560 = vst.msk [vmem:[%s4] sm:$0x3] %vm559, 0.0
    %561 = vst.msk [vmem:[%s5] sm:$0x3] %vm559, 0.0
  $region21: #{encoder_forward_impl.31} parent=0 // pred_fallthru
    _
  // Predicated region
  $region22: #{encoder_forward_impl.31} parent=0 // pred_check
    %p562 = pneg %p17
  $region23: #{encoder_forward_impl.31} parent=0 // pred_check_branch
    %564 = sbr.rel (%p562) target = $region25
  $region24: #{encoder_forward_impl.31} parent=0 // pred_region
    %v565 = vld [vmem:[#allocation2] sm:$0xf]
    %v568 = vunpack.c.l.s4 1983009808
    %v569 = vunpack.c.0.s8 %v568
    %v570 = vlaneseq
    %v571 = vshrl.u32 %v570, 7
    %v572 = vsub.s32 %v569, %v571
    %v573 = vrot.slane %v565, %v572
    %v574 = vcombine.high %v573, %v573
    %v577 = vpack.c.bf16 %v573, %v573
    %v578 = vpack.c.bf16 %v574, %v574
    %v581 = vcombine.low %v577, %v578
    %v583 = vunpack.c.l.s4 1966171168
    %v584 = vunpack.c.0.s8 %v583
    %v585 = vlaneseq
    %v586 = vshrl.u32 %v585, 7
    %v587 = vsub.s32 %v584, %v586
    %v588 = vrot.slane %v581, %v587
    %v590 = vunpack.c.l.s4 1966171168
    %v591 = vunpack.c.0.s8 %v590
    %v592 = vlaneseq
    %v593 = vshrl.u32 %v592, 7
    %v594 = vsub.s32 %v591, %v593
    %v595 = vrot.slane %v588, %v594
    %597 = vst [vmem:[%s3] sm:$0x3] %v595
    %v598 = vld [vmem:[%s4] sm:$0x3]
    %vm599 = vcmask 1041408
    %v600 = vsel %vm599, %v573, 0.0
    %v601 = vrot.slane %v600, 4
    %v602 = vadd.f32 %v600, %v601
    %v603 = vrot.slane %v602, 2
    %v604 = vadd.f32 %v602, %v603
    %v605 = vrot.slane %v604, 1
    %v606 = vadd.f32 %v604, %v605
    %v607 = vsel %vm599, %v574, 0.0
    %v608 = vrot.slane %v607, 4
    %v609 = vadd.f32 %v607, %v608
    %v610 = vrot.slane %v609, 2
    %v611 = vadd.f32 %v609, %v610
    %v612 = vrot.slane %v611, 1
    %v613 = vadd.f32 %v611, %v612
    %v616 = vcombine.low %v606, %v613
    %v618 = vunpack.c.l.s4 1966171168
    %v619 = vunpack.c.0.s8 %v618
    %v620 = vlaneseq
    %v621 = vshrl.u32 %v620, 7
    %v622 = vsub.s32 %v619, %v621
    %v623 = vrot.slane %v616, %v622
    %v625 = vunpack.c.l.s4 1966171168
    %v626 = vunpack.c.0.s8 %v625
    %v627 = vlaneseq
    %v628 = vshrl.u32 %v627, 7
    %v629 = vsub.s32 %v626, %v628
    %v630 = vrot.slane %v623, %v629
    %v632 = vadd.f32 %v598, %v630
    %v633 = vlaneseq
    %vm634 = vcmp.ge.s32.totalorder %v633, 0
    %vm635 = vcmp.lt.s32.totalorder %v633, 256
    %vm636 = vmand %vm634, %vm635
    %637 = vst.msk [vmem:[%s4] sm:$0x3] %vm636, %v632
    %v638 = vld [vmem:[%s5] sm:$0x3]
    %v639 = vmul.f32 %v565, %v565
    %v642 = vunpack.c.l.s4 1983009808
    %v643 = vunpack.c.0.s8 %v642
    %v644 = vlaneseq
    %v645 = vshrl.u32 %v644, 7
    %v646 = vsub.s32 %v643, %v645
    %v647 = vrot.slane %v639, %v646
    %v648 = vcombine.high %v647, %v647
    %v651 = vsel %vm599, %v647, 0.0
    %v652 = vrot.slane %v651, 4
    %v653 = vadd.f32 %v651, %v652
    %v654 = vrot.slane %v653, 2
    %v655 = vadd.f32 %v653, %v654
    %v656 = vrot.slane %v655, 1
    %v657 = vadd.f32 %v655, %v656
    %v658 = vsel %vm599, %v648, 0.0
    %v659 = vrot.slane %v658, 4
    %v660 = vadd.f32 %v658, %v659
    %v661 = vrot.slane %v660, 2
    %v662 = vadd.f32 %v660, %v661
    %v663 = vrot.slane %v662, 1
    %v664 = vadd.f32 %v662, %v663
    %v667 = vcombine.low %v657, %v664
    %v669 = vunpack.c.l.s4 1966171168
    %v670 = vunpack.c.0.s8 %v669
    %v671 = vlaneseq
    %v672 = vshrl.u32 %v671, 7
    %v673 = vsub.s32 %v670, %v672
    %v674 = vrot.slane %v667, %v673
    %v676 = vunpack.c.l.s4 1966171168
    %v677 = vunpack.c.0.s8 %v676
    %v678 = vlaneseq
    %v679 = vshrl.u32 %v678, 7
    %v680 = vsub.s32 %v677, %v679
    %v681 = vrot.slane %v674, %v680
    %v683 = vadd.f32 %v638, %v681
    %684 = vst.msk [vmem:[%s5] sm:$0x3] %vm636, %v683
  $region25: #{encoder_forward_impl.31} parent=0 // pred_fallthru
    _
  // Predicated region
  $region26: #{encoder_forward_impl.31} parent=0 // pred_check
    _
  $region27: #{encoder_forward_impl.31} parent=0 // pred_check_branch
    %686 = sbr.rel (0) target = $region29
  $region28: #{encoder_forward_impl.31} parent=0 // pred_region
    _
  $region29: #{encoder_forward_impl.31} parent=0 // pred_fallthru
    _
  // Predicated region
  $region30: #{encoder_forward_impl.31} parent=0 // pred_check
    _
  $region31: #{encoder_forward_impl.31} parent=0 // pred_check_branch
    %688 = sbr.rel (0) target = $region33
  $region32: #{encoder_forward_impl.31} parent=0 // pred_region
    _
  $region33: #{encoder_forward_impl.31} parent=0 // pred_fallthru
    _
  // Predicated region
  $region34: #{encoder_forward_impl.31} parent=0 // pred_check
    _
  $region35: #{encoder_forward_impl.31} parent=0 // pred_check_branch
    %690 = sbr.rel (0) target = $region37
  $region36: #{encoder_forward_impl.31} parent=0 // pred_region
    _
  $region37: #{encoder_forward_impl.31} parent=0 // pred_fallthru
    _
  // Predicated region
  $region38: #{encoder_forward_impl.31} parent=0 // pred_check
    _
  $region39: #{encoder_forward_impl.31} parent=0 // pred_check_branch
    %692 = sbr.rel (0) target = $region41
  $region40: #{encoder_forward_impl.31} parent=0 // pred_region
    _
  $region41: #{encoder_forward_impl.31} parent=0 // pred_fallthru
    _
  // Predicated region
  $region42: #{encoder_forward_impl.31} parent=0 // pred_check
    _
  $region43: #{encoder_forward_impl.31} parent=0 // pred_check_branch
    %694 = sbr.rel (0) target = $region45
  $region44: #{encoder_forward_impl.31} parent=0 // pred_region
    _
  $region45: #{encoder_forward_impl.31} parent=0 // pred_fallthru
    _
  // Predicated region
  $region46: #{encoder_forward_impl.31} parent=0 // pred_check
    _
  $region47: #{encoder_forward_impl.31} parent=0 // pred_check_branch
    %696 = sbr.rel (0) target = $region49
  $region48: #{encoder_forward_impl.31} parent=0 // pred_region
    _
  $region49: #{encoder_forward_impl.31} parent=0 // pred_fallthru
    _

// kernel: encoder_forward_impl.33
$region0: #{encoder_forward_impl.33}
  #allocation0 [shape = 'u32[]', space=smem, size = 0x4, offset = 0x4, fixed_abs, tag = 'smem constant byte address 0x4 - core index']
  #allocation1 [shape = 'u32[144,128]{1,0:T(1,128)}', space=vmem, size = 0x12000, scoped, tag = 'internal scratch']
  #allocation2 [shape = 'f32[8,128]{1,0:T(8,128)}', space=vmem, size = 0x1000, scoped, tag = 'scratch operand']
  %s0 = inlined_call_operand.vmem [shape: bf16[8,256], index: 0, kind: input, shape index: {}]
  %s1 = inlined_call_operand.vmem [shape: bf16[256,128], index: 1, kind: input, shape index: {}]
  %s2 = inlined_call_operand.vmem [shape: f32[1,128], index: 2, kind: input, shape index: {}]
  %s3 = inlined_call_operand.vmem [shape: bf16[8,128], index: 3, kind: output, shape index: {0}]
  %s4 = inlined_call_operand.vmem [shape: f32[1,128], index: 4, kind: output, shape index: {1}]
  %s5 = inlined_call_operand.vmem [shape: f32[1,128], index: 5, kind: output, shape index: {2}]
  %6 = xla_tuple %s3, %s4, %s5
  %s7 = sld [smem:[#allocation0]]
  $region50: #{encoder_forward_impl.33} parent=0
    _
  %s9 = ssub.s32 1, %s7
  %s10 = scalar_select 0, %s9, %s7
  // Predicated region
  $region2: #{encoder_forward_impl.33} parent=0 // pred_check
    _
  $region3: #{encoder_forward_impl.33} parent=0 // pred_check_branch
    %12 = sbr.rel (0) target = $region5
  $region4: #{encoder_forward_impl.33} parent=0 // pred_region
    _
  $region5: #{encoder_forward_impl.33} parent=0 // pred_fallthru
    _
  // Predicated region
  $region6: #{encoder_forward_impl.33} parent=0 // pred_check
    _
  $region7: #{encoder_forward_impl.33} parent=0 // pred_check_branch
    %14 = sbr.rel (0) target = $region9
  $region8: #{encoder_forward_impl.33} parent=0 // pred_region
    _
  $region9: #{encoder_forward_impl.33} parent=0 // pred_fallthru
    _
  // Predicated region
  $region10: #{encoder_forward_impl.33} parent=0 // pred_check
    _
  $region11: #{encoder_forward_impl.33} parent=0 // pred_check_branch
    %16 = sbr.rel (0) target = $region13
  $region12: #{encoder_forward_impl.33} parent=0 // pred_region
    _
  $region13: #{encoder_forward_impl.33} parent=0 // pred_fallthru
    _
  %p18 = scmp.eq.s32.totalorder 0, 0
  // Predicated region
  $region14: #{encoder_forward_impl.33} parent=0 // pred_check
    %p19 = pneg %p18
  $region15: #{encoder_forward_impl.33} parent=0 // pred_check_branch
    %21 = sbr.rel (%p19) target = $region17
  $region16: #{encoder_forward_impl.33} parent=0 // pred_region
    %v22 = vld [vmem:[%s2] sm:$0x1]
    %v24 = vlaneseq
    %v25 = vshrl.u32 %v24, 7
    %v26 = vsub.s32 0, %v25
    %v27 = vrot.slane %v22, %v26
    %29 = vst [vmem:[#allocation2] sm:$0xff] %v27
  $region17: #{encoder_forward_impl.33} parent=0 // pred_fallthru
    _
  %v30 = vld [vmem:[#allocation2] sm:$0xff]
  %v31 = vld [vmem:[%s0] sm:$0xff]
  %v32 = vld [vmem:[%s1] sm:$0xf]
  %v33 = vld [vmem:[%s1 + $0x4] sm:$0xf]
  %v34 = vld [vmem:[%s1 + $0x8] sm:$0xf]
  %v35 = vld [vmem:[%s1 + $0xc] sm:$0xf]
  %v36 = vld [vmem:[%s1 + $0x10] sm:$0xf]
  %v37 = vld [vmem:[%s1 + $0x14] sm:$0xf]
  %v38 = vld [vmem:[%s1 + $0x18] sm:$0xf]
  %v39 = vld [vmem:[%s1 + $0x1c] sm:$0xf]
  %v40 = vld [vmem:[%s1 + $0x20] sm:$0xf]
  %v41 = vld [vmem:[%s1 + $0x24] sm:$0xf]
  %v42 = vld [vmem:[%s1 + $0x28] sm:$0xf]
  %v43 = vld [vmem:[%s1 + $0x2c] sm:$0xf]
  %v44 = vld [vmem:[%s1 + $0x30] sm:$0xf]
  %v45 = vld [vmem:[%s1 + $0x34] sm:$0xf]
  %v46 = vld [vmem:[%s1 + $0x38] sm:$0xf]
  %v47 = vld [vmem:[%s1 + $0x3c] sm:$0xf]
  %v48 = vld [vmem:[%s1 + $0x40] sm:$0xf]
  %v49 = vld [vmem:[%s1 + $0x44] sm:$0xf]
  %v50 = vld [vmem:[%s1 + $0x48] sm:$0xf]
  %v51 = vld [vmem:[%s1 + $0x4c] sm:$0xf]
  %v52 = vld [vmem:[%s1 + $0x50] sm:$0xf]
  %v53 = vld [vmem:[%s1 + $0x54] sm:$0xf]
  %v54 = vld [vmem:[%s1 + $0x58] sm:$0xf]
  %v55 = vld [vmem:[%s1 + $0x5c] sm:$0xf]
  %v56 = vld [vmem:[%s1 + $0x60] sm:$0xf]
  %v57 = vld [vmem:[%s1 + $0x64] sm:$0xf]
  %v58 = vld [vmem:[%s1 + $0x68] sm:$0xf]
  %v59 = vld [vmem:[%s1 + $0x6c] sm:$0xf]
  %v60 = vld [vmem:[%s1 + $0x70] sm:$0xf]
  %v61 = vld [vmem:[%s1 + $0x74] sm:$0xf]
  %v62 = vld [vmem:[%s1 + $0x78] sm:$0xf]
  %v63 = vld [vmem:[%s1 + $0x7c] sm:$0xf]
  %v65 = vunpack.c.l.b16 %v31
  %v66 = vunpack.c.h.b16 %v31
  %v67 = vpack.c.b16 %v65, %v65
  %v68 = vpack.c.b16 %v66, %v66
  %v103 = vunpack.c.l.b16 %v32
  %v104 = vunpack.c.l.b16 %v33
  %v105 = vunpack.c.l.b16 %v34
  %v106 = vunpack.c.l.b16 %v35
  %v107 = vunpack.c.l.b16 %v36
  %v108 = vunpack.c.l.b16 %v37
  %v109 = vunpack.c.l.b16 %v38
  %v110 = vunpack.c.l.b16 %v39
  %v111 = vunpack.c.l.b16 %v40
  %v112 = vunpack.c.l.b16 %v41
  %v113 = vunpack.c.l.b16 %v42
  %v114 = vunpack.c.l.b16 %v43
  %v115 = vunpack.c.l.b16 %v44
  %v116 = vunpack.c.l.b16 %v45
  %v117 = vunpack.c.l.b16 %v46
  %v118 = vunpack.c.l.b16 %v47
  %v119 = vunpack.c.l.b16 %v48
  %v120 = vunpack.c.l.b16 %v49
  %v121 = vunpack.c.l.b16 %v50
  %v122 = vunpack.c.l.b16 %v51
  %v123 = vunpack.c.l.b16 %v52
  %v124 = vunpack.c.l.b16 %v53
  %v125 = vunpack.c.l.b16 %v54
  %v126 = vunpack.c.l.b16 %v55
  %v127 = vunpack.c.l.b16 %v56
  %v128 = vunpack.c.l.b16 %v57
  %v129 = vunpack.c.l.b16 %v58
  %v130 = vunpack.c.l.b16 %v59
  %v131 = vunpack.c.l.b16 %v60
  %v132 = vunpack.c.l.b16 %v61
  %v133 = vunpack.c.l.b16 %v62
  %v134 = vunpack.c.l.b16 %v63
  %v135 = vpack.c.b16 %v104, %v103
  %v136 = vpack.c.b16 %v106, %v105
  %v137 = vpack.c.b16 %v108, %v107
  %v138 = vpack.c.b16 %v110, %v109
  %v139 = vpack.c.b16 %v112, %v111
  %v140 = vpack.c.b16 %v114, %v113
  %v141 = vpack.c.b16 %v116, %v115
  %v142 = vpack.c.b16 %v118, %v117
  %v143 = vpack.c.b16 %v120, %v119
  %v144 = vpack.c.b16 %v122, %v121
  %v145 = vpack.c.b16 %v124, %v123
  %v146 = vpack.c.b16 %v126, %v125
  %v147 = vpack.c.b16 %v128, %v127
  %v148 = vpack.c.b16 %v130, %v129
  %v149 = vpack.c.b16 %v132, %v131
  %v150 = vpack.c.b16 %v134, %v133
  %167 = vmatprep.subr.bf16.mxu0 0
  %168 = vmatpush1.bf16.msra.mxu0 %v142
  %169 = vmatprep.subr.bf16.mxu0 0
  %170 = vmatpush1.bf16.msra.mxu0 %v141
  %171 = vmatprep.subr.bf16.mxu0 0
  %172 = vmatpush1.bf16.msra.mxu0 %v140
  %173 = vmatprep.subr.bf16.mxu0 0
  %174 = vmatpush1.bf16.msra.mxu0 %v139
  %175 = vmatprep.subr.bf16.mxu0 0
  %176 = vmatpush1.bf16.msra.mxu0 %v138
  %177 = vmatprep.subr.bf16.mxu0 0
  %178 = vmatpush1.bf16.msra.mxu0 %v137
  %179 = vmatprep.subr.bf16.mxu0 0
  %180 = vmatpush1.bf16.msra.mxu0 %v136
  %181 = vmatprep.subr.bf16.mxu0 0
  %182 = vmatpush1.bf16.msra.mxu0 %v135
  %183 = vmatprep.subr.bf16.mxu0 0
  %184 = vmatpush2.bf16.msra.mxu0 %v150
  %185 = vmatprep.subr.bf16.mxu0 0
  %186 = vmatpush2.bf16.msra.mxu0 %v149
  %187 = vmatprep.subr.bf16.mxu0 0
  %188 = vmatpush2.bf16.msra.mxu0 %v148
  %189 = vmatprep.subr.bf16.mxu0 0
  %190 = vmatpush2.bf16.msra.mxu0 %v147
  %191 = vmatprep.subr.bf16.mxu0 0
  %192 = vmatpush2.bf16.msra.mxu0 %v146
  %193 = vmatprep.subr.bf16.mxu0 0
  %194 = vmatpush2.bf16.msra.mxu0 %v145
  %195 = vmatprep.subr.bf16.mxu0 0
  %196 = vmatpush2.bf16.msra.mxu0 %v144
  %197 = vmatprep.subr.bf16.mxu0 0
  %198 = vmatpush2.bf16.msra.mxu0 %v143
  %199 = vmatprep.mubr.bf16.mxu0 %v68
  %200 = vmatmul.mubr.bf16.gmra.mxu0 %v67
  %v201 = vpop.f32.mrf.mxu0
  %v202 = vadd.f32 0.0, %v201
  %v203 = vpop.f32.mrf.mxu0
  %v204 = vpop.f32.mrf.mxu0
  %v205 = vpop.f32.mrf.mxu0
  %206 = vdwg.mxu0
  %v207 = vadd.f32 %v30, %v202
  %208 = vst [vmem:[#allocation2] sm:$0xff] %v207
  %p209 = scmp.eq.s32.totalorder 0, 0
  %p210 = pnand %p209, %p18
  %p211 = pneg %p210
  // Predicated region
  $region18: #{encoder_forward_impl.33} parent=0 // pred_check
    _
  $region19: #{encoder_forward_impl.33} parent=0 // pred_check_branch
    %213 = sbr.rel (%p210) target = $region21
  $region20: #{encoder_forward_impl.33} parent=0 // pred_region
    %214 = vst [vmem:[%s4] sm:$0x1] 0.0
    %215 = vst [vmem:[%s5] sm:$0x1] 0.0
  $region21: #{encoder_forward_impl.33} parent=0 // pred_fallthru
    _
  // Predicated region
  $region22: #{encoder_forward_impl.33} parent=0 // pred_check
    %p216 = pneg %p18
  $region23: #{encoder_forward_impl.33} parent=0 // pred_check_branch
    %218 = sbr.rel (%p216) target = $region25
  $region24: #{encoder_forward_impl.33} parent=0 // pred_region
    %v219 = vld [vmem:[#allocation2] sm:$0xff]
    %v220 = vpack.c.bf16 %v219, %v219
    %221 = vst [vmem:[%s3] sm:$0xf] %v220
    %v222 = vld [vmem:[%s4] sm:$0x1]
    %v223 = vrot.slane %v219, 4
    %v224 = vadd.f32 %v219, %v223
    %v225 = vrot.slane %v224, 2
    %v226 = vadd.f32 %v224, %v225
    %v227 = vrot.slane %v226, 1
    %v228 = vadd.f32 %v226, %v227
    %v229 = vadd.f32 %v222, %v228
    %230 = vst [vmem:[%s4] sm:$0x1] %v229
    %v231 = vld [vmem:[%s5] sm:$0x1]
    %v232 = vmul.f32 %v219, %v219
    %v233 = vrot.slane %v232, 4
    %v234 = vadd.f32 %v232, %v233
    %v235 = vrot.slane %v234, 2
    %v236 = vadd.f32 %v234, %v235
    %v237 = vrot.slane %v236, 1
    %v238 = vadd.f32 %v236, %v237
    %v239 = vadd.f32 %v231, %v238
    %240 = vst [vmem:[%s5] sm:$0x1] %v239
  $region25: #{encoder_forward_impl.33} parent=0 // pred_fallthru
    _
  // Predicated region
  $region26: #{encoder_forward_impl.33} parent=0 // pred_check
    _
  $region27: #{encoder_forward_impl.33} parent=0 // pred_check_branch
    %242 = sbr.rel (0) target = $region29
  $region28: #{encoder_forward_impl.33} parent=0 // pred_region
    _
  $region29: #{encoder_forward_impl.33} parent=0 // pred_fallthru
    _
  // Predicated region
  $region30: #{encoder_forward_impl.33} parent=0 // pred_check
    _
  $region31: #{encoder_forward_impl.33} parent=0 // pred_check_branch
    %244 = sbr.rel (0) target = $region33
  $region32: #{encoder_forward_impl.33} parent=0 // pred_region
    _
  $region33: #{encoder_forward_impl.33} parent=0 // pred_fallthru
    _
  // Predicated region
  $region34: #{encoder_forward_impl.33} parent=0 // pred_check
    _
  $region35: #{encoder_forward_impl.33} parent=0 // pred_check_branch
    %246 = sbr.rel (0) target = $region37
  $region36: #{encoder_forward_impl.33} parent=0 // pred_region
    _
  $region37: #{encoder_forward_impl.33} parent=0 // pred_fallthru
    _
  // Predicated region
  $region38: #{encoder_forward_impl.33} parent=0 // pred_check
    _
  $region39: #{encoder_forward_impl.33} parent=0 // pred_check_branch
    %248 = sbr.rel (0) target = $region41
  $region40: #{encoder_forward_impl.33} parent=0 // pred_region
    _
  $region41: #{encoder_forward_impl.33} parent=0 // pred_fallthru
    _
  // Predicated region
  $region42: #{encoder_forward_impl.33} parent=0 // pred_check
    _
  $region43: #{encoder_forward_impl.33} parent=0 // pred_check_branch
    %250 = sbr.rel (0) target = $region45
  $region44: #{encoder_forward_impl.33} parent=0 // pred_region
    _
  $region45: #{encoder_forward_impl.33} parent=0 // pred_fallthru
    _
  // Predicated region
  $region46: #{encoder_forward_impl.33} parent=0 // pred_check
    _
  $region47: #{encoder_forward_impl.33} parent=0 // pred_check_branch
    %252 = sbr.rel (0) target = $region49
  $region48: #{encoder_forward_impl.33} parent=0 // pred_region
    _
  $region49: #{encoder_forward_impl.33} parent=0 // pred_fallthru
    _

// kernel: tile.177
$region0: #{tile.177}
  #allocation0 [shape = 's32[1]{0}', space=sflag, size = 0x4, scoped, tag = 'scoped memory for tile.177']
  %s0 = inlined_call_operand.vmem [shape: f32[16], index: 0, kind: input, shape index: {}]
  %s1 = inlined_call_operand.vmem [shape: f32[4,16], index: 1, kind: output, shape index: {}]
  // Predicated region
  $region2: #{tile.177} parent=0 // pred_check
    _
  $region3: #{tile.177} parent=0 // pred_check_branch
    %3 = sbr.rel (0) target = $region5
  $region4: #{tile.177} parent=0 // pred_region
    _
  $region5: #{tile.177} parent=0 // pred_fallthru
    _
  %v4 = vld [vmem:[%s0] ss:$0 sm:$0xff]
  %5 = vst [vmem:[%s1] sm:$0xf] %v4

// kernel: tile.178
$region0: #{tile.178}
  %s0 = inlined_call_operand.vmem [shape: f32[4,16], index: 0, kind: input, shape index: {}]
  %s1 = inlined_call_operand.vmem [shape: f32[1,64], index: 1, kind: output, shape index: {}]
  $region1: #{tile.178} parent=0
    #allocation0 [shape = 'u8[4096]{0}', space=vmem, size = 0x1000, scoped, tag = 'scoped mem for output reshape']
    #allocation1 [shape = 'u8[4096]{0}', space=vmem, size = 0x1000, scoped, tag = 'scoped mem for input reshape']
    %s3 = sshll.u32 1, 4
    %s4 = ssub.s32 %s3, 1
    %v5 = vld [vmem:[%s0] sm:%s4]
    %6 = vst [vmem:[#allocation1] sm:%s4] %v5
    %v7 = vld [vmem:[#allocation1] sm:$0x1]
    %vm8 = vcmask 130048
    %9 = vst.msk [vmem:[#allocation0] sm:$0x1] %vm8, %v7
    %s10 = scalar_lea.vmem [#allocation1], 3
    %v11 = vld [vmem:[%s10] sm:$0x1]
    %12 = vrot.lane.b32.xlu0 %v11, 48
    %v13 = vpop.permute.xlu0 %12
    %vm14 = vcmask 523648
    %15 = vst.msk [vmem:[#allocation0] sm:$0x1] %vm14, %v13
    %s16 = scalar_lea.vmem [#allocation1], 2
    %v17 = vld [vmem:[%s16] sm:$0x1]
    %18 = vrot.lane.b32.xlu0 %v17, 32
    %v19 = vpop.permute.xlu0 %18
    %vm20 = vcmask 392448
    %21 = vst.msk [vmem:[#allocation0] sm:$0x1] %vm20, %v19
    %s22 = scalar_lea.vmem [#allocation1], 1
    %v23 = vld [vmem:[%s22] sm:$0x1]
    %24 = vrot.lane.b32.xlu0 %v23, 16
    %v25 = vpop.permute.xlu0 %24
    %vm26 = vcmask 261248
    %27 = vst.msk [vmem:[#allocation0] sm:$0x1] %vm26, %v25
    %s29 = sshll.u32 1, 1
    %s30 = ssub.s32 %s29, 1
    %v32 = vld [vmem:[#allocation0] sm:%s30]
    %s33 = sshll.u32 1, 1
    %s34 = ssub.s32 %s33, 1
    %35 = vst [vmem:[%s1] sm:%s34] %v32

// kernel: encoder_forward_impl.35
$region0: #{encoder_forward_impl.35}
  #allocation0 [shape = 'u32[]', space=smem, size = 0x4, offset = 0x4, fixed_abs, tag = 'smem constant byte address 0x4 - core index']
  #allocation1 [shape = 'u32[144,128]{1,0:T(1,128)}', space=vmem, size = 0x12000, scoped, tag = 'internal scratch']
  #allocation2 [shape = 'f32[32,64]{1,0:T(8,128)}', space=vmem, size = 0x4000, scoped, tag = 'scratch operand']
  %s0 = inlined_call_operand.vmem [shape: bf16[32,128], index: 0, kind: input, shape index: {}]
  %s1 = inlined_call_operand.vmem [shape: bf16[128,64], index: 1, kind: input, shape index: {}]
  %s2 = inlined_call_operand.vmem [shape: f32[1,64], index: 2, kind: input, shape index: {}]
  %s3 = inlined_call_operand.vmem [shape: bf16[32,64], index: 3, kind: output, shape index: {0}]
  %s4 = inlined_call_operand.vmem [shape: f32[1,64], index: 4, kind: output, shape index: {1}]
  %s5 = inlined_call_operand.vmem [shape: f32[1,64], index: 5, kind: output, shape index: {2}]
  %6 = xla_tuple %s3, %s4, %s5
  %s7 = sld [smem:[#allocation0]]
  $region50: #{encoder_forward_impl.35} parent=0
    _
  %s9 = ssub.s32 1, %s7
  %s10 = scalar_select 0, %s9, %s7
  // Predicated region
  $region2: #{encoder_forward_impl.35} parent=0 // pred_check
    _
  $region3: #{encoder_forward_impl.35} parent=0 // pred_check_branch
    %12 = sbr.rel (0) target = $region5
  $region4: #{encoder_forward_impl.35} parent=0 // pred_region
    _
  $region5: #{encoder_forward_impl.35} parent=0 // pred_fallthru
    _
  // Predicated region
  $region6: #{encoder_forward_impl.35} parent=0 // pred_check
    _
  $region7: #{encoder_forward_impl.35} parent=0 // pred_check_branch
    %14 = sbr.rel (0) target = $region9
  $region8: #{encoder_forward_impl.35} parent=0 // pred_region
    _
  $region9: #{encoder_forward_impl.35} parent=0 // pred_fallthru
    _
  // Predicated region
  $region10: #{encoder_forward_impl.35} parent=0 // pred_check
    _
  $region11: #{encoder_forward_impl.35} parent=0 // pred_check_branch
    %16 = sbr.rel (0) target = $region13
  $region12: #{encoder_forward_impl.35} parent=0 // pred_region
    _
  $region13: #{encoder_forward_impl.35} parent=0 // pred_fallthru
    _
  %p18 = scmp.eq.s32.totalorder 0, 0
  // Predicated region
  $region14: #{encoder_forward_impl.35} parent=0 // pred_check
    %p19 = pneg %p18
  $region15: #{encoder_forward_impl.35} parent=0 // pred_check_branch
    %21 = sbr.rel (%p19) target = $region17
  $region16: #{encoder_forward_impl.35} parent=0 // pred_region
    %v22 = vld [vmem:[%s2] sm:$0x1]
    %v24 = vlaneseq
    %v25 = vshrl.u32 %v24, 7
    %v26 = vsub.s32 0, %v25
    %v27 = vrot.slane %v22, %v26
    %vm29 = vcmask 523264
    %30 = vst.msk [vmem:[#allocation2] sm:$0xff] %vm29, %v27
    %31 = vst.msk [vmem:[#allocation2 + $0x8] sm:$0xff] %vm29, %v27
    %32 = vst.msk [vmem:[#allocation2 + $0x10] sm:$0xff] %vm29, %v27
    %33 = vst.msk [vmem:[#allocation2 + $0x18] sm:$0xff] %vm29, %v27
  $region17: #{encoder_forward_impl.35} parent=0 // pred_fallthru
    _
  %v34 = vld [vmem:[#allocation2] sm:$0xff]
  %v35 = vld [vmem:[#allocation2 + $0x8] sm:$0xff]
  %v36 = vld [vmem:[#allocation2 + $0x10] sm:$0xff]
  %v37 = vld [vmem:[#allocation2 + $0x18] sm:$0xff]
  %v38 = vld [vmem:[%s0] sm:$0xf]
  %v39 = vld [vmem:[%s0 + $0x4] sm:$0xf]
  %v40 = vld [vmem:[%s0 + $0x8] sm:$0xf]
  %v41 = vld [vmem:[%s0 + $0xc] sm:$0xf]
  %v42 = vld [vmem:[%s1] sm:$0xf]
  %v43 = vld [vmem:[%s1 + $0x4] sm:$0xf]
  %v44 = vld [vmem:[%s1 + $0x8] sm:$0xf]
  %v45 = vld [vmem:[%s1 + $0xc] sm:$0xf]
  %v46 = vld [vmem:[%s1 + $0x10] sm:$0xf]
  %v47 = vld [vmem:[%s1 + $0x14] sm:$0xf]
  %v48 = vld [vmem:[%s1 + $0x18] sm:$0xf]
  %v49 = vld [vmem:[%s1 + $0x1c] sm:$0xf]
  %v50 = vld [vmem:[%s1 + $0x20] sm:$0xf]
  %v51 = vld [vmem:[%s1 + $0x24] sm:$0xf]
  %v52 = vld [vmem:[%s1 + $0x28] sm:$0xf]
  %v53 = vld [vmem:[%s1 + $0x2c] sm:$0xf]
  %v54 = vld [vmem:[%s1 + $0x30] sm:$0xf]
  %v55 = vld [vmem:[%s1 + $0x34] sm:$0xf]
  %v56 = vld [vmem:[%s1 + $0x38] sm:$0xf]
  %v57 = vld [vmem:[%s1 + $0x3c] sm:$0xf]
  %v62 = vunpack.c.l.b16 %v38
  %v63 = vunpack.c.l.b16 %v39
  %v64 = vunpack.c.l.b16 %v40
  %v65 = vunpack.c.l.b16 %v41
  %v66 = vpack.c.b16 %v63, %v62
  %v67 = vpack.c.b16 %v65, %v64
  %v86 = vunpack.c.l.b16 %v42
  %v87 = vunpack.c.l.b16 %v43
  %v88 = vunpack.c.l.b16 %v44
  %v89 = vunpack.c.l.b16 %v45
  %v90 = vunpack.c.l.b16 %v46
  %v91 = vunpack.c.l.b16 %v47
  %v92 = vunpack.c.l.b16 %v48
  %v93 = vunpack.c.l.b16 %v49
  %v94 = vunpack.c.l.b16 %v50
  %v95 = vunpack.c.l.b16 %v51
  %v96 = vunpack.c.l.b16 %v52
  %v97 = vunpack.c.l.b16 %v53
  %v98 = vunpack.c.l.b16 %v54
  %v99 = vunpack.c.l.b16 %v55
  %v100 = vunpack.c.l.b16 %v56
  %v101 = vunpack.c.l.b16 %v57
  %v102 = vpack.c.b16 %v87, %v86
  %v103 = vpack.c.b16 %v89, %v88
  %v104 = vpack.c.b16 %v91, %v90
  %v105 = vpack.c.b16 %v93, %v92
  %v106 = vpack.c.b16 %v95, %v94
  %v107 = vpack.c.b16 %v97, %v96
  %v108 = vpack.c.b16 %v99, %v98
  %v109 = vpack.c.b16 %v101, %v100
  %118 = vmatprep.subr.bf16.mxu0 0
  %119 = vmatpush1.bf16.msra.mxu0 %v109
  %120 = vmatprep.subr.bf16.mxu0 0
  %121 = vmatpush1.bf16.msra.mxu0 %v108
  %122 = vmatprep.subr.bf16.mxu0 0
  %123 = vmatpush1.bf16.msra.mxu0 %v107
  %124 = vmatprep.subr.bf16.mxu0 0
  %125 = vmatpush1.bf16.msra.mxu0 %v106
  %126 = vmatprep.subr.bf16.mxu0 0
  %127 = vmatpush1.bf16.msra.mxu0 %v105
  %128 = vmatprep.subr.bf16.mxu0 0
  %129 = vmatpush1.bf16.msra.mxu0 %v104
  %130 = vmatprep.subr.bf16.mxu0 0
  %131 = vmatpush1.bf16.msra.mxu0 %v103
  %132 = vmatprep.subr.bf16.mxu0 0
  %133 = vmatpush1.bf16.msra.mxu0 %v102
  %134 = vmatprep.subr.bf16.mxu0 0
  %135 = vmatpush2.bf16.msra.mxu0 0
  %136 = vmatprep.subr.bf16.mxu0 0
  %137 = vmatpush2.bf16.msra.mxu0 0
  %138 = vmatprep.subr.bf16.mxu0 0
  %139 = vmatpush2.bf16.msra.mxu0 0
  %140 = vmatprep.subr.bf16.mxu0 0
  %141 = vmatpush2.bf16.msra.mxu0 0
  %142 = vmatprep.subr.bf16.mxu0 0
  %143 = vmatpush2.bf16.msra.mxu0 0
  %144 = vmatprep.subr.bf16.mxu0 0
  %145 = vmatpush2.bf16.msra.mxu0 0
  %146 = vmatprep.subr.bf16.mxu0 0
  %147 = vmatpush2.bf16.msra.mxu0 0
  %148 = vmatprep.subr.bf16.mxu0 0
  %149 = vmatpush2.bf16.msra.mxu0 0
  %150 = vmatprep.mubr.bf16.mxu0 0
  %151 = vmatmul.mubr.bf16.gmra.mxu0 %v66
  %v152 = vpop.f32.mrf.mxu0
  %v153 = vadd.f32 0.0, %v152
  %v154 = vpop.f32.mrf.mxu0
  %v155 = vpop.f32.mrf.mxu0
  %v156 = vadd.f32 0.0, %v155
  %v157 = vpop.f32.mrf.mxu0
  %158 = vmatprep.mubr.bf16.mxu0 0
  %159 = vmatmul.mubr.bf16.gmra.mxu0 %v67
  %v160 = vpop.f32.mrf.mxu0
  %v161 = vadd.f32 0.0, %v160
  %v162 = vpop.f32.mrf.mxu0
  %v163 = vpop.f32.mrf.mxu0
  %v164 = vadd.f32 0.0, %v163
  %v165 = vpop.f32.mrf.mxu0
  %166 = vdwg.mxu0
  %v167 = vadd.f32 %v34, %v153
  %v168 = vadd.f32 %v35, %v156
  %v169 = vadd.f32 %v36, %v161
  %v170 = vadd.f32 %v37, %v164
  %vm171 = vcmask 523264
  %172 = vst.msk [vmem:[#allocation2] sm:$0xff] %vm171, %v167
  %173 = vst.msk [vmem:[#allocation2 + $0x8] sm:$0xff] %vm171, %v168
  %174 = vst.msk [vmem:[#allocation2 + $0x10] sm:$0xff] %vm171, %v169
  %175 = vst.msk [vmem:[#allocation2 + $0x18] sm:$0xff] %vm171, %v170
  %p176 = scmp.eq.s32.totalorder 0, 0
  %p177 = pnand %p176, %p18
  %p178 = pneg %p177
  // Predicated region
  $region18: #{encoder_forward_impl.35} parent=0 // pred_check
    _
  $region19: #{encoder_forward_impl.35} parent=0 // pred_check_branch
    %180 = sbr.rel (%p177) target = $region21
  $region20: #{encoder_forward_impl.35} parent=0 // pred_region
    %vm181 = vcmask 516096
    %182 = vst.msk [vmem:[%s4] sm:$0x1] %vm181, 0.0
    %183 = vst.msk [vmem:[%s5] sm:$0x1] %vm181, 0.0
  $region21: #{encoder_forward_impl.35} parent=0 // pred_fallthru
    _
  // Predicated region
  $region22: #{encoder_forward_impl.35} parent=0 // pred_check
    %p184 = pneg %p18
  $region23: #{encoder_forward_impl.35} parent=0 // pred_check_branch
    %186 = sbr.rel (%p184) target = $region25
  $region24: #{encoder_forward_impl.35} parent=0 // pred_region
    %v187 = vld [vmem:[#allocation2] sm:$0xff]
    %v188 = vld [vmem:[#allocation2 + $0x8] sm:$0xff]
    %v189 = vld [vmem:[#allocation2 + $0x10] sm:$0xff]
    %v190 = vld [vmem:[#allocation2 + $0x18] sm:$0xff]
    %v191 = vpack.c.bf16 %v188, %v187
    %v192 = vpack.c.bf16 %v190, %v189
    %v195 = vunpack.c.l.b16 %v191
    %v196 = vunpack.c.h.b16 %v191
    %v197 = vunpack.c.l.b16 %v192
    %v198 = vunpack.c.h.b16 %v192
    %v199 = vpack.c.b16 %v195, %v195
    %v200 = vpack.c.b16 %v196, %v196
    %v201 = vpack.c.b16 %v197, %v197
    %v202 = vpack.c.b16 %v198, %v198
    %vm207 = vcmask 519168
    %208 = vst.msk [vmem:[%s3] sm:$0xf] %vm207, %v199
    %209 = vst.msk [vmem:[%s3 + $0x4] sm:$0xf] %vm207, %v200
    %210 = vst.msk [vmem:[%s3 + $0x8] sm:$0xf] %vm207, %v201
    %211 = vst.msk [vmem:[%s3 + $0xc] sm:$0xf] %vm207, %v202
    %v212 = vld [vmem:[%s4] sm:$0x1]
    %v213 = vsel %vm171, %v187, 0.0
    %v214 = vsel %vm171, %v188, 0.0
    %v215 = vadd.f32 %v213, %v214
    %v216 = vsel %vm171, %v189, 0.0
    %v217 = vadd.f32 %v215, %v216
    %v218 = vsel %vm171, %v190, 0.0
    %v219 = vadd.f32 %v217, %v218
    %v220 = vrot.slane %v219, 4
    %v221 = vadd.f32 %v219, %v220
    %v222 = vrot.slane %v221, 2
    %v223 = vadd.f32 %v221, %v222
    %v224 = vrot.slane %v223, 1
    %v225 = vadd.f32 %v223, %v224
    %v226 = vadd.f32 %v212, %v225
    %vm227 = vcmask 516096
    %228 = vst.msk [vmem:[%s4] sm:$0x1] %vm227, %v226
    %v229 = vld [vmem:[%s5] sm:$0x1]
    %v230 = vmul.f32 %v187, %v187
    %v231 = vmul.f32 %v188, %v188
    %v232 = vmul.f32 %v189, %v189
    %v233 = vmul.f32 %v190, %v190
    %v234 = vsel %vm171, %v230, 0.0
    %v235 = vsel %vm171, %v231, 0.0
    %v236 = vadd.f32 %v234, %v235
    %v237 = vsel %vm171, %v232, 0.0
    %v238 = vadd.f32 %v236, %v237
    %v239 = vsel %vm171, %v233, 0.0
    %v240 = vadd.f32 %v238, %v239
    %v241 = vrot.slane %v240, 4
    %v242 = vadd.f32 %v240, %v241
    %v243 = vrot.slane %v242, 2
    %v244 = vadd.f32 %v242, %v243
    %v245 = vrot.slane %v244, 1
    %v246 = vadd.f32 %v244, %v245
    %v247 = vadd.f32 %v229, %v246
    %248 = vst.msk [vmem:[%s5] sm:$0x1] %vm227, %v247
  $region25: #{encoder_forward_impl.35} parent=0 // pred_fallthru
    _
  // Predicated region
  $region26: #{encoder_forward_impl.35} parent=0 // pred_check
    _
  $region27: #{encoder_forward_impl.35} parent=0 // pred_check_branch
    %250 = sbr.rel (0) target = $region29
  $region28: #{encoder_forward_impl.35} parent=0 // pred_region
    _
  $region29: #{encoder_forward_impl.35} parent=0 // pred_fallthru
    _
  // Predicated region
  $region30: #{encoder_forward_impl.35} parent=0 // pred_check
    _
  $region31: #{encoder_forward_impl.35} parent=0 // pred_check_branch
    %252 = sbr.rel (0) target = $region33
  $region32: #{encoder_forward_impl.35} parent=0 // pred_region
    _
  $region33: #{encoder_forward_impl.35} parent=0 // pred_fallthru
    _
  // Predicated region
  $region34: #{encoder_forward_impl.35} parent=0 // pred_check
    _
  $region35: #{encoder_forward_impl.35} parent=0 // pred_check_branch
    %254 = sbr.rel (0) target = $region37
  $region36: #{encoder_forward_impl.35} parent=0 // pred_region
    _
  $region37: #{encoder_forward_impl.35} parent=0 // pred_fallthru
    _
  // Predicated region
  $region38: #{encoder_forward_impl.35} parent=0 // pred_check
    _
  $region39: #{encoder_forward_impl.35} parent=0 // pred_check_branch
    %256 = sbr.rel (0) target = $region41
  $region40: #{encoder_forward_impl.35} parent=0 // pred_region
    _
  $region41: #{encoder_forward_impl.35} parent=0 // pred_fallthru
    _
  // Predicated region
  $region42: #{encoder_forward_impl.35} parent=0 // pred_check
    _
  $region43: #{encoder_forward_impl.35} parent=0 // pred_check_branch
    %258 = sbr.rel (0) target = $region45
  $region44: #{encoder_forward_impl.35} parent=0 // pred_region
    _
  $region45: #{encoder_forward_impl.35} parent=0 // pred_fallthru
    _
  // Predicated region
  $region46: #{encoder_forward_impl.35} parent=0 // pred_check
    _
  $region47: #{encoder_forward_impl.35} parent=0 // pred_check_branch
    %260 = sbr.rel (0) target = $region49
  $region48: #{encoder_forward_impl.35} parent=0 // pred_region
    _
  $region49: #{encoder_forward_impl.35} parent=0 // pred_fallthru
    _

// kernel: tile.192
$region0: #{tile.192}
  #allocation0 [shape = 's32[1]{0}', space=sflag, size = 0x4, scoped, tag = 'scoped memory for tile.192']
  %s0 = inlined_call_operand.vmem [shape: f32[8], index: 0, kind: input, shape index: {}]
  %s1 = inlined_call_operand.vmem [shape: f32[4,8], index: 1, kind: output, shape index: {}]
  // Predicated region
  $region2: #{tile.192} parent=0 // pred_check
    _
  $region3: #{tile.192} parent=0 // pred_check_branch
    %3 = sbr.rel (0) target = $region5
  $region4: #{tile.192} parent=0 // pred_region
    _
  $region5: #{tile.192} parent=0 // pred_fallthru
    _
  %v4 = vld [vmem:[%s0] ss:$0 sm:$0xff]
  %5 = vst [vmem:[%s1] sm:$0xf] %v4

// kernel: tile.193
$region0: #{tile.193}
  %s0 = inlined_call_operand.vmem [shape: f32[4,8], index: 0, kind: input, shape index: {}]
  %s1 = inlined_call_operand.vmem [shape: f32[1,32], index: 1, kind: output, shape index: {}]
  $region1: #{tile.193} parent=0
    #allocation0 [shape = 'u8[4096]{0}', space=vmem, size = 0x1000, scoped, tag = 'scoped mem for output reshape']
    #allocation1 [shape = 'u8[4096]{0}', space=vmem, size = 0x1000, scoped, tag = 'scoped mem for input reshape']
    %s3 = sshll.u32 1, 4
    %s4 = ssub.s32 %s3, 1
    %v5 = vld [vmem:[%s0] sm:%s4]
    %6 = vst [vmem:[#allocation1] sm:%s4] %v5
    %v7 = vld [vmem:[#allocation1] sm:$0x1]
    %vm8 = vcmask 64512
    %9 = vst.msk [vmem:[#allocation0] sm:$0x1] %vm8, %v7
    %s10 = scalar_lea.vmem [#allocation1], 3
    %v11 = vld [vmem:[%s10] sm:$0x1]
    %12 = vrot.lane.b32.xlu0 %v11, 24
    %v13 = vpop.permute.xlu0 %12
    %vm14 = vcmask 261312
    %15 = vst.msk [vmem:[#allocation0] sm:$0x1] %vm14, %v13
    %s16 = scalar_lea.vmem [#allocation1], 2
    %v17 = vld [vmem:[%s16] sm:$0x1]
    %18 = vrot.lane.b32.xlu0 %v17, 16
    %v19 = vpop.permute.xlu0 %18
    %vm20 = vcmask 195712
    %21 = vst.msk [vmem:[#allocation0] sm:$0x1] %vm20, %v19
    %s22 = scalar_lea.vmem [#allocation1], 1
    %v23 = vld [vmem:[%s22] sm:$0x1]
    %24 = vrot.lane.b32.xlu0 %v23, 8
    %v25 = vpop.permute.xlu0 %24
    %vm26 = vcmask 130112
    %27 = vst.msk [vmem:[#allocation0] sm:$0x1] %vm26, %v25
    %s29 = sshll.u32 1, 1
    %s30 = ssub.s32 %s29, 1
    %v32 = vld [vmem:[#allocation0] sm:%s30]
    %s33 = sshll.u32 1, 1
    %s34 = ssub.s32 %s33, 1
    %35 = vst [vmem:[%s1] sm:%s34] %v32

// kernel: encoder_forward_impl.37
$region0: #{encoder_forward_impl.37}
  #allocation0 [shape = 'u32[]', space=smem, size = 0x4, offset = 0x4, fixed_abs, tag = 'smem constant byte address 0x4 - core index']
  #allocation1 [shape = 'u32[144,128]{1,0:T(1,128)}', space=vmem, size = 0x12000, scoped, tag = 'internal scratch']
  #allocation2 [shape = 'f32[128,32]{1,0:T(8,128)}', space=vmem, size = 0x10000, scoped, tag = 'scratch operand']
  %s0 = inlined_call_operand.vmem [shape: bf16[128,64], index: 0, kind: input, shape index: {}]
  %s1 = inlined_call_operand.vmem [shape: bf16[64,32], index: 1, kind: input, shape index: {}]
  %s2 = inlined_call_operand.vmem [shape: f32[1,32], index: 2, kind: input, shape index: {}]
  %s3 = inlined_call_operand.vmem [shape: bf16[128,32], index: 3, kind: output, shape index: {0}]
  %s4 = inlined_call_operand.vmem [shape: f32[1,32], index: 4, kind: output, shape index: {1}]
  %s5 = inlined_call_operand.vmem [shape: f32[1,32], index: 5, kind: output, shape index: {2}]
  %6 = xla_tuple %s3, %s4, %s5
  %s7 = sld [smem:[#allocation0]]
  $region50: #{encoder_forward_impl.37} parent=0
    _
  %s9 = ssub.s32 1, %s7
  %s10 = scalar_select 0, %s9, %s7
  // Predicated region
  $region2: #{encoder_forward_impl.37} parent=0 // pred_check
    _
  $region3: #{encoder_forward_impl.37} parent=0 // pred_check_branch
    %12 = sbr.rel (0) target = $region5
  $region4: #{encoder_forward_impl.37} parent=0 // pred_region
    _
  $region5: #{encoder_forward_impl.37} parent=0 // pred_fallthru
    _
  // Predicated region
  $region6: #{encoder_forward_impl.37} parent=0 // pred_check
    _
  $region7: #{encoder_forward_impl.37} parent=0 // pred_check_branch
    %14 = sbr.rel (0) target = $region9
  $region8: #{encoder_forward_impl.37} parent=0 // pred_region
    _
  $region9: #{encoder_forward_impl.37} parent=0 // pred_fallthru
    _
  // Predicated region
  $region10: #{encoder_forward_impl.37} parent=0 // pred_check
    _
  $region11: #{encoder_forward_impl.37} parent=0 // pred_check_branch
    %16 = sbr.rel (0) target = $region13
  $region12: #{encoder_forward_impl.37} parent=0 // pred_region
    _
  $region13: #{encoder_forward_impl.37} parent=0 // pred_fallthru
    _
  %p18 = scmp.eq.s32.totalorder 0, 0
  // Predicated region
  $region14: #{encoder_forward_impl.37} parent=0 // pred_check
    %p19 = pneg %p18
  $region15: #{encoder_forward_impl.37} parent=0 // pred_check_branch
    %21 = sbr.rel (%p19) target = $region17
  $region16: #{encoder_forward_impl.37} parent=0 // pred_region
    %v22 = vld [vmem:[%s2] sm:$0x1]
    %v24 = vlaneseq
    %v25 = vshrl.u32 %v24, 7
    %v26 = vsub.s32 0, %v25
    %v27 = vrot.slane %v22, %v26
    %vm29 = vcmask 261120
    %30 = vst.msk [vmem:[#allocation2] sm:$0xff] %vm29, %v27
    %31 = vst.msk [vmem:[#allocation2 + $0x8] sm:$0xff] %vm29, %v27
    %32 = vst.msk [vmem:[#allocation2 + $0x10] sm:$0xff] %vm29, %v27
    %33 = vst.msk [vmem:[#allocation2 + $0x18] sm:$0xff] %vm29, %v27
    %34 = vst.msk [vmem:[#allocation2 + $0x20] sm:$0xff] %vm29, %v27
    %35 = vst.msk [vmem:[#allocation2 + $0x28] sm:$0xff] %vm29, %v27
    %36 = vst.msk [vmem:[#allocation2 + $0x30] sm:$0xff] %vm29, %v27
    %37 = vst.msk [vmem:[#allocation2 + $0x38] sm:$0xff] %vm29, %v27
    %38 = vst.msk [vmem:[#allocation2 + $0x40] sm:$0xff] %vm29, %v27
    %39 = vst.msk [vmem:[#allocation2 + $0x48] sm:$0xff] %vm29, %v27
    %40 = vst.msk [vmem:[#allocation2 + $0x50] sm:$0xff] %vm29, %v27
    %41 = vst.msk [vmem:[#allocation2 + $0x58] sm:$0xff] %vm29, %v27
    %42 = vst.msk [vmem:[#allocation2 + $0x60] sm:$0xff] %vm29, %v27
    %43 = vst.msk [vmem:[#allocation2 + $0x68] sm:$0xff] %vm29, %v27
    %44 = vst.msk [vmem:[#allocation2 + $0x70] sm:$0xff] %vm29, %v27
    %45 = vst.msk [vmem:[#allocation2 + $0x78] sm:$0xff] %vm29, %v27
  $region17: #{encoder_forward_impl.37} parent=0 // pred_fallthru
    _
  %v46 = vld [vmem:[#allocation2] sm:$0xff]
  %v47 = vld [vmem:[#allocation2 + $0x8] sm:$0xff]
  %v48 = vld [vmem:[#allocation2 + $0x10] sm:$0xff]
  %v49 = vld [vmem:[#allocation2 + $0x18] sm:$0xff]
  %v50 = vld [vmem:[#allocation2 + $0x20] sm:$0xff]
  %v51 = vld [vmem:[#allocation2 + $0x28] sm:$0xff]
  %v52 = vld [vmem:[#allocation2 + $0x30] sm:$0xff]
  %v53 = vld [vmem:[#allocation2 + $0x38] sm:$0xff]
  %v54 = vld [vmem:[#allocation2 + $0x40] sm:$0xff]
  %v55 = vld [vmem:[#allocation2 + $0x48] sm:$0xff]
  %v56 = vld [vmem:[#allocation2 + $0x50] sm:$0xff]
  %v57 = vld [vmem:[#allocation2 + $0x58] sm:$0xff]
  %v58 = vld [vmem:[#allocation2 + $0x60] sm:$0xff]
  %v59 = vld [vmem:[#allocation2 + $0x68] sm:$0xff]
  %v60 = vld [vmem:[#allocation2 + $0x70] sm:$0xff]
  %v61 = vld [vmem:[#allocation2 + $0x78] sm:$0xff]
  %v62 = vld [vmem:[%s0] sm:$0xf]
  %v63 = vld [vmem:[%s0 + $0x4] sm:$0xf]
  %v64 = vld [vmem:[%s0 + $0x8] sm:$0xf]
  %v65 = vld [vmem:[%s0 + $0xc] sm:$0xf]
  %v66 = vld [vmem:[%s0 + $0x10] sm:$0xf]
  %v67 = vld [vmem:[%s0 + $0x14] sm:$0xf]
  %v68 = vld [vmem:[%s0 + $0x18] sm:$0xf]
  %v69 = vld [vmem:[%s0 + $0x1c] sm:$0xf]
  %v70 = vld [vmem:[%s0 + $0x20] sm:$0xf]
  %v71 = vld [vmem:[%s0 + $0x24] sm:$0xf]
  %v72 = vld [vmem:[%s0 + $0x28] sm:$0xf]
  %v73 = vld [vmem:[%s0 + $0x2c] sm:$0xf]
  %v74 = vld [vmem:[%s0 + $0x30] sm:$0xf]
  %v75 = vld [vmem:[%s0 + $0x34] sm:$0xf]
  %v76 = vld [vmem:[%s0 + $0x38] sm:$0xf]
  %v77 = vld [vmem:[%s0 + $0x3c] sm:$0xf]
  %v78 = vld [vmem:[%s1] sm:$0xf]
  %v79 = vld [vmem:[%s1 + $0x4] sm:$0xf]
  %v80 = vld [vmem:[%s1 + $0x8] sm:$0xf]
  %v81 = vld [vmem:[%s1 + $0xc] sm:$0xf]
  %v82 = vld [vmem:[%s1 + $0x10] sm:$0xf]
  %v83 = vld [vmem:[%s1 + $0x14] sm:$0xf]
  %v84 = vld [vmem:[%s1 + $0x18] sm:$0xf]
  %v85 = vld [vmem:[%s1 + $0x1c] sm:$0xf]
  %v102 = vunpack.c.l.b16 %v62
  %v103 = vunpack.c.l.b16 %v63
  %v104 = vunpack.c.l.b16 %v64
  %v105 = vunpack.c.l.b16 %v65
  %v106 = vunpack.c.l.b16 %v66
  %v107 = vunpack.c.l.b16 %v67
  %v108 = vunpack.c.l.b16 %v68
  %v109 = vunpack.c.l.b16 %v69
  %v110 = vunpack.c.l.b16 %v70
  %v111 = vunpack.c.l.b16 %v71
  %v112 = vunpack.c.l.b16 %v72
  %v113 = vunpack.c.l.b16 %v73
  %v114 = vunpack.c.l.b16 %v74
  %v115 = vunpack.c.l.b16 %v75
  %v116 = vunpack.c.l.b16 %v76
  %v117 = vunpack.c.l.b16 %v77
  %v118 = vpack.c.b16 %v103, %v102
  %v119 = vpack.c.b16 %v105, %v104
  %v120 = vpack.c.b16 %v107, %v106
  %v121 = vpack.c.b16 %v109, %v108
  %v122 = vpack.c.b16 %v111, %v110
  %v123 = vpack.c.b16 %v113, %v112
  %v124 = vpack.c.b16 %v115, %v114
  %v125 = vpack.c.b16 %v117, %v116
  %v134 = vunpack.c.l.b16 %v78
  %v135 = vunpack.c.l.b16 %v79
  %v136 = vunpack.c.l.b16 %v80
  %v137 = vunpack.c.l.b16 %v81
  %v138 = vunpack.c.l.b16 %v82
  %v139 = vunpack.c.l.b16 %v83
  %v140 = vunpack.c.l.b16 %v84
  %v141 = vunpack.c.l.b16 %v85
  %v142 = vpack.c.b16 %v135, %v134
  %v143 = vpack.c.b16 %v137, %v136
  %v144 = vpack.c.b16 %v139, %v138
  %v145 = vpack.c.b16 %v141, %v140
  %vm150 = vcmask 523264
  %v152 = vsel %vm150, %v118, 0
  %v155 = vsel %vm150, %v119, 0
  %v158 = vsel %vm150, %v120, 0
  %v161 = vsel %vm150, %v121, 0
  %v164 = vsel %vm150, %v122, 0
  %v167 = vsel %vm150, %v123, 0
  %v170 = vsel %vm150, %v124, 0
  %v173 = vsel %vm150, %v125, 0
  %175 = vmatprep.subr.bf16.mxu0 0
  %176 = vmatpush1.bf16.msra.mxu0 0
  %177 = vmatprep.subr.bf16.mxu0 0
  %178 = vmatpush1.bf16.msra.mxu0 0
  %179 = vmatprep.subr.bf16.mxu0 0
  %180 = vmatpush1.bf16.msra.mxu0 0
  %181 = vmatprep.subr.bf16.mxu0 0
  %182 = vmatpush1.bf16.msra.mxu0 0
  %183 = vmatprep.subr.bf16.mxu0 0
  %184 = vmatpush1.bf16.msra.mxu0 %v145
  %185 = vmatprep.subr.bf16.mxu0 0
  %186 = vmatpush1.bf16.msra.mxu0 %v144
  %187 = vmatprep.subr.bf16.mxu0 0
  %188 = vmatpush1.bf16.msra.mxu0 %v143
  %189 = vmatprep.subr.bf16.mxu0 0
  %190 = vmatpush1.bf16.msra.mxu0 %v142
  %191 = vmatprep.subr.bf16.mxu0 0
  %192 = vmatpush2.bf16.msra.mxu0 0
  %193 = vmatprep.subr.bf16.mxu0 0
  %194 = vmatpush2.bf16.msra.mxu0 0
  %195 = vmatprep.subr.bf16.mxu0 0
  %196 = vmatpush2.bf16.msra.mxu0 0
  %197 = vmatprep.subr.bf16.mxu0 0
  %198 = vmatpush2.bf16.msra.mxu0 0
  %199 = vmatprep.subr.bf16.mxu0 0
  %200 = vmatpush2.bf16.msra.mxu0 0
  %201 = vmatprep.subr.bf16.mxu0 0
  %202 = vmatpush2.bf16.msra.mxu0 0
  %203 = vmatprep.subr.bf16.mxu0 0
  %204 = vmatpush2.bf16.msra.mxu0 0
  %205 = vmatprep.subr.bf16.mxu0 0
  %206 = vmatpush2.bf16.msra.mxu0 0
  %207 = vmatprep.mubr.bf16.mxu0 0
  %208 = vmatmul.mubr.bf16.gmra.mxu0 %v152
  %v209 = vpop.f32.mrf.mxu0
  %v210 = vadd.f32 0.0, %v209
  %v211 = vpop.f32.mrf.mxu0
  %v212 = vpop.f32.mrf.mxu0
  %v213 = vadd.f32 0.0, %v212
  %v214 = vpop.f32.mrf.mxu0
  %215 = vmatprep.mubr.bf16.mxu0 0
  %216 = vmatmul.mubr.bf16.gmra.mxu0 %v155
  %v217 = vpop.f32.mrf.mxu0
  %v218 = vadd.f32 0.0, %v217
  %v219 = vpop.f32.mrf.mxu0
  %v220 = vpop.f32.mrf.mxu0
  %v221 = vadd.f32 0.0, %v220
  %v222 = vpop.f32.mrf.mxu0
  %223 = vmatprep.mubr.bf16.mxu0 0
  %224 = vmatmul.mubr.bf16.gmra.mxu0 %v158
  %v225 = vpop.f32.mrf.mxu0
  %v226 = vadd.f32 0.0, %v225
  %v227 = vpop.f32.mrf.mxu0
  %v228 = vpop.f32.mrf.mxu0
  %v229 = vadd.f32 0.0, %v228
  %v230 = vpop.f32.mrf.mxu0
  %231 = vmatprep.mubr.bf16.mxu0 0
  %232 = vmatmul.mubr.bf16.gmra.mxu0 %v161
  %v233 = vpop.f32.mrf.mxu0
  %v234 = vadd.f32 0.0, %v233
  %v235 = vpop.f32.mrf.mxu0
  %v236 = vpop.f32.mrf.mxu0
  %v237 = vadd.f32 0.0, %v236
  %v238 = vpop.f32.mrf.mxu0
  %239 = vmatprep.mubr.bf16.mxu0 0
  %240 = vmatmul.mubr.bf16.gmra.mxu0 %v164
  %v241 = vpop.f32.mrf.mxu0
  %v242 = vadd.f32 0.0, %v241
  %v243 = vpop.f32.mrf.mxu0
  %v244 = vpop.f32.mrf.mxu0
  %v245 = vadd.f32 0.0, %v244
  %v246 = vpop.f32.mrf.mxu0
  %247 = vmatprep.mubr.bf16.mxu0 0
  %248 = vmatmul.mubr.bf16.gmra.mxu0 %v167
  %v249 = vpop.f32.mrf.mxu0
  %v250 = vadd.f32 0.0, %v249
  %v251 = vpop.f32.mrf.mxu0
  %v252 = vpop.f32.mrf.mxu0
  %v253 = vadd.f32 0.0, %v252
  %v254 = vpop.f32.mrf.mxu0
  %255 = vmatprep.mubr.bf16.mxu0 0
  %256 = vmatmul.mubr.bf16.gmra.mxu0 %v170
  %v257 = vpop.f32.mrf.mxu0
  %v258 = vadd.f32 0.0, %v257
  %v259 = vpop.f32.mrf.mxu0
  %v260 = vpop.f32.mrf.mxu0
  %v261 = vadd.f32 0.0, %v260
  %v262 = vpop.f32.mrf.mxu0
  %263 = vmatprep.mubr.bf16.mxu0 0
  %264 = vmatmul.mubr.bf16.gmra.mxu0 %v173
  %v265 = vpop.f32.mrf.mxu0
  %v266 = vadd.f32 0.0, %v265
  %v267 = vpop.f32.mrf.mxu0
  %v268 = vpop.f32.mrf.mxu0
  %v269 = vadd.f32 0.0, %v268
  %v270 = vpop.f32.mrf.mxu0
  %271 = vdwg.mxu0
  %v272 = vadd.f32 %v46, %v210
  %v273 = vadd.f32 %v47, %v213
  %v274 = vadd.f32 %v48, %v218
  %v275 = vadd.f32 %v49, %v221
  %v276 = vadd.f32 %v50, %v226
  %v277 = vadd.f32 %v51, %v229
  %v278 = vadd.f32 %v52, %v234
  %v279 = vadd.f32 %v53, %v237
  %v280 = vadd.f32 %v54, %v242
  %v281 = vadd.f32 %v55, %v245
  %v282 = vadd.f32 %v56, %v250
  %v283 = vadd.f32 %v57, %v253
  %v284 = vadd.f32 %v58, %v258
  %v285 = vadd.f32 %v59, %v261
  %v286 = vadd.f32 %v60, %v266
  %v287 = vadd.f32 %v61, %v269
  %vm288 = vcmask 261120
  %289 = vst.msk [vmem:[#allocation2] sm:$0xff] %vm288, %v272
  %290 = vst.msk [vmem:[#allocation2 + $0x8] sm:$0xff] %vm288, %v273
  %291 = vst.msk [vmem:[#allocation2 + $0x10] sm:$0xff] %vm288, %v274
  %292 = vst.msk [vmem:[#allocation2 + $0x18] sm:$0xff] %vm288, %v275
  %293 = vst.msk [vmem:[#allocation2 + $0x20] sm:$0xff] %vm288, %v276
  %294 = vst.msk [vmem:[#allocation2 + $0x28] sm:$0xff] %vm288, %v277
  %295 = vst.msk [vmem:[#allocation2 + $0x30] sm:$0xff] %vm288, %v278
  %296 = vst.msk [vmem:[#allocation2 + $0x38] sm:$0xff] %vm288, %v279
  %297 = vst.msk [vmem:[#allocation2 + $0x40] sm:$0xff] %vm288, %v280
  %298 = vst.msk [vmem:[#allocation2 + $0x48] sm:$0xff] %vm288, %v281
  %299 = vst.msk [vmem:[#allocation2 + $0x50] sm:$0xff] %vm288, %v282
  %300 = vst.msk [vmem:[#allocation2 + $0x58] sm:$0xff] %vm288, %v283
  %301 = vst.msk [vmem:[#allocation2 + $0x60] sm:$0xff] %vm288, %v284
  %302 = vst.msk [vmem:[#allocation2 + $0x68] sm:$0xff] %vm288, %v285
  %303 = vst.msk [vmem:[#allocation2 + $0x70] sm:$0xff] %vm288, %v286
  %304 = vst.msk [vmem:[#allocation2 + $0x78] sm:$0xff] %vm288, %v287
  %p305 = scmp.eq.s32.totalorder 0, 0
  %p306 = pnand %p305, %p18
  %p307 = pneg %p306
  // Predicated region
  $region18: #{encoder_forward_impl.37} parent=0 // pred_check
    _
  $region19: #{encoder_forward_impl.37} parent=0 // pred_check_branch
    %309 = sbr.rel (%p306) target = $region21
  $region20: #{encoder_forward_impl.37} parent=0 // pred_region
    %vm310 = vcmask 253952
    %311 = vst.msk [vmem:[%s4] sm:$0x1] %vm310, 0.0
    %312 = vst.msk [vmem:[%s5] sm:$0x1] %vm310, 0.0
  $region21: #{encoder_forward_impl.37} parent=0 // pred_fallthru
    _
  // Predicated region
  $region22: #{encoder_forward_impl.37} parent=0 // pred_check
    %p313 = pneg %p18
  $region23: #{encoder_forward_impl.37} parent=0 // pred_check_branch
    %315 = sbr.rel (%p313) target = $region25
  $region24: #{encoder_forward_impl.37} parent=0 // pred_region
    %v316 = vld [vmem:[#allocation2] sm:$0xff]
    %v317 = vld [vmem:[#allocation2 + $0x8] sm:$0xff]
    %v318 = vld [vmem:[#allocation2 + $0x10] sm:$0xff]
    %v319 = vld [vmem:[#allocation2 + $0x18] sm:$0xff]
    %v320 = vld [vmem:[#allocation2 + $0x20] sm:$0xff]
    %v321 = vld [vmem:[#allocation2 + $0x28] sm:$0xff]
    %v322 = vld [vmem:[#allocation2 + $0x30] sm:$0xff]
    %v323 = vld [vmem:[#allocation2 + $0x38] sm:$0xff]
    %v324 = vld [vmem:[#allocation2 + $0x40] sm:$0xff]
    %v325 = vld [vmem:[#allocation2 + $0x48] sm:$0xff]
    %v326 = vld [vmem:[#allocation2 + $0x50] sm:$0xff]
    %v327 = vld [vmem:[#allocation2 + $0x58] sm:$0xff]
    %v328 = vld [vmem:[#allocation2 + $0x60] sm:$0xff]
    %v329 = vld [vmem:[#allocation2 + $0x68] sm:$0xff]
    %v330 = vld [vmem:[#allocation2 + $0x70] sm:$0xff]
    %v331 = vld [vmem:[#allocation2 + $0x78] sm:$0xff]
    %v332 = vpack.c.bf16 %v317, %v316
    %v333 = vpack.c.bf16 %v319, %v318
    %v334 = vpack.c.bf16 %v321, %v320
    %v335 = vpack.c.bf16 %v323, %v322
    %v336 = vpack.c.bf16 %v325, %v324
    %v337 = vpack.c.bf16 %v327, %v326
    %v338 = vpack.c.bf16 %v329, %v328
    %v339 = vpack.c.bf16 %v331, %v330
    %v348 = vunpack.c.l.b16 %v332
    %v349 = vunpack.c.h.b16 %v332
    %v350 = vunpack.c.l.b16 %v333
    %v351 = vunpack.c.h.b16 %v333
    %v352 = vunpack.c.l.b16 %v334
    %v353 = vunpack.c.h.b16 %v334
    %v354 = vunpack.c.l.b16 %v335
    %v355 = vunpack.c.h.b16 %v335
    %v356 = vunpack.c.l.b16 %v336
    %v357 = vunpack.c.h.b16 %v336
    %v358 = vunpack.c.l.b16 %v337
    %v359 = vunpack.c.h.b16 %v337
    %v360 = vunpack.c.l.b16 %v338
    %v361 = vunpack.c.h.b16 %v338
    %v362 = vunpack.c.l.b16 %v339
    %v363 = vunpack.c.h.b16 %v339
    %v364 = vpack.c.b16 %v348, %v348
    %v365 = vpack.c.b16 %v349, %v349
    %v366 = vpack.c.b16 %v350, %v350
    %v367 = vpack.c.b16 %v351, %v351
    %v368 = vpack.c.b16 %v352, %v352
    %v369 = vpack.c.b16 %v353, %v353
    %v370 = vpack.c.b16 %v354, %v354
    %v371 = vpack.c.b16 %v355, %v355
    %v372 = vpack.c.b16 %v356, %v356
    %v373 = vpack.c.b16 %v357, %v357
    %v374 = vpack.c.b16 %v358, %v358
    %v375 = vpack.c.b16 %v359, %v359
    %v376 = vpack.c.b16 %v360, %v360
    %v377 = vpack.c.b16 %v361, %v361
    %v378 = vpack.c.b16 %v362, %v362
    %v379 = vpack.c.b16 %v363, %v363
    %vm396 = vcmask 257024
    %397 = vst.msk [vmem:[%s3] sm:$0xf] %vm396, %v364
    %398 = vst.msk [vmem:[%s3 + $0x4] sm:$0xf] %vm396, %v365
    %399 = vst.msk [vmem:[%s3 + $0x8] sm:$0xf] %vm396, %v366
    %400 = vst.msk [vmem:[%s3 + $0xc] sm:$0xf] %vm396, %v367
    %401 = vst.msk [vmem:[%s3 + $0x10] sm:$0xf] %vm396, %v368
    %402 = vst.msk [vmem:[%s3 + $0x14] sm:$0xf] %vm396, %v369
    %403 = vst.msk [vmem:[%s3 + $0x18] sm:$0xf] %vm396, %v370
    %404 = vst.msk [vmem:[%s3 + $0x1c] sm:$0xf] %vm396, %v371
    %405 = vst.msk [vmem:[%s3 + $0x20] sm:$0xf] %vm396, %v372
    %406 = vst.msk [vmem:[%s3 + $0x24] sm:$0xf] %vm396, %v373
    %407 = vst.msk [vmem:[%s3 + $0x28] sm:$0xf] %vm396, %v374
    %408 = vst.msk [vmem:[%s3 + $0x2c] sm:$0xf] %vm396, %v375
    %409 = vst.msk [vmem:[%s3 + $0x30] sm:$0xf] %vm396, %v376
    %410 = vst.msk [vmem:[%s3 + $0x34] sm:$0xf] %vm396, %v377
    %411 = vst.msk [vmem:[%s3 + $0x38] sm:$0xf] %vm396, %v378
    %412 = vst.msk [vmem:[%s3 + $0x3c] sm:$0xf] %vm396, %v379
    %v413 = vld [vmem:[%s4] sm:$0x1]
    %v414 = vsel %vm288, %v316, 0.0
    %v415 = vsel %vm288, %v317, 0.0
    %v416 = vadd.f32 %v414, %v415
    %v417 = vsel %vm288, %v318, 0.0
    %v418 = vadd.f32 %v416, %v417
    %v419 = vsel %vm288, %v319, 0.0
    %v420 = vadd.f32 %v418, %v419
    %v421 = vsel %vm288, %v320, 0.0
    %v422 = vadd.f32 %v420, %v421
    %v423 = vsel %vm288, %v321, 0.0
    %v424 = vadd.f32 %v422, %v423
    %v425 = vsel %vm288, %v322, 0.0
    %v426 = vadd.f32 %v424, %v425
    %v427 = vsel %vm288, %v323, 0.0
    %v428 = vadd.f32 %v426, %v427
    %v429 = vsel %vm288, %v324, 0.0
    %v430 = vadd.f32 %v428, %v429
    %v431 = vsel %vm288, %v325, 0.0
    %v432 = vadd.f32 %v430, %v431
    %v433 = vsel %vm288, %v326, 0.0
    %v434 = vadd.f32 %v432, %v433
    %v435 = vsel %vm288, %v327, 0.0
    %v436 = vadd.f32 %v434, %v435
    %v437 = vsel %vm288, %v328, 0.0
    %v438 = vadd.f32 %v436, %v437
    %v439 = vsel %vm288, %v329, 0.0
    %v440 = vadd.f32 %v438, %v439
    %v441 = vsel %vm288, %v330, 0.0
    %v442 = vadd.f32 %v440, %v441
    %v443 = vsel %vm288, %v331, 0.0
    %v444 = vadd.f32 %v442, %v443
    %v445 = vrot.slane %v444, 4
    %v446 = vadd.f32 %v444, %v445
    %v447 = vrot.slane %v446, 2
    %v448 = vadd.f32 %v446, %v447
    %v449 = vrot.slane %v448, 1
    %v450 = vadd.f32 %v448, %v449
    %v451 = vadd.f32 %v413, %v450
    %vm452 = vcmask 253952
    %453 = vst.msk [vmem:[%s4] sm:$0x1] %vm452, %v451
    %v454 = vld [vmem:[%s5] sm:$0x1]
    %v455 = vmul.f32 %v316, %v316
    %v456 = vmul.f32 %v317, %v317
    %v457 = vmul.f32 %v318, %v318
    %v458 = vmul.f32 %v319, %v319
    %v459 = vmul.f32 %v320, %v320
    %v460 = vmul.f32 %v321, %v321
    %v461 = vmul.f32 %v322, %v322
    %v462 = vmul.f32 %v323, %v323
    %v463 = vmul.f32 %v324, %v324
    %v464 = vmul.f32 %v325, %v325
    %v465 = vmul.f32 %v326, %v326
    %v466 = vmul.f32 %v327, %v327
    %v467 = vmul.f32 %v328, %v328
    %v468 = vmul.f32 %v329, %v329
    %v469 = vmul.f32 %v330, %v330
    %v470 = vmul.f32 %v331, %v331
    %v471 = vsel %vm288, %v455, 0.0
    %v472 = vsel %vm288, %v456, 0.0
    %v473 = vadd.f32 %v471, %v472
    %v474 = vsel %vm288, %v457, 0.0
    %v475 = vadd.f32 %v473, %v474
    %v476 = vsel %vm288, %v458, 0.0
    %v477 = vadd.f32 %v475, %v476
    %v478 = vsel %vm288, %v459, 0.0
    %v479 = vadd.f32 %v477, %v478
    %v480 = vsel %vm288, %v460, 0.0
    %v481 = vadd.f32 %v479, %v480
    %v482 = vsel %vm288, %v461, 0.0
    %v483 = vadd.f32 %v481, %v482
    %v484 = vsel %vm288, %v462, 0.0
    %v485 = vadd.f32 %v483, %v484
    %v486 = vsel %vm288, %v463, 0.0
    %v487 = vadd.f32 %v485, %v486
    %v488 = vsel %vm288, %v464, 0.0
    %v489 = vadd.f32 %v487, %v488
    %v490 = vsel %vm288, %v465, 0.0
    %v491 = vadd.f32 %v489, %v490
    %v492 = vsel %vm288, %v466, 0.0
    %v493 = vadd.f32 %v491, %v492
    %v494 = vsel %vm288, %v467, 0.0
    %v495 = vadd.f32 %v493, %v494
    %v496 = vsel %vm288, %v468, 0.0
    %v497 = vadd.f32 %v495, %v496
    %v498 = vsel %vm288, %v469, 0.0
    %v499 = vadd.f32 %v497, %v498
    %v500 = vsel %vm288, %v470, 0.0
    %v501 = vadd.f32 %v499, %v500
    %v502 = vrot.slane %v501, 4
    %v503 = vadd.f32 %v501, %v502
    %v504 = vrot.slane %v503, 2
    %v505 = vadd.f32 %v503, %v504
    %v506 = vrot.slane %v505, 1
    %v507 = vadd.f32 %v505, %v506
    %v508 = vadd.f32 %v454, %v507
    %509 = vst.msk [vmem:[%s5] sm:$0x1] %vm452, %v508
  $region25: #{encoder_forward_impl.37} parent=0 // pred_fallthru
    _
  // Predicated region
  $region26: #{encoder_forward_impl.37} parent=0 // pred_check
    _
  $region27: #{encoder_forward_impl.37} parent=0 // pred_check_branch
    %511 = sbr.rel (0) target = $region29
  $region28: #{encoder_forward_impl.37} parent=0 // pred_region
    _
  $region29: #{encoder_forward_impl.37} parent=0 // pred_fallthru
    _
  // Predicated region
  $region30: #{encoder_forward_impl.37} parent=0 // pred_check
    _
  $region31: #{encoder_forward_impl.37} parent=0 // pred_check_branch
    %513 = sbr.rel (0) target = $region33
  $region32: #{encoder_forward_impl.37} parent=0 // pred_region
    _
  $region33: #{encoder_forward_impl.37} parent=0 // pred_fallthru
    _
  // Predicated region
  $region34: #{encoder_forward_impl.37} parent=0 // pred_check
    _
  $region35: #{encoder_forward_impl.37} parent=0 // pred_check_branch
    %515 = sbr.rel (0) target = $region37
  $region36: #{encoder_forward_impl.37} parent=0 // pred_region
    _
  $region37: #{encoder_forward_impl.37} parent=0 // pred_fallthru
    _
  // Predicated region
  $region38: #{encoder_forward_impl.37} parent=0 // pred_check
    _
  $region39: #{encoder_forward_impl.37} parent=0 // pred_check_branch
    %517 = sbr.rel (0) target = $region41
  $region40: #{encoder_forward_impl.37} parent=0 // pred_region
    _
  $region41: #{encoder_forward_impl.37} parent=0 // pred_fallthru
    _
  // Predicated region
  $region42: #{encoder_forward_impl.37} parent=0 // pred_check
    _
  $region43: #{encoder_forward_impl.37} parent=0 // pred_check_branch
    %519 = sbr.rel (0) target = $region45
  $region44: #{encoder_forward_impl.37} parent=0 // pred_region
    _
  $region45: #{encoder_forward_impl.37} parent=0 // pred_fallthru
    _
  // Predicated region
  $region46: #{encoder_forward_impl.37} parent=0 // pred_check
    _
  $region47: #{encoder_forward_impl.37} parent=0 // pred_check_branch
    %521 = sbr.rel (0) target = $region49
  $region48: #{encoder_forward_impl.37} parent=0 // pred_region
    _
  $region49: #{encoder_forward_impl.37} parent=0 // pred_fallthru
    _

// kernel: squeeze.80
$region0: #{squeeze.80}
  %s0 = inlined_call_operand.vmem [shape: s32[1,1,16,16], index: 0, kind: input, shape index: {}]
  %s1 = inlined_call_operand.vmem [shape: s32[256], index: 1, kind: output, shape index: {}]
  $region1: #{squeeze.80} parent=0
    #allocation0 [shape = 'u8[4096]{0}', space=vmem, size = 0x1000, scoped, tag = 'scoped mem for output reshape']
    %s2 = smov 3
    %v3 = vld [vmem:[%s0] ss:$8 sm:%s2]
    %vm4 = vcmask 130048
    %5 = vst.msk [vmem:[#allocation0] sm:$0x3] %vm4, %v3
    %s6 = scalar_lea.vmem %s0, 7
    %s7 = smov 3
    %v8 = vld [vmem:[%s6] ss:$8 sm:%s7]
    %9 = vrot.lane.b32.xlu0 %v8, 112
    %v10 = vpop.permute.xlu0 %9
    %vm11 = vcmask 1048448
    %12 = vst.msk [vmem:[#allocation0] sm:$0x3] %vm11, %v10
    %s13 = scalar_lea.vmem %s0, 6
    %s14 = smov 3
    %v15 = vld [vmem:[%s13] ss:$8 sm:%s14]
    %16 = vrot.lane.b32.xlu0 %v15, 96
    %v17 = vpop.permute.xlu0 %16
    %vm18 = vcmask 917248
    %19 = vst.msk [vmem:[#allocation0] sm:$0x3] %vm18, %v17
    %s20 = scalar_lea.vmem %s0, 5
    %s21 = smov 3
    %v22 = vld [vmem:[%s20] ss:$8 sm:%s21]
    %23 = vrot.lane.b32.xlu0 %v22, 80
    %v24 = vpop.permute.xlu0 %23
    %vm25 = vcmask 786048
    %26 = vst.msk [vmem:[#allocation0] sm:$0x3] %vm25, %v24
    %s27 = scalar_lea.vmem %s0, 4
    %s28 = smov 3
    %v29 = vld [vmem:[%s27] ss:$8 sm:%s28]
    %30 = vrot.lane.b32.xlu0 %v29, 64
    %v31 = vpop.permute.xlu0 %30
    %vm32 = vcmask 654848
    %33 = vst.msk [vmem:[#allocation0] sm:$0x3] %vm32, %v31
    %s34 = scalar_lea.vmem %s0, 3
    %s35 = smov 3
    %v36 = vld [vmem:[%s34] ss:$8 sm:%s35]
    %37 = vrot.lane.b32.xlu0 %v36, 48
    %v38 = vpop.permute.xlu0 %37
    %vm39 = vcmask 523648
    %40 = vst.msk [vmem:[#allocation0] sm:$0x3] %vm39, %v38
    %s41 = scalar_lea.vmem %s0, 2
    %s42 = smov 3
    %v43 = vld [vmem:[%s41] ss:$8 sm:%s42]
    %44 = vrot.lane.b32.xlu0 %v43, 32
    %v45 = vpop.permute.xlu0 %44
    %vm46 = vcmask 392448
    %47 = vst.msk [vmem:[#allocation0] sm:$0x3] %vm46, %v45
    %s48 = scalar_lea.vmem %s0, 1
    %s49 = smov 3
    %v50 = vld [vmem:[%s48] ss:$8 sm:%s49]
    %51 = vrot.lane.b32.xlu0 %v50, 16
    %v52 = vpop.permute.xlu0 %51
    %vm53 = vcmask 261248
    %54 = vst.msk [vmem:[#allocation0] sm:$0x3] %vm53, %v52
    %s56 = sshll.u32 1, 2
    %s57 = ssub.s32 %s56, 1
    %v59 = vld [vmem:[#allocation0] sm:%s57]
    %s60 = sshll.u32 1, 2
    %s61 = ssub.s32 %s60, 1
    %62 = vst [vmem:[%s1] sm:%s61] %v59

// kernel: custom-call
$region0: #{custom-call}
  %s0 = inlined_call_operand.vmem [shape: u32[256], index: 0, kind: output, shape index: {}]

// kernel: encoder_forward_impl.39
$region0: #{encoder_forward_impl.39}
  #allocation0 [shape = 'u32[]', space=smem, size = 0x4, offset = 0x4, fixed_abs, tag = 'smem constant byte address 0x4 - core index']
  #allocation1 [shape = 'u32[144,128]{1,0:T(1,128)}', space=vmem, size = 0x12000, scoped, tag = 'internal scratch']
  #allocation2 [shape = 'f32[256,3]{1,0:T(8,128)}', space=vmem, size = 0x20000, scoped, tag = 'scratch operand']
  %s0 = inlined_call_operand.vmem [shape: bf16[512,392], index: 0, kind: input, shape index: {}]
  %s1 = inlined_call_operand.vmem [shape: bf16[392,3], index: 1, kind: input, shape index: {}]
  %s2 = inlined_call_operand.vmem [shape: f32[1,3], index: 2, kind: input, shape index: {}]
  %s3 = inlined_call_operand.vmem [shape: f32[512,3], index: 3, kind: output, shape index: {}]
  %s4 = sld [smem:[#allocation0]]
  $region53: #{encoder_forward_impl.39} parent=0
    _
  %s6 = ssub.s32 1, %s4
  %s7 = scalar_select 0, %s6, %s4
  loop: start=0, step=1, limit=4
  $region2: #{encoder_forward_impl.39} parent=0 // loop_pre_header
    _
  $region3: #{encoder_forward_impl.39} parent=0 // loop_header
    %s9 = sphi 0, %s13
    %p10 = scmp.ge.s32.totalorder %s9, 4
    %s16 = sphi 0, %s35
    %s17 = sphi 0, %s31
    %s18 = sphi 0, %s27
    %s19 = sphi 0, %s16
    %s20 = sphi 0, %s17
    %s21 = sphi 0, %s18
    %s22 = sphi 0, %s19
    %s23 = sphi 0, %s20
    %s24 = sphi 0, %s21
    %s40 = sphi 0, %s42
    %s43 = sphi 0, %s40
    %s44 = sphi 0, %s43
    %s60 = sphi 0, %s44
    %s68 = sphi 0, %s70
    %s71 = sphi 0, %s68
    %s72 = sphi 0, %s71
    %s88 = sphi 0, %s72
    %s94 = sphi 0, %s96
    %s97 = sphi 0, %s94
    %s98 = sphi 0, %s97
    %s114 = sphi 0, %s98
    %s122 = sphi 0, %s124
    %s125 = sphi 0, %s122
    %s126 = sphi 0, %s125
    %s142 = sphi 0, %s126
  $region4: #{encoder_forward_impl.39} parent=0 // loop_header_branch
    %12 = sbr.rel (%p10) target = $region8
  $region5: #{encoder_forward_impl.39} parent=0 // loop_body
    %s14 = ssub.s32 %s9, 1
    %s15 = ssub.s32 %s9, 2
    %s25 = sadd.s32 1, %s18
    %p26 = scmp.ge.s32.totalorder %s25, 1
    %s27 = scalar_select %p26, 0, %s25
    %s28 = sadd.s32 1, %s17
    %s29 = scalar_select %p26, %s28, %s17
    %p30 = scmp.ge.s32.totalorder %s29, 2
    %s31 = scalar_select %p30, 0, %s29
    %s32 = sadd.s32 1, %s16
    %s33 = scalar_select %p30, %s32, %s16
    %p34 = scmp.ge.s32.totalorder %s33, 1
    %s35 = scalar_select %p34, 0, %s33
    %s36 = ssub.s32 %s17, %s31
    %s37 = ssub.s32 %s18, %s27
    %s38 = sor.u32 %s36, %s37
    %p39 = scmp.eq.s32.totalorder %s38, 0
    %s41 = sadd.s32 %s40, 1
    %s42 = scalar_select %p39, %s40, %s41
    %p45 = pneg %p39
    %p46 = scmp.eq.s32.totalorder %s9, 1
    %p47 = por %p45, %p46
    %p48 = scmp.ne.s32.totalorder %s40, %s43
    %p49 = scmp.eq.s32.totalorder %s9, 0
    %p50 = por %p48, %p49
    %p51 = scmp.ne.s32.totalorder %s40, %s43
    %p52 = scmp.eq.s32.totalorder %s14, 1
    %p53 = por %p51, %p52
    %p54 = scmp.ne.s32.totalorder %s43, %s44
    %p55 = scmp.eq.s32.totalorder %s14, 0
    %p56 = por %p54, %p55
    %p57 = scmp.ne.s32.totalorder %s43, %s44
    %p58 = scmp.eq.s32.totalorder %s15, 1
    %p59 = por %p57, %p58
    %p61 = scmp.ne.s32.totalorder %s44, %s60
    %p62 = scmp.eq.s32.totalorder %s15, 0
    %p63 = por %p61, %p62
    %s64 = ssub.s32 %s18, %s27
    %s65 = ssub.s32 %s16, %s35
    %s66 = sor.u32 %s64, %s65
    %p67 = scmp.eq.s32.totalorder %s66, 0
    %s69 = sadd.s32 %s68, 1
    %s70 = scalar_select %p67, %s68, %s69
    %p73 = pneg %p67
    %p74 = scmp.eq.s32.totalorder %s9, 1
    %p75 = por %p73, %p74
    %p76 = scmp.ne.s32.totalorder %s68, %s71
    %p77 = scmp.eq.s32.totalorder %s9, 0
    %p78 = por %p76, %p77
    %p79 = scmp.ne.s32.totalorder %s68, %s71
    %p80 = scmp.eq.s32.totalorder %s14, 1
    %p81 = por %p79, %p80
    %p82 = scmp.ne.s32.totalorder %s71, %s72
    %p83 = scmp.eq.s32.totalorder %s14, 0
    %p84 = por %p82, %p83
    %p85 = scmp.ne.s32.totalorder %s71, %s72
    %p86 = scmp.eq.s32.totalorder %s15, 1
    %p87 = por %p85, %p86
    %p89 = scmp.ne.s32.totalorder %s72, %s88
    %p90 = scmp.eq.s32.totalorder %s15, 0
    %p91 = por %p89, %p90
    %s92 = ssub.s32 %s16, %s35
    %p93 = scmp.eq.s32.totalorder %s92, 0
    %s95 = sadd.s32 %s94, 1
    %s96 = scalar_select %p93, %s94, %s95
    %p99 = pneg %p93
    %p100 = scmp.eq.s32.totalorder %s9, 1
    %p101 = por %p99, %p100
    %p102 = scmp.ne.s32.totalorder %s94, %s97
    %p103 = scmp.eq.s32.totalorder %s9, 0
    %p104 = por %p102, %p103
    %p105 = scmp.ne.s32.totalorder %s94, %s97
    %p106 = scmp.eq.s32.totalorder %s14, 1
    %p107 = por %p105, %p106
    %p108 = scmp.ne.s32.totalorder %s97, %s98
    %p109 = scmp.eq.s32.totalorder %s14, 0
    %p110 = por %p108, %p109
    %p111 = scmp.ne.s32.totalorder %s97, %s98
    %p112 = scmp.eq.s32.totalorder %s15, 1
    %p113 = por %p111, %p112
    %p115 = scmp.ne.s32.totalorder %s98, %s114
    %p116 = scmp.eq.s32.totalorder %s15, 0
    %p117 = por %p115, %p116
    %s118 = ssub.s32 %s17, %s31
    %s119 = ssub.s32 %s16, %s35
    %s120 = sor.u32 %s118, %s119
    %p121 = scmp.eq.s32.totalorder %s120, 0
    %s123 = sadd.s32 %s122, 1
    %s124 = scalar_select %p121, %s122, %s123
    %p127 = pneg %p121
    %p128 = scmp.eq.s32.totalorder %s9, 1
    %p129 = por %p127, %p128
    %p130 = scmp.ne.s32.totalorder %s122, %s125
    %p131 = scmp.eq.s32.totalorder %s9, 0
    %p132 = por %p130, %p131
    %p133 = scmp.ne.s32.totalorder %s122, %s125
    %p134 = scmp.eq.s32.totalorder %s14, 1
    %p135 = por %p133, %p134
    %p136 = scmp.ne.s32.totalorder %s125, %s126
    %p137 = scmp.eq.s32.totalorder %s14, 0
    %p138 = por %p136, %p137
    %p139 = scmp.ne.s32.totalorder %s125, %s126
    %p140 = scmp.eq.s32.totalorder %s15, 1
    %p141 = por %p139, %p140
    %p143 = scmp.ne.s32.totalorder %s126, %s142
    %p144 = scmp.eq.s32.totalorder %s15, 0
    %p145 = por %p143, %p144
    %p146 = scmp.le.s32.totalorder 1, %s9
    %p147 = scmp.lt.s32.totalorder %s9, 3
    %p148 = pnand %p146, %p147
    %p149 = pneg %p148
    // Predicated region
    $region9: #{encoder_forward_impl.39} parent=5 // pred_check
      _
    $region10: #{encoder_forward_impl.39} parent=5 // pred_check_branch
      %151 = sbr.rel (%p148) target = $region12
    $region11: #{encoder_forward_impl.39} parent=5 // pred_region
      %s152 = ssub.s32 %s9, 1
      // Predicated region
      $region13: #{encoder_forward_impl.39} parent=11 // pred_check
        %p153 = pneg %p84
      $region14: #{encoder_forward_impl.39} parent=11 // pred_check_branch
        %155 = sbr.rel (%p153) target = $region16
      $region15: #{encoder_forward_impl.39} parent=11 // pred_region
        %s156 = smul.u32 49, %s21
        %p157 = scmp.lt.s32.totalorder %s156, 48
        %s158 = scalar_select %p157, %s156, 48
        %p159 = scmp.lt.s32.totalorder %s19, 0
        %s160 = scalar_select %p159, %s19, 0
        %s161 = sadd.s32 %s160, %s158
        %s162 = smul.addr %s161, 4
        %s163 = scalar_lea.vmem %s1, %s162
        %s164 = smul.u32 49, %s21
      $region16: #{encoder_forward_impl.39} parent=11 // pred_fallthru
        _
      // Predicated region
      $region17: #{encoder_forward_impl.39} parent=11 // pred_check
        %p165 = pneg %p110
      $region18: #{encoder_forward_impl.39} parent=11 // pred_check_branch
        %167 = sbr.rel (%p165) target = $region20
      $region19: #{encoder_forward_impl.39} parent=11 // pred_region
        %p168 = scmp.lt.s32.totalorder %s19, 0
        %s169 = scalar_select %p168, %s19, 0
        %s170 = scalar_lea.vmem %s2, %s169
      $region20: #{encoder_forward_impl.39} parent=11 // pred_fallthru
        _
    $region12: #{encoder_forward_impl.39} parent=5 // pred_fallthru
      _
    %p171 = scmp.lt.s32.totalorder %s9, 2
    // Predicated region
    $region21: #{encoder_forward_impl.39} parent=5 // pred_check
      %p172 = pneg %p171
    $region22: #{encoder_forward_impl.39} parent=5 // pred_check_branch
      %174 = sbr.rel (%p172) target = $region24
    $region23: #{encoder_forward_impl.39} parent=5 // pred_region
      // Predicated region
      $region25: #{encoder_forward_impl.39} parent=23 // pred_check
        %p175 = pneg %p50
      $region26: #{encoder_forward_impl.39} parent=23 // pred_check_branch
        %177 = sbr.rel (%p175) target = $region28
      $region27: #{encoder_forward_impl.39} parent=23 // pred_region
        %s178 = smul.u32 32, %s17
        %s179 = smul.u32 4, %s18
        %p180 = scmp.lt.s32.totalorder %s178, 63
        %s181 = scalar_select %p180, %s178, 63
        %p182 = scmp.lt.s32.totalorder %s179, 3
        %s183 = scalar_select %p182, %s179, 3
        %s184 = smul.addr %s181, 4
        %s185 = sadd.s32 %s183, %s184
        %s186 = smul.addr %s185, 4
        %s187 = scalar_lea.vmem %s0, %s186
        %s188 = smul.u32 32, %s17
        %s189 = smul.u32 4, %s18
      $region28: #{encoder_forward_impl.39} parent=23 // pred_fallthru
        _
    $region24: #{encoder_forward_impl.39} parent=5 // pred_fallthru
      _
    %p190 = scmp.le.s32.totalorder 1, %s9
    %p191 = scmp.lt.s32.totalorder %s9, 3
    %p192 = pnand %p190, %p191
    %p193 = pneg %p192
    // Predicated region
    $region29: #{encoder_forward_impl.39} parent=5 // pred_check
      _
    $region30: #{encoder_forward_impl.39} parent=5 // pred_check_branch
      %195 = sbr.rel (%p192) target = $region32
    $region31: #{encoder_forward_impl.39} parent=5 // pred_region
      %s196 = ssub.s32 %s9, 1
      %s197 = smul.u32 32, %s20
      %s198 = smul.u32 4, %s21
      %p199 = scmp.lt.s32.totalorder %s197, 63
      %s200 = scalar_select %p199, %s197, 63
      %p201 = scmp.lt.s32.totalorder %s198, 3
      %s202 = scalar_select %p201, %s198, 3
      %s203 = smul.addr %s200, 4
      %s204 = sadd.s32 %s202, %s203
      %s205 = smul.addr %s204, 4
      %s206 = scalar_lea.vmem %s0, %s205
      %p207 = pneg %p56
      %p208 = pneg %p53
      %s209 = smul.u32 49, %s21
      %p210 = scmp.lt.s32.totalorder %s209, 48
      %s211 = scalar_select %p210, %s209, 48
      %p212 = scmp.lt.s32.totalorder %s19, 0
      %s213 = scalar_select %p212, %s19, 0
      %s214 = sadd.s32 %s213, %s211
      %s215 = smul.addr %s214, 4
      %s216 = scalar_lea.vmem %s1, %s215
      %p217 = pneg %p84
      %p218 = pneg %p81
      %p219 = scmp.lt.s32.totalorder %s19, 0
      %s220 = scalar_select %p219, %s19, 0
      %s221 = scalar_lea.vmem %s2, %s220
      %p222 = pneg %p110
      %p223 = pneg %p107
      %p224 = pneg %p138
      %p225 = pneg %p135
      %s226 = smul.u32 32, %s20
      %p227 = scmp.lt.s32.totalorder %s226, 63
      %s228 = scalar_select %p227, %s226, 63
      %p229 = scmp.lt.s32.totalorder %s19, 0
      %s230 = scalar_select %p229, %s19, 0
      %s231 = sadd.s32 %s230, %s228
      %s232 = smul.addr %s231, 8
      %s233 = scalar_lea.vmem %s3, %s232
      %s234 = smul.u32 32, %s20
      %s235 = smul.u32 4, %s21
      %p236 = scmp.lt.s32.totalorder %s234, 63
      %s237 = scalar_select %p236, %s234, 63
      %p238 = scmp.lt.s32.totalorder %s235, 3
      %s239 = scalar_select %p238, %s235, 3
      %s240 = smul.addr %s237, 4
      %s241 = sadd.s32 %s239, %s240
      %s242 = smul.addr %s241, 4
      %s243 = scalar_lea.vmem %s0, %s242
      %s244 = smul.u32 32, %s20
      %s245 = smul.u32 4, %s21
      %s246 = smul.u32 49, %s21
      %p247 = scmp.lt.s32.totalorder %s246, 48
      %s248 = scalar_select %p247, %s246, 48
      %p249 = scmp.lt.s32.totalorder %s19, 0
      %s250 = scalar_select %p249, %s19, 0
      %s251 = sadd.s32 %s250, %s248
      %s252 = smul.addr %s251, 4
      %s253 = scalar_lea.vmem %s1, %s252
      %s254 = smul.u32 49, %s21
      %p255 = scmp.lt.s32.totalorder %s19, 0
      %s256 = scalar_select %p255, %s19, 0
      %s257 = scalar_lea.vmem %s2, %s256
      %s258 = smul.u32 32, %s20
      %p259 = scmp.lt.s32.totalorder %s258, 63
      %s260 = scalar_select %p259, %s258, 63
      %p261 = scmp.lt.s32.totalorder %s19, 0
      %s262 = scalar_select %p261, %s19, 0
      %s263 = sadd.s32 %s262, %s260
      %s264 = smul.addr %s263, 8
      %s265 = scalar_lea.vmem %s3, %s264
      %s266 = smul.u32 32, %s20
      %p268 = scmp.eq.s32.totalorder %s21, 0
      // Predicated region
      $region33: #{encoder_forward_impl.39} parent=31 // pred_check
        %p269 = pneg %p268
      $region34: #{encoder_forward_impl.39} parent=31 // pred_check_branch
        %271 = sbr.rel (%p269) target = $region36
      $region35: #{encoder_forward_impl.39} parent=31 // pred_region
        %v272 = vld [vmem:[%s257] sm:$0x1]
        %v274 = vlaneseq
        %v275 = vshrl.u32 %v274, 7
        %v276 = vsub.s32 0, %v275
        %v277 = vrot.slane %v272, %v276
        %vm279 = vcmask 23552
        %280 = vst.msk [vmem:[#allocation2] sm:$0xff] %vm279, %v277
        %281 = vst.msk [vmem:[#allocation2 + $0x8] sm:$0xff] %vm279, %v277
        %282 = vst.msk [vmem:[#allocation2 + $0x10] sm:$0xff] %vm279, %v277
        %283 = vst.msk [vmem:[#allocation2 + $0x18] sm:$0xff] %vm279, %v277
        %284 = vst.msk [vmem:[#allocation2 + $0x20] sm:$0xff] %vm279, %v277
        %285 = vst.msk [vmem:[#allocation2 + $0x28] sm:$0xff] %vm279, %v277
        %286 = vst.msk [vmem:[#allocation2 + $0x30] sm:$0xff] %vm279, %v277
        %287 = vst.msk [vmem:[#allocation2 + $0x38] sm:$0xff] %vm279, %v277
        %288 = vst.msk [vmem:[#allocation2 + $0x40] sm:$0xff] %vm279, %v277
        %289 = vst.msk [vmem:[#allocation2 + $0x48] sm:$0xff] %vm279, %v277
        %290 = vst.msk [vmem:[#allocation2 + $0x50] sm:$0xff] %vm279, %v277
        %291 = vst.msk [vmem:[#allocation2 + $0x58] sm:$0xff] %vm279, %v277
        %292 = vst.msk [vmem:[#allocation2 + $0x60] sm:$0xff] %vm279, %v277
        %293 = vst.msk [vmem:[#allocation2 + $0x68] sm:$0xff] %vm279, %v277
        %294 = vst.msk [vmem:[#allocation2 + $0x70] sm:$0xff] %vm279, %v277
        %295 = vst.msk [vmem:[#allocation2 + $0x78] sm:$0xff] %vm279, %v277
        %296 = vst.msk [vmem:[#allocation2 + $0x80] sm:$0xff] %vm279, %v277
        %297 = vst.msk [vmem:[#allocation2 + $0x88] sm:$0xff] %vm279, %v277
        %298 = vst.msk [vmem:[#allocation2 + $0x90] sm:$0xff] %vm279, %v277
        %299 = vst.msk [vmem:[#allocation2 + $0x98] sm:$0xff] %vm279, %v277
        %300 = vst.msk [vmem:[#allocation2 + $0xa0] sm:$0xff] %vm279, %v277
        %301 = vst.msk [vmem:[#allocation2 + $0xa8] sm:$0xff] %vm279, %v277
        %302 = vst.msk [vmem:[#allocation2 + $0xb0] sm:$0xff] %vm279, %v277
        %303 = vst.msk [vmem:[#allocation2 + $0xb8] sm:$0xff] %vm279, %v277
        %304 = vst.msk [vmem:[#allocation2 + $0xc0] sm:$0xff] %vm279, %v277
        %305 = vst.msk [vmem:[#allocation2 + $0xc8] sm:$0xff] %vm279, %v277
        %306 = vst.msk [vmem:[#allocation2 + $0xd0] sm:$0xff] %vm279, %v277
        %307 = vst.msk [vmem:[#allocation2 + $0xd8] sm:$0xff] %vm279, %v277
        %308 = vst.msk [vmem:[#allocation2 + $0xe0] sm:$0xff] %vm279, %v277
        %309 = vst.msk [vmem:[#allocation2 + $0xe8] sm:$0xff] %vm279, %v277
        %310 = vst.msk [vmem:[#allocation2 + $0xf0] sm:$0xff] %vm279, %v277
        %311 = vst.msk [vmem:[#allocation2 + $0xf8] sm:$0xff] %vm279, %v277
      $region36: #{encoder_forward_impl.39} parent=31 // pred_fallthru
        _
      %v312 = vld [vmem:[#allocation2] sm:$0xff]
      %v313 = vld [vmem:[#allocation2 + $0x8] sm:$0xff]
      %v314 = vld [vmem:[#allocation2 + $0x10] sm:$0xff]
      %v315 = vld [vmem:[#allocation2 + $0x18] sm:$0xff]
      %v316 = vld [vmem:[#allocation2 + $0x20] sm:$0xff]
      %v317 = vld [vmem:[#allocation2 + $0x28] sm:$0xff]
      %v318 = vld [vmem:[#allocation2 + $0x30] sm:$0xff]
      %v319 = vld [vmem:[#allocation2 + $0x38] sm:$0xff]
      %v320 = vld [vmem:[#allocation2 + $0x40] sm:$0xff]
      %v321 = vld [vmem:[#allocation2 + $0x48] sm:$0xff]
      %v322 = vld [vmem:[#allocation2 + $0x50] sm:$0xff]
      %v323 = vld [vmem:[#allocation2 + $0x58] sm:$0xff]
      %v324 = vld [vmem:[#allocation2 + $0x60] sm:$0xff]
      %v325 = vld [vmem:[#allocation2 + $0x68] sm:$0xff]
      %v326 = vld [vmem:[#allocation2 + $0x70] sm:$0xff]
      %v327 = vld [vmem:[#allocation2 + $0x78] sm:$0xff]
      %v328 = vld [vmem:[#allocation2 + $0x80] sm:$0xff]
      %v329 = vld [vmem:[#allocation2 + $0x88] sm:$0xff]
      %v330 = vld [vmem:[#allocation2 + $0x90] sm:$0xff]
      %v331 = vld [vmem:[#allocation2 + $0x98] sm:$0xff]
      %v332 = vld [vmem:[#allocation2 + $0xa0] sm:$0xff]
      %v333 = vld [vmem:[#allocation2 + $0xa8] sm:$0xff]
      %v334 = vld [vmem:[#allocation2 + $0xb0] sm:$0xff]
      %v335 = vld [vmem:[#allocation2 + $0xb8] sm:$0xff]
      %v336 = vld [vmem:[#allocation2 + $0xc0] sm:$0xff]
      %v337 = vld [vmem:[#allocation2 + $0xc8] sm:$0xff]
      %v338 = vld [vmem:[#allocation2 + $0xd0] sm:$0xff]
      %v339 = vld [vmem:[#allocation2 + $0xd8] sm:$0xff]
      %v340 = vld [vmem:[#allocation2 + $0xe0] sm:$0xff]
      %v341 = vld [vmem:[#allocation2 + $0xe8] sm:$0xff]
      %v342 = vld [vmem:[#allocation2 + $0xf0] sm:$0xff]
      %v343 = vld [vmem:[#allocation2 + $0xf8] sm:$0xff]
      %v344 = vld [vmem:[%s243] sm:$0xff]
      %v345 = vld [vmem:[%s243 + $0x8] sm:$0xff]
      %v346 = vld [vmem:[%s243 + $0x10] sm:$0xff]
      %v347 = vld [vmem:[%s243 + $0x18] sm:$0xff]
      %v348 = vld [vmem:[%s243 + $0x20] sm:$0xff]
      %v349 = vld [vmem:[%s243 + $0x28] sm:$0xff]
      %v350 = vld [vmem:[%s243 + $0x30] sm:$0xff]
      %v351 = vld [vmem:[%s243 + $0x38] sm:$0xff]
      %v352 = vld [vmem:[%s243 + $0x40] sm:$0xff]
      %v353 = vld [vmem:[%s243 + $0x48] sm:$0xff]
      %v354 = vld [vmem:[%s243 + $0x50] sm:$0xff]
      %v355 = vld [vmem:[%s243 + $0x58] sm:$0xff]
      %v356 = vld [vmem:[%s243 + $0x60] sm:$0xff]
      %v357 = vld [vmem:[%s243 + $0x68] sm:$0xff]
      %v358 = vld [vmem:[%s243 + $0x70] sm:$0xff]
      %v359 = vld [vmem:[%s243 + $0x78] sm:$0xff]
      %v360 = vld [vmem:[%s243 + $0x80] sm:$0xff]
      %v361 = vld [vmem:[%s243 + $0x88] sm:$0xff]
      %v362 = vld [vmem:[%s243 + $0x90] sm:$0xff]
      %v363 = vld [vmem:[%s243 + $0x98] sm:$0xff]
      %v364 = vld [vmem:[%s243 + $0xa0] sm:$0xff]
      %v365 = vld [vmem:[%s243 + $0xa8] sm:$0xff]
      %v366 = vld [vmem:[%s243 + $0xb0] sm:$0xff]
      %v367 = vld [vmem:[%s243 + $0xb8] sm:$0xff]
      %v368 = vld [vmem:[%s243 + $0xc0] sm:$0xff]
      %v369 = vld [vmem:[%s243 + $0xc8] sm:$0xff]
      %v370 = vld [vmem:[%s243 + $0xd0] sm:$0xff]
      %v371 = vld [vmem:[%s243 + $0xd8] sm:$0xff]
      %v372 = vld [vmem:[%s243 + $0xe0] sm:$0xff]
      %v373 = vld [vmem:[%s243 + $0xe8] sm:$0xff]
      %v374 = vld [vmem:[%s243 + $0xf0] sm:$0xff]
      %v375 = vld [vmem:[%s243 + $0xf8] sm:$0xff]
      %v376 = vld [vmem:[%s243 + $0x100] sm:$0xff]
      %v377 = vld [vmem:[%s243 + $0x108] sm:$0xff]
      %v378 = vld [vmem:[%s243 + $0x110] sm:$0xff]
      %v379 = vld [vmem:[%s243 + $0x118] sm:$0xff]
      %v380 = vld [vmem:[%s243 + $0x120] sm:$0xff]
      %v381 = vld [vmem:[%s243 + $0x128] sm:$0xff]
      %v382 = vld [vmem:[%s243 + $0x130] sm:$0xff]
      %v383 = vld [vmem:[%s243 + $0x138] sm:$0xff]
      %v384 = vld [vmem:[%s243 + $0x140] sm:$0xff]
      %v385 = vld [vmem:[%s243 + $0x148] sm:$0xff]
      %v386 = vld [vmem:[%s243 + $0x150] sm:$0xff]
      %v387 = vld [vmem:[%s243 + $0x158] sm:$0xff]
      %v388 = vld [vmem:[%s243 + $0x160] sm:$0xff]
      %v389 = vld [vmem:[%s243 + $0x168] sm:$0xff]
      %v390 = vld [vmem:[%s243 + $0x170] sm:$0xff]
      %v391 = vld [vmem:[%s243 + $0x178] sm:$0xff]
      %v392 = vld [vmem:[%s243 + $0x180] sm:$0xff]
      %v393 = vld [vmem:[%s243 + $0x188] sm:$0xff]
      %v394 = vld [vmem:[%s243 + $0x190] sm:$0xff]
      %v395 = vld [vmem:[%s243 + $0x198] sm:$0xff]
      %v396 = vld [vmem:[%s243 + $0x1a0] sm:$0xff]
      %v397 = vld [vmem:[%s243 + $0x1a8] sm:$0xff]
      %v398 = vld [vmem:[%s243 + $0x1b0] sm:$0xff]
      %v399 = vld [vmem:[%s243 + $0x1b8] sm:$0xff]
      %v400 = vld [vmem:[%s243 + $0x1c0] sm:$0xff]
      %v401 = vld [vmem:[%s243 + $0x1c8] sm:$0xff]
      %v402 = vld [vmem:[%s243 + $0x1d0] sm:$0xff]
      %v403 = vld [vmem:[%s243 + $0x1d8] sm:$0xff]
      %v404 = vld [vmem:[%s243 + $0x1e0] sm:$0xff]
      %v405 = vld [vmem:[%s243 + $0x1e8] sm:$0xff]
      %v406 = vld [vmem:[%s243 + $0x1f0] sm:$0xff]
      %v407 = vld [vmem:[%s243 + $0x1f8] sm:$0xff]
      %v408 = vld [vmem:[%s253] sm:$0xf]
      %v409 = vld [vmem:[%s253 + $0x4] sm:$0xf]
      %v410 = vld [vmem:[%s253 + $0x8] sm:$0xf]
      %v411 = vld [vmem:[%s253 + $0xc] sm:$0xf]
      %v412 = vld [vmem:[%s253 + $0x10] sm:$0xf]
      %v413 = vld [vmem:[%s253 + $0x14] sm:$0xf]
      %v414 = vld [vmem:[%s253 + $0x18] sm:$0xf]
      %v415 = vld [vmem:[%s253 + $0x1c] sm:$0xf]
      %v416 = vld [vmem:[%s253 + $0x20] sm:$0xf]
      %v417 = vld [vmem:[%s253 + $0x24] sm:$0xf]
      %v418 = vld [vmem:[%s253 + $0x28] sm:$0xf]
      %v419 = vld [vmem:[%s253 + $0x2c] sm:$0xf]
      %v420 = vld [vmem:[%s253 + $0x30] sm:$0xf]
      %v421 = vld [vmem:[%s253 + $0x34] sm:$0xf]
      %v422 = vld [vmem:[%s253 + $0x38] sm:$0xf]
      %v423 = vld [vmem:[%s253 + $0x3c] sm:$0xf]
      %v424 = vld [vmem:[%s253 + $0x40] sm:$0xf]
      %v425 = vld [vmem:[%s253 + $0x44] sm:$0xf]
      %v426 = vld [vmem:[%s253 + $0x48] sm:$0xf]
      %v427 = vld [vmem:[%s253 + $0x4c] sm:$0xf]
      %v428 = vld [vmem:[%s253 + $0x50] sm:$0xf]
      %v429 = vld [vmem:[%s253 + $0x54] sm:$0xf]
      %v430 = vld [vmem:[%s253 + $0x58] sm:$0xf]
      %v431 = vld [vmem:[%s253 + $0x5c] sm:$0xf]
      %v432 = vld [vmem:[%s253 + $0x60] sm:$0xf]
      %v433 = vld [vmem:[%s253 + $0x64] sm:$0xf]
      %v434 = vld [vmem:[%s253 + $0x68] sm:$0xf]
      %v435 = vld [vmem:[%s253 + $0x6c] sm:$0xf]
      %v436 = vld [vmem:[%s253 + $0x70] sm:$0xf]
      %v437 = vld [vmem:[%s253 + $0x74] sm:$0xf]
      %v438 = vld [vmem:[%s253 + $0x78] sm:$0xf]
      %v439 = vld [vmem:[%s253 + $0x7c] sm:$0xf]
      %v440 = vld [vmem:[%s253 + $0x80] sm:$0xf]
      %v441 = vld [vmem:[%s253 + $0x84] sm:$0xf]
      %v442 = vld [vmem:[%s253 + $0x88] sm:$0xf]
      %v443 = vld [vmem:[%s253 + $0x8c] sm:$0xf]
      %v444 = vld [vmem:[%s253 + $0x90] sm:$0xf]
      %v445 = vld [vmem:[%s253 + $0x94] sm:$0xf]
      %v446 = vld [vmem:[%s253 + $0x98] sm:$0xf]
      %v447 = vld [vmem:[%s253 + $0x9c] sm:$0xf]
      %v448 = vld [vmem:[%s253 + $0xa0] sm:$0xf]
      %v449 = vld [vmem:[%s253 + $0xa4] sm:$0xf]
      %v450 = vld [vmem:[%s253 + $0xa8] sm:$0xf]
      %v451 = vld [vmem:[%s253 + $0xac] sm:$0xf]
      %v452 = vld [vmem:[%s253 + $0xb0] sm:$0xf]
      %v453 = vld [vmem:[%s253 + $0xb4] sm:$0xf]
      %v454 = vld [vmem:[%s253 + $0xb8] sm:$0xf]
      %v455 = vld [vmem:[%s253 + $0xbc] sm:$0xf]
      %v456 = vld [vmem:[%s253 + $0xc0] sm:$0xf]
      %v521 = vunpack.c.l.b16 %v344
      %v522 = vunpack.c.h.b16 %v344
      %v523 = vunpack.c.l.b16 %v345
      %v524 = vunpack.c.h.b16 %v345
      %v525 = vunpack.c.l.b16 %v346
      %v526 = vunpack.c.h.b16 %v346
      %v527 = vunpack.c.l.b16 %v347
      %v528 = vunpack.c.h.b16 %v347
      %v529 = vunpack.c.l.b16 %v348
      %v530 = vunpack.c.h.b16 %v348
      %v531 = vunpack.c.l.b16 %v349
      %v532 = vunpack.c.h.b16 %v349
      %v533 = vunpack.c.l.b16 %v350
      %v534 = vunpack.c.h.b16 %v350
      %v535 = vunpack.c.l.b16 %v351
      %v536 = vunpack.c.h.b16 %v351
      %v537 = vunpack.c.l.b16 %v352
      %v538 = vunpack.c.h.b16 %v352
      %v539 = vunpack.c.l.b16 %v353
      %v540 = vunpack.c.h.b16 %v353
      %v541 = vunpack.c.l.b16 %v354
      %v542 = vunpack.c.h.b16 %v354
      %v543 = vunpack.c.l.b16 %v355
      %v544 = vunpack.c.h.b16 %v355
      %v545 = vunpack.c.l.b16 %v356
      %v546 = vunpack.c.h.b16 %v356
      %v547 = vunpack.c.l.b16 %v357
      %v548 = vunpack.c.h.b16 %v357
      %v549 = vunpack.c.l.b16 %v358
      %v550 = vunpack.c.h.b16 %v358
      %v551 = vunpack.c.l.b16 %v359
      %v552 = vunpack.c.h.b16 %v359
      %v553 = vunpack.c.l.b16 %v360
      %v554 = vunpack.c.h.b16 %v360
      %v555 = vunpack.c.l.b16 %v361
      %v556 = vunpack.c.h.b16 %v361
      %v557 = vunpack.c.l.b16 %v362
      %v558 = vunpack.c.h.b16 %v362
      %v559 = vunpack.c.l.b16 %v363
      %v560 = vunpack.c.h.b16 %v363
      %v561 = vunpack.c.l.b16 %v364
      %v562 = vunpack.c.h.b16 %v364
      %v563 = vunpack.c.l.b16 %v365
      %v564 = vunpack.c.h.b16 %v365
      %v565 = vunpack.c.l.b16 %v366
      %v566 = vunpack.c.h.b16 %v366
      %v567 = vunpack.c.l.b16 %v367
      %v568 = vunpack.c.h.b16 %v367
      %v569 = vunpack.c.l.b16 %v368
      %v570 = vunpack.c.h.b16 %v368
      %v571 = vunpack.c.l.b16 %v369
      %v572 = vunpack.c.h.b16 %v369
      %v573 = vunpack.c.l.b16 %v370
      %v574 = vunpack.c.h.b16 %v370
      %v575 = vunpack.c.l.b16 %v371
      %v576 = vunpack.c.h.b16 %v371
      %v577 = vunpack.c.l.b16 %v372
      %v578 = vunpack.c.h.b16 %v372
      %v579 = vunpack.c.l.b16 %v373
      %v580 = vunpack.c.h.b16 %v373
      %v581 = vunpack.c.l.b16 %v374
      %v582 = vunpack.c.h.b16 %v374
      %v583 = vunpack.c.l.b16 %v375
      %v584 = vunpack.c.h.b16 %v375
      %v585 = vunpack.c.l.b16 %v376
      %v586 = vunpack.c.h.b16 %v376
      %v587 = vunpack.c.l.b16 %v377
      %v588 = vunpack.c.h.b16 %v377
      %v589 = vunpack.c.l.b16 %v378
      %v590 = vunpack.c.h.b16 %v378
      %v591 = vunpack.c.l.b16 %v379
      %v592 = vunpack.c.h.b16 %v379
      %v593 = vunpack.c.l.b16 %v380
      %v594 = vunpack.c.h.b16 %v380
      %v595 = vunpack.c.l.b16 %v381
      %v596 = vunpack.c.h.b16 %v381
      %v597 = vunpack.c.l.b16 %v382
      %v598 = vunpack.c.h.b16 %v382
      %v599 = vunpack.c.l.b16 %v383
      %v600 = vunpack.c.h.b16 %v383
      %v601 = vunpack.c.l.b16 %v384
      %v602 = vunpack.c.h.b16 %v384
      %v603 = vunpack.c.l.b16 %v385
      %v604 = vunpack.c.h.b16 %v385
      %v605 = vunpack.c.l.b16 %v386
      %v606 = vunpack.c.h.b16 %v386
      %v607 = vunpack.c.l.b16 %v387
      %v608 = vunpack.c.h.b16 %v387
      %v609 = vunpack.c.l.b16 %v388
      %v610 = vunpack.c.h.b16 %v388
      %v611 = vunpack.c.l.b16 %v389
      %v612 = vunpack.c.h.b16 %v389
      %v613 = vunpack.c.l.b16 %v390
      %v614 = vunpack.c.h.b16 %v390
      %v615 = vunpack.c.l.b16 %v391
      %v616 = vunpack.c.h.b16 %v391
      %v617 = vunpack.c.l.b16 %v392
      %v618 = vunpack.c.h.b16 %v392
      %v619 = vunpack.c.l.b16 %v393
      %v620 = vunpack.c.h.b16 %v393
      %v621 = vunpack.c.l.b16 %v394
      %v622 = vunpack.c.h.b16 %v394
      %v623 = vunpack.c.l.b16 %v395
      %v624 = vunpack.c.h.b16 %v395
      %v625 = vunpack.c.l.b16 %v396
      %v626 = vunpack.c.h.b16 %v396
      %v627 = vunpack.c.l.b16 %v397
      %v628 = vunpack.c.h.b16 %v397
      %v629 = vunpack.c.l.b16 %v398
      %v630 = vunpack.c.h.b16 %v398
      %v631 = vunpack.c.l.b16 %v399
      %v632 = vunpack.c.h.b16 %v399
      %v633 = vunpack.c.l.b16 %v400
      %v634 = vunpack.c.h.b16 %v400
      %v635 = vunpack.c.l.b16 %v401
      %v636 = vunpack.c.h.b16 %v401
      %v637 = vunpack.c.l.b16 %v402
      %v638 = vunpack.c.h.b16 %v402
      %v639 = vunpack.c.l.b16 %v403
      %v640 = vunpack.c.h.b16 %v403
      %v641 = vunpack.c.l.b16 %v404
      %v642 = vunpack.c.h.b16 %v404
      %v643 = vunpack.c.l.b16 %v405
      %v644 = vunpack.c.h.b16 %v405
      %v645 = vunpack.c.l.b16 %v406
      %v646 = vunpack.c.h.b16 %v406
      %v647 = vunpack.c.l.b16 %v407
      %v648 = vunpack.c.h.b16 %v407
      %v649 = vpack.c.b16 %v525, %v521
      %v650 = vpack.c.b16 %v526, %v522
      %v651 = vpack.c.b16 %v527, %v523
      %v652 = vpack.c.b16 %v528, %v524
      %v653 = vpack.c.b16 %v533, %v529
      %v654 = vpack.c.b16 %v534, %v530
      %v655 = vpack.c.b16 %v535, %v531
      %v656 = vpack.c.b16 %v536, %v532
      %v657 = vpack.c.b16 %v541, %v537
      %v658 = vpack.c.b16 %v542, %v538
      %v659 = vpack.c.b16 %v543, %v539
      %v660 = vpack.c.b16 %v544, %v540
      %v661 = vpack.c.b16 %v549, %v545
      %v662 = vpack.c.b16 %v550, %v546
      %v663 = vpack.c.b16 %v551, %v547
      %v664 = vpack.c.b16 %v552, %v548
      %v665 = vpack.c.b16 %v557, %v553
      %v666 = vpack.c.b16 %v558, %v554
      %v667 = vpack.c.b16 %v559, %v555
      %v668 = vpack.c.b16 %v560, %v556
      %v669 = vpack.c.b16 %v565, %v561
      %v670 = vpack.c.b16 %v566, %v562
      %v671 = vpack.c.b16 %v567, %v563
      %v672 = vpack.c.b16 %v568, %v564
      %v673 = vpack.c.b16 %v573, %v569
      %v674 = vpack.c.b16 %v574, %v570
      %v675 = vpack.c.b16 %v575, %v571
      %v676 = vpack.c.b16 %v576, %v572
      %v677 = vpack.c.b16 %v581, %v577
      %v678 = vpack.c.b16 %v582, %v578
      %v679 = vpack.c.b16 %v583, %v579
      %v680 = vpack.c.b16 %v584, %v580
      %v681 = vpack.c.b16 %v589, %v585
      %v682 = vpack.c.b16 %v590, %v586
      %v683 = vpack.c.b16 %v591, %v587
      %v684 = vpack.c.b16 %v592, %v588
      %v685 = vpack.c.b16 %v597, %v593
      %v686 = vpack.c.b16 %v598, %v594
      %v687 = vpack.c.b16 %v599, %v595
      %v688 = vpack.c.b16 %v600, %v596
      %v689 = vpack.c.b16 %v605, %v601
      %v690 = vpack.c.b16 %v606, %v602
      %v691 = vpack.c.b16 %v607, %v603
      %v692 = vpack.c.b16 %v608, %v604
      %v693 = vpack.c.b16 %v613, %v609
      %v694 = vpack.c.b16 %v614, %v610
      %v695 = vpack.c.b16 %v615, %v611
      %v696 = vpack.c.b16 %v616, %v612
      %v697 = vpack.c.b16 %v621, %v617
      %v698 = vpack.c.b16 %v622, %v618
      %v699 = vpack.c.b16 %v623, %v619
      %v700 = vpack.c.b16 %v624, %v620
      %v701 = vpack.c.b16 %v629, %v625
      %v702 = vpack.c.b16 %v630, %v626
      %v703 = vpack.c.b16 %v631, %v627
      %v704 = vpack.c.b16 %v632, %v628
      %v705 = vpack.c.b16 %v637, %v633
      %v706 = vpack.c.b16 %v638, %v634
      %v707 = vpack.c.b16 %v639, %v635
      %v708 = vpack.c.b16 %v640, %v636
      %v709 = vpack.c.b16 %v645, %v641
      %v710 = vpack.c.b16 %v646, %v642
      %v711 = vpack.c.b16 %v647, %v643
      %v712 = vpack.c.b16 %v648, %v644
      %v810 = vunpack.c.l.b16 %v408
      %v811 = vunpack.c.l.b16 %v409
      %v812 = vunpack.c.l.b16 %v410
      %v813 = vunpack.c.l.b16 %v411
      %v814 = vunpack.c.l.b16 %v412
      %v815 = vunpack.c.l.b16 %v413
      %v816 = vunpack.c.l.b16 %v414
      %v817 = vunpack.c.l.b16 %v415
      %v818 = vunpack.c.l.b16 %v416
      %v819 = vunpack.c.l.b16 %v417
      %v820 = vunpack.c.l.b16 %v418
      %v821 = vunpack.c.l.b16 %v419
      %v822 = vunpack.c.l.b16 %v420
      %v823 = vunpack.c.l.b16 %v421
      %v824 = vunpack.c.l.b16 %v422
      %v825 = vunpack.c.l.b16 %v423
      %v826 = vunpack.c.l.b16 %v424
      %v827 = vunpack.c.l.b16 %v425
      %v828 = vunpack.c.l.b16 %v426
      %v829 = vunpack.c.l.b16 %v427
      %v830 = vunpack.c.l.b16 %v428
      %v831 = vunpack.c.l.b16 %v429
      %v832 = vunpack.c.l.b16 %v430
      %v833 = vunpack.c.l.b16 %v431
      %v834 = vunpack.c.l.b16 %v432
      %v835 = vunpack.c.l.b16 %v433
      %v836 = vunpack.c.l.b16 %v434
      %v837 = vunpack.c.l.b16 %v435
      %v838 = vunpack.c.l.b16 %v436
      %v839 = vunpack.c.l.b16 %v437
      %v840 = vunpack.c.l.b16 %v438
      %v841 = vunpack.c.l.b16 %v439
      %v842 = vunpack.c.l.b16 %v440
      %v843 = vunpack.c.l.b16 %v441
      %v844 = vunpack.c.l.b16 %v442
      %v845 = vunpack.c.l.b16 %v443
      %v846 = vunpack.c.l.b16 %v444
      %v847 = vunpack.c.l.b16 %v445
      %v848 = vunpack.c.l.b16 %v446
      %v849 = vunpack.c.l.b16 %v447
      %v850 = vunpack.c.l.b16 %v448
      %v851 = vunpack.c.l.b16 %v449
      %v852 = vunpack.c.l.b16 %v450
      %v853 = vunpack.c.l.b16 %v451
      %v854 = vunpack.c.l.b16 %v452
      %v855 = vunpack.c.l.b16 %v453
      %v856 = vunpack.c.l.b16 %v454
      %v857 = vunpack.c.l.b16 %v455
      %v858 = vunpack.c.l.b16 %v456
      %v859 = vpack.c.b16 %v811, %v810
      %v860 = vpack.c.b16 %v813, %v812
      %v861 = vpack.c.b16 %v815, %v814
      %v862 = vpack.c.b16 %v817, %v816
      %v863 = vpack.c.b16 %v819, %v818
      %v864 = vpack.c.b16 %v821, %v820
      %v865 = vpack.c.b16 %v823, %v822
      %v866 = vpack.c.b16 %v825, %v824
      %v867 = vpack.c.b16 %v827, %v826
      %v868 = vpack.c.b16 %v829, %v828
      %v869 = vpack.c.b16 %v831, %v830
      %v870 = vpack.c.b16 %v833, %v832
      %v871 = vpack.c.b16 %v835, %v834
      %v872 = vpack.c.b16 %v837, %v836
      %v873 = vpack.c.b16 %v839, %v838
      %v874 = vpack.c.b16 %v841, %v840
      %v875 = vpack.c.b16 %v843, %v842
      %v876 = vpack.c.b16 %v845, %v844
      %v877 = vpack.c.b16 %v847, %v846
      %v878 = vpack.c.b16 %v849, %v848
      %v879 = vpack.c.b16 %v851, %v850
      %v880 = vpack.c.b16 %v853, %v852
      %v881 = vpack.c.b16 %v855, %v854
      %v882 = vpack.c.b16 %v857, %v856
      %v883 = vpack.c.b16 %v858, %v858
      %vm908 = vcmask 64512
      %v910 = vsel %vm908, %v652, 0
      %v913 = vsel %vm908, %v656, 0
      %v916 = vsel %vm908, %v660, 0
      %v919 = vsel %vm908, %v664, 0
      %v922 = vsel %vm908, %v668, 0
      %v925 = vsel %vm908, %v672, 0
      %v928 = vsel %vm908, %v676, 0
      %v931 = vsel %vm908, %v680, 0
      %v934 = vsel %vm908, %v684, 0
      %v937 = vsel %vm908, %v688, 0
      %v940 = vsel %vm908, %v692, 0
      %v943 = vsel %vm908, %v696, 0
      %v946 = vsel %vm908, %v700, 0
      %v949 = vsel %vm908, %v704, 0
      %v952 = vsel %vm908, %v708, 0
      %v955 = vsel %vm908, %v712, 0
      %vm957 = vcmask 1043456
      %v959 = vsel %vm957, %v883, 0
      %961 = vmatprep.subr.bf16.mxu0 0
      %962 = vmatpush1.bf16.msra.mxu0 %v866
      %963 = vmatprep.subr.bf16.mxu0 0
      %964 = vmatpush1.bf16.msra.mxu0 %v865
      %965 = vmatprep.subr.bf16.mxu0 0
      %966 = vmatpush1.bf16.msra.mxu0 %v864
      %967 = vmatprep.subr.bf16.mxu0 0
      %968 = vmatpush1.bf16.msra.mxu0 %v863
      %969 = vmatprep.subr.bf16.mxu0 0
      %970 = vmatpush1.bf16.msra.mxu0 %v862
      %971 = vmatprep.subr.bf16.mxu0 0
      %972 = vmatpush1.bf16.msra.mxu0 %v861
      %973 = vmatprep.subr.bf16.mxu0 0
      %974 = vmatpush1.bf16.msra.mxu0 %v860
      %975 = vmatprep.subr.bf16.mxu0 0
      %976 = vmatpush1.bf16.msra.mxu0 %v859
      %977 = vmatprep.subr.bf16.mxu0 0
      %978 = vmatpush2.bf16.msra.mxu0 %v874
      %979 = vmatprep.subr.bf16.mxu0 0
      %980 = vmatpush2.bf16.msra.mxu0 %v873
      %981 = vmatprep.subr.bf16.mxu0 0
      %982 = vmatpush2.bf16.msra.mxu0 %v872
      %983 = vmatprep.subr.bf16.mxu0 0
      %984 = vmatpush2.bf16.msra.mxu0 %v871
      %985 = vmatprep.subr.bf16.mxu0 0
      %986 = vmatpush2.bf16.msra.mxu0 %v870
      %987 = vmatprep.subr.bf16.mxu0 0
      %988 = vmatpush2.bf16.msra.mxu0 %v869
      %989 = vmatprep.subr.bf16.mxu0 0
      %990 = vmatpush2.bf16.msra.mxu0 %v868
      %991 = vmatprep.subr.bf16.mxu0 0
      %992 = vmatpush2.bf16.msra.mxu0 %v867
      %993 = vmatprep.mubr.bf16.mxu0 %v650
      %994 = vmatmul.mubr.bf16.gmra.mxu0 %v649
      %v995 = vpop.f32.mrf.mxu0
      %v996 = vadd.f32 0.0, %v995
      %v997 = vpop.f32.mrf.mxu0
      %v998 = vpop.f32.mrf.mxu0
      %v999 = vadd.f32 0.0, %v998
      %v1000 = vpop.f32.mrf.mxu0
      %1001 = vmatprep.mubr.bf16.mxu0 %v654
      %1002 = vmatmul.mubr.bf16.gmra.mxu0 %v653
      %v1003 = vpop.f32.mrf.mxu0
      %v1004 = vadd.f32 0.0, %v1003
      %v1005 = vpop.f32.mrf.mxu0
      %v1006 = vpop.f32.mrf.mxu0
      %v1007 = vadd.f32 0.0, %v1006
      %v1008 = vpop.f32.mrf.mxu0
      %1009 = vmatprep.mubr.bf16.mxu0 %v658
      %1010 = vmatmul.mubr.bf16.gmra.mxu0 %v657
      %v1011 = vpop.f32.mrf.mxu0
      %v1012 = vadd.f32 0.0, %v1011
      %v1013 = vpop.f32.mrf.mxu0
      %v1014 = vpop.f32.mrf.mxu0
      %v1015 = vadd.f32 0.0, %v1014
      %v1016 = vpop.f32.mrf.mxu0
      %1017 = vmatprep.mubr.bf16.mxu0 %v662
      %1018 = vmatmul.mubr.bf16.gmra.mxu0 %v661
      %v1019 = vpop.f32.mrf.mxu0
      %v1020 = vadd.f32 0.0, %v1019
      %v1021 = vpop.f32.mrf.mxu0
      %v1022 = vpop.f32.mrf.mxu0
      %v1023 = vadd.f32 0.0, %v1022
      %v1024 = vpop.f32.mrf.mxu0
      %1025 = vmatprep.mubr.bf16.mxu0 %v666
      %1026 = vmatmul.mubr.bf16.gmra.mxu0 %v665
      %v1027 = vpop.f32.mrf.mxu0
      %v1028 = vadd.f32 0.0, %v1027
      %v1029 = vpop.f32.mrf.mxu0
      %v1030 = vpop.f32.mrf.mxu0
      %v1031 = vadd.f32 0.0, %v1030
      %v1032 = vpop.f32.mrf.mxu0
      %1033 = vmatprep.mubr.bf16.mxu0 %v670
      %1034 = vmatmul.mubr.bf16.gmra.mxu0 %v669
      %v1035 = vpop.f32.mrf.mxu0
      %v1036 = vadd.f32 0.0, %v1035
      %v1037 = vpop.f32.mrf.mxu0
      %v1038 = vpop.f32.mrf.mxu0
      %v1039 = vadd.f32 0.0, %v1038
      %v1040 = vpop.f32.mrf.mxu0
      %1041 = vmatprep.mubr.bf16.mxu0 %v674
      %1042 = vmatmul.mubr.bf16.gmra.mxu0 %v673
      %v1043 = vpop.f32.mrf.mxu0
      %v1044 = vadd.f32 0.0, %v1043
      %v1045 = vpop.f32.mrf.mxu0
      %v1046 = vpop.f32.mrf.mxu0
      %v1047 = vadd.f32 0.0, %v1046
      %v1048 = vpop.f32.mrf.mxu0
      %1049 = vmatprep.mubr.bf16.mxu0 %v678
      %1050 = vmatmul.mubr.bf16.gmra.mxu0 %v677
      %v1051 = vpop.f32.mrf.mxu0
      %v1052 = vadd.f32 0.0, %v1051
      %v1053 = vpop.f32.mrf.mxu0
      %v1054 = vpop.f32.mrf.mxu0
      %v1055 = vadd.f32 0.0, %v1054
      %v1056 = vpop.f32.mrf.mxu0
      %1057 = vmatprep.mubr.bf16.mxu0 %v682
      %1058 = vmatmul.mubr.bf16.gmra.mxu0 %v681
      %v1059 = vpop.f32.mrf.mxu0
      %v1060 = vadd.f32 0.0, %v1059
      %v1061 = vpop.f32.mrf.mxu0
      %v1062 = vpop.f32.mrf.mxu0
      %v1063 = vadd.f32 0.0, %v1062
      %v1064 = vpop.f32.mrf.mxu0
      %1065 = vmatprep.mubr.bf16.mxu0 %v686
      %1066 = vmatmul.mubr.bf16.gmra.mxu0 %v685
      %v1067 = vpop.f32.mrf.mxu0
      %v1068 = vadd.f32 0.0, %v1067
      %v1069 = vpop.f32.mrf.mxu0
      %v1070 = vpop.f32.mrf.mxu0
      %v1071 = vadd.f32 0.0, %v1070
      %v1072 = vpop.f32.mrf.mxu0
      %1073 = vmatprep.mubr.bf16.mxu0 %v690
      %1074 = vmatmul.mubr.bf16.gmra.mxu0 %v689
      %v1075 = vpop.f32.mrf.mxu0
      %v1076 = vadd.f32 0.0, %v1075
      %v1077 = vpop.f32.mrf.mxu0
      %v1078 = vpop.f32.mrf.mxu0
      %v1079 = vadd.f32 0.0, %v1078
      %v1080 = vpop.f32.mrf.mxu0
      %1081 = vmatprep.mubr.bf16.mxu0 %v694
      %1082 = vmatmul.mubr.bf16.gmra.mxu0 %v693
      %v1083 = vpop.f32.mrf.mxu0
      %v1084 = vadd.f32 0.0, %v1083
      %v1085 = vpop.f32.mrf.mxu0
      %v1086 = vpop.f32.mrf.mxu0
      %v1087 = vadd.f32 0.0, %v1086
      %v1088 = vpop.f32.mrf.mxu0
      %1089 = vmatprep.mubr.bf16.mxu0 %v698
      %1090 = vmatmul.mubr.bf16.gmra.mxu0 %v697
      %v1091 = vpop.f32.mrf.mxu0
      %v1092 = vadd.f32 0.0, %v1091
      %v1093 = vpop.f32.mrf.mxu0
      %v1094 = vpop.f32.mrf.mxu0
      %v1095 = vadd.f32 0.0, %v1094
      %v1096 = vpop.f32.mrf.mxu0
      %1097 = vmatprep.mubr.bf16.mxu0 %v702
      %1098 = vmatmul.mubr.bf16.gmra.mxu0 %v701
      %v1099 = vpop.f32.mrf.mxu0
      %v1100 = vadd.f32 0.0, %v1099
      %v1101 = vpop.f32.mrf.mxu0
      %v1102 = vpop.f32.mrf.mxu0
      %v1103 = vadd.f32 0.0, %v1102
      %v1104 = vpop.f32.mrf.mxu0
      %1105 = vmatprep.mubr.bf16.mxu0 %v706
      %1106 = vmatmul.mubr.bf16.gmra.mxu0 %v705
      %v1107 = vpop.f32.mrf.mxu0
      %v1108 = vadd.f32 0.0, %v1107
      %v1109 = vpop.f32.mrf.mxu0
      %v1110 = vpop.f32.mrf.mxu0
      %v1111 = vadd.f32 0.0, %v1110
      %v1112 = vpop.f32.mrf.mxu0
      %1113 = vmatprep.mubr.bf16.mxu0 %v710
      %1114 = vmatmul.mubr.bf16.gmra.mxu0 %v709
      %v1115 = vpop.f32.mrf.mxu0
      %v1116 = vadd.f32 0.0, %v1115
      %v1117 = vpop.f32.mrf.mxu0
      %v1118 = vpop.f32.mrf.mxu0
      %v1119 = vadd.f32 0.0, %v1118
      %v1120 = vpop.f32.mrf.mxu0
      %1121 = vdwg.mxu0
      %1122 = vmatprep.subr.bf16.mxu0 0
      %1123 = vmatpush1.bf16.msra.mxu0 %v882
      %1124 = vmatprep.subr.bf16.mxu0 0
      %1125 = vmatpush1.bf16.msra.mxu0 %v881
      %1126 = vmatprep.subr.bf16.mxu0 0
      %1127 = vmatpush1.bf16.msra.mxu0 %v880
      %1128 = vmatprep.subr.bf16.mxu0 0
      %1129 = vmatpush1.bf16.msra.mxu0 %v879
      %1130 = vmatprep.subr.bf16.mxu0 0
      %1131 = vmatpush1.bf16.msra.mxu0 %v878
      %1132 = vmatprep.subr.bf16.mxu0 0
      %1133 = vmatpush1.bf16.msra.mxu0 %v877
      %1134 = vmatprep.subr.bf16.mxu0 0
      %1135 = vmatpush1.bf16.msra.mxu0 %v876
      %1136 = vmatprep.subr.bf16.mxu0 0
      %1137 = vmatpush1.bf16.msra.mxu0 %v875
      %1138 = vmatprep.subr.bf16.mxu0 0
      %1139 = vmatpush2.bf16.msra.mxu0 0
      %1140 = vmatprep.subr.bf16.mxu0 0
      %1141 = vmatpush2.bf16.msra.mxu0 0
      %1142 = vmatprep.subr.bf16.mxu0 0
      %1143 = vmatpush2.bf16.msra.mxu0 0
      %1144 = vmatprep.subr.bf16.mxu0 0
      %1145 = vmatpush2.bf16.msra.mxu0 0
      %1146 = vmatprep.subr.bf16.mxu0 0
      %1147 = vmatpush2.bf16.msra.mxu0 0
      %1148 = vmatprep.subr.bf16.mxu0 0
      %1149 = vmatpush2.bf16.msra.mxu0 0
      %1150 = vmatprep.subr.bf16.mxu0 0
      %1151 = vmatpush2.bf16.msra.mxu0 0
      %1152 = vmatprep.subr.bf16.mxu0 0
      %1153 = vmatpush2.bf16.msra.mxu0 %v959
      %1154 = vmatprep.mubr.bf16.mxu0 %v910
      %1155 = vmatmul.mubr.bf16.gmra.mxu0 %v651
      %v1156 = vpop.f32.mrf.mxu0
      %v1157 = vadd.f32 %v996, %v1156
      %v1158 = vpop.f32.mrf.mxu0
      %v1159 = vpop.f32.mrf.mxu0
      %v1160 = vadd.f32 %v999, %v1159
      %v1161 = vpop.f32.mrf.mxu0
      %1162 = vmatprep.mubr.bf16.mxu0 %v913
      %1163 = vmatmul.mubr.bf16.gmra.mxu0 %v655
      %v1164 = vpop.f32.mrf.mxu0
      %v1165 = vadd.f32 %v1004, %v1164
      %v1166 = vpop.f32.mrf.mxu0
      %v1167 = vpop.f32.mrf.mxu0
      %v1168 = vadd.f32 %v1007, %v1167
      %v1169 = vpop.f32.mrf.mxu0
      %1170 = vmatprep.mubr.bf16.mxu0 %v916
      %1171 = vmatmul.mubr.bf16.gmra.mxu0 %v659
      %v1172 = vpop.f32.mrf.mxu0
      %v1173 = vadd.f32 %v1012, %v1172
      %v1174 = vpop.f32.mrf.mxu0
      %v1175 = vpop.f32.mrf.mxu0
      %v1176 = vadd.f32 %v1015, %v1175
      %v1177 = vpop.f32.mrf.mxu0
      %1178 = vmatprep.mubr.bf16.mxu0 %v919
      %1179 = vmatmul.mubr.bf16.gmra.mxu0 %v663
      %v1180 = vpop.f32.mrf.mxu0
      %v1181 = vadd.f32 %v1020, %v1180
      %v1182 = vpop.f32.mrf.mxu0
      %v1183 = vpop.f32.mrf.mxu0
      %v1184 = vadd.f32 %v1023, %v1183
      %v1185 = vpop.f32.mrf.mxu0
      %1186 = vmatprep.mubr.bf16.mxu0 %v922
      %1187 = vmatmul.mubr.bf16.gmra.mxu0 %v667
      %v1188 = vpop.f32.mrf.mxu0
      %v1189 = vadd.f32 %v1028, %v1188
      %v1190 = vpop.f32.mrf.mxu0
      %v1191 = vpop.f32.mrf.mxu0
      %v1192 = vadd.f32 %v1031, %v1191
      %v1193 = vpop.f32.mrf.mxu0
      %1194 = vmatprep.mubr.bf16.mxu0 %v925
      %1195 = vmatmul.mubr.bf16.gmra.mxu0 %v671
      %v1196 = vpop.f32.mrf.mxu0
      %v1197 = vadd.f32 %v1036, %v1196
      %v1198 = vpop.f32.mrf.mxu0
      %v1199 = vpop.f32.mrf.mxu0
      %v1200 = vadd.f32 %v1039, %v1199
      %v1201 = vpop.f32.mrf.mxu0
      %1202 = vmatprep.mubr.bf16.mxu0 %v928
      %1203 = vmatmul.mubr.bf16.gmra.mxu0 %v675
      %v1204 = vpop.f32.mrf.mxu0
      %v1205 = vadd.f32 %v1044, %v1204
      %v1206 = vpop.f32.mrf.mxu0
      %v1207 = vpop.f32.mrf.mxu0
      %v1208 = vadd.f32 %v1047, %v1207
      %v1209 = vpop.f32.mrf.mxu0
      %1210 = vmatprep.mubr.bf16.mxu0 %v931
      %1211 = vmatmul.mubr.bf16.gmra.mxu0 %v679
      %v1212 = vpop.f32.mrf.mxu0
      %v1213 = vadd.f32 %v1052, %v1212
      %v1214 = vpop.f32.mrf.mxu0
      %v1215 = vpop.f32.mrf.mxu0
      %v1216 = vadd.f32 %v1055, %v1215
      %v1217 = vpop.f32.mrf.mxu0
      %1218 = vmatprep.mubr.bf16.mxu0 %v934
      %1219 = vmatmul.mubr.bf16.gmra.mxu0 %v683
      %v1220 = vpop.f32.mrf.mxu0
      %v1221 = vadd.f32 %v1060, %v1220
      %v1222 = vpop.f32.mrf.mxu0
      %v1223 = vpop.f32.mrf.mxu0
      %v1224 = vadd.f32 %v1063, %v1223
      %v1225 = vpop.f32.mrf.mxu0
      %1226 = vmatprep.mubr.bf16.mxu0 %v937
      %1227 = vmatmul.mubr.bf16.gmra.mxu0 %v687
      %v1228 = vpop.f32.mrf.mxu0
      %v1229 = vadd.f32 %v1068, %v1228
      %v1230 = vpop.f32.mrf.mxu0
      %v1231 = vpop.f32.mrf.mxu0
      %v1232 = vadd.f32 %v1071, %v1231
      %v1233 = vpop.f32.mrf.mxu0
      %1234 = vmatprep.mubr.bf16.mxu0 %v940
      %1235 = vmatmul.mubr.bf16.gmra.mxu0 %v691
      %v1236 = vpop.f32.mrf.mxu0
      %v1237 = vadd.f32 %v1076, %v1236
      %v1238 = vpop.f32.mrf.mxu0
      %v1239 = vpop.f32.mrf.mxu0
      %v1240 = vadd.f32 %v1079, %v1239
      %v1241 = vpop.f32.mrf.mxu0
      %1242 = vmatprep.mubr.bf16.mxu0 %v943
      %1243 = vmatmul.mubr.bf16.gmra.mxu0 %v695
      %v1244 = vpop.f32.mrf.mxu0
      %v1245 = vadd.f32 %v1084, %v1244
      %v1246 = vpop.f32.mrf.mxu0
      %v1247 = vpop.f32.mrf.mxu0
      %v1248 = vadd.f32 %v1087, %v1247
      %v1249 = vpop.f32.mrf.mxu0
      %1250 = vmatprep.mubr.bf16.mxu0 %v946
      %1251 = vmatmul.mubr.bf16.gmra.mxu0 %v699
      %v1252 = vpop.f32.mrf.mxu0
      %v1253 = vadd.f32 %v1092, %v1252
      %v1254 = vpop.f32.mrf.mxu0
      %v1255 = vpop.f32.mrf.mxu0
      %v1256 = vadd.f32 %v1095, %v1255
      %v1257 = vpop.f32.mrf.mxu0
      %1258 = vmatprep.mubr.bf16.mxu0 %v949
      %1259 = vmatmul.mubr.bf16.gmra.mxu0 %v703
      %v1260 = vpop.f32.mrf.mxu0
      %v1261 = vadd.f32 %v1100, %v1260
      %v1262 = vpop.f32.mrf.mxu0
      %v1263 = vpop.f32.mrf.mxu0
      %v1264 = vadd.f32 %v1103, %v1263
      %v1265 = vpop.f32.mrf.mxu0
      %1266 = vmatprep.mubr.bf16.mxu0 %v952
      %1267 = vmatmul.mubr.bf16.gmra.mxu0 %v707
      %v1268 = vpop.f32.mrf.mxu0
      %v1269 = vadd.f32 %v1108, %v1268
      %v1270 = vpop.f32.mrf.mxu0
      %v1271 = vpop.f32.mrf.mxu0
      %v1272 = vadd.f32 %v1111, %v1271
      %v1273 = vpop.f32.mrf.mxu0
      %1274 = vmatprep.mubr.bf16.mxu0 %v955
      %1275 = vmatmul.mubr.bf16.gmra.mxu0 %v711
      %v1276 = vpop.f32.mrf.mxu0
      %v1277 = vadd.f32 %v1116, %v1276
      %v1278 = vpop.f32.mrf.mxu0
      %v1279 = vpop.f32.mrf.mxu0
      %v1280 = vadd.f32 %v1119, %v1279
      %v1281 = vpop.f32.mrf.mxu0
      %1282 = vdwg.mxu0
      %v1283 = vadd.f32 %v312, %v1157
      %v1284 = vadd.f32 %v313, %v1160
      %v1285 = vadd.f32 %v314, %v1165
      %v1286 = vadd.f32 %v315, %v1168
      %v1287 = vadd.f32 %v316, %v1173
      %v1288 = vadd.f32 %v317, %v1176
      %v1289 = vadd.f32 %v318, %v1181
      %v1290 = vadd.f32 %v319, %v1184
      %v1291 = vadd.f32 %v320, %v1189
      %v1292 = vadd.f32 %v321, %v1192
      %v1293 = vadd.f32 %v322, %v1197
      %v1294 = vadd.f32 %v323, %v1200
      %v1295 = vadd.f32 %v324, %v1205
      %v1296 = vadd.f32 %v325, %v1208
      %v1297 = vadd.f32 %v326, %v1213
      %v1298 = vadd.f32 %v327, %v1216
      %v1299 = vadd.f32 %v328, %v1221
      %v1300 = vadd.f32 %v329, %v1224
      %v1301 = vadd.f32 %v330, %v1229
      %v1302 = vadd.f32 %v331, %v1232
      %v1303 = vadd.f32 %v332, %v1237
      %v1304 = vadd.f32 %v333, %v1240
      %v1305 = vadd.f32 %v334, %v1245
      %v1306 = vadd.f32 %v335, %v1248
      %v1307 = vadd.f32 %v336, %v1253
      %v1308 = vadd.f32 %v337, %v1256
      %v1309 = vadd.f32 %v338, %v1261
      %v1310 = vadd.f32 %v339, %v1264
      %v1311 = vadd.f32 %v340, %v1269
      %v1312 = vadd.f32 %v341, %v1272
      %v1313 = vadd.f32 %v342, %v1277
      %v1314 = vadd.f32 %v343, %v1280
      %vm1315 = vcmask 23552
      %1316 = vst.msk [vmem:[#allocation2] sm:$0xff] %vm1315, %v1283
      %1317 = vst.msk [vmem:[#allocation2 + $0x8] sm:$0xff] %vm1315, %v1284
      %1318 = vst.msk [vmem:[#allocation2 + $0x10] sm:$0xff] %vm1315, %v1285
      %1319 = vst.msk [vmem:[#allocation2 + $0x18] sm:$0xff] %vm1315, %v1286
      %1320 = vst.msk [vmem:[#allocation2 + $0x20] sm:$0xff] %vm1315, %v1287
      %1321 = vst.msk [vmem:[#allocation2 + $0x28] sm:$0xff] %vm1315, %v1288
      %1322 = vst.msk [vmem:[#allocation2 + $0x30] sm:$0xff] %vm1315, %v1289
      %1323 = vst.msk [vmem:[#allocation2 + $0x38] sm:$0xff] %vm1315, %v1290
      %1324 = vst.msk [vmem:[#allocation2 + $0x40] sm:$0xff] %vm1315, %v1291
      %1325 = vst.msk [vmem:[#allocation2 + $0x48] sm:$0xff] %vm1315, %v1292
      %1326 = vst.msk [vmem:[#allocation2 + $0x50] sm:$0xff] %vm1315, %v1293
      %1327 = vst.msk [vmem:[#allocation2 + $0x58] sm:$0xff] %vm1315, %v1294
      %1328 = vst.msk [vmem:[#allocation2 + $0x60] sm:$0xff] %vm1315, %v1295
      %1329 = vst.msk [vmem:[#allocation2 + $0x68] sm:$0xff] %vm1315, %v1296
      %1330 = vst.msk [vmem:[#allocation2 + $0x70] sm:$0xff] %vm1315, %v1297
      %1331 = vst.msk [vmem:[#allocation2 + $0x78] sm:$0xff] %vm1315, %v1298
      %1332 = vst.msk [vmem:[#allocation2 + $0x80] sm:$0xff] %vm1315, %v1299
      %1333 = vst.msk [vmem:[#allocation2 + $0x88] sm:$0xff] %vm1315, %v1300
      %1334 = vst.msk [vmem:[#allocation2 + $0x90] sm:$0xff] %vm1315, %v1301
      %1335 = vst.msk [vmem:[#allocation2 + $0x98] sm:$0xff] %vm1315, %v1302
      %1336 = vst.msk [vmem:[#allocation2 + $0xa0] sm:$0xff] %vm1315, %v1303
      %1337 = vst.msk [vmem:[#allocation2 + $0xa8] sm:$0xff] %vm1315, %v1304
      %1338 = vst.msk [vmem:[#allocation2 + $0xb0] sm:$0xff] %vm1315, %v1305
      %1339 = vst.msk [vmem:[#allocation2 + $0xb8] sm:$0xff] %vm1315, %v1306
      %1340 = vst.msk [vmem:[#allocation2 + $0xc0] sm:$0xff] %vm1315, %v1307
      %1341 = vst.msk [vmem:[#allocation2 + $0xc8] sm:$0xff] %vm1315, %v1308
      %1342 = vst.msk [vmem:[#allocation2 + $0xd0] sm:$0xff] %vm1315, %v1309
      %1343 = vst.msk [vmem:[#allocation2 + $0xd8] sm:$0xff] %vm1315, %v1310
      %1344 = vst.msk [vmem:[#allocation2 + $0xe0] sm:$0xff] %vm1315, %v1311
      %1345 = vst.msk [vmem:[#allocation2 + $0xe8] sm:$0xff] %vm1315, %v1312
      %1346 = vst.msk [vmem:[#allocation2 + $0xf0] sm:$0xff] %vm1315, %v1313
      %1347 = vst.msk [vmem:[#allocation2 + $0xf8] sm:$0xff] %vm1315, %v1314
      // Predicated region
      $region37: #{encoder_forward_impl.39} parent=31 // pred_check
        %p1348 = pneg %p268
      $region38: #{encoder_forward_impl.39} parent=31 // pred_check_branch
        %1350 = sbr.rel (%p1348) target = $region40
      $region39: #{encoder_forward_impl.39} parent=31 // pred_region
        %v1351 = vld [vmem:[#allocation2] sm:$0xff]
        %v1352 = vld [vmem:[#allocation2 + $0x8] sm:$0xff]
        %v1353 = vld [vmem:[#allocation2 + $0x10] sm:$0xff]
        %v1354 = vld [vmem:[#allocation2 + $0x18] sm:$0xff]
        %v1355 = vld [vmem:[#allocation2 + $0x20] sm:$0xff]
        %v1356 = vld [vmem:[#allocation2 + $0x28] sm:$0xff]
        %v1357 = vld [vmem:[#allocation2 + $0x30] sm:$0xff]
        %v1358 = vld [vmem:[#allocation2 + $0x38] sm:$0xff]
        %v1359 = vld [vmem:[#allocation2 + $0x40] sm:$0xff]
        %v1360 = vld [vmem:[#allocation2 + $0x48] sm:$0xff]
        %v1361 = vld [vmem:[#allocation2 + $0x50] sm:$0xff]
        %v1362 = vld [vmem:[#allocation2 + $0x58] sm:$0xff]
        %v1363 = vld [vmem:[#allocation2 + $0x60] sm:$0xff]
        %v1364 = vld [vmem:[#allocation2 + $0x68] sm:$0xff]
        %v1365 = vld [vmem:[#allocation2 + $0x70] sm:$0xff]
        %v1366 = vld [vmem:[#allocation2 + $0x78] sm:$0xff]
        %v1367 = vld [vmem:[#allocation2 + $0x80] sm:$0xff]
        %v1368 = vld [vmem:[#allocation2 + $0x88] sm:$0xff]
        %v1369 = vld [vmem:[#allocation2 + $0x90] sm:$0xff]
        %v1370 = vld [vmem:[#allocation2 + $0x98] sm:$0xff]
        %v1371 = vld [vmem:[#allocation2 + $0xa0] sm:$0xff]
        %v1372 = vld [vmem:[#allocation2 + $0xa8] sm:$0xff]
        %v1373 = vld [vmem:[#allocation2 + $0xb0] sm:$0xff]
        %v1374 = vld [vmem:[#allocation2 + $0xb8] sm:$0xff]
        %v1375 = vld [vmem:[#allocation2 + $0xc0] sm:$0xff]
        %v1376 = vld [vmem:[#allocation2 + $0xc8] sm:$0xff]
        %v1377 = vld [vmem:[#allocation2 + $0xd0] sm:$0xff]
        %v1378 = vld [vmem:[#allocation2 + $0xd8] sm:$0xff]
        %v1379 = vld [vmem:[#allocation2 + $0xe0] sm:$0xff]
        %v1380 = vld [vmem:[#allocation2 + $0xe8] sm:$0xff]
        %v1381 = vld [vmem:[#allocation2 + $0xf0] sm:$0xff]
        %v1382 = vld [vmem:[#allocation2 + $0xf8] sm:$0xff]
        %v1383 = vtanh.pop %v1351
        %v1384 = vtanh.pop %v1352
        %v1385 = vtanh.pop %v1353
        %v1386 = vtanh.pop %v1354
        %v1387 = vtanh.pop %v1355
        %v1388 = vtanh.pop %v1356
        %v1389 = vtanh.pop %v1357
        %v1390 = vtanh.pop %v1358
        %v1391 = vtanh.pop %v1359
        %v1392 = vtanh.pop %v1360
        %v1393 = vtanh.pop %v1361
        %v1394 = vtanh.pop %v1362
        %v1395 = vtanh.pop %v1363
        %v1396 = vtanh.pop %v1364
        %v1397 = vtanh.pop %v1365
        %v1398 = vtanh.pop %v1366
        %v1399 = vtanh.pop %v1367
        %v1400 = vtanh.pop %v1368
        %v1401 = vtanh.pop %v1369
        %v1402 = vtanh.pop %v1370
        %v1403 = vtanh.pop %v1371
        %v1404 = vtanh.pop %v1372
        %v1405 = vtanh.pop %v1373
        %v1406 = vtanh.pop %v1374
        %v1407 = vtanh.pop %v1375
        %v1408 = vtanh.pop %v1376
        %v1409 = vtanh.pop %v1377
        %v1410 = vtanh.pop %v1378
        %v1411 = vtanh.pop %v1379
        %v1412 = vtanh.pop %v1380
        %v1413 = vtanh.pop %v1381
        %v1414 = vtanh.pop %v1382
        %1415 = vst.msk [vmem:[%s265] sm:$0xff] %vm1315, %v1383
        %1416 = vst.msk [vmem:[%s265 + $0x8] sm:$0xff] %vm1315, %v1384
        %1417 = vst.msk [vmem:[%s265 + $0x10] sm:$0xff] %vm1315, %v1385
        %1418 = vst.msk [vmem:[%s265 + $0x18] sm:$0xff] %vm1315, %v1386
        %1419 = vst.msk [vmem:[%s265 + $0x20] sm:$0xff] %vm1315, %v1387
        %1420 = vst.msk [vmem:[%s265 + $0x28] sm:$0xff] %vm1315, %v1388
        %1421 = vst.msk [vmem:[%s265 + $0x30] sm:$0xff] %vm1315, %v1389
        %1422 = vst.msk [vmem:[%s265 + $0x38] sm:$0xff] %vm1315, %v1390
        %1423 = vst.msk [vmem:[%s265 + $0x40] sm:$0xff] %vm1315, %v1391
        %1424 = vst.msk [vmem:[%s265 + $0x48] sm:$0xff] %vm1315, %v1392
        %1425 = vst.msk [vmem:[%s265 + $0x50] sm:$0xff] %vm1315, %v1393
        %1426 = vst.msk [vmem:[%s265 + $0x58] sm:$0xff] %vm1315, %v1394
        %1427 = vst.msk [vmem:[%s265 + $0x60] sm:$0xff] %vm1315, %v1395
        %1428 = vst.msk [vmem:[%s265 + $0x68] sm:$0xff] %vm1315, %v1396
        %1429 = vst.msk [vmem:[%s265 + $0x70] sm:$0xff] %vm1315, %v1397
        %1430 = vst.msk [vmem:[%s265 + $0x78] sm:$0xff] %vm1315, %v1398
        %1431 = vst.msk [vmem:[%s265 + $0x80] sm:$0xff] %vm1315, %v1399
        %1432 = vst.msk [vmem:[%s265 + $0x88] sm:$0xff] %vm1315, %v1400
        %1433 = vst.msk [vmem:[%s265 + $0x90] sm:$0xff] %vm1315, %v1401
        %1434 = vst.msk [vmem:[%s265 + $0x98] sm:$0xff] %vm1315, %v1402
        %1435 = vst.msk [vmem:[%s265 + $0xa0] sm:$0xff] %vm1315, %v1403
        %1436 = vst.msk [vmem:[%s265 + $0xa8] sm:$0xff] %vm1315, %v1404
        %1437 = vst.msk [vmem:[%s265 + $0xb0] sm:$0xff] %vm1315, %v1405
        %1438 = vst.msk [vmem:[%s265 + $0xb8] sm:$0xff] %vm1315, %v1406
        %1439 = vst.msk [vmem:[%s265 + $0xc0] sm:$0xff] %vm1315, %v1407
        %1440 = vst.msk [vmem:[%s265 + $0xc8] sm:$0xff] %vm1315, %v1408
        %1441 = vst.msk [vmem:[%s265 + $0xd0] sm:$0xff] %vm1315, %v1409
        %1442 = vst.msk [vmem:[%s265 + $0xd8] sm:$0xff] %vm1315, %v1410
        %1443 = vst.msk [vmem:[%s265 + $0xe0] sm:$0xff] %vm1315, %v1411
        %1444 = vst.msk [vmem:[%s265 + $0xe8] sm:$0xff] %vm1315, %v1412
        %1445 = vst.msk [vmem:[%s265 + $0xf0] sm:$0xff] %vm1315, %v1413
        %1446 = vst.msk [vmem:[%s265 + $0xf8] sm:$0xff] %vm1315, %v1414
      $region40: #{encoder_forward_impl.39} parent=31 // pred_fallthru
        _
      %s1447 = smul.u32 32, %s20
      %p1448 = scmp.lt.s32.totalorder %s1447, 63
      %s1449 = scalar_select %p1448, %s1447, 63
      %p1450 = scmp.lt.s32.totalorder %s19, 0
      %s1451 = scalar_select %p1450, %s19, 0
      %s1452 = sadd.s32 %s1451, %s1449
      %s1453 = smul.addr %s1452, 8
      %s1454 = scalar_lea.vmem %s3, %s1453
      // Predicated region
      $region41: #{encoder_forward_impl.39} parent=31 // pred_check
        %p1455 = pneg %p135
      $region42: #{encoder_forward_impl.39} parent=31 // pred_check_branch
        %1457 = sbr.rel (%p1455) target = $region44
      $region43: #{encoder_forward_impl.39} parent=31 // pred_region
        %s1458 = smul.u32 32, %s20
      $region44: #{encoder_forward_impl.39} parent=31 // pred_fallthru
        _
    $region32: #{encoder_forward_impl.39} parent=5 // pred_fallthru
      _
    %p1459 = scmp.le.s32.totalorder 2, %s9
    // Predicated region
    $region45: #{encoder_forward_impl.39} parent=5 // pred_check
      %p1460 = pneg %p1459
    $region46: #{encoder_forward_impl.39} parent=5 // pred_check_branch
      %1462 = sbr.rel (%p1460) target = $region48
    $region47: #{encoder_forward_impl.39} parent=5 // pred_region
      %s1463 = ssub.s32 %s9, 2
      // Predicated region
      $region49: #{encoder_forward_impl.39} parent=47 // pred_check
        %p1464 = pneg %p141
      $region50: #{encoder_forward_impl.39} parent=47 // pred_check_branch
        %1466 = sbr.rel (%p1464) target = $region52
      $region51: #{encoder_forward_impl.39} parent=47 // pred_region
        %s1467 = smul.u32 32, %s23
        %p1468 = scmp.lt.s32.totalorder %s1467, 63
        %s1469 = scalar_select %p1468, %s1467, 63
        %p1470 = scmp.lt.s32.totalorder %s22, 0
        %s1471 = scalar_select %p1470, %s22, 0
        %s1472 = sadd.s32 %s1471, %s1469
        %s1473 = smul.addr %s1472, 8
        %s1474 = scalar_lea.vmem %s3, %s1473
      $region52: #{encoder_forward_impl.39} parent=47 // pred_fallthru
        _
    $region48: #{encoder_forward_impl.39} parent=5 // pred_fallthru
      _
  $region6: #{encoder_forward_impl.39} parent=0 // loop_footer
    %s13 = sadd.s32 1, %s9
  $region7: #{encoder_forward_impl.39} parent=0 // loop_footer_branch
    %8 = sbr.rel target = $region3
  $region8: #{encoder_forward_impl.39} parent=0 // loop_exit
    _

// kernel: encoder_forward_impl.40
$region0: #{encoder_forward_impl.40}
  #allocation0 [shape = 'u32[]', space=smem, size = 0x4, offset = 0x4, fixed_abs, tag = 'smem constant byte address 0x4 - core index']
  #allocation1 [shape = 'u32[144,128]{1,0:T(1,128)}', space=vmem, size = 0x12000, scoped, tag = 'internal scratch']
  %s0 = inlined_call_operand.vmem [shape: s32[2,256,1], index: 0, kind: input, shape index: {}]
  %s1 = inlined_call_operand.vmem [shape: f32[2,256,3], index: 1, kind: input, shape index: {}]
  %s2 = inlined_call_operand.vmem [shape: f32[2,16,4], index: 2, kind: output, shape index: {}]
  %s3 = sld [smem:[#allocation0]]
  $region45: #{encoder_forward_impl.40} parent=0
    _
  %s5 = ssub.s32 1, %s3
  %s6 = scalar_select 0, %s5, %s3
  loop: start=0, step=1, limit=4
  $region2: #{encoder_forward_impl.40} parent=0 // loop_pre_header
    _
  $region3: #{encoder_forward_impl.40} parent=0 // loop_header
    %s8 = sphi 0, %s12
    %p9 = scmp.ge.s32.totalorder %s8, 4
    %s15 = sphi 0, %s27
    %s16 = sphi 0, %s23
    %s17 = sphi 0, %s15
    %s18 = sphi 0, %s16
    %s19 = sphi 0, %s17
    %s20 = sphi 0, %s18
    %s32 = sphi 0, %s34
    %s35 = sphi 0, %s32
    %s36 = sphi 0, %s35
    %s52 = sphi 0, %s36
    %s60 = sphi 0, %s62
    %s63 = sphi 0, %s60
    %s64 = sphi 0, %s63
    %s80 = sphi 0, %s64
    %s86 = sphi 0, %s88
    %s89 = sphi 0, %s86
    %s90 = sphi 0, %s89
    %s106 = sphi 0, %s90
  $region4: #{encoder_forward_impl.40} parent=0 // loop_header_branch
    %11 = sbr.rel (%p9) target = $region8
  $region5: #{encoder_forward_impl.40} parent=0 // loop_body
    %s13 = ssub.s32 %s8, 1
    %s14 = ssub.s32 %s8, 2
    %s21 = sadd.s32 1, %s16
    %p22 = scmp.ge.s32.totalorder %s21, 1
    %s23 = scalar_select %p22, 0, %s21
    %s24 = sadd.s32 1, %s15
    %s25 = scalar_select %p22, %s24, %s15
    %p26 = scmp.ge.s32.totalorder %s25, 2
    %s27 = scalar_select %p26, 0, %s25
    %s28 = ssub.s32 %s15, %s27
    %s29 = ssub.s32 %s16, %s23
    %s30 = sor.u32 %s28, %s29
    %p31 = scmp.eq.s32.totalorder %s30, 0
    %s33 = sadd.s32 %s32, 1
    %s34 = scalar_select %p31, %s32, %s33
    %p37 = pneg %p31
    %p38 = scmp.eq.s32.totalorder %s8, 1
    %p39 = por %p37, %p38
    %p40 = scmp.ne.s32.totalorder %s32, %s35
    %p41 = scmp.eq.s32.totalorder %s8, 0
    %p42 = por %p40, %p41
    %p43 = scmp.ne.s32.totalorder %s32, %s35
    %p44 = scmp.eq.s32.totalorder %s13, 1
    %p45 = por %p43, %p44
    %p46 = scmp.ne.s32.totalorder %s35, %s36
    %p47 = scmp.eq.s32.totalorder %s13, 0
    %p48 = por %p46, %p47
    %p49 = scmp.ne.s32.totalorder %s35, %s36
    %p50 = scmp.eq.s32.totalorder %s14, 1
    %p51 = por %p49, %p50
    %p53 = scmp.ne.s32.totalorder %s36, %s52
    %p54 = scmp.eq.s32.totalorder %s14, 0
    %p55 = por %p53, %p54
    %s56 = ssub.s32 %s15, %s27
    %s57 = ssub.s32 %s16, %s23
    %s58 = sor.u32 %s56, %s57
    %p59 = scmp.eq.s32.totalorder %s58, 0
    %s61 = sadd.s32 %s60, 1
    %s62 = scalar_select %p59, %s60, %s61
    %p65 = pneg %p59
    %p66 = scmp.eq.s32.totalorder %s8, 1
    %p67 = por %p65, %p66
    %p68 = scmp.ne.s32.totalorder %s60, %s63
    %p69 = scmp.eq.s32.totalorder %s8, 0
    %p70 = por %p68, %p69
    %p71 = scmp.ne.s32.totalorder %s60, %s63
    %p72 = scmp.eq.s32.totalorder %s13, 1
    %p73 = por %p71, %p72
    %p74 = scmp.ne.s32.totalorder %s63, %s64
    %p75 = scmp.eq.s32.totalorder %s13, 0
    %p76 = por %p74, %p75
    %p77 = scmp.ne.s32.totalorder %s63, %s64
    %p78 = scmp.eq.s32.totalorder %s14, 1
    %p79 = por %p77, %p78
    %p81 = scmp.ne.s32.totalorder %s64, %s80
    %p82 = scmp.eq.s32.totalorder %s14, 0
    %p83 = por %p81, %p82
    %s84 = ssub.s32 %s15, %s27
    %p85 = scmp.eq.s32.totalorder %s84, 0
    %s87 = sadd.s32 %s86, 1
    %s88 = scalar_select %p85, %s86, %s87
    %p91 = pneg %p85
    %p92 = scmp.eq.s32.totalorder %s8, 1
    %p93 = por %p91, %p92
    %p94 = scmp.ne.s32.totalorder %s86, %s89
    %p95 = scmp.eq.s32.totalorder %s8, 0
    %p96 = por %p94, %p95
    %p97 = scmp.ne.s32.totalorder %s86, %s89
    %p98 = scmp.eq.s32.totalorder %s13, 1
    %p99 = por %p97, %p98
    %p100 = scmp.ne.s32.totalorder %s89, %s90
    %p101 = scmp.eq.s32.totalorder %s13, 0
    %p102 = por %p100, %p101
    %p103 = scmp.ne.s32.totalorder %s89, %s90
    %p104 = scmp.eq.s32.totalorder %s14, 1
    %p105 = por %p103, %p104
    %p107 = scmp.ne.s32.totalorder %s90, %s106
    %p108 = scmp.eq.s32.totalorder %s14, 0
    %p109 = por %p107, %p108
    %p110 = scmp.le.s32.totalorder 1, %s8
    %p111 = scmp.lt.s32.totalorder %s8, 3
    %p112 = pnand %p110, %p111
    %p113 = pneg %p112
    // Predicated region
    $region9: #{encoder_forward_impl.40} parent=5 // pred_check
      _
    $region10: #{encoder_forward_impl.40} parent=5 // pred_check_branch
      %115 = sbr.rel (%p112) target = $region12
    $region11: #{encoder_forward_impl.40} parent=5 // pred_region
      %s116 = ssub.s32 %s8, 1
    $region12: #{encoder_forward_impl.40} parent=5 // pred_fallthru
      _
    %p117 = scmp.lt.s32.totalorder %s8, 2
    // Predicated region
    $region13: #{encoder_forward_impl.40} parent=5 // pred_check
      %p118 = pneg %p117
    $region14: #{encoder_forward_impl.40} parent=5 // pred_check_branch
      %120 = sbr.rel (%p118) target = $region16
    $region15: #{encoder_forward_impl.40} parent=5 // pred_region
      // Predicated region
      $region17: #{encoder_forward_impl.40} parent=15 // pred_check
        %p121 = pneg %p42
      $region18: #{encoder_forward_impl.40} parent=15 // pred_check_branch
        %123 = sbr.rel (%p121) target = $region20
      $region19: #{encoder_forward_impl.40} parent=15 // pred_region
        %s124 = smul.u32 32, %s16
        %p125 = scmp.lt.s32.totalorder %s15, 1
        %s126 = scalar_select %p125, %s15, 1
        %p127 = scmp.lt.s32.totalorder %s124, 31
        %s128 = scalar_select %p127, %s124, 31
        %s129 = smul.addr %s126, 32
        %s130 = sadd.s32 %s128, %s129
        %s131 = smul.addr %s130, 8
        %s132 = scalar_lea.vmem %s0, %s131
        %s133 = smul.u32 32, %s16
      $region20: #{encoder_forward_impl.40} parent=15 // pred_fallthru
        _
      // Predicated region
      $region21: #{encoder_forward_impl.40} parent=15 // pred_check
        %p134 = pneg %p70
      $region22: #{encoder_forward_impl.40} parent=15 // pred_check_branch
        %136 = sbr.rel (%p134) target = $region24
      $region23: #{encoder_forward_impl.40} parent=15 // pred_region
        %s137 = smul.u32 32, %s16
        %p138 = scmp.lt.s32.totalorder %s15, 1
        %s139 = scalar_select %p138, %s15, 1
        %p140 = scmp.lt.s32.totalorder %s137, 31
        %s141 = scalar_select %p140, %s137, 31
        %s142 = smul.addr %s139, 32
        %s143 = sadd.s32 %s141, %s142
        %s144 = smul.addr %s143, 8
        %s145 = scalar_lea.vmem %s1, %s144
        %s146 = smul.u32 32, %s16
      $region24: #{encoder_forward_impl.40} parent=15 // pred_fallthru
        _
    $region16: #{encoder_forward_impl.40} parent=5 // pred_fallthru
      _
    %p147 = scmp.le.s32.totalorder 1, %s8
    %p148 = scmp.lt.s32.totalorder %s8, 3
    %p149 = pnand %p147, %p148
    %p150 = pneg %p149
    // Predicated region
    $region25: #{encoder_forward_impl.40} parent=5 // pred_check
      _
    $region26: #{encoder_forward_impl.40} parent=5 // pred_check_branch
      %152 = sbr.rel (%p149) target = $region28
    $region27: #{encoder_forward_impl.40} parent=5 // pred_region
      %s153 = ssub.s32 %s8, 1
      %s154 = smul.u32 32, %s18
      %p155 = scmp.lt.s32.totalorder %s17, 1
      %s156 = scalar_select %p155, %s17, 1
      %p157 = scmp.lt.s32.totalorder %s154, 31
      %s158 = scalar_select %p157, %s154, 31
      %s159 = smul.addr %s156, 32
      %s160 = sadd.s32 %s158, %s159
      %s161 = smul.addr %s160, 8
      %s162 = scalar_lea.vmem %s0, %s161
      %p163 = pneg %p48
      %p164 = pneg %p45
      %s165 = smul.u32 32, %s18
      %p166 = scmp.lt.s32.totalorder %s17, 1
      %s167 = scalar_select %p166, %s17, 1
      %p168 = scmp.lt.s32.totalorder %s165, 31
      %s169 = scalar_select %p168, %s165, 31
      %s170 = smul.addr %s167, 32
      %s171 = sadd.s32 %s169, %s170
      %s172 = smul.addr %s171, 8
      %s173 = scalar_lea.vmem %s1, %s172
      %p174 = pneg %p76
      %p175 = pneg %p73
      %p176 = pneg %p102
      %p177 = pneg %p99
      %p178 = scmp.lt.s32.totalorder %s17, 1
      %s179 = scalar_select %p178, %s17, 1
      %s180 = smul.addr %s179, 2
      %s181 = smul.addr %s180, 8
      %s182 = scalar_lea.vmem %s2, %s181
      %s183 = smul.u32 32, %s18
      %p184 = scmp.lt.s32.totalorder %s17, 1
      %s185 = scalar_select %p184, %s17, 1
      %p186 = scmp.lt.s32.totalorder %s183, 31
      %s187 = scalar_select %p186, %s183, 31
      %s188 = smul.addr %s185, 32
      %s189 = sadd.s32 %s187, %s188
      %s190 = smul.addr %s189, 8
      %s191 = scalar_lea.vmem %s0, %s190
      %s192 = smul.u32 32, %s18
      %s193 = smul.u32 32, %s18
      %p194 = scmp.lt.s32.totalorder %s17, 1
      %s195 = scalar_select %p194, %s17, 1
      %p196 = scmp.lt.s32.totalorder %s193, 31
      %s197 = scalar_select %p196, %s193, 31
      %s198 = smul.addr %s195, 32
      %s199 = sadd.s32 %s197, %s198
      %s200 = smul.addr %s199, 8
      %s201 = scalar_lea.vmem %s1, %s200
      %s202 = smul.u32 32, %s18
      %p203 = scmp.lt.s32.totalorder %s17, 1
      %s204 = scalar_select %p203, %s17, 1
      %s205 = smul.addr %s204, 2
      %s206 = smul.addr %s205, 8
      %s207 = scalar_lea.vmem %s2, %s206
      %p208 = scmp.eq.s32.totalorder %s18, 0
      // Predicated region
      $region29: #{encoder_forward_impl.40} parent=27 // pred_check
        %p209 = pneg %p208
      $region30: #{encoder_forward_impl.40} parent=27 // pred_check_branch
        %211 = sbr.rel (%p209) target = $region32
      $region31: #{encoder_forward_impl.40} parent=27 // pred_region
        %vm212 = vcmask 31744
        %213 = vst.msk [vmem:[%s207] sm:$0xff] %vm212, 0.0
        %214 = vst.msk [vmem:[%s207 + $0x8] sm:$0xff] %vm212, 0.0
      $region32: #{encoder_forward_impl.40} parent=27 // pred_fallthru
        _
      %v215 = vld [vmem:[%s191] sm:$0xff]
      %v216 = vld [vmem:[%s191 + $0x8] sm:$0xff]
      %v217 = vld [vmem:[%s191 + $0x10] sm:$0xff]
      %v218 = vld [vmem:[%s191 + $0x18] sm:$0xff]
      %v219 = vld [vmem:[%s191 + $0x20] sm:$0xff]
      %v220 = vld [vmem:[%s191 + $0x28] sm:$0xff]
      %v221 = vld [vmem:[%s191 + $0x30] sm:$0xff]
      %v222 = vld [vmem:[%s191 + $0x38] sm:$0xff]
      %v223 = vld [vmem:[%s191 + $0x40] sm:$0xff]
      %v224 = vld [vmem:[%s191 + $0x48] sm:$0xff]
      %v225 = vld [vmem:[%s191 + $0x50] sm:$0xff]
      %v226 = vld [vmem:[%s191 + $0x58] sm:$0xff]
      %v227 = vld [vmem:[%s191 + $0x60] sm:$0xff]
      %v228 = vld [vmem:[%s191 + $0x68] sm:$0xff]
      %v229 = vld [vmem:[%s191 + $0x70] sm:$0xff]
      %v230 = vld [vmem:[%s191 + $0x78] sm:$0xff]
      %v231 = vld [vmem:[%s191 + $0x80] sm:$0xff]
      %v232 = vld [vmem:[%s191 + $0x88] sm:$0xff]
      %v233 = vld [vmem:[%s191 + $0x90] sm:$0xff]
      %v234 = vld [vmem:[%s191 + $0x98] sm:$0xff]
      %v235 = vld [vmem:[%s191 + $0xa0] sm:$0xff]
      %v236 = vld [vmem:[%s191 + $0xa8] sm:$0xff]
      %v237 = vld [vmem:[%s191 + $0xb0] sm:$0xff]
      %v238 = vld [vmem:[%s191 + $0xb8] sm:$0xff]
      %v239 = vld [vmem:[%s191 + $0xc0] sm:$0xff]
      %v240 = vld [vmem:[%s191 + $0xc8] sm:$0xff]
      %v241 = vld [vmem:[%s191 + $0xd0] sm:$0xff]
      %v242 = vld [vmem:[%s191 + $0xd8] sm:$0xff]
      %v243 = vld [vmem:[%s191 + $0xe0] sm:$0xff]
      %v244 = vld [vmem:[%s191 + $0xe8] sm:$0xff]
      %v245 = vld [vmem:[%s191 + $0xf0] sm:$0xff]
      %v246 = vld [vmem:[%s191 + $0xf8] sm:$0xff]
      %v247 = vld [vmem:[%s201] sm:$0xff]
      %v248 = vld [vmem:[%s201 + $0x8] sm:$0xff]
      %v249 = vld [vmem:[%s201 + $0x10] sm:$0xff]
      %v250 = vld [vmem:[%s201 + $0x18] sm:$0xff]
      %v251 = vld [vmem:[%s201 + $0x20] sm:$0xff]
      %v252 = vld [vmem:[%s201 + $0x28] sm:$0xff]
      %v253 = vld [vmem:[%s201 + $0x30] sm:$0xff]
      %v254 = vld [vmem:[%s201 + $0x38] sm:$0xff]
      %v255 = vld [vmem:[%s201 + $0x40] sm:$0xff]
      %v256 = vld [vmem:[%s201 + $0x48] sm:$0xff]
      %v257 = vld [vmem:[%s201 + $0x50] sm:$0xff]
      %v258 = vld [vmem:[%s201 + $0x58] sm:$0xff]
      %v259 = vld [vmem:[%s201 + $0x60] sm:$0xff]
      %v260 = vld [vmem:[%s201 + $0x68] sm:$0xff]
      %v261 = vld [vmem:[%s201 + $0x70] sm:$0xff]
      %v262 = vld [vmem:[%s201 + $0x78] sm:$0xff]
      %v263 = vld [vmem:[%s201 + $0x80] sm:$0xff]
      %v264 = vld [vmem:[%s201 + $0x88] sm:$0xff]
      %v265 = vld [vmem:[%s201 + $0x90] sm:$0xff]
      %v266 = vld [vmem:[%s201 + $0x98] sm:$0xff]
      %v267 = vld [vmem:[%s201 + $0xa0] sm:$0xff]
      %v268 = vld [vmem:[%s201 + $0xa8] sm:$0xff]
      %v269 = vld [vmem:[%s201 + $0xb0] sm:$0xff]
      %v270 = vld [vmem:[%s201 + $0xb8] sm:$0xff]
      %v271 = vld [vmem:[%s201 + $0xc0] sm:$0xff]
      %v272 = vld [vmem:[%s201 + $0xc8] sm:$0xff]
      %v273 = vld [vmem:[%s201 + $0xd0] sm:$0xff]
      %v274 = vld [vmem:[%s201 + $0xd8] sm:$0xff]
      %v275 = vld [vmem:[%s201 + $0xe0] sm:$0xff]
      %v276 = vld [vmem:[%s201 + $0xe8] sm:$0xff]
      %v277 = vld [vmem:[%s201 + $0xf0] sm:$0xff]
      %v278 = vld [vmem:[%s201 + $0xf8] sm:$0xff]
      %v279 = vlaneseq
      %v280 = vand.u32 %v279, 127
      %281 = vset.pattern.permute.xlu0 0
      %282 = vperm.xlu0 %281, %v215
      %v283 = vpop.permute.xlu0 %282
      %284 = vset.pattern.permute.xlu0 0
      %285 = vperm.xlu0 %284, %v216
      %v286 = vpop.permute.xlu0 %285
      %287 = vset.pattern.permute.xlu0 0
      %288 = vperm.xlu0 %287, %v217
      %v289 = vpop.permute.xlu0 %288
      %290 = vset.pattern.permute.xlu0 0
      %291 = vperm.xlu0 %290, %v218
      %v292 = vpop.permute.xlu0 %291
      %293 = vset.pattern.permute.xlu0 0
      %294 = vperm.xlu0 %293, %v219
      %v295 = vpop.permute.xlu0 %294
      %296 = vset.pattern.permute.xlu0 0
      %297 = vperm.xlu0 %296, %v220
      %v298 = vpop.permute.xlu0 %297
      %299 = vset.pattern.permute.xlu0 0
      %300 = vperm.xlu0 %299, %v221
      %v301 = vpop.permute.xlu0 %300
      %302 = vset.pattern.permute.xlu0 0
      %303 = vperm.xlu0 %302, %v222
      %v304 = vpop.permute.xlu0 %303
      %305 = vset.pattern.permute.xlu0 0
      %306 = vperm.xlu0 %305, %v223
      %v307 = vpop.permute.xlu0 %306
      %308 = vset.pattern.permute.xlu0 0
      %309 = vperm.xlu0 %308, %v224
      %v310 = vpop.permute.xlu0 %309
      %311 = vset.pattern.permute.xlu0 0
      %312 = vperm.xlu0 %311, %v225
      %v313 = vpop.permute.xlu0 %312
      %314 = vset.pattern.permute.xlu0 0
      %315 = vperm.xlu0 %314, %v226
      %v316 = vpop.permute.xlu0 %315
      %317 = vset.pattern.permute.xlu0 0
      %318 = vperm.xlu0 %317, %v227
      %v319 = vpop.permute.xlu0 %318
      %320 = vset.pattern.permute.xlu0 0
      %321 = vperm.xlu0 %320, %v228
      %v322 = vpop.permute.xlu0 %321
      %323 = vset.pattern.permute.xlu0 0
      %324 = vperm.xlu0 %323, %v229
      %v325 = vpop.permute.xlu0 %324
      %326 = vset.pattern.permute.xlu0 0
      %327 = vperm.xlu0 %326, %v230
      %v328 = vpop.permute.xlu0 %327
      %329 = vset.pattern.permute.xlu0 0
      %330 = vperm.xlu0 %329, %v231
      %v331 = vpop.permute.xlu0 %330
      %332 = vset.pattern.permute.xlu0 0
      %333 = vperm.xlu0 %332, %v232
      %v334 = vpop.permute.xlu0 %333
      %335 = vset.pattern.permute.xlu0 0
      %336 = vperm.xlu0 %335, %v233
      %v337 = vpop.permute.xlu0 %336
      %338 = vset.pattern.permute.xlu0 0
      %339 = vperm.xlu0 %338, %v234
      %v340 = vpop.permute.xlu0 %339
      %341 = vset.pattern.permute.xlu0 0
      %342 = vperm.xlu0 %341, %v235
      %v343 = vpop.permute.xlu0 %342
      %344 = vset.pattern.permute.xlu0 0
      %345 = vperm.xlu0 %344, %v236
      %v346 = vpop.permute.xlu0 %345
      %347 = vset.pattern.permute.xlu0 0
      %348 = vperm.xlu0 %347, %v237
      %v349 = vpop.permute.xlu0 %348
      %350 = vset.pattern.permute.xlu0 0
      %351 = vperm.xlu0 %350, %v238
      %v352 = vpop.permute.xlu0 %351
      %353 = vset.pattern.permute.xlu0 0
      %354 = vperm.xlu0 %353, %v239
      %v355 = vpop.permute.xlu0 %354
      %356 = vset.pattern.permute.xlu0 0
      %357 = vperm.xlu0 %356, %v240
      %v358 = vpop.permute.xlu0 %357
      %359 = vset.pattern.permute.xlu0 0
      %360 = vperm.xlu0 %359, %v241
      %v361 = vpop.permute.xlu0 %360
      %362 = vset.pattern.permute.xlu0 0
      %363 = vperm.xlu0 %362, %v242
      %v364 = vpop.permute.xlu0 %363
      %365 = vset.pattern.permute.xlu0 0
      %366 = vperm.xlu0 %365, %v243
      %v367 = vpop.permute.xlu0 %366
      %368 = vset.pattern.permute.xlu0 0
      %369 = vperm.xlu0 %368, %v244
      %v370 = vpop.permute.xlu0 %369
      %371 = vset.pattern.permute.xlu0 0
      %372 = vperm.xlu0 %371, %v245
      %v373 = vpop.permute.xlu0 %372
      %374 = vset.pattern.permute.xlu0 0
      %375 = vperm.xlu0 %374, %v246
      %v376 = vpop.permute.xlu0 %375
      %vm377 = vcmp.eq.s32.totalorder %v283, %v280
      %vm378 = vcmp.eq.s32.totalorder %v286, %v280
      %vm379 = vcmp.eq.s32.totalorder %v289, %v280
      %vm380 = vcmp.eq.s32.totalorder %v292, %v280
      %vm381 = vcmp.eq.s32.totalorder %v295, %v280
      %vm382 = vcmp.eq.s32.totalorder %v298, %v280
      %vm383 = vcmp.eq.s32.totalorder %v301, %v280
      %vm384 = vcmp.eq.s32.totalorder %v304, %v280
      %vm385 = vcmp.eq.s32.totalorder %v307, %v280
      %vm386 = vcmp.eq.s32.totalorder %v310, %v280
      %vm387 = vcmp.eq.s32.totalorder %v313, %v280
      %vm388 = vcmp.eq.s32.totalorder %v316, %v280
      %vm389 = vcmp.eq.s32.totalorder %v319, %v280
      %vm390 = vcmp.eq.s32.totalorder %v322, %v280
      %vm391 = vcmp.eq.s32.totalorder %v325, %v280
      %vm392 = vcmp.eq.s32.totalorder %v328, %v280
      %vm393 = vcmp.eq.s32.totalorder %v331, %v280
      %vm394 = vcmp.eq.s32.totalorder %v334, %v280
      %vm395 = vcmp.eq.s32.totalorder %v337, %v280
      %vm396 = vcmp.eq.s32.totalorder %v340, %v280
      %vm397 = vcmp.eq.s32.totalorder %v343, %v280
      %vm398 = vcmp.eq.s32.totalorder %v346, %v280
      %vm399 = vcmp.eq.s32.totalorder %v349, %v280
      %vm400 = vcmp.eq.s32.totalorder %v352, %v280
      %vm401 = vcmp.eq.s32.totalorder %v355, %v280
      %vm402 = vcmp.eq.s32.totalorder %v358, %v280
      %vm403 = vcmp.eq.s32.totalorder %v361, %v280
      %vm404 = vcmp.eq.s32.totalorder %v364, %v280
      %vm405 = vcmp.eq.s32.totalorder %v367, %v280
      %vm406 = vcmp.eq.s32.totalorder %v370, %v280
      %vm407 = vcmp.eq.s32.totalorder %v373, %v280
      %vm408 = vcmp.eq.s32.totalorder %v376, %v280
      %v409 = vsel %vm377, 1, 0
      %v410 = vsel %vm378, 1, 0
      %v411 = vsel %vm379, 1, 0
      %v412 = vsel %vm380, 1, 0
      %v413 = vsel %vm381, 1, 0
      %v414 = vsel %vm382, 1, 0
      %v415 = vsel %vm383, 1, 0
      %v416 = vsel %vm384, 1, 0
      %v417 = vsel %vm385, 1, 0
      %v418 = vsel %vm386, 1, 0
      %v419 = vsel %vm387, 1, 0
      %v420 = vsel %vm388, 1, 0
      %v421 = vsel %vm389, 1, 0
      %v422 = vsel %vm390, 1, 0
      %v423 = vsel %vm391, 1, 0
      %v424 = vsel %vm392, 1, 0
      %v425 = vsel %vm393, 1, 0
      %v426 = vsel %vm394, 1, 0
      %v427 = vsel %vm395, 1, 0
      %v428 = vsel %vm396, 1, 0
      %v429 = vsel %vm397, 1, 0
      %v430 = vsel %vm398, 1, 0
      %v431 = vsel %vm399, 1, 0
      %v432 = vsel %vm400, 1, 0
      %v433 = vsel %vm401, 1, 0
      %v434 = vsel %vm402, 1, 0
      %v435 = vsel %vm403, 1, 0
      %v436 = vsel %vm404, 1, 0
      %v437 = vsel %vm405, 1, 0
      %v438 = vsel %vm406, 1, 0
      %v439 = vsel %vm407, 1, 0
      %v440 = vsel %vm408, 1, 0
      %v441 = vcvt.s32.f32 %v409
      %v442 = vcvt.s32.f32 %v410
      %v443 = vcvt.s32.f32 %v411
      %v444 = vcvt.s32.f32 %v412
      %v445 = vcvt.s32.f32 %v413
      %v446 = vcvt.s32.f32 %v414
      %v447 = vcvt.s32.f32 %v415
      %v448 = vcvt.s32.f32 %v416
      %v449 = vcvt.s32.f32 %v417
      %v450 = vcvt.s32.f32 %v418
      %v451 = vcvt.s32.f32 %v419
      %v452 = vcvt.s32.f32 %v420
      %v453 = vcvt.s32.f32 %v421
      %v454 = vcvt.s32.f32 %v422
      %v455 = vcvt.s32.f32 %v423
      %v456 = vcvt.s32.f32 %v424
      %v457 = vcvt.s32.f32 %v425
      %v458 = vcvt.s32.f32 %v426
      %v459 = vcvt.s32.f32 %v427
      %v460 = vcvt.s32.f32 %v428
      %v461 = vcvt.s32.f32 %v429
      %v462 = vcvt.s32.f32 %v430
      %v463 = vcvt.s32.f32 %v431
      %v464 = vcvt.s32.f32 %v432
      %v465 = vcvt.s32.f32 %v433
      %v466 = vcvt.s32.f32 %v434
      %v467 = vcvt.s32.f32 %v435
      %v468 = vcvt.s32.f32 %v436
      %v469 = vcvt.s32.f32 %v437
      %v470 = vcvt.s32.f32 %v438
      %v471 = vcvt.s32.f32 %v439
      %v472 = vcvt.s32.f32 %v440
      %vm473 = vcmask 23552
      %v474 = vsel %vm473, %v247, 1.0
      %v475 = vsel %vm473, %v248, 1.0
      %v476 = vsel %vm473, %v249, 1.0
      %v477 = vsel %vm473, %v250, 1.0
      %v478 = vsel %vm473, %v251, 1.0
      %v479 = vsel %vm473, %v252, 1.0
      %v480 = vsel %vm473, %v253, 1.0
      %v481 = vsel %vm473, %v254, 1.0
      %v482 = vsel %vm473, %v255, 1.0
      %v483 = vsel %vm473, %v256, 1.0
      %v484 = vsel %vm473, %v257, 1.0
      %v485 = vsel %vm473, %v258, 1.0
      %v486 = vsel %vm473, %v259, 1.0
      %v487 = vsel %vm473, %v260, 1.0
      %v488 = vsel %vm473, %v261, 1.0
      %v489 = vsel %vm473, %v262, 1.0
      %v490 = vsel %vm473, %v263, 1.0
      %v491 = vsel %vm473, %v264, 1.0
      %v492 = vsel %vm473, %v265, 1.0
      %v493 = vsel %vm473, %v266, 1.0
      %v494 = vsel %vm473, %v267, 1.0
      %v495 = vsel %vm473, %v268, 1.0
      %v496 = vsel %vm473, %v269, 1.0
      %v497 = vsel %vm473, %v270, 1.0
      %v498 = vsel %vm473, %v271, 1.0
      %v499 = vsel %vm473, %v272, 1.0
      %v500 = vsel %vm473, %v273, 1.0
      %v501 = vsel %vm473, %v274, 1.0
      %v502 = vsel %vm473, %v275, 1.0
      %v503 = vsel %vm473, %v276, 1.0
      %v504 = vsel %vm473, %v277, 1.0
      %v505 = vsel %vm473, %v278, 1.0
      %v506 = vld [vmem:[%s207] sm:$0xff]
      %v507 = vld [vmem:[%s207 + $0x8] sm:$0xff]
      %508 = vxpose.xlu0.b32.start [1/16] %v441, 128
      %509 = vxpose.xlu0.b32.cont [2/16] %v442, 128
      %510 = vxpose.xlu0.b32.cont [3/16] %v443, 128
      %511 = vxpose.xlu0.b32.cont [4/16] %v444, 128
      %512 = vxpose.xlu0.b32.cont [5/16] %v445, 128
      %513 = vxpose.xlu0.b32.cont [6/16] %v446, 128
      %514 = vxpose.xlu0.b32.cont [7/16] %v447, 128
      %515 = vxpose.xlu0.b32.cont [8/16] %v448, 128
      %516 = vxpose.xlu0.b32.cont [9/16] %v449, 128
      %517 = vxpose.xlu0.b32.cont [10/16] %v450, 128
      %518 = vxpose.xlu0.b32.cont [11/16] %v451, 128
      %519 = vxpose.xlu0.b32.cont [12/16] %v452, 128
      %520 = vxpose.xlu0.b32.cont [13/16] %v453, 128
      %521 = vxpose.xlu0.b32.cont [14/16] %v454, 128
      %522 = vxpose.xlu0.b32.cont [15/16] %v455, 128
      %523 = vxpose.xlu0.b32.end [16/16] %v456, 128
      %v524 = vpop.trf.xlu0
      %v525 = vpop.trf.xlu0
      %v526 = vpop.trf.xlu0
      %v527 = vpop.trf.xlu0
      %v528 = vpop.trf.xlu0
      %v529 = vpop.trf.xlu0
      %v530 = vpop.trf.xlu0
      %v531 = vpop.trf.xlu0
      %v532 = vpop.trf.xlu0
      %v533 = vpop.trf.xlu0
      %v534 = vpop.trf.xlu0
      %v535 = vpop.trf.xlu0
      %v536 = vpop.trf.xlu0
      %v537 = vpop.trf.xlu0
      %v538 = vpop.trf.xlu0
      %v539 = vpop.trf.xlu0
      %540 = vxpose.xlu0.b32.start [1/16] %v457, 128
      %541 = vxpose.xlu0.b32.cont [2/16] %v458, 128
      %542 = vxpose.xlu0.b32.cont [3/16] %v459, 128
      %543 = vxpose.xlu0.b32.cont [4/16] %v460, 128
      %544 = vxpose.xlu0.b32.cont [5/16] %v461, 128
      %545 = vxpose.xlu0.b32.cont [6/16] %v462, 128
      %546 = vxpose.xlu0.b32.cont [7/16] %v463, 128
      %547 = vxpose.xlu0.b32.cont [8/16] %v464, 128
      %548 = vxpose.xlu0.b32.cont [9/16] %v465, 128
      %549 = vxpose.xlu0.b32.cont [10/16] %v466, 128
      %550 = vxpose.xlu0.b32.cont [11/16] %v467, 128
      %551 = vxpose.xlu0.b32.cont [12/16] %v468, 128
      %552 = vxpose.xlu0.b32.cont [13/16] %v469, 128
      %553 = vxpose.xlu0.b32.cont [14/16] %v470, 128
      %554 = vxpose.xlu0.b32.cont [15/16] %v471, 128
      %555 = vxpose.xlu0.b32.end [16/16] %v472, 128
      %v556 = vpop.trf.xlu0
      %v557 = vpop.trf.xlu0
      %v558 = vpop.trf.xlu0
      %v559 = vpop.trf.xlu0
      %v560 = vpop.trf.xlu0
      %v561 = vpop.trf.xlu0
      %v562 = vpop.trf.xlu0
      %v563 = vpop.trf.xlu0
      %v564 = vpop.trf.xlu0
      %v565 = vpop.trf.xlu0
      %v566 = vpop.trf.xlu0
      %v567 = vpop.trf.xlu0
      %v568 = vpop.trf.xlu0
      %v569 = vpop.trf.xlu0
      %v570 = vpop.trf.xlu0
      %v571 = vpop.trf.xlu0
      %572 = vmatprep.subr.mxu0 0.0
      %573 = vmatpush1.msra.mxu0 %v489
      %574 = vmatprep.subr.mxu0 0.0
      %575 = vmatpush1.msra.mxu0 %v488
      %576 = vmatprep.subr.mxu0 0.0
      %577 = vmatpush1.msra.mxu0 %v487
      %578 = vmatprep.subr.mxu0 0.0
      %579 = vmatpush1.msra.mxu0 %v486
      %580 = vmatprep.subr.mxu0 0.0
      %581 = vmatpush1.msra.mxu0 %v485
      %582 = vmatprep.subr.mxu0 0.0
      %583 = vmatpush1.msra.mxu0 %v484
      %584 = vmatprep.subr.mxu0 0.0
      %585 = vmatpush1.msra.mxu0 %v483
      %586 = vmatprep.subr.mxu0 0.0
      %587 = vmatpush1.msra.mxu0 %v482
      %588 = vmatprep.subr.mxu0 0.0
      %589 = vmatpush1.msra.mxu0 %v481
      %590 = vmatprep.subr.mxu0 0.0
      %591 = vmatpush1.msra.mxu0 %v480
      %592 = vmatprep.subr.mxu0 0.0
      %593 = vmatpush1.msra.mxu0 %v479
      %594 = vmatprep.subr.mxu0 0.0
      %595 = vmatpush1.msra.mxu0 %v478
      %596 = vmatprep.subr.mxu0 0.0
      %597 = vmatpush1.msra.mxu0 %v477
      %598 = vmatprep.subr.mxu0 0.0
      %599 = vmatpush1.msra.mxu0 %v476
      %600 = vmatprep.subr.mxu0 0.0
      %601 = vmatpush1.msra.mxu0 %v475
      %602 = vmatprep.subr.mxu0 0.0
      %603 = vmatpush1.msra.mxu0 %v474
      %604 = vmatprep.subr.mxu0 0.0
      %605 = vmatpush2.msra.mxu0 %v505
      %606 = vmatprep.subr.mxu0 0.0
      %607 = vmatpush2.msra.mxu0 %v504
      %608 = vmatprep.subr.mxu0 0.0
      %609 = vmatpush2.msra.mxu0 %v503
      %610 = vmatprep.subr.mxu0 0.0
      %611 = vmatpush2.msra.mxu0 %v502
      %612 = vmatprep.subr.mxu0 0.0
      %613 = vmatpush2.msra.mxu0 %v501
      %614 = vmatprep.subr.mxu0 0.0
      %615 = vmatpush2.msra.mxu0 %v500
      %616 = vmatprep.subr.mxu0 0.0
      %617 = vmatpush2.msra.mxu0 %v499
      %618 = vmatprep.subr.mxu0 0.0
      %619 = vmatpush2.msra.mxu0 %v498
      %620 = vmatprep.subr.mxu0 0.0
      %621 = vmatpush2.msra.mxu0 %v497
      %622 = vmatprep.subr.mxu0 0.0
      %623 = vmatpush2.msra.mxu0 %v496
      %624 = vmatprep.subr.mxu0 0.0
      %625 = vmatpush2.msra.mxu0 %v495
      %626 = vmatprep.subr.mxu0 0.0
      %627 = vmatpush2.msra.mxu0 %v494
      %628 = vmatprep.subr.mxu0 0.0
      %629 = vmatpush2.msra.mxu0 %v493
      %630 = vmatprep.subr.mxu0 0.0
      %631 = vmatpush2.msra.mxu0 %v492
      %632 = vmatprep.subr.mxu0 0.0
      %633 = vmatpush2.msra.mxu0 %v491
      %634 = vmatprep.subr.mxu0 0.0
      %635 = vmatpush2.msra.mxu0 %v490
      %636 = vmatprep.mubr.f32.mxu0 %v556
      %637 = vmatmul.mubr.f32.gmra.mxu0 %v524
      %v638 = vpop.f32.mrf.mxu0
      %v639 = vadd.f32 0.0, %v638
      %v640 = vpop.f32.mrf.mxu0
      %641 = vmatprep.mubr.f32.mxu0 %v557
      %642 = vmatmul.mubr.f32.gmra.mxu0 %v525
      %v643 = vpop.f32.mrf.mxu0
      %v644 = vadd.f32 0.0, %v643
      %v645 = vpop.f32.mrf.mxu0
      %646 = vdwg.mxu0
      %v647 = vadd.f32 %v506, %v639
      %v648 = vadd.f32 %v507, %v644
      %vm649 = vcmask 31744
      %650 = vst.msk [vmem:[%s207] sm:$0xff] %vm649, %v647
      %651 = vst.msk [vmem:[%s207 + $0x8] sm:$0xff] %vm649, %v648
      %p652 = scmp.lt.s32.totalorder %s17, 1
      %s653 = scalar_select %p652, %s17, 1
      %s654 = smul.addr %s653, 2
      %s655 = smul.addr %s654, 8
      %s656 = scalar_lea.vmem %s2, %s655
      // Predicated region
      $region33: #{encoder_forward_impl.40} parent=27 // pred_check
        %p657 = pneg %p99
      $region34: #{encoder_forward_impl.40} parent=27 // pred_check_branch
        %659 = sbr.rel (%p657) target = $region36
      $region35: #{encoder_forward_impl.40} parent=27 // pred_region
        _
      $region36: #{encoder_forward_impl.40} parent=27 // pred_fallthru
        _
    $region28: #{encoder_forward_impl.40} parent=5 // pred_fallthru
      _
    %p660 = scmp.le.s32.totalorder 2, %s8
    // Predicated region
    $region37: #{encoder_forward_impl.40} parent=5 // pred_check
      %p661 = pneg %p660
    $region38: #{encoder_forward_impl.40} parent=5 // pred_check_branch
      %663 = sbr.rel (%p661) target = $region40
    $region39: #{encoder_forward_impl.40} parent=5 // pred_region
      %s664 = ssub.s32 %s8, 2
      // Predicated region
      $region41: #{encoder_forward_impl.40} parent=39 // pred_check
        %p665 = pneg %p105
      $region42: #{encoder_forward_impl.40} parent=39 // pred_check_branch
        %667 = sbr.rel (%p665) target = $region44
      $region43: #{encoder_forward_impl.40} parent=39 // pred_region
        %p668 = scmp.lt.s32.totalorder %s19, 1
        %s669 = scalar_select %p668, %s19, 1
        %s670 = smul.addr %s669, 2
        %s671 = smul.addr %s670, 8
        %s672 = scalar_lea.vmem %s2, %s671
      $region44: #{encoder_forward_impl.40} parent=39 // pred_fallthru
        _
    $region40: #{encoder_forward_impl.40} parent=5 // pred_fallthru
      _
  $region6: #{encoder_forward_impl.40} parent=0 // loop_footer
    %s12 = sadd.s32 1, %s8
  $region7: #{encoder_forward_impl.40} parent=0 // loop_footer_branch
    %7 = sbr.rel target = $region3
  $region8: #{encoder_forward_impl.40} parent=0 // loop_exit
    _

// kernel: encoder_forward_impl.41
$region0: #{encoder_forward_impl.41}
  #allocation0 [shape = 'u32[]', space=smem, size = 0x4, offset = 0x4, fixed_abs, tag = 'smem constant byte address 0x4 - core index']
  #allocation1 [shape = 'u32[144,128]{1,0:T(1,128)}', space=vmem, size = 0x12000, scoped, tag = 'internal scratch']
  %s0 = inlined_call_operand.vmem [shape: s32[2,256,1], index: 0, kind: input, shape index: {}]
  %s1 = inlined_call_operand.vmem [shape: f32[2,16,3], index: 1, kind: input, shape index: {}]
  %s2 = inlined_call_operand.vmem [shape: f32[2,256,3], index: 2, kind: output, shape index: {}]
  %s3 = sld [smem:[#allocation0]]
  $region41: #{encoder_forward_impl.41} parent=0
    _
  %s5 = ssub.s32 1, %s3
  %s6 = scalar_select 0, %s5, %s3
  loop: start=0, step=1, limit=4
  $region2: #{encoder_forward_impl.41} parent=0 // loop_pre_header
    _
  $region3: #{encoder_forward_impl.41} parent=0 // loop_header
    %s8 = sphi 0, %s12
    %p9 = scmp.ge.s32.totalorder %s8, 4
    %s15 = sphi 0, %s27
    %s16 = sphi 0, %s23
    %s17 = sphi 0, %s15
    %s18 = sphi 0, %s16
    %s19 = sphi 0, %s17
    %s20 = sphi 0, %s18
    %s32 = sphi 0, %s34
    %s35 = sphi 0, %s32
    %s36 = sphi 0, %s35
    %s52 = sphi 0, %s36
    %s58 = sphi 0, %s60
    %s61 = sphi 0, %s58
    %s62 = sphi 0, %s61
    %s78 = sphi 0, %s62
    %s86 = sphi 0, %s88
    %s89 = sphi 0, %s86
    %s90 = sphi 0, %s89
    %s106 = sphi 0, %s90
  $region4: #{encoder_forward_impl.41} parent=0 // loop_header_branch
    %11 = sbr.rel (%p9) target = $region8
  $region5: #{encoder_forward_impl.41} parent=0 // loop_body
    %s13 = ssub.s32 %s8, 1
    %s14 = ssub.s32 %s8, 2
    %s21 = sadd.s32 1, %s16
    %p22 = scmp.ge.s32.totalorder %s21, 1
    %s23 = scalar_select %p22, 0, %s21
    %s24 = sadd.s32 1, %s15
    %s25 = scalar_select %p22, %s24, %s15
    %p26 = scmp.ge.s32.totalorder %s25, 2
    %s27 = scalar_select %p26, 0, %s25
    %s28 = ssub.s32 %s15, %s27
    %s29 = ssub.s32 %s16, %s23
    %s30 = sor.u32 %s28, %s29
    %p31 = scmp.eq.s32.totalorder %s30, 0
    %s33 = sadd.s32 %s32, 1
    %s34 = scalar_select %p31, %s32, %s33
    %p37 = pneg %p31
    %p38 = scmp.eq.s32.totalorder %s8, 1
    %p39 = por %p37, %p38
    %p40 = scmp.ne.s32.totalorder %s32, %s35
    %p41 = scmp.eq.s32.totalorder %s8, 0
    %p42 = por %p40, %p41
    %p43 = scmp.ne.s32.totalorder %s32, %s35
    %p44 = scmp.eq.s32.totalorder %s13, 1
    %p45 = por %p43, %p44
    %p46 = scmp.ne.s32.totalorder %s35, %s36
    %p47 = scmp.eq.s32.totalorder %s13, 0
    %p48 = por %p46, %p47
    %p49 = scmp.ne.s32.totalorder %s35, %s36
    %p50 = scmp.eq.s32.totalorder %s14, 1
    %p51 = por %p49, %p50
    %p53 = scmp.ne.s32.totalorder %s36, %s52
    %p54 = scmp.eq.s32.totalorder %s14, 0
    %p55 = por %p53, %p54
    %s56 = ssub.s32 %s15, %s27
    %p57 = scmp.eq.s32.totalorder %s56, 0
    %s59 = sadd.s32 %s58, 1
    %s60 = scalar_select %p57, %s58, %s59
    %p63 = pneg %p57
    %p64 = scmp.eq.s32.totalorder %s8, 1
    %p65 = por %p63, %p64
    %p66 = scmp.ne.s32.totalorder %s58, %s61
    %p67 = scmp.eq.s32.totalorder %s8, 0
    %p68 = por %p66, %p67
    %p69 = scmp.ne.s32.totalorder %s58, %s61
    %p70 = scmp.eq.s32.totalorder %s13, 1
    %p71 = por %p69, %p70
    %p72 = scmp.ne.s32.totalorder %s61, %s62
    %p73 = scmp.eq.s32.totalorder %s13, 0
    %p74 = por %p72, %p73
    %p75 = scmp.ne.s32.totalorder %s61, %s62
    %p76 = scmp.eq.s32.totalorder %s14, 1
    %p77 = por %p75, %p76
    %p79 = scmp.ne.s32.totalorder %s62, %s78
    %p80 = scmp.eq.s32.totalorder %s14, 0
    %p81 = por %p79, %p80
    %s82 = ssub.s32 %s15, %s27
    %s83 = ssub.s32 %s16, %s23
    %s84 = sor.u32 %s82, %s83
    %p85 = scmp.eq.s32.totalorder %s84, 0
    %s87 = sadd.s32 %s86, 1
    %s88 = scalar_select %p85, %s86, %s87
    %p91 = pneg %p85
    %p92 = scmp.eq.s32.totalorder %s8, 1
    %p93 = por %p91, %p92
    %p94 = scmp.ne.s32.totalorder %s86, %s89
    %p95 = scmp.eq.s32.totalorder %s8, 0
    %p96 = por %p94, %p95
    %p97 = scmp.ne.s32.totalorder %s86, %s89
    %p98 = scmp.eq.s32.totalorder %s13, 1
    %p99 = por %p97, %p98
    %p100 = scmp.ne.s32.totalorder %s89, %s90
    %p101 = scmp.eq.s32.totalorder %s13, 0
    %p102 = por %p100, %p101
    %p103 = scmp.ne.s32.totalorder %s89, %s90
    %p104 = scmp.eq.s32.totalorder %s14, 1
    %p105 = por %p103, %p104
    %p107 = scmp.ne.s32.totalorder %s90, %s106
    %p108 = scmp.eq.s32.totalorder %s14, 0
    %p109 = por %p107, %p108
    %p110 = scmp.le.s32.totalorder 1, %s8
    %p111 = scmp.lt.s32.totalorder %s8, 3
    %p112 = pnand %p110, %p111
    %p113 = pneg %p112
    // Predicated region
    $region9: #{encoder_forward_impl.41} parent=5 // pred_check
      _
    $region10: #{encoder_forward_impl.41} parent=5 // pred_check_branch
      %115 = sbr.rel (%p112) target = $region12
    $region11: #{encoder_forward_impl.41} parent=5 // pred_region
      %s116 = ssub.s32 %s8, 1
    $region12: #{encoder_forward_impl.41} parent=5 // pred_fallthru
      _
    %p117 = scmp.lt.s32.totalorder %s8, 2
    // Predicated region
    $region13: #{encoder_forward_impl.41} parent=5 // pred_check
      %p118 = pneg %p117
    $region14: #{encoder_forward_impl.41} parent=5 // pred_check_branch
      %120 = sbr.rel (%p118) target = $region16
    $region15: #{encoder_forward_impl.41} parent=5 // pred_region
      // Predicated region
      $region17: #{encoder_forward_impl.41} parent=15 // pred_check
        %p121 = pneg %p42
      $region18: #{encoder_forward_impl.41} parent=15 // pred_check_branch
        %123 = sbr.rel (%p121) target = $region20
      $region19: #{encoder_forward_impl.41} parent=15 // pred_region
        %s124 = smul.u32 32, %s16
        %p125 = scmp.lt.s32.totalorder %s15, 1
        %s126 = scalar_select %p125, %s15, 1
        %p127 = scmp.lt.s32.totalorder %s124, 31
        %s128 = scalar_select %p127, %s124, 31
        %s129 = smul.addr %s126, 32
        %s130 = sadd.s32 %s128, %s129
        %s131 = smul.addr %s130, 8
        %s132 = scalar_lea.vmem %s0, %s131
        %s133 = smul.u32 32, %s16
      $region20: #{encoder_forward_impl.41} parent=15 // pred_fallthru
        _
      // Predicated region
      $region21: #{encoder_forward_impl.41} parent=15 // pred_check
        %p134 = pneg %p68
      $region22: #{encoder_forward_impl.41} parent=15 // pred_check_branch
        %136 = sbr.rel (%p134) target = $region24
      $region23: #{encoder_forward_impl.41} parent=15 // pred_region
        %p137 = scmp.lt.s32.totalorder %s15, 1
        %s138 = scalar_select %p137, %s15, 1
        %s139 = smul.addr %s138, 2
        %s140 = smul.addr %s139, 8
        %s141 = scalar_lea.vmem %s1, %s140
      $region24: #{encoder_forward_impl.41} parent=15 // pred_fallthru
        _
    $region16: #{encoder_forward_impl.41} parent=5 // pred_fallthru
      _
    %p142 = scmp.le.s32.totalorder 1, %s8
    %p143 = scmp.lt.s32.totalorder %s8, 3
    %p144 = pnand %p142, %p143
    %p145 = pneg %p144
    // Predicated region
    $region25: #{encoder_forward_impl.41} parent=5 // pred_check
      _
    $region26: #{encoder_forward_impl.41} parent=5 // pred_check_branch
      %147 = sbr.rel (%p144) target = $region28
    $region27: #{encoder_forward_impl.41} parent=5 // pred_region
      %s148 = ssub.s32 %s8, 1
      %s149 = smul.u32 32, %s18
      %p150 = scmp.lt.s32.totalorder %s17, 1
      %s151 = scalar_select %p150, %s17, 1
      %p152 = scmp.lt.s32.totalorder %s149, 31
      %s153 = scalar_select %p152, %s149, 31
      %s154 = smul.addr %s151, 32
      %s155 = sadd.s32 %s153, %s154
      %s156 = smul.addr %s155, 8
      %s157 = scalar_lea.vmem %s0, %s156
      %p158 = pneg %p48
      %p159 = pneg %p45
      %p160 = scmp.lt.s32.totalorder %s17, 1
      %s161 = scalar_select %p160, %s17, 1
      %s162 = smul.addr %s161, 2
      %s163 = smul.addr %s162, 8
      %s164 = scalar_lea.vmem %s1, %s163
      %p165 = pneg %p74
      %p166 = pneg %p71
      %p167 = pneg %p102
      %p168 = pneg %p99
      %s169 = smul.u32 32, %s18
      %p170 = scmp.lt.s32.totalorder %s17, 1
      %s171 = scalar_select %p170, %s17, 1
      %p172 = scmp.lt.s32.totalorder %s169, 31
      %s173 = scalar_select %p172, %s169, 31
      %s174 = smul.addr %s171, 32
      %s175 = sadd.s32 %s173, %s174
      %s176 = smul.addr %s175, 8
      %s177 = scalar_lea.vmem %s2, %s176
      %s178 = smul.u32 32, %s18
      %p179 = scmp.lt.s32.totalorder %s17, 1
      %s180 = scalar_select %p179, %s17, 1
      %p181 = scmp.lt.s32.totalorder %s178, 31
      %s182 = scalar_select %p181, %s178, 31
      %s183 = smul.addr %s180, 32
      %s184 = sadd.s32 %s182, %s183
      %s185 = smul.addr %s184, 8
      %s186 = scalar_lea.vmem %s0, %s185
      %s187 = smul.u32 32, %s18
      %p188 = scmp.lt.s32.totalorder %s17, 1
      %s189 = scalar_select %p188, %s17, 1
      %s190 = smul.addr %s189, 2
      %s191 = smul.addr %s190, 8
      %s192 = scalar_lea.vmem %s1, %s191
      %s193 = smul.u32 32, %s18
      %p194 = scmp.lt.s32.totalorder %s17, 1
      %s195 = scalar_select %p194, %s17, 1
      %p196 = scmp.lt.s32.totalorder %s193, 31
      %s197 = scalar_select %p196, %s193, 31
      %s198 = smul.addr %s195, 32
      %s199 = sadd.s32 %s197, %s198
      %s200 = smul.addr %s199, 8
      %s201 = scalar_lea.vmem %s2, %s200
      %s202 = smul.u32 32, %s18
      %v203 = vld [vmem:[%s186] sm:$0xff]
      %v204 = vld [vmem:[%s186 + $0x8] sm:$0xff]
      %v205 = vld [vmem:[%s186 + $0x10] sm:$0xff]
      %v206 = vld [vmem:[%s186 + $0x18] sm:$0xff]
      %v207 = vld [vmem:[%s186 + $0x20] sm:$0xff]
      %v208 = vld [vmem:[%s186 + $0x28] sm:$0xff]
      %v209 = vld [vmem:[%s186 + $0x30] sm:$0xff]
      %v210 = vld [vmem:[%s186 + $0x38] sm:$0xff]
      %v211 = vld [vmem:[%s186 + $0x40] sm:$0xff]
      %v212 = vld [vmem:[%s186 + $0x48] sm:$0xff]
      %v213 = vld [vmem:[%s186 + $0x50] sm:$0xff]
      %v214 = vld [vmem:[%s186 + $0x58] sm:$0xff]
      %v215 = vld [vmem:[%s186 + $0x60] sm:$0xff]
      %v216 = vld [vmem:[%s186 + $0x68] sm:$0xff]
      %v217 = vld [vmem:[%s186 + $0x70] sm:$0xff]
      %v218 = vld [vmem:[%s186 + $0x78] sm:$0xff]
      %v219 = vld [vmem:[%s186 + $0x80] sm:$0xff]
      %v220 = vld [vmem:[%s186 + $0x88] sm:$0xff]
      %v221 = vld [vmem:[%s186 + $0x90] sm:$0xff]
      %v222 = vld [vmem:[%s186 + $0x98] sm:$0xff]
      %v223 = vld [vmem:[%s186 + $0xa0] sm:$0xff]
      %v224 = vld [vmem:[%s186 + $0xa8] sm:$0xff]
      %v225 = vld [vmem:[%s186 + $0xb0] sm:$0xff]
      %v226 = vld [vmem:[%s186 + $0xb8] sm:$0xff]
      %v227 = vld [vmem:[%s186 + $0xc0] sm:$0xff]
      %v228 = vld [vmem:[%s186 + $0xc8] sm:$0xff]
      %v229 = vld [vmem:[%s186 + $0xd0] sm:$0xff]
      %v230 = vld [vmem:[%s186 + $0xd8] sm:$0xff]
      %v231 = vld [vmem:[%s186 + $0xe0] sm:$0xff]
      %v232 = vld [vmem:[%s186 + $0xe8] sm:$0xff]
      %v233 = vld [vmem:[%s186 + $0xf0] sm:$0xff]
      %v234 = vld [vmem:[%s186 + $0xf8] sm:$0xff]
      %v235 = vlaneseq
      %v236 = vand.u32 %v235, 127
      %237 = vset.pattern.permute.xlu0 0
      %238 = vperm.xlu0 %237, %v203
      %v239 = vpop.permute.xlu0 %238
      %240 = vset.pattern.permute.xlu0 0
      %241 = vperm.xlu0 %240, %v204
      %v242 = vpop.permute.xlu0 %241
      %243 = vset.pattern.permute.xlu0 0
      %244 = vperm.xlu0 %243, %v205
      %v245 = vpop.permute.xlu0 %244
      %246 = vset.pattern.permute.xlu0 0
      %247 = vperm.xlu0 %246, %v206
      %v248 = vpop.permute.xlu0 %247
      %249 = vset.pattern.permute.xlu0 0
      %250 = vperm.xlu0 %249, %v207
      %v251 = vpop.permute.xlu0 %250
      %252 = vset.pattern.permute.xlu0 0
      %253 = vperm.xlu0 %252, %v208
      %v254 = vpop.permute.xlu0 %253
      %255 = vset.pattern.permute.xlu0 0
      %256 = vperm.xlu0 %255, %v209
      %v257 = vpop.permute.xlu0 %256
      %258 = vset.pattern.permute.xlu0 0
      %259 = vperm.xlu0 %258, %v210
      %v260 = vpop.permute.xlu0 %259
      %261 = vset.pattern.permute.xlu0 0
      %262 = vperm.xlu0 %261, %v211
      %v263 = vpop.permute.xlu0 %262
      %264 = vset.pattern.permute.xlu0 0
      %265 = vperm.xlu0 %264, %v212
      %v266 = vpop.permute.xlu0 %265
      %267 = vset.pattern.permute.xlu0 0
      %268 = vperm.xlu0 %267, %v213
      %v269 = vpop.permute.xlu0 %268
      %270 = vset.pattern.permute.xlu0 0
      %271 = vperm.xlu0 %270, %v214
      %v272 = vpop.permute.xlu0 %271
      %273 = vset.pattern.permute.xlu0 0
      %274 = vperm.xlu0 %273, %v215
      %v275 = vpop.permute.xlu0 %274
      %276 = vset.pattern.permute.xlu0 0
      %277 = vperm.xlu0 %276, %v216
      %v278 = vpop.permute.xlu0 %277
      %279 = vset.pattern.permute.xlu0 0
      %280 = vperm.xlu0 %279, %v217
      %v281 = vpop.permute.xlu0 %280
      %282 = vset.pattern.permute.xlu0 0
      %283 = vperm.xlu0 %282, %v218
      %v284 = vpop.permute.xlu0 %283
      %285 = vset.pattern.permute.xlu0 0
      %286 = vperm.xlu0 %285, %v219
      %v287 = vpop.permute.xlu0 %286
      %288 = vset.pattern.permute.xlu0 0
      %289 = vperm.xlu0 %288, %v220
      %v290 = vpop.permute.xlu0 %289
      %291 = vset.pattern.permute.xlu0 0
      %292 = vperm.xlu0 %291, %v221
      %v293 = vpop.permute.xlu0 %292
      %294 = vset.pattern.permute.xlu0 0
      %295 = vperm.xlu0 %294, %v222
      %v296 = vpop.permute.xlu0 %295
      %297 = vset.pattern.permute.xlu0 0
      %298 = vperm.xlu0 %297, %v223
      %v299 = vpop.permute.xlu0 %298
      %300 = vset.pattern.permute.xlu0 0
      %301 = vperm.xlu0 %300, %v224
      %v302 = vpop.permute.xlu0 %301
      %303 = vset.pattern.permute.xlu0 0
      %304 = vperm.xlu0 %303, %v225
      %v305 = vpop.permute.xlu0 %304
      %306 = vset.pattern.permute.xlu0 0
      %307 = vperm.xlu0 %306, %v226
      %v308 = vpop.permute.xlu0 %307
      %309 = vset.pattern.permute.xlu0 0
      %310 = vperm.xlu0 %309, %v227
      %v311 = vpop.permute.xlu0 %310
      %312 = vset.pattern.permute.xlu0 0
      %313 = vperm.xlu0 %312, %v228
      %v314 = vpop.permute.xlu0 %313
      %315 = vset.pattern.permute.xlu0 0
      %316 = vperm.xlu0 %315, %v229
      %v317 = vpop.permute.xlu0 %316
      %318 = vset.pattern.permute.xlu0 0
      %319 = vperm.xlu0 %318, %v230
      %v320 = vpop.permute.xlu0 %319
      %321 = vset.pattern.permute.xlu0 0
      %322 = vperm.xlu0 %321, %v231
      %v323 = vpop.permute.xlu0 %322
      %324 = vset.pattern.permute.xlu0 0
      %325 = vperm.xlu0 %324, %v232
      %v326 = vpop.permute.xlu0 %325
      %327 = vset.pattern.permute.xlu0 0
      %328 = vperm.xlu0 %327, %v233
      %v329 = vpop.permute.xlu0 %328
      %330 = vset.pattern.permute.xlu0 0
      %331 = vperm.xlu0 %330, %v234
      %v332 = vpop.permute.xlu0 %331
      %vm333 = vcmp.eq.s32.totalorder %v239, %v236
      %vm334 = vcmp.eq.s32.totalorder %v242, %v236
      %vm335 = vcmp.eq.s32.totalorder %v245, %v236
      %vm336 = vcmp.eq.s32.totalorder %v248, %v236
      %vm337 = vcmp.eq.s32.totalorder %v251, %v236
      %vm338 = vcmp.eq.s32.totalorder %v254, %v236
      %vm339 = vcmp.eq.s32.totalorder %v257, %v236
      %vm340 = vcmp.eq.s32.totalorder %v260, %v236
      %vm341 = vcmp.eq.s32.totalorder %v263, %v236
      %vm342 = vcmp.eq.s32.totalorder %v266, %v236
      %vm343 = vcmp.eq.s32.totalorder %v269, %v236
      %vm344 = vcmp.eq.s32.totalorder %v272, %v236
      %vm345 = vcmp.eq.s32.totalorder %v275, %v236
      %vm346 = vcmp.eq.s32.totalorder %v278, %v236
      %vm347 = vcmp.eq.s32.totalorder %v281, %v236
      %vm348 = vcmp.eq.s32.totalorder %v284, %v236
      %vm349 = vcmp.eq.s32.totalorder %v287, %v236
      %vm350 = vcmp.eq.s32.totalorder %v290, %v236
      %vm351 = vcmp.eq.s32.totalorder %v293, %v236
      %vm352 = vcmp.eq.s32.totalorder %v296, %v236
      %vm353 = vcmp.eq.s32.totalorder %v299, %v236
      %vm354 = vcmp.eq.s32.totalorder %v302, %v236
      %vm355 = vcmp.eq.s32.totalorder %v305, %v236
      %vm356 = vcmp.eq.s32.totalorder %v308, %v236
      %vm357 = vcmp.eq.s32.totalorder %v311, %v236
      %vm358 = vcmp.eq.s32.totalorder %v314, %v236
      %vm359 = vcmp.eq.s32.totalorder %v317, %v236
      %vm360 = vcmp.eq.s32.totalorder %v320, %v236
      %vm361 = vcmp.eq.s32.totalorder %v323, %v236
      %vm362 = vcmp.eq.s32.totalorder %v326, %v236
      %vm363 = vcmp.eq.s32.totalorder %v329, %v236
      %vm364 = vcmp.eq.s32.totalorder %v332, %v236
      %v365 = vsel %vm333, 1, 0
      %v366 = vsel %vm334, 1, 0
      %v367 = vsel %vm335, 1, 0
      %v368 = vsel %vm336, 1, 0
      %v369 = vsel %vm337, 1, 0
      %v370 = vsel %vm338, 1, 0
      %v371 = vsel %vm339, 1, 0
      %v372 = vsel %vm340, 1, 0
      %v373 = vsel %vm341, 1, 0
      %v374 = vsel %vm342, 1, 0
      %v375 = vsel %vm343, 1, 0
      %v376 = vsel %vm344, 1, 0
      %v377 = vsel %vm345, 1, 0
      %v378 = vsel %vm346, 1, 0
      %v379 = vsel %vm347, 1, 0
      %v380 = vsel %vm348, 1, 0
      %v381 = vsel %vm349, 1, 0
      %v382 = vsel %vm350, 1, 0
      %v383 = vsel %vm351, 1, 0
      %v384 = vsel %vm352, 1, 0
      %v385 = vsel %vm353, 1, 0
      %v386 = vsel %vm354, 1, 0
      %v387 = vsel %vm355, 1, 0
      %v388 = vsel %vm356, 1, 0
      %v389 = vsel %vm357, 1, 0
      %v390 = vsel %vm358, 1, 0
      %v391 = vsel %vm359, 1, 0
      %v392 = vsel %vm360, 1, 0
      %v393 = vsel %vm361, 1, 0
      %v394 = vsel %vm362, 1, 0
      %v395 = vsel %vm363, 1, 0
      %v396 = vsel %vm364, 1, 0
      %v397 = vcvt.s32.f32 %v365
      %v398 = vcvt.s32.f32 %v366
      %v399 = vcvt.s32.f32 %v367
      %v400 = vcvt.s32.f32 %v368
      %v401 = vcvt.s32.f32 %v369
      %v402 = vcvt.s32.f32 %v370
      %v403 = vcvt.s32.f32 %v371
      %v404 = vcvt.s32.f32 %v372
      %v405 = vcvt.s32.f32 %v373
      %v406 = vcvt.s32.f32 %v374
      %v407 = vcvt.s32.f32 %v375
      %v408 = vcvt.s32.f32 %v376
      %v409 = vcvt.s32.f32 %v377
      %v410 = vcvt.s32.f32 %v378
      %v411 = vcvt.s32.f32 %v379
      %v412 = vcvt.s32.f32 %v380
      %v413 = vcvt.s32.f32 %v381
      %v414 = vcvt.s32.f32 %v382
      %v415 = vcvt.s32.f32 %v383
      %v416 = vcvt.s32.f32 %v384
      %v417 = vcvt.s32.f32 %v385
      %v418 = vcvt.s32.f32 %v386
      %v419 = vcvt.s32.f32 %v387
      %v420 = vcvt.s32.f32 %v388
      %v421 = vcvt.s32.f32 %v389
      %v422 = vcvt.s32.f32 %v390
      %v423 = vcvt.s32.f32 %v391
      %v424 = vcvt.s32.f32 %v392
      %v425 = vcvt.s32.f32 %v393
      %v426 = vcvt.s32.f32 %v394
      %v427 = vcvt.s32.f32 %v395
      %v428 = vcvt.s32.f32 %v396
      %v429 = vld [vmem:[%s192] sm:$0xff]
      %v430 = vld [vmem:[%s192 + $0x8] sm:$0xff]
      %vm431 = vcmask 130048
      %v433 = vsel %vm431, %v397, 0
      %v436 = vsel %vm431, %v398, 0
      %v439 = vsel %vm431, %v399, 0
      %v442 = vsel %vm431, %v400, 0
      %v445 = vsel %vm431, %v401, 0
      %v448 = vsel %vm431, %v402, 0
      %v451 = vsel %vm431, %v403, 0
      %v454 = vsel %vm431, %v404, 0
      %v457 = vsel %vm431, %v405, 0
      %v460 = vsel %vm431, %v406, 0
      %v463 = vsel %vm431, %v407, 0
      %v466 = vsel %vm431, %v408, 0
      %v469 = vsel %vm431, %v409, 0
      %v472 = vsel %vm431, %v410, 0
      %v475 = vsel %vm431, %v411, 0
      %v478 = vsel %vm431, %v412, 0
      %v481 = vsel %vm431, %v413, 0
      %v484 = vsel %vm431, %v414, 0
      %v487 = vsel %vm431, %v415, 0
      %v490 = vsel %vm431, %v416, 0
      %v493 = vsel %vm431, %v417, 0
      %v496 = vsel %vm431, %v418, 0
      %v499 = vsel %vm431, %v419, 0
      %v502 = vsel %vm431, %v420, 0
      %v505 = vsel %vm431, %v421, 0
      %v508 = vsel %vm431, %v422, 0
      %v511 = vsel %vm431, %v423, 0
      %v514 = vsel %vm431, %v424, 0
      %v517 = vsel %vm431, %v425, 0
      %v520 = vsel %vm431, %v426, 0
      %v523 = vsel %vm431, %v427, 0
      %v526 = vsel %vm431, %v428, 0
      %528 = vmatprep.subr.mxu0 0.0
      %529 = vmatpush1.msra.mxu0 0.0
      %530 = vmatprep.subr.mxu0 0.0
      %531 = vmatpush1.msra.mxu0 0.0
      %532 = vmatprep.subr.mxu0 0.0
      %533 = vmatpush1.msra.mxu0 0.0
      %534 = vmatprep.subr.mxu0 0.0
      %535 = vmatpush1.msra.mxu0 0.0
      %536 = vmatprep.subr.mxu0 0.0
      %537 = vmatpush1.msra.mxu0 0.0
      %538 = vmatprep.subr.mxu0 0.0
      %539 = vmatpush1.msra.mxu0 0.0
      %540 = vmatprep.subr.mxu0 0.0
      %541 = vmatpush1.msra.mxu0 0.0
      %542 = vmatprep.subr.mxu0 0.0
      %543 = vmatpush1.msra.mxu0 0.0
      %544 = vmatprep.subr.mxu0 0.0
      %545 = vmatpush1.msra.mxu0 0.0
      %546 = vmatprep.subr.mxu0 0.0
      %547 = vmatpush1.msra.mxu0 0.0
      %548 = vmatprep.subr.mxu0 0.0
      %549 = vmatpush1.msra.mxu0 0.0
      %550 = vmatprep.subr.mxu0 0.0
      %551 = vmatpush1.msra.mxu0 0.0
      %552 = vmatprep.subr.mxu0 0.0
      %553 = vmatpush1.msra.mxu0 0.0
      %554 = vmatprep.subr.mxu0 0.0
      %555 = vmatpush1.msra.mxu0 0.0
      %556 = vmatprep.subr.mxu0 0.0
      %557 = vmatpush1.msra.mxu0 %v430
      %558 = vmatprep.subr.mxu0 0.0
      %559 = vmatpush1.msra.mxu0 %v429
      %560 = vmatprep.subr.mxu0 0.0
      %561 = vmatpush2.msra.mxu0 0.0
      %562 = vmatprep.subr.mxu0 0.0
      %563 = vmatpush2.msra.mxu0 0.0
      %564 = vmatprep.subr.mxu0 0.0
      %565 = vmatpush2.msra.mxu0 0.0
      %566 = vmatprep.subr.mxu0 0.0
      %567 = vmatpush2.msra.mxu0 0.0
      %568 = vmatprep.subr.mxu0 0.0
      %569 = vmatpush2.msra.mxu0 0.0
      %570 = vmatprep.subr.mxu0 0.0
      %571 = vmatpush2.msra.mxu0 0.0
      %572 = vmatprep.subr.mxu0 0.0
      %573 = vmatpush2.msra.mxu0 0.0
      %574 = vmatprep.subr.mxu0 0.0
      %575 = vmatpush2.msra.mxu0 0.0
      %576 = vmatprep.subr.mxu0 0.0
      %577 = vmatpush2.msra.mxu0 0.0
      %578 = vmatprep.subr.mxu0 0.0
      %579 = vmatpush2.msra.mxu0 0.0
      %580 = vmatprep.subr.mxu0 0.0
      %581 = vmatpush2.msra.mxu0 0.0
      %582 = vmatprep.subr.mxu0 0.0
      %583 = vmatpush2.msra.mxu0 0.0
      %584 = vmatprep.subr.mxu0 0.0
      %585 = vmatpush2.msra.mxu0 0.0
      %586 = vmatprep.subr.mxu0 0.0
      %587 = vmatpush2.msra.mxu0 0.0
      %588 = vmatprep.subr.mxu0 0.0
      %589 = vmatpush2.msra.mxu0 0.0
      %590 = vmatprep.subr.mxu0 0.0
      %591 = vmatpush2.msra.mxu0 0.0
      %592 = vmatprep.mubr.f32.mxu0 0.0
      %593 = vmatmul.mubr.f32.gmra.mxu0 %v433
      %v594 = vpop.f32.mrf.mxu0
      %v595 = vadd.f32 0.0, %v594
      %v596 = vpop.f32.mrf.mxu0
      %597 = vmatprep.mubr.f32.mxu0 0.0
      %598 = vmatmul.mubr.f32.gmra.mxu0 %v436
      %v599 = vpop.f32.mrf.mxu0
      %v600 = vadd.f32 0.0, %v599
      %v601 = vpop.f32.mrf.mxu0
      %602 = vmatprep.mubr.f32.mxu0 0.0
      %603 = vmatmul.mubr.f32.gmra.mxu0 %v439
      %v604 = vpop.f32.mrf.mxu0
      %v605 = vadd.f32 0.0, %v604
      %v606 = vpop.f32.mrf.mxu0
      %607 = vmatprep.mubr.f32.mxu0 0.0
      %608 = vmatmul.mubr.f32.gmra.mxu0 %v442
      %v609 = vpop.f32.mrf.mxu0
      %v610 = vadd.f32 0.0, %v609
      %v611 = vpop.f32.mrf.mxu0
      %612 = vmatprep.mubr.f32.mxu0 0.0
      %613 = vmatmul.mubr.f32.gmra.mxu0 %v445
      %v614 = vpop.f32.mrf.mxu0
      %v615 = vadd.f32 0.0, %v614
      %v616 = vpop.f32.mrf.mxu0
      %617 = vmatprep.mubr.f32.mxu0 0.0
      %618 = vmatmul.mubr.f32.gmra.mxu0 %v448
      %v619 = vpop.f32.mrf.mxu0
      %v620 = vadd.f32 0.0, %v619
      %v621 = vpop.f32.mrf.mxu0
      %622 = vmatprep.mubr.f32.mxu0 0.0
      %623 = vmatmul.mubr.f32.gmra.mxu0 %v451
      %v624 = vpop.f32.mrf.mxu0
      %v625 = vadd.f32 0.0, %v624
      %v626 = vpop.f32.mrf.mxu0
      %627 = vmatprep.mubr.f32.mxu0 0.0
      %628 = vmatmul.mubr.f32.gmra.mxu0 %v454
      %v629 = vpop.f32.mrf.mxu0
      %v630 = vadd.f32 0.0, %v629
      %v631 = vpop.f32.mrf.mxu0
      %632 = vmatprep.mubr.f32.mxu0 0.0
      %633 = vmatmul.mubr.f32.gmra.mxu0 %v457
      %v634 = vpop.f32.mrf.mxu0
      %v635 = vadd.f32 0.0, %v634
      %v636 = vpop.f32.mrf.mxu0
      %637 = vmatprep.mubr.f32.mxu0 0.0
      %638 = vmatmul.mubr.f32.gmra.mxu0 %v460
      %v639 = vpop.f32.mrf.mxu0
      %v640 = vadd.f32 0.0, %v639
      %v641 = vpop.f32.mrf.mxu0
      %642 = vmatprep.mubr.f32.mxu0 0.0
      %643 = vmatmul.mubr.f32.gmra.mxu0 %v463
      %v644 = vpop.f32.mrf.mxu0
      %v645 = vadd.f32 0.0, %v644
      %v646 = vpop.f32.mrf.mxu0
      %647 = vmatprep.mubr.f32.mxu0 0.0
      %648 = vmatmul.mubr.f32.gmra.mxu0 %v466
      %v649 = vpop.f32.mrf.mxu0
      %v650 = vadd.f32 0.0, %v649
      %v651 = vpop.f32.mrf.mxu0
      %652 = vmatprep.mubr.f32.mxu0 0.0
      %653 = vmatmul.mubr.f32.gmra.mxu0 %v469
      %v654 = vpop.f32.mrf.mxu0
      %v655 = vadd.f32 0.0, %v654
      %v656 = vpop.f32.mrf.mxu0
      %657 = vmatprep.mubr.f32.mxu0 0.0
      %658 = vmatmul.mubr.f32.gmra.mxu0 %v472
      %v659 = vpop.f32.mrf.mxu0
      %v660 = vadd.f32 0.0, %v659
      %v661 = vpop.f32.mrf.mxu0
      %662 = vmatprep.mubr.f32.mxu0 0.0
      %663 = vmatmul.mubr.f32.gmra.mxu0 %v475
      %v664 = vpop.f32.mrf.mxu0
      %v665 = vadd.f32 0.0, %v664
      %v666 = vpop.f32.mrf.mxu0
      %667 = vmatprep.mubr.f32.mxu0 0.0
      %668 = vmatmul.mubr.f32.gmra.mxu0 %v478
      %v669 = vpop.f32.mrf.mxu0
      %v670 = vadd.f32 0.0, %v669
      %v671 = vpop.f32.mrf.mxu0
      %672 = vmatprep.mubr.f32.mxu0 0.0
      %673 = vmatmul.mubr.f32.gmra.mxu0 %v481
      %v674 = vpop.f32.mrf.mxu0
      %v675 = vadd.f32 0.0, %v674
      %v676 = vpop.f32.mrf.mxu0
      %677 = vmatprep.mubr.f32.mxu0 0.0
      %678 = vmatmul.mubr.f32.gmra.mxu0 %v484
      %v679 = vpop.f32.mrf.mxu0
      %v680 = vadd.f32 0.0, %v679
      %v681 = vpop.f32.mrf.mxu0
      %682 = vmatprep.mubr.f32.mxu0 0.0
      %683 = vmatmul.mubr.f32.gmra.mxu0 %v487
      %v684 = vpop.f32.mrf.mxu0
      %v685 = vadd.f32 0.0, %v684
      %v686 = vpop.f32.mrf.mxu0
      %687 = vmatprep.mubr.f32.mxu0 0.0
      %688 = vmatmul.mubr.f32.gmra.mxu0 %v490
      %v689 = vpop.f32.mrf.mxu0
      %v690 = vadd.f32 0.0, %v689
      %v691 = vpop.f32.mrf.mxu0
      %692 = vmatprep.mubr.f32.mxu0 0.0
      %693 = vmatmul.mubr.f32.gmra.mxu0 %v493
      %v694 = vpop.f32.mrf.mxu0
      %v695 = vadd.f32 0.0, %v694
      %v696 = vpop.f32.mrf.mxu0
      %697 = vmatprep.mubr.f32.mxu0 0.0
      %698 = vmatmul.mubr.f32.gmra.mxu0 %v496
      %v699 = vpop.f32.mrf.mxu0
      %v700 = vadd.f32 0.0, %v699
      %v701 = vpop.f32.mrf.mxu0
      %702 = vmatprep.mubr.f32.mxu0 0.0
      %703 = vmatmul.mubr.f32.gmra.mxu0 %v499
      %v704 = vpop.f32.mrf.mxu0
      %v705 = vadd.f32 0.0, %v704
      %v706 = vpop.f32.mrf.mxu0
      %707 = vmatprep.mubr.f32.mxu0 0.0
      %708 = vmatmul.mubr.f32.gmra.mxu0 %v502
      %v709 = vpop.f32.mrf.mxu0
      %v710 = vadd.f32 0.0, %v709
      %v711 = vpop.f32.mrf.mxu0
      %712 = vmatprep.mubr.f32.mxu0 0.0
      %713 = vmatmul.mubr.f32.gmra.mxu0 %v505
      %v714 = vpop.f32.mrf.mxu0
      %v715 = vadd.f32 0.0, %v714
      %v716 = vpop.f32.mrf.mxu0
      %717 = vmatprep.mubr.f32.mxu0 0.0
      %718 = vmatmul.mubr.f32.gmra.mxu0 %v508
      %v719 = vpop.f32.mrf.mxu0
      %v720 = vadd.f32 0.0, %v719
      %v721 = vpop.f32.mrf.mxu0
      %722 = vmatprep.mubr.f32.mxu0 0.0
      %723 = vmatmul.mubr.f32.gmra.mxu0 %v511
      %v724 = vpop.f32.mrf.mxu0
      %v725 = vadd.f32 0.0, %v724
      %v726 = vpop.f32.mrf.mxu0
      %727 = vmatprep.mubr.f32.mxu0 0.0
      %728 = vmatmul.mubr.f32.gmra.mxu0 %v514
      %v729 = vpop.f32.mrf.mxu0
      %v730 = vadd.f32 0.0, %v729
      %v731 = vpop.f32.mrf.mxu0
      %732 = vmatprep.mubr.f32.mxu0 0.0
      %733 = vmatmul.mubr.f32.gmra.mxu0 %v517
      %v734 = vpop.f32.mrf.mxu0
      %v735 = vadd.f32 0.0, %v734
      %v736 = vpop.f32.mrf.mxu0
      %737 = vmatprep.mubr.f32.mxu0 0.0
      %738 = vmatmul.mubr.f32.gmra.mxu0 %v520
      %v739 = vpop.f32.mrf.mxu0
      %v740 = vadd.f32 0.0, %v739
      %v741 = vpop.f32.mrf.mxu0
      %742 = vmatprep.mubr.f32.mxu0 0.0
      %743 = vmatmul.mubr.f32.gmra.mxu0 %v523
      %v744 = vpop.f32.mrf.mxu0
      %v745 = vadd.f32 0.0, %v744
      %v746 = vpop.f32.mrf.mxu0
      %747 = vmatprep.mubr.f32.mxu0 0.0
      %748 = vmatmul.mubr.f32.gmra.mxu0 %v526
      %v749 = vpop.f32.mrf.mxu0
      %v750 = vadd.f32 0.0, %v749
      %v751 = vpop.f32.mrf.mxu0
      %752 = vdwg.mxu0
      %vm753 = vcmask 23552
      %754 = vst.msk [vmem:[%s201] sm:$0xff] %vm753, %v595
      %755 = vst.msk [vmem:[%s201 + $0x8] sm:$0xff] %vm753, %v600
      %756 = vst.msk [vmem:[%s201 + $0x10] sm:$0xff] %vm753, %v605
      %757 = vst.msk [vmem:[%s201 + $0x18] sm:$0xff] %vm753, %v610
      %758 = vst.msk [vmem:[%s201 + $0x20] sm:$0xff] %vm753, %v615
      %759 = vst.msk [vmem:[%s201 + $0x28] sm:$0xff] %vm753, %v620
      %760 = vst.msk [vmem:[%s201 + $0x30] sm:$0xff] %vm753, %v625
      %761 = vst.msk [vmem:[%s201 + $0x38] sm:$0xff] %vm753, %v630
      %762 = vst.msk [vmem:[%s201 + $0x40] sm:$0xff] %vm753, %v635
      %763 = vst.msk [vmem:[%s201 + $0x48] sm:$0xff] %vm753, %v640
      %764 = vst.msk [vmem:[%s201 + $0x50] sm:$0xff] %vm753, %v645
      %765 = vst.msk [vmem:[%s201 + $0x58] sm:$0xff] %vm753, %v650
      %766 = vst.msk [vmem:[%s201 + $0x60] sm:$0xff] %vm753, %v655
      %767 = vst.msk [vmem:[%s201 + $0x68] sm:$0xff] %vm753, %v660
      %768 = vst.msk [vmem:[%s201 + $0x70] sm:$0xff] %vm753, %v665
      %769 = vst.msk [vmem:[%s201 + $0x78] sm:$0xff] %vm753, %v670
      %770 = vst.msk [vmem:[%s201 + $0x80] sm:$0xff] %vm753, %v675
      %771 = vst.msk [vmem:[%s201 + $0x88] sm:$0xff] %vm753, %v680
      %772 = vst.msk [vmem:[%s201 + $0x90] sm:$0xff] %vm753, %v685
      %773 = vst.msk [vmem:[%s201 + $0x98] sm:$0xff] %vm753, %v690
      %774 = vst.msk [vmem:[%s201 + $0xa0] sm:$0xff] %vm753, %v695
      %775 = vst.msk [vmem:[%s201 + $0xa8] sm:$0xff] %vm753, %v700
      %776 = vst.msk [vmem:[%s201 + $0xb0] sm:$0xff] %vm753, %v705
      %777 = vst.msk [vmem:[%s201 + $0xb8] sm:$0xff] %vm753, %v710
      %778 = vst.msk [vmem:[%s201 + $0xc0] sm:$0xff] %vm753, %v715
      %779 = vst.msk [vmem:[%s201 + $0xc8] sm:$0xff] %vm753, %v720
      %780 = vst.msk [vmem:[%s201 + $0xd0] sm:$0xff] %vm753, %v725
      %781 = vst.msk [vmem:[%s201 + $0xd8] sm:$0xff] %vm753, %v730
      %782 = vst.msk [vmem:[%s201 + $0xe0] sm:$0xff] %vm753, %v735
      %783 = vst.msk [vmem:[%s201 + $0xe8] sm:$0xff] %vm753, %v740
      %784 = vst.msk [vmem:[%s201 + $0xf0] sm:$0xff] %vm753, %v745
      %785 = vst.msk [vmem:[%s201 + $0xf8] sm:$0xff] %vm753, %v750
      %s786 = smul.u32 32, %s18
      %p787 = scmp.lt.s32.totalorder %s17, 1
      %s788 = scalar_select %p787, %s17, 1
      %p789 = scmp.lt.s32.totalorder %s786, 31
      %s790 = scalar_select %p789, %s786, 31
      %s791 = smul.addr %s788, 32
      %s792 = sadd.s32 %s790, %s791
      %s793 = smul.addr %s792, 8
      %s794 = scalar_lea.vmem %s2, %s793
      // Predicated region
      $region29: #{encoder_forward_impl.41} parent=27 // pred_check
        %p795 = pneg %p99
      $region30: #{encoder_forward_impl.41} parent=27 // pred_check_branch
        %797 = sbr.rel (%p795) target = $region32
      $region31: #{encoder_forward_impl.41} parent=27 // pred_region
        %s798 = smul.u32 32, %s18
      $region32: #{encoder_forward_impl.41} parent=27 // pred_fallthru
        _
    $region28: #{encoder_forward_impl.41} parent=5 // pred_fallthru
      _
    %p799 = scmp.le.s32.totalorder 2, %s8
    // Predicated region
    $region33: #{encoder_forward_impl.41} parent=5 // pred_check
      %p800 = pneg %p799
    $region34: #{encoder_forward_impl.41} parent=5 // pred_check_branch
      %802 = sbr.rel (%p800) target = $region36
    $region35: #{encoder_forward_impl.41} parent=5 // pred_region
      %s803 = ssub.s32 %s8, 2
      // Predicated region
      $region37: #{encoder_forward_impl.41} parent=35 // pred_check
        %p804 = pneg %p105
      $region38: #{encoder_forward_impl.41} parent=35 // pred_check_branch
        %806 = sbr.rel (%p804) target = $region40
      $region39: #{encoder_forward_impl.41} parent=35 // pred_region
        %s807 = smul.u32 32, %s20
        %p808 = scmp.lt.s32.totalorder %s19, 1
        %s809 = scalar_select %p808, %s19, 1
        %p810 = scmp.lt.s32.totalorder %s807, 31
        %s811 = scalar_select %p810, %s807, 31
        %s812 = smul.addr %s809, 32
        %s813 = sadd.s32 %s811, %s812
        %s814 = smul.addr %s813, 8
        %s815 = scalar_lea.vmem %s2, %s814
      $region40: #{encoder_forward_impl.41} parent=35 // pred_fallthru
        _
    $region36: #{encoder_forward_impl.41} parent=5 // pred_fallthru
      _
  $region6: #{encoder_forward_impl.41} parent=0 // loop_footer
    %s12 = sadd.s32 1, %s8
  $region7: #{encoder_forward_impl.41} parent=0 // loop_footer_branch
    %7 = sbr.rel target = $region3
  $region8: #{encoder_forward_impl.41} parent=0 // loop_exit
    _

</llo_original>
